<compile_context>
chip_gen: v7x
topology: tpu7x:2x2x1
jax: 0.10.0
libtpu: 0.0.40
codegen_flags: <defaults>
</compile_context>

<pallas_src>
import jax
import jax.numpy as jnp
from jax.experimental import pallas as pl
from jax.experimental.pallas import tpu as pltpu


# ---------------------------------------------------------------------------
# Kernel
# ---------------------------------------------------------------------------
def _transe_kernel(gamma_ref, head_ref, rel_ref, tail_ref, out_ref):
    # Upcast (no-op for f32 inputs; required on v5e for bf16), VPU elementwise,
    # XLU lane reduction.  gamma comes from SMEM at runtime.
    h = head_ref[...].astype(jnp.float32)
    r = rel_ref[...].astype(jnp.float32)
    t = tail_ref[...].astype(jnp.float32)
    l1 = jnp.sum(jnp.abs(h + r - t), axis=-1)            # (tile_e,)
    # Lane-dense store: one (1, 1, tile_e) row per grid step (full-width vst).
    out_ref[...] = (gamma_ref[0, 0] - l1)[None, None, :]


# ---------------------------------------------------------------------------
# Per-generation configuration / tile selection
# ---------------------------------------------------------------------------
_LANE = 128
_MAX_TILE_E = 32768   # sanity cap only; the VMEM budget is the real limiter

# generation -> (vmem_budget_bytes_for_tiling, vmem_limit_bytes, core_parallel)
_GEN_CONFIG = {
    "v5e": (24 << 20, 32 << 20, False),   # scoped default is 16 MiB -> must raise
    "v6e": (44 << 20, 64 << 20, False),   # 128 MiB physical, plenty of headroom
    "v7x": (36 << 20, 48 << 20, True),    # only 64 MiB physical per TC; 2 TCs
    "unknown": (24 << 20, 32 << 20, False),
}


def _generation():
    try:
        kind = jax.devices()[0].device_kind.lower()
    except Exception:
        return "unknown"
    if "v7" in kind or "7x" in kind:
        return "v7x"
    if "v6" in kind:
        return "v6e"
    if "v5" in kind:
        return "v5e"
    return "unknown"


def _normalize_tile(tile_e, E):
    """Clamp to E or round down to a multiple of 128 (lane-aligned rows)."""
    tile_e = int(tile_e)
    if tile_e >= E:
        return E
    tile_e = max(_LANE, (tile_e // _LANE) * _LANE)
    if tile_e >= E:
        return E
    return tile_e


def _pick_tile_e(E, D, itemsize, budget_bytes):
    # Live VMEM per edge row (conservative):
    #   3 streams x 2 pipeline buffers (native dtype)
    # + ~3 full-width f32 temporaries (upcast / h+r-t / abs)
    # + double-buffered lane-dense output (8 padded sublanes x f32 x 2 buffers)
    per_row = 3 * D * itemsize * 2 + 3 * D * 4 + 64
    tile = budget_bytes // per_row
    tile = min(tile, _MAX_TILE_E)
    return _normalize_tile(tile, E)


# ---------------------------------------------------------------------------
# Wrapper
# ---------------------------------------------------------------------------
def transe_score(head, rel, tail, gamma, *, tile_e=None, core_parallel=None,
                 vmem_limit_bytes=None):
    """score = gamma - ||head + rel - tail||_1 along the hidden dim.

    Returns an (E,) f32 array.  Callers should store / pass the embedding
    streams in bf16 where possible: the kernel is purely HBM-bound, so halving
    input bytes is ~2x end-to-end; accumulation stays f32 inside the kernel.
    """
    assert head.shape == rel.shape == tail.shape
    assert head.dtype == rel.dtype == tail.dtype
    E, D = head.shape
    itemsize = jnp.dtype(head.dtype).itemsize

    budget_bytes, gen_vmem_limit, gen_core_parallel = _GEN_CONFIG[_generation()]
    if vmem_limit_bytes is None:
        vmem_limit_bytes = gen_vmem_limit
    if core_parallel is None:
        core_parallel = gen_core_parallel

    if tile_e is None:
        tile_e = _pick_tile_e(E, D, itemsize, budget_bytes)
    else:
        tile_e = _normalize_tile(tile_e, E)

    num_blocks = pl.cdiv(E, tile_e)           # ragged tail handled below

    # Inputs: (tile_e, D) blocks streaming over the edge axis, D untiled.
    # Double-buffering (default) + large blocks; deeper Buffered(n) is not
    # worth the VMEM here (compute per step is negligible).
    emb_spec = pl.BlockSpec((tile_e, D), lambda i: (i, 0))
    # Output: lane-dense (1, 1, tile_e) row per block into (num_blocks, 1, tile_e).
    out_spec = pl.BlockSpec((1, 1, tile_e), lambda i: (i, 0, 0))
    # gamma: runtime scalar in SMEM -> compile once across gamma sweeps.
    gamma_spec = pl.BlockSpec(memory_space=pltpu.MemorySpace.SMEM)

    gamma_arr = jnp.asarray(gamma, dtype=jnp.float32).reshape(1, 1)

    # v7x: split the (long) edge grid across both TensorCores; elsewhere plain
    # "parallel" (codegen-neutral on single-TC chips).  Fall back gracefully if
    # the enum is unavailable in the running JAX version.
    if core_parallel:
        dim_sem = (getattr(pltpu, "CORE_PARALLEL", "parallel"),)
    else:
        dim_sem = ("parallel",)

    cost = pl.CostEstimate(
        flops=3 * E * D,                       # add + sub + abs per element
        transcendentals=0,
        bytes_accessed=3 * E * D * itemsize + 4 * E + 4,
    )

    out = pl.pallas_call(
        _transe_kernel,
        out_shape=jax.ShapeDtypeStruct((num_blocks, 1, tile_e), jnp.float32),
        grid_spec=pltpu.PrefetchScalarGridSpec(
            num_scalar_prefetch=0,
            grid=(num_blocks,),
            in_specs=[gamma_spec, emb_spec, emb_spec, emb_spec],
            out_specs=out_spec,
        ),
        compiler_params=pltpu.CompilerParams(
            dimension_semantics=dim_sem,
            vmem_limit_bytes=vmem_limit_bytes,
        ),
        cost_estimate=cost,
    )(gamma_arr, head, rel, tail)

    # Flatten and drop the tail block's padded lanes (they hold garbage
    # computed from the unfilled part of the last input block).
    return out.reshape(num_blocks * tile_e)[:E]


# ---------------------------------------------------------------------------
# Demo / self-test
# ---------------------------------------------------------------------------
if __name__ == "__main__":
    # Small deterministic example. E deliberately not a multiple of 128 so the
    # ragged-tail / lane-slicing path is exercised.
    E, D = 1003, 128
    gamma = 12.0

    key = jax.random.PRNGKey(0)
    k_h, k_r, k_t = jax.random.split(key, 3)
    head = jax.random.normal(k_h, (E, D), dtype=jnp.float32)
    rel = jax.random.normal(k_r, (E, D), dtype=jnp.float32)
    tail = jax.random.normal(k_t, (E, D), dtype=jnp.float32)

    # Pure-JAX reference.
    ref = gamma - jnp.sum(jnp.abs(head + rel - tail), axis=-1)

    # 1) Auto-selected tile (single full block at this small E).
    s1 = jax.block_until_ready(transe_score(head, rel, tail, gamma))
    assert s1.shape == (E,)
    assert jnp.allclose(s1, ref, atol=1e-3, rtol=1e-5)

    # 2) Explicit small tile -> multi-step grid + ragged tail block whose
    #    padded lanes are sliced off by the wrapper.
    s2 = jax.block_until_ready(transe_score(head, rel, tail, gamma, tile_e=128))
    assert jnp.allclose(s2, ref, atol=1e-3, rtol=1e-5)

    # 3) bf16 inputs (half the HBM traffic), f32 math inside the kernel.
    s3 = jax.block_until_ready(
        transe_score(head.astype(jnp.bfloat16),
                     rel.astype(jnp.bfloat16),
                     tail.astype(jnp.bfloat16), gamma))
    assert jnp.allclose(s3, ref, atol=1.0, rtol=0.02)

    # TODO(synk): create_neg (batched L1 cdist for negative sampling) is not
    # part of forward(); it would be a separate tiled Pallas kernel if needed.
    print("KERNEL_OK")
</pallas_src>

<mosaic_0001>
module attributes {stable_mosaic.version = 11 : i64} {
  func.func @_transe_kernel(%arg0: i32, %arg1: memref<1x1xf32, #tpu.memory_space<smem>>, %arg2: memref<1003x128xf32, #tpu.memory_space<vmem>>, %arg3: memref<1003x128xf32, #tpu.memory_space<vmem>>, %arg4: memref<1003x128xf32, #tpu.memory_space<vmem>>, %arg5: memref<1x1x1003xf32, #tpu.memory_space<vmem>>) attributes {dimension_semantics = [#tpu.dimension_semantics<parallel>], iteration_bounds = array<i64: 1>, scalar_prefetch = 0 : i64, scratch_operands = 0 : i64, tpu.core_type = #tpu.core_type<tc>, window_params = [{transform_indices = @transform_0, window_bounds = array<i64: 1, 1>}, {transform_indices = @transform_1, window_bounds = array<i64: 1003, 128>}, {transform_indices = @transform_2, window_bounds = array<i64: 1003, 128>}, {transform_indices = @transform_3, window_bounds = array<i64: 1003, 128>}, {transform_indices = @transform_4, window_bounds = array<i64: 1, 1, 1003>}]} {
    %c0 = arith.constant 0 : index
    %c0_0 = arith.constant 0 : index
    %0 = vector.load %arg2[%c0, %c0_0] : memref<1003x128xf32, #tpu.memory_space<vmem>>, vector<1003x128xf32>
    %c0_1 = arith.constant 0 : index
    %c0_2 = arith.constant 0 : index
    %1 = vector.load %arg3[%c0_1, %c0_2] : memref<1003x128xf32, #tpu.memory_space<vmem>>, vector<1003x128xf32>
    %c0_3 = arith.constant 0 : index
    %c0_4 = arith.constant 0 : index
    %2 = vector.load %arg4[%c0_3, %c0_4] : memref<1003x128xf32, #tpu.memory_space<vmem>>, vector<1003x128xf32>
    %3 = arith.addf %0, %1 : vector<1003x128xf32>
    %4 = arith.subf %3, %2 : vector<1003x128xf32>
    %5 = math.absf %4 : vector<1003x128xf32>
    %cst = arith.constant dense<0.000000e+00> : vector<1003xf32>
    %6 = vector.multi_reduction <add>, %5, %cst [1] : vector<1003x128xf32> to vector<1003xf32>
    %c0_5 = arith.constant 0 : index
    %c0_6 = arith.constant 0 : index
    %7 = memref.load %arg1[%c0_5, %c0_6] : memref<1x1xf32, #tpu.memory_space<smem>>
    %8 = vector.broadcast %7 : f32 to vector<1003xf32>
    %9 = arith.subf %8, %6 : vector<1003xf32>
    %10 = vector.shape_cast %9 : vector<1003xf32> to vector<1x1x1003xf32>
    %c0_7 = arith.constant 0 : index
    %c0_8 = arith.constant 0 : index
    %c0_9 = arith.constant 0 : index
    %11 = vector.load %arg5[%c0_7, %c0_8, %c0_9] : memref<1x1x1003xf32, #tpu.memory_space<vmem>>, vector<1x1x1003xf32>
    tpu.vector_store %arg5[%c0_7, %c0_8, %c0_9], %10 {strides = array<i32>} : memref<1x1x1003xf32, #tpu.memory_space<vmem>>, vector<1x1x1003xf32>,
    return
  }
  func.func @transform_0(%arg0: i32) -> (i32, i32) {
    %c0_i32 = arith.constant 0 : i32
    %c0_i32_0 = arith.constant 0 : i32
    %c0_i32_1 = arith.constant 0 : i32
    return %c0_i32, %c0_i32_0 : i32, i32
  }
  func.func @transform_1(%arg0: i32) -> (i32, i32) {
    %c0_i32 = arith.constant 0 : i32
    %c0_i32_0 = arith.constant 0 : i32
    return %arg0, %c0_i32 : i32, i32
  }
  func.func @transform_2(%arg0: i32) -> (i32, i32) {
    %c0_i32 = arith.constant 0 : i32
    %c0_i32_0 = arith.constant 0 : i32
    return %arg0, %c0_i32 : i32, i32
  }
  func.func @transform_3(%arg0: i32) -> (i32, i32) {
    %c0_i32 = arith.constant 0 : i32
    %c0_i32_0 = arith.constant 0 : i32
    return %arg0, %c0_i32 : i32, i32
  }
  func.func @transform_4(%arg0: i32) -> (i32, i32, i32) {
    %c0_i32 = arith.constant 0 : i32
    %c0_i32_0 = arith.constant 0 : i32
    %c0_i32_1 = arith.constant 0 : i32
    return %arg0, %c0_i32, %c0_i32_0 : i32, i32, i32
  }
}

</mosaic_0001>

<llo_original>
// kernel: tpu_custom_call.1
$region0: #{tpu_custom_call.1}
  #allocation0 [shape = 'u32[]', space=smem, size = 0x4, offset = 0x4, fixed_abs, tag = 'smem constant byte address 0x4 - core index']
  #allocation1 [shape = 'u32[144,128]{1,0:T(1,128)}', space=vmem, size = 0x12000, scoped, tag = 'internal scratch']
  #allocation2 [shape = 'f32[1,1]{1,0:T(1,128)S(6)}', space=smem, size = 0x200, scoped, tag = 'scoped memory for tpu_custom_call.1']
  %s0 = inlined_call_operand.<no memory space> [shape: f32[1,1], index: 0, kind: input, shape index: {}]
  %s1 = inlined_call_operand.hbm [shape: f32[1003,128], index: 1, kind: input, shape index: {}]
  %s2 = inlined_call_operand.hbm [shape: f32[1003,128], index: 2, kind: input, shape index: {}]
  %s3 = inlined_call_operand.hbm [shape: f32[1003,128], index: 3, kind: input, shape index: {}]
  %s4 = inlined_call_operand.hbm [shape: f32[1,1,1003], index: 4, kind: output, shape index: {}]
  %s5 = sld [smem:[#allocation0]]
  $region38: #{tpu_custom_call.1} parent=0
    _
  %s7 = ssub.s32 1, %s5
  %s8 = scalar_select 0, %s7, %s5
  %9 = sst [smem:[#allocation2]] %s0
  $region1: #{tpu_custom_call.1} parent=0
    #allocation3 [shape = 'u8[516096]{0}', space=vmem, size = 0x7e000, scoped, tag = 'input window, operand 1, single buffered']
    #allocation4 [shape = 's32[1]{0}', space=sflag, size = 0x4, scoped, tag = 'scoped memory for tpu_custom_call.1']
    #allocation5 [shape = 's32[1]{0}', space=sflag, size = 0x4, scoped, tag = 'scoped memory for tpu_custom_call.1']
    #allocation6 [shape = 'u8[516096]{0}', space=vmem, size = 0x7e000, scoped, tag = 'input window, operand 2, single buffered']
    #allocation7 [shape = 's32[1]{0}', space=sflag, size = 0x4, scoped, tag = 'scoped memory for tpu_custom_call.1']
    #allocation8 [shape = 'u8[516096]{0}', space=vmem, size = 0x7e000, scoped, tag = 'input window, operand 3, single buffered']
    #allocation9 [shape = 'u8[4096]{0}', space=vmem, size = 0x1000, scoped, tag = 'output window, operand 0, single buffered']
    %10 = vsyncpa [#allocation4], 0
    %11 = vsyncpa [#allocation7], 0
    %12 = vsyncpa [#allocation5], 0
    // Predicated region
    $region2: #{tpu_custom_call.1} parent=1 // pred_check
      _
    $region3: #{tpu_custom_call.1} parent=1 // pred_check_branch
      %14 = sbr.rel (0) target = $region5
    $region4: #{tpu_custom_call.1} parent=1 // pred_region
      _
    $region5: #{tpu_custom_call.1} parent=1 // pred_fallthru
      _
    // Predicated region
    $region6: #{tpu_custom_call.1} parent=1 // pred_check
      _
    $region7: #{tpu_custom_call.1} parent=1 // pred_check_branch
      %16 = sbr.rel (0) target = $region9
    $region8: #{tpu_custom_call.1} parent=1 // pred_region
      %s18 = ssub.s32 16128, 16128
      %19 = vsyncadd [#allocation4], %s18
      %s20 = sshll.u32 [#allocation3], 4
      %s21 = int_to_ptr.vmem [resolvable:$true] %s20
      %26 = dma.hbm_to_vmem [thread:$0]  %s1, 16128, %s21, [#allocation4], 128, 128, 8
    $region9: #{tpu_custom_call.1} parent=1 // pred_fallthru
      _
    // Predicated region
    $region10: #{tpu_custom_call.1} parent=1 // pred_check
      _
    $region11: #{tpu_custom_call.1} parent=1 // pred_check_branch
      %28 = sbr.rel (0) target = $region13
    $region12: #{tpu_custom_call.1} parent=1 // pred_region
      %s30 = ssub.s32 16128, 16128
      %31 = vsyncadd [#allocation7], %s30
      %s32 = sshll.u32 [#allocation6], 4
      %s33 = int_to_ptr.vmem [resolvable:$true] %s32
      %38 = dma.hbm_to_vmem [thread:$0]  %s2, 16128, %s33, [#allocation7], 128, 128, 8
    $region13: #{tpu_custom_call.1} parent=1 // pred_fallthru
      _
    // Predicated region
    $region14: #{tpu_custom_call.1} parent=1 // pred_check
      _
    $region15: #{tpu_custom_call.1} parent=1 // pred_check_branch
      %40 = sbr.rel (0) target = $region17
    $region16: #{tpu_custom_call.1} parent=1 // pred_region
      %s42 = ssub.s32 16128, 16128
      %43 = vsyncadd [#allocation7], %s42
      %s44 = sshll.u32 [#allocation8], 4
      %s45 = int_to_ptr.vmem [resolvable:$true] %s44
      %50 = dma.hbm_to_vmem [thread:$0]  %s3, 16128, %s45, [#allocation7], 128, 128, 8
    $region17: #{tpu_custom_call.1} parent=1 // pred_fallthru
      _
    // Predicated region
    $region18: #{tpu_custom_call.1} parent=1 // pred_check
      _
    $region19: #{tpu_custom_call.1} parent=1 // pred_check_branch
      %52 = sbr.rel (0) target = $region21
    $region20: #{tpu_custom_call.1} parent=1 // pred_region
      %53 = dma.done [#allocation4], 16128
    $region21: #{tpu_custom_call.1} parent=1 // pred_fallthru
      _
    // Predicated region
    $region22: #{tpu_custom_call.1} parent=1 // pred_check
      _
    $region23: #{tpu_custom_call.1} parent=1 // pred_check_branch
      %55 = sbr.rel (0) target = $region25
    $region24: #{tpu_custom_call.1} parent=1 // pred_region
      %56 = dma.done [#allocation7], 16128
    $region25: #{tpu_custom_call.1} parent=1 // pred_fallthru
      _
    // Predicated region
    $region26: #{tpu_custom_call.1} parent=1 // pred_check
      _
    $region27: #{tpu_custom_call.1} parent=1 // pred_check_branch
      %58 = sbr.rel (0) target = $region29
    $region28: #{tpu_custom_call.1} parent=1 // pred_region
      %59 = dma.done [#allocation7], 16128
    $region29: #{tpu_custom_call.1} parent=1 // pred_fallthru
      _
    %v60 = vld [vmem:[#allocation3] sm:$0xff]
    %v61 = vld [vmem:[#allocation3 + $0x8] sm:$0xff]
    %v62 = vld [vmem:[#allocation3 + $0x10] sm:$0xff]
    %v63 = vld [vmem:[#allocation3 + $0x18] sm:$0xff]
    %v64 = vld [vmem:[#allocation3 + $0x20] sm:$0xff]
    %v65 = vld [vmem:[#allocation3 + $0x28] sm:$0xff]
    %v66 = vld [vmem:[#allocation3 + $0x30] sm:$0xff]
    %v67 = vld [vmem:[#allocation3 + $0x38] sm:$0xff]
    %v68 = vld [vmem:[#allocation3 + $0x40] sm:$0xff]
    %v69 = vld [vmem:[#allocation3 + $0x48] sm:$0xff]
    %v70 = vld [vmem:[#allocation3 + $0x50] sm:$0xff]
    %v71 = vld [vmem:[#allocation3 + $0x58] sm:$0xff]
    %v72 = vld [vmem:[#allocation3 + $0x60] sm:$0xff]
    %v73 = vld [vmem:[#allocation3 + $0x68] sm:$0xff]
    %v74 = vld [vmem:[#allocation3 + $0x70] sm:$0xff]
    %v75 = vld [vmem:[#allocation3 + $0x78] sm:$0xff]
    %v76 = vld [vmem:[#allocation3 + $0x80] sm:$0xff]
    %v77 = vld [vmem:[#allocation3 + $0x88] sm:$0xff]
    %v78 = vld [vmem:[#allocation3 + $0x90] sm:$0xff]
    %v79 = vld [vmem:[#allocation3 + $0x98] sm:$0xff]
    %v80 = vld [vmem:[#allocation3 + $0xa0] sm:$0xff]
    %v81 = vld [vmem:[#allocation3 + $0xa8] sm:$0xff]
    %v82 = vld [vmem:[#allocation3 + $0xb0] sm:$0xff]
    %v83 = vld [vmem:[#allocation3 + $0xb8] sm:$0xff]
    %v84 = vld [vmem:[#allocation3 + $0xc0] sm:$0xff]
    %v85 = vld [vmem:[#allocation3 + $0xc8] sm:$0xff]
    %v86 = vld [vmem:[#allocation3 + $0xd0] sm:$0xff]
    %v87 = vld [vmem:[#allocation3 + $0xd8] sm:$0xff]
    %v88 = vld [vmem:[#allocation3 + $0xe0] sm:$0xff]
    %v89 = vld [vmem:[#allocation3 + $0xe8] sm:$0xff]
    %v90 = vld [vmem:[#allocation3 + $0xf0] sm:$0xff]
    %v91 = vld [vmem:[#allocation3 + $0xf8] sm:$0xff]
    %v92 = vld [vmem:[#allocation3 + $0x100] sm:$0xff]
    %v93 = vld [vmem:[#allocation3 + $0x108] sm:$0xff]
    %v94 = vld [vmem:[#allocation3 + $0x110] sm:$0xff]
    %v95 = vld [vmem:[#allocation3 + $0x118] sm:$0xff]
    %v96 = vld [vmem:[#allocation3 + $0x120] sm:$0xff]
    %v97 = vld [vmem:[#allocation3 + $0x128] sm:$0xff]
    %v98 = vld [vmem:[#allocation3 + $0x130] sm:$0xff]
    %v99 = vld [vmem:[#allocation3 + $0x138] sm:$0xff]
    %v100 = vld [vmem:[#allocation3 + $0x140] sm:$0xff]
    %v101 = vld [vmem:[#allocation3 + $0x148] sm:$0xff]
    %v102 = vld [vmem:[#allocation3 + $0x150] sm:$0xff]
    %v103 = vld [vmem:[#allocation3 + $0x158] sm:$0xff]
    %v104 = vld [vmem:[#allocation3 + $0x160] sm:$0xff]
    %v105 = vld [vmem:[#allocation3 + $0x168] sm:$0xff]
    %v106 = vld [vmem:[#allocation3 + $0x170] sm:$0xff]
    %v107 = vld [vmem:[#allocation3 + $0x178] sm:$0xff]
    %v108 = vld [vmem:[#allocation3 + $0x180] sm:$0xff]
    %v109 = vld [vmem:[#allocation3 + $0x188] sm:$0xff]
    %v110 = vld [vmem:[#allocation3 + $0x190] sm:$0xff]
    %v111 = vld [vmem:[#allocation3 + $0x198] sm:$0xff]
    %v112 = vld [vmem:[#allocation3 + $0x1a0] sm:$0xff]
    %v113 = vld [vmem:[#allocation3 + $0x1a8] sm:$0xff]
    %v114 = vld [vmem:[#allocation3 + $0x1b0] sm:$0xff]
    %v115 = vld [vmem:[#allocation3 + $0x1b8] sm:$0xff]
    %v116 = vld [vmem:[#allocation3 + $0x1c0] sm:$0xff]
    %v117 = vld [vmem:[#allocation3 + $0x1c8] sm:$0xff]
    %v118 = vld [vmem:[#allocation3 + $0x1d0] sm:$0xff]
    %v119 = vld [vmem:[#allocation3 + $0x1d8] sm:$0xff]
    %v120 = vld [vmem:[#allocation3 + $0x1e0] sm:$0xff]
    %v121 = vld [vmem:[#allocation3 + $0x1e8] sm:$0xff]
    %v122 = vld [vmem:[#allocation3 + $0x1f0] sm:$0xff]
    %v123 = vld [vmem:[#allocation3 + $0x1f8] sm:$0xff]
    %v124 = vld [vmem:[#allocation3 + $0x200] sm:$0xff]
    %v125 = vld [vmem:[#allocation3 + $0x208] sm:$0xff]
    %v126 = vld [vmem:[#allocation3 + $0x210] sm:$0xff]
    %v127 = vld [vmem:[#allocation3 + $0x218] sm:$0xff]
    %v128 = vld [vmem:[#allocation3 + $0x220] sm:$0xff]
    %v129 = vld [vmem:[#allocation3 + $0x228] sm:$0xff]
    %v130 = vld [vmem:[#allocation3 + $0x230] sm:$0xff]
    %v131 = vld [vmem:[#allocation3 + $0x238] sm:$0xff]
    %v132 = vld [vmem:[#allocation3 + $0x240] sm:$0xff]
    %v133 = vld [vmem:[#allocation3 + $0x248] sm:$0xff]
    %v134 = vld [vmem:[#allocation3 + $0x250] sm:$0xff]
    %v135 = vld [vmem:[#allocation3 + $0x258] sm:$0xff]
    %v136 = vld [vmem:[#allocation3 + $0x260] sm:$0xff]
    %v137 = vld [vmem:[#allocation3 + $0x268] sm:$0xff]
    %v138 = vld [vmem:[#allocation3 + $0x270] sm:$0xff]
    %v139 = vld [vmem:[#allocation3 + $0x278] sm:$0xff]
    %v140 = vld [vmem:[#allocation3 + $0x280] sm:$0xff]
    %v141 = vld [vmem:[#allocation3 + $0x288] sm:$0xff]
    %v142 = vld [vmem:[#allocation3 + $0x290] sm:$0xff]
    %v143 = vld [vmem:[#allocation3 + $0x298] sm:$0xff]
    %v144 = vld [vmem:[#allocation3 + $0x2a0] sm:$0xff]
    %v145 = vld [vmem:[#allocation3 + $0x2a8] sm:$0xff]
    %v146 = vld [vmem:[#allocation3 + $0x2b0] sm:$0xff]
    %v147 = vld [vmem:[#allocation3 + $0x2b8] sm:$0xff]
    %v148 = vld [vmem:[#allocation3 + $0x2c0] sm:$0xff]
    %v149 = vld [vmem:[#allocation3 + $0x2c8] sm:$0xff]
    %v150 = vld [vmem:[#allocation3 + $0x2d0] sm:$0xff]
    %v151 = vld [vmem:[#allocation3 + $0x2d8] sm:$0xff]
    %v152 = vld [vmem:[#allocation3 + $0x2e0] sm:$0xff]
    %v153 = vld [vmem:[#allocation3 + $0x2e8] sm:$0xff]
    %v154 = vld [vmem:[#allocation3 + $0x2f0] sm:$0xff]
    %v155 = vld [vmem:[#allocation3 + $0x2f8] sm:$0xff]
    %v156 = vld [vmem:[#allocation3 + $0x300] sm:$0xff]
    %v157 = vld [vmem:[#allocation3 + $0x308] sm:$0xff]
    %v158 = vld [vmem:[#allocation3 + $0x310] sm:$0xff]
    %v159 = vld [vmem:[#allocation3 + $0x318] sm:$0xff]
    %v160 = vld [vmem:[#allocation3 + $0x320] sm:$0xff]
    %v161 = vld [vmem:[#allocation3 + $0x328] sm:$0xff]
    %v162 = vld [vmem:[#allocation3 + $0x330] sm:$0xff]
    %v163 = vld [vmem:[#allocation3 + $0x338] sm:$0xff]
    %v164 = vld [vmem:[#allocation3 + $0x340] sm:$0xff]
    %v165 = vld [vmem:[#allocation3 + $0x348] sm:$0xff]
    %v166 = vld [vmem:[#allocation3 + $0x350] sm:$0xff]
    %v167 = vld [vmem:[#allocation3 + $0x358] sm:$0xff]
    %v168 = vld [vmem:[#allocation3 + $0x360] sm:$0xff]
    %v169 = vld [vmem:[#allocation3 + $0x368] sm:$0xff]
    %v170 = vld [vmem:[#allocation3 + $0x370] sm:$0xff]
    %v171 = vld [vmem:[#allocation3 + $0x378] sm:$0xff]
    %v172 = vld [vmem:[#allocation3 + $0x380] sm:$0xff]
    %v173 = vld [vmem:[#allocation3 + $0x388] sm:$0xff]
    %v174 = vld [vmem:[#allocation3 + $0x390] sm:$0xff]
    %v175 = vld [vmem:[#allocation3 + $0x398] sm:$0xff]
    %v176 = vld [vmem:[#allocation3 + $0x3a0] sm:$0xff]
    %v177 = vld [vmem:[#allocation3 + $0x3a8] sm:$0xff]
    %v178 = vld [vmem:[#allocation3 + $0x3b0] sm:$0xff]
    %v179 = vld [vmem:[#allocation3 + $0x3b8] sm:$0xff]
    %v180 = vld [vmem:[#allocation3 + $0x3c0] sm:$0xff]
    %v181 = vld [vmem:[#allocation3 + $0x3c8] sm:$0xff]
    %v182 = vld [vmem:[#allocation3 + $0x3d0] sm:$0xff]
    %v183 = vld [vmem:[#allocation3 + $0x3d8] sm:$0xff]
    %v184 = vld [vmem:[#allocation3 + $0x3e0] sm:$0xff]
    %v185 = vld [vmem:[#allocation3 + $0x3e8] sm:$0x7]
    %v186 = vld [vmem:[#allocation6] sm:$0xff]
    %v187 = vld [vmem:[#allocation6 + $0x8] sm:$0xff]
    %v188 = vld [vmem:[#allocation6 + $0x10] sm:$0xff]
    %v189 = vld [vmem:[#allocation6 + $0x18] sm:$0xff]
    %v190 = vld [vmem:[#allocation6 + $0x20] sm:$0xff]
    %v191 = vld [vmem:[#allocation6 + $0x28] sm:$0xff]
    %v192 = vld [vmem:[#allocation6 + $0x30] sm:$0xff]
    %v193 = vld [vmem:[#allocation6 + $0x38] sm:$0xff]
    %v194 = vld [vmem:[#allocation6 + $0x40] sm:$0xff]
    %v195 = vld [vmem:[#allocation6 + $0x48] sm:$0xff]
    %v196 = vld [vmem:[#allocation6 + $0x50] sm:$0xff]
    %v197 = vld [vmem:[#allocation6 + $0x58] sm:$0xff]
    %v198 = vld [vmem:[#allocation6 + $0x60] sm:$0xff]
    %v199 = vld [vmem:[#allocation6 + $0x68] sm:$0xff]
    %v200 = vld [vmem:[#allocation6 + $0x70] sm:$0xff]
    %v201 = vld [vmem:[#allocation6 + $0x78] sm:$0xff]
    %v202 = vld [vmem:[#allocation6 + $0x80] sm:$0xff]
    %v203 = vld [vmem:[#allocation6 + $0x88] sm:$0xff]
    %v204 = vld [vmem:[#allocation6 + $0x90] sm:$0xff]
    %v205 = vld [vmem:[#allocation6 + $0x98] sm:$0xff]
    %v206 = vld [vmem:[#allocation6 + $0xa0] sm:$0xff]
    %v207 = vld [vmem:[#allocation6 + $0xa8] sm:$0xff]
    %v208 = vld [vmem:[#allocation6 + $0xb0] sm:$0xff]
    %v209 = vld [vmem:[#allocation6 + $0xb8] sm:$0xff]
    %v210 = vld [vmem:[#allocation6 + $0xc0] sm:$0xff]
    %v211 = vld [vmem:[#allocation6 + $0xc8] sm:$0xff]
    %v212 = vld [vmem:[#allocation6 + $0xd0] sm:$0xff]
    %v213 = vld [vmem:[#allocation6 + $0xd8] sm:$0xff]
    %v214 = vld [vmem:[#allocation6 + $0xe0] sm:$0xff]
    %v215 = vld [vmem:[#allocation6 + $0xe8] sm:$0xff]
    %v216 = vld [vmem:[#allocation6 + $0xf0] sm:$0xff]
    %v217 = vld [vmem:[#allocation6 + $0xf8] sm:$0xff]
    %v218 = vld [vmem:[#allocation6 + $0x100] sm:$0xff]
    %v219 = vld [vmem:[#allocation6 + $0x108] sm:$0xff]
    %v220 = vld [vmem:[#allocation6 + $0x110] sm:$0xff]
    %v221 = vld [vmem:[#allocation6 + $0x118] sm:$0xff]
    %v222 = vld [vmem:[#allocation6 + $0x120] sm:$0xff]
    %v223 = vld [vmem:[#allocation6 + $0x128] sm:$0xff]
    %v224 = vld [vmem:[#allocation6 + $0x130] sm:$0xff]
    %v225 = vld [vmem:[#allocation6 + $0x138] sm:$0xff]
    %v226 = vld [vmem:[#allocation6 + $0x140] sm:$0xff]
    %v227 = vld [vmem:[#allocation6 + $0x148] sm:$0xff]
    %v228 = vld [vmem:[#allocation6 + $0x150] sm:$0xff]
    %v229 = vld [vmem:[#allocation6 + $0x158] sm:$0xff]
    %v230 = vld [vmem:[#allocation6 + $0x160] sm:$0xff]
    %v231 = vld [vmem:[#allocation6 + $0x168] sm:$0xff]
    %v232 = vld [vmem:[#allocation6 + $0x170] sm:$0xff]
    %v233 = vld [vmem:[#allocation6 + $0x178] sm:$0xff]
    %v234 = vld [vmem:[#allocation6 + $0x180] sm:$0xff]
    %v235 = vld [vmem:[#allocation6 + $0x188] sm:$0xff]
    %v236 = vld [vmem:[#allocation6 + $0x190] sm:$0xff]
    %v237 = vld [vmem:[#allocation6 + $0x198] sm:$0xff]
    %v238 = vld [vmem:[#allocation6 + $0x1a0] sm:$0xff]
    %v239 = vld [vmem:[#allocation6 + $0x1a8] sm:$0xff]
    %v240 = vld [vmem:[#allocation6 + $0x1b0] sm:$0xff]
    %v241 = vld [vmem:[#allocation6 + $0x1b8] sm:$0xff]
    %v242 = vld [vmem:[#allocation6 + $0x1c0] sm:$0xff]
    %v243 = vld [vmem:[#allocation6 + $0x1c8] sm:$0xff]
    %v244 = vld [vmem:[#allocation6 + $0x1d0] sm:$0xff]
    %v245 = vld [vmem:[#allocation6 + $0x1d8] sm:$0xff]
    %v246 = vld [vmem:[#allocation6 + $0x1e0] sm:$0xff]
    %v247 = vld [vmem:[#allocation6 + $0x1e8] sm:$0xff]
    %v248 = vld [vmem:[#allocation6 + $0x1f0] sm:$0xff]
    %v249 = vld [vmem:[#allocation6 + $0x1f8] sm:$0xff]
    %v250 = vld [vmem:[#allocation6 + $0x200] sm:$0xff]
    %v251 = vld [vmem:[#allocation6 + $0x208] sm:$0xff]
    %v252 = vld [vmem:[#allocation6 + $0x210] sm:$0xff]
    %v253 = vld [vmem:[#allocation6 + $0x218] sm:$0xff]
    %v254 = vld [vmem:[#allocation6 + $0x220] sm:$0xff]
    %v255 = vld [vmem:[#allocation6 + $0x228] sm:$0xff]
    %v256 = vld [vmem:[#allocation6 + $0x230] sm:$0xff]
    %v257 = vld [vmem:[#allocation6 + $0x238] sm:$0xff]
    %v258 = vld [vmem:[#allocation6 + $0x240] sm:$0xff]
    %v259 = vld [vmem:[#allocation6 + $0x248] sm:$0xff]
    %v260 = vld [vmem:[#allocation6 + $0x250] sm:$0xff]
    %v261 = vld [vmem:[#allocation6 + $0x258] sm:$0xff]
    %v262 = vld [vmem:[#allocation6 + $0x260] sm:$0xff]
    %v263 = vld [vmem:[#allocation6 + $0x268] sm:$0xff]
    %v264 = vld [vmem:[#allocation6 + $0x270] sm:$0xff]
    %v265 = vld [vmem:[#allocation6 + $0x278] sm:$0xff]
    %v266 = vld [vmem:[#allocation6 + $0x280] sm:$0xff]
    %v267 = vld [vmem:[#allocation6 + $0x288] sm:$0xff]
    %v268 = vld [vmem:[#allocation6 + $0x290] sm:$0xff]
    %v269 = vld [vmem:[#allocation6 + $0x298] sm:$0xff]
    %v270 = vld [vmem:[#allocation6 + $0x2a0] sm:$0xff]
    %v271 = vld [vmem:[#allocation6 + $0x2a8] sm:$0xff]
    %v272 = vld [vmem:[#allocation6 + $0x2b0] sm:$0xff]
    %v273 = vld [vmem:[#allocation6 + $0x2b8] sm:$0xff]
    %v274 = vld [vmem:[#allocation6 + $0x2c0] sm:$0xff]
    %v275 = vld [vmem:[#allocation6 + $0x2c8] sm:$0xff]
    %v276 = vld [vmem:[#allocation6 + $0x2d0] sm:$0xff]
    %v277 = vld [vmem:[#allocation6 + $0x2d8] sm:$0xff]
    %v278 = vld [vmem:[#allocation6 + $0x2e0] sm:$0xff]
    %v279 = vld [vmem:[#allocation6 + $0x2e8] sm:$0xff]
    %v280 = vld [vmem:[#allocation6 + $0x2f0] sm:$0xff]
    %v281 = vld [vmem:[#allocation6 + $0x2f8] sm:$0xff]
    %v282 = vld [vmem:[#allocation6 + $0x300] sm:$0xff]
    %v283 = vld [vmem:[#allocation6 + $0x308] sm:$0xff]
    %v284 = vld [vmem:[#allocation6 + $0x310] sm:$0xff]
    %v285 = vld [vmem:[#allocation6 + $0x318] sm:$0xff]
    %v286 = vld [vmem:[#allocation6 + $0x320] sm:$0xff]
    %v287 = vld [vmem:[#allocation6 + $0x328] sm:$0xff]
    %v288 = vld [vmem:[#allocation6 + $0x330] sm:$0xff]
    %v289 = vld [vmem:[#allocation6 + $0x338] sm:$0xff]
    %v290 = vld [vmem:[#allocation6 + $0x340] sm:$0xff]
    %v291 = vld [vmem:[#allocation6 + $0x348] sm:$0xff]
    %v292 = vld [vmem:[#allocation6 + $0x350] sm:$0xff]
    %v293 = vld [vmem:[#allocation6 + $0x358] sm:$0xff]
    %v294 = vld [vmem:[#allocation6 + $0x360] sm:$0xff]
    %v295 = vld [vmem:[#allocation6 + $0x368] sm:$0xff]
    %v296 = vld [vmem:[#allocation6 + $0x370] sm:$0xff]
    %v297 = vld [vmem:[#allocation6 + $0x378] sm:$0xff]
    %v298 = vld [vmem:[#allocation6 + $0x380] sm:$0xff]
    %v299 = vld [vmem:[#allocation6 + $0x388] sm:$0xff]
    %v300 = vld [vmem:[#allocation6 + $0x390] sm:$0xff]
    %v301 = vld [vmem:[#allocation6 + $0x398] sm:$0xff]
    %v302 = vld [vmem:[#allocation6 + $0x3a0] sm:$0xff]
    %v303 = vld [vmem:[#allocation6 + $0x3a8] sm:$0xff]
    %v304 = vld [vmem:[#allocation6 + $0x3b0] sm:$0xff]
    %v305 = vld [vmem:[#allocation6 + $0x3b8] sm:$0xff]
    %v306 = vld [vmem:[#allocation6 + $0x3c0] sm:$0xff]
    %v307 = vld [vmem:[#allocation6 + $0x3c8] sm:$0xff]
    %v308 = vld [vmem:[#allocation6 + $0x3d0] sm:$0xff]
    %v309 = vld [vmem:[#allocation6 + $0x3d8] sm:$0xff]
    %v310 = vld [vmem:[#allocation6 + $0x3e0] sm:$0xff]
    %v311 = vld [vmem:[#allocation6 + $0x3e8] sm:$0x7]
    %v312 = vld [vmem:[#allocation8] sm:$0xff]
    %v313 = vld [vmem:[#allocation8 + $0x8] sm:$0xff]
    %v314 = vld [vmem:[#allocation8 + $0x10] sm:$0xff]
    %v315 = vld [vmem:[#allocation8 + $0x18] sm:$0xff]
    %v316 = vld [vmem:[#allocation8 + $0x20] sm:$0xff]
    %v317 = vld [vmem:[#allocation8 + $0x28] sm:$0xff]
    %v318 = vld [vmem:[#allocation8 + $0x30] sm:$0xff]
    %v319 = vld [vmem:[#allocation8 + $0x38] sm:$0xff]
    %v320 = vld [vmem:[#allocation8 + $0x40] sm:$0xff]
    %v321 = vld [vmem:[#allocation8 + $0x48] sm:$0xff]
    %v322 = vld [vmem:[#allocation8 + $0x50] sm:$0xff]
    %v323 = vld [vmem:[#allocation8 + $0x58] sm:$0xff]
    %v324 = vld [vmem:[#allocation8 + $0x60] sm:$0xff]
    %v325 = vld [vmem:[#allocation8 + $0x68] sm:$0xff]
    %v326 = vld [vmem:[#allocation8 + $0x70] sm:$0xff]
    %v327 = vld [vmem:[#allocation8 + $0x78] sm:$0xff]
    %v328 = vld [vmem:[#allocation8 + $0x80] sm:$0xff]
    %v329 = vld [vmem:[#allocation8 + $0x88] sm:$0xff]
    %v330 = vld [vmem:[#allocation8 + $0x90] sm:$0xff]
    %v331 = vld [vmem:[#allocation8 + $0x98] sm:$0xff]
    %v332 = vld [vmem:[#allocation8 + $0xa0] sm:$0xff]
    %v333 = vld [vmem:[#allocation8 + $0xa8] sm:$0xff]
    %v334 = vld [vmem:[#allocation8 + $0xb0] sm:$0xff]
    %v335 = vld [vmem:[#allocation8 + $0xb8] sm:$0xff]
    %v336 = vld [vmem:[#allocation8 + $0xc0] sm:$0xff]
    %v337 = vld [vmem:[#allocation8 + $0xc8] sm:$0xff]
    %v338 = vld [vmem:[#allocation8 + $0xd0] sm:$0xff]
    %v339 = vld [vmem:[#allocation8 + $0xd8] sm:$0xff]
    %v340 = vld [vmem:[#allocation8 + $0xe0] sm:$0xff]
    %v341 = vld [vmem:[#allocation8 + $0xe8] sm:$0xff]
    %v342 = vld [vmem:[#allocation8 + $0xf0] sm:$0xff]
    %v343 = vld [vmem:[#allocation8 + $0xf8] sm:$0xff]
    %v344 = vld [vmem:[#allocation8 + $0x100] sm:$0xff]
    %v345 = vld [vmem:[#allocation8 + $0x108] sm:$0xff]
    %v346 = vld [vmem:[#allocation8 + $0x110] sm:$0xff]
    %v347 = vld [vmem:[#allocation8 + $0x118] sm:$0xff]
    %v348 = vld [vmem:[#allocation8 + $0x120] sm:$0xff]
    %v349 = vld [vmem:[#allocation8 + $0x128] sm:$0xff]
    %v350 = vld [vmem:[#allocation8 + $0x130] sm:$0xff]
    %v351 = vld [vmem:[#allocation8 + $0x138] sm:$0xff]
    %v352 = vld [vmem:[#allocation8 + $0x140] sm:$0xff]
    %v353 = vld [vmem:[#allocation8 + $0x148] sm:$0xff]
    %v354 = vld [vmem:[#allocation8 + $0x150] sm:$0xff]
    %v355 = vld [vmem:[#allocation8 + $0x158] sm:$0xff]
    %v356 = vld [vmem:[#allocation8 + $0x160] sm:$0xff]
    %v357 = vld [vmem:[#allocation8 + $0x168] sm:$0xff]
    %v358 = vld [vmem:[#allocation8 + $0x170] sm:$0xff]
    %v359 = vld [vmem:[#allocation8 + $0x178] sm:$0xff]
    %v360 = vld [vmem:[#allocation8 + $0x180] sm:$0xff]
    %v361 = vld [vmem:[#allocation8 + $0x188] sm:$0xff]
    %v362 = vld [vmem:[#allocation8 + $0x190] sm:$0xff]
    %v363 = vld [vmem:[#allocation8 + $0x198] sm:$0xff]
    %v364 = vld [vmem:[#allocation8 + $0x1a0] sm:$0xff]
    %v365 = vld [vmem:[#allocation8 + $0x1a8] sm:$0xff]
    %v366 = vld [vmem:[#allocation8 + $0x1b0] sm:$0xff]
    %v367 = vld [vmem:[#allocation8 + $0x1b8] sm:$0xff]
    %v368 = vld [vmem:[#allocation8 + $0x1c0] sm:$0xff]
    %v369 = vld [vmem:[#allocation8 + $0x1c8] sm:$0xff]
    %v370 = vld [vmem:[#allocation8 + $0x1d0] sm:$0xff]
    %v371 = vld [vmem:[#allocation8 + $0x1d8] sm:$0xff]
    %v372 = vld [vmem:[#allocation8 + $0x1e0] sm:$0xff]
    %v373 = vld [vmem:[#allocation8 + $0x1e8] sm:$0xff]
    %v374 = vld [vmem:[#allocation8 + $0x1f0] sm:$0xff]
    %v375 = vld [vmem:[#allocation8 + $0x1f8] sm:$0xff]
    %v376 = vld [vmem:[#allocation8 + $0x200] sm:$0xff]
    %v377 = vld [vmem:[#allocation8 + $0x208] sm:$0xff]
    %v378 = vld [vmem:[#allocation8 + $0x210] sm:$0xff]
    %v379 = vld [vmem:[#allocation8 + $0x218] sm:$0xff]
    %v380 = vld [vmem:[#allocation8 + $0x220] sm:$0xff]
    %v381 = vld [vmem:[#allocation8 + $0x228] sm:$0xff]
    %v382 = vld [vmem:[#allocation8 + $0x230] sm:$0xff]
    %v383 = vld [vmem:[#allocation8 + $0x238] sm:$0xff]
    %v384 = vld [vmem:[#allocation8 + $0x240] sm:$0xff]
    %v385 = vld [vmem:[#allocation8 + $0x248] sm:$0xff]
    %v386 = vld [vmem:[#allocation8 + $0x250] sm:$0xff]
    %v387 = vld [vmem:[#allocation8 + $0x258] sm:$0xff]
    %v388 = vld [vmem:[#allocation8 + $0x260] sm:$0xff]
    %v389 = vld [vmem:[#allocation8 + $0x268] sm:$0xff]
    %v390 = vld [vmem:[#allocation8 + $0x270] sm:$0xff]
    %v391 = vld [vmem:[#allocation8 + $0x278] sm:$0xff]
    %v392 = vld [vmem:[#allocation8 + $0x280] sm:$0xff]
    %v393 = vld [vmem:[#allocation8 + $0x288] sm:$0xff]
    %v394 = vld [vmem:[#allocation8 + $0x290] sm:$0xff]
    %v395 = vld [vmem:[#allocation8 + $0x298] sm:$0xff]
    %v396 = vld [vmem:[#allocation8 + $0x2a0] sm:$0xff]
    %v397 = vld [vmem:[#allocation8 + $0x2a8] sm:$0xff]
    %v398 = vld [vmem:[#allocation8 + $0x2b0] sm:$0xff]
    %v399 = vld [vmem:[#allocation8 + $0x2b8] sm:$0xff]
    %v400 = vld [vmem:[#allocation8 + $0x2c0] sm:$0xff]
    %v401 = vld [vmem:[#allocation8 + $0x2c8] sm:$0xff]
    %v402 = vld [vmem:[#allocation8 + $0x2d0] sm:$0xff]
    %v403 = vld [vmem:[#allocation8 + $0x2d8] sm:$0xff]
    %v404 = vld [vmem:[#allocation8 + $0x2e0] sm:$0xff]
    %v405 = vld [vmem:[#allocation8 + $0x2e8] sm:$0xff]
    %v406 = vld [vmem:[#allocation8 + $0x2f0] sm:$0xff]
    %v407 = vld [vmem:[#allocation8 + $0x2f8] sm:$0xff]
    %v408 = vld [vmem:[#allocation8 + $0x300] sm:$0xff]
    %v409 = vld [vmem:[#allocation8 + $0x308] sm:$0xff]
    %v410 = vld [vmem:[#allocation8 + $0x310] sm:$0xff]
    %v411 = vld [vmem:[#allocation8 + $0x318] sm:$0xff]
    %v412 = vld [vmem:[#allocation8 + $0x320] sm:$0xff]
    %v413 = vld [vmem:[#allocation8 + $0x328] sm:$0xff]
    %v414 = vld [vmem:[#allocation8 + $0x330] sm:$0xff]
    %v415 = vld [vmem:[#allocation8 + $0x338] sm:$0xff]
    %v416 = vld [vmem:[#allocation8 + $0x340] sm:$0xff]
    %v417 = vld [vmem:[#allocation8 + $0x348] sm:$0xff]
    %v418 = vld [vmem:[#allocation8 + $0x350] sm:$0xff]
    %v419 = vld [vmem:[#allocation8 + $0x358] sm:$0xff]
    %v420 = vld [vmem:[#allocation8 + $0x360] sm:$0xff]
    %v421 = vld [vmem:[#allocation8 + $0x368] sm:$0xff]
    %v422 = vld [vmem:[#allocation8 + $0x370] sm:$0xff]
    %v423 = vld [vmem:[#allocation8 + $0x378] sm:$0xff]
    %v424 = vld [vmem:[#allocation8 + $0x380] sm:$0xff]
    %v425 = vld [vmem:[#allocation8 + $0x388] sm:$0xff]
    %v426 = vld [vmem:[#allocation8 + $0x390] sm:$0xff]
    %v427 = vld [vmem:[#allocation8 + $0x398] sm:$0xff]
    %v428 = vld [vmem:[#allocation8 + $0x3a0] sm:$0xff]
    %v429 = vld [vmem:[#allocation8 + $0x3a8] sm:$0xff]
    %v430 = vld [vmem:[#allocation8 + $0x3b0] sm:$0xff]
    %v431 = vld [vmem:[#allocation8 + $0x3b8] sm:$0xff]
    %v432 = vld [vmem:[#allocation8 + $0x3c0] sm:$0xff]
    %v433 = vld [vmem:[#allocation8 + $0x3c8] sm:$0xff]
    %v434 = vld [vmem:[#allocation8 + $0x3d0] sm:$0xff]
    %v435 = vld [vmem:[#allocation8 + $0x3d8] sm:$0xff]
    %v436 = vld [vmem:[#allocation8 + $0x3e0] sm:$0xff]
    %v437 = vld [vmem:[#allocation8 + $0x3e8] sm:$0x7]
    %v438 = vadd.f32 %v60, %v186
    %v439 = vadd.f32 %v61, %v187
    %v440 = vadd.f32 %v62, %v188
    %v441 = vadd.f32 %v63, %v189
    %v442 = vadd.f32 %v64, %v190
    %v443 = vadd.f32 %v65, %v191
    %v444 = vadd.f32 %v66, %v192
    %v445 = vadd.f32 %v67, %v193
    %v446 = vadd.f32 %v68, %v194
    %v447 = vadd.f32 %v69, %v195
    %v448 = vadd.f32 %v70, %v196
    %v449 = vadd.f32 %v71, %v197
    %v450 = vadd.f32 %v72, %v198
    %v451 = vadd.f32 %v73, %v199
    %v452 = vadd.f32 %v74, %v200
    %v453 = vadd.f32 %v75, %v201
    %v454 = vadd.f32 %v76, %v202
    %v455 = vadd.f32 %v77, %v203
    %v456 = vadd.f32 %v78, %v204
    %v457 = vadd.f32 %v79, %v205
    %v458 = vadd.f32 %v80, %v206
    %v459 = vadd.f32 %v81, %v207
    %v460 = vadd.f32 %v82, %v208
    %v461 = vadd.f32 %v83, %v209
    %v462 = vadd.f32 %v84, %v210
    %v463 = vadd.f32 %v85, %v211
    %v464 = vadd.f32 %v86, %v212
    %v465 = vadd.f32 %v87, %v213
    %v466 = vadd.f32 %v88, %v214
    %v467 = vadd.f32 %v89, %v215
    %v468 = vadd.f32 %v90, %v216
    %v469 = vadd.f32 %v91, %v217
    %v470 = vadd.f32 %v92, %v218
    %v471 = vadd.f32 %v93, %v219
    %v472 = vadd.f32 %v94, %v220
    %v473 = vadd.f32 %v95, %v221
    %v474 = vadd.f32 %v96, %v222
    %v475 = vadd.f32 %v97, %v223
    %v476 = vadd.f32 %v98, %v224
    %v477 = vadd.f32 %v99, %v225
    %v478 = vadd.f32 %v100, %v226
    %v479 = vadd.f32 %v101, %v227
    %v480 = vadd.f32 %v102, %v228
    %v481 = vadd.f32 %v103, %v229
    %v482 = vadd.f32 %v104, %v230
    %v483 = vadd.f32 %v105, %v231
    %v484 = vadd.f32 %v106, %v232
    %v485 = vadd.f32 %v107, %v233
    %v486 = vadd.f32 %v108, %v234
    %v487 = vadd.f32 %v109, %v235
    %v488 = vadd.f32 %v110, %v236
    %v489 = vadd.f32 %v111, %v237
    %v490 = vadd.f32 %v112, %v238
    %v491 = vadd.f32 %v113, %v239
    %v492 = vadd.f32 %v114, %v240
    %v493 = vadd.f32 %v115, %v241
    %v494 = vadd.f32 %v116, %v242
    %v495 = vadd.f32 %v117, %v243
    %v496 = vadd.f32 %v118, %v244
    %v497 = vadd.f32 %v119, %v245
    %v498 = vadd.f32 %v120, %v246
    %v499 = vadd.f32 %v121, %v247
    %v500 = vadd.f32 %v122, %v248
    %v501 = vadd.f32 %v123, %v249
    %v502 = vadd.f32 %v124, %v250
    %v503 = vadd.f32 %v125, %v251
    %v504 = vadd.f32 %v126, %v252
    %v505 = vadd.f32 %v127, %v253
    %v506 = vadd.f32 %v128, %v254
    %v507 = vadd.f32 %v129, %v255
    %v508 = vadd.f32 %v130, %v256
    %v509 = vadd.f32 %v131, %v257
    %v510 = vadd.f32 %v132, %v258
    %v511 = vadd.f32 %v133, %v259
    %v512 = vadd.f32 %v134, %v260
    %v513 = vadd.f32 %v135, %v261
    %v514 = vadd.f32 %v136, %v262
    %v515 = vadd.f32 %v137, %v263
    %v516 = vadd.f32 %v138, %v264
    %v517 = vadd.f32 %v139, %v265
    %v518 = vadd.f32 %v140, %v266
    %v519 = vadd.f32 %v141, %v267
    %v520 = vadd.f32 %v142, %v268
    %v521 = vadd.f32 %v143, %v269
    %v522 = vadd.f32 %v144, %v270
    %v523 = vadd.f32 %v145, %v271
    %v524 = vadd.f32 %v146, %v272
    %v525 = vadd.f32 %v147, %v273
    %v526 = vadd.f32 %v148, %v274
    %v527 = vadd.f32 %v149, %v275
    %v528 = vadd.f32 %v150, %v276
    %v529 = vadd.f32 %v151, %v277
    %v530 = vadd.f32 %v152, %v278
    %v531 = vadd.f32 %v153, %v279
    %v532 = vadd.f32 %v154, %v280
    %v533 = vadd.f32 %v155, %v281
    %v534 = vadd.f32 %v156, %v282
    %v535 = vadd.f32 %v157, %v283
    %v536 = vadd.f32 %v158, %v284
    %v537 = vadd.f32 %v159, %v285
    %v538 = vadd.f32 %v160, %v286
    %v539 = vadd.f32 %v161, %v287
    %v540 = vadd.f32 %v162, %v288
    %v541 = vadd.f32 %v163, %v289
    %v542 = vadd.f32 %v164, %v290
    %v543 = vadd.f32 %v165, %v291
    %v544 = vadd.f32 %v166, %v292
    %v545 = vadd.f32 %v167, %v293
    %v546 = vadd.f32 %v168, %v294
    %v547 = vadd.f32 %v169, %v295
    %v548 = vadd.f32 %v170, %v296
    %v549 = vadd.f32 %v171, %v297
    %v550 = vadd.f32 %v172, %v298
    %v551 = vadd.f32 %v173, %v299
    %v552 = vadd.f32 %v174, %v300
    %v553 = vadd.f32 %v175, %v301
    %v554 = vadd.f32 %v176, %v302
    %v555 = vadd.f32 %v177, %v303
    %v556 = vadd.f32 %v178, %v304
    %v557 = vadd.f32 %v179, %v305
    %v558 = vadd.f32 %v180, %v306
    %v559 = vadd.f32 %v181, %v307
    %v560 = vadd.f32 %v182, %v308
    %v561 = vadd.f32 %v183, %v309
    %v562 = vadd.f32 %v184, %v310
    %v563 = vadd.f32 %v185, %v311
    %v564 = vsub.f32 %v438, %v312
    %v565 = vsub.f32 %v439, %v313
    %v566 = vsub.f32 %v440, %v314
    %v567 = vsub.f32 %v441, %v315
    %v568 = vsub.f32 %v442, %v316
    %v569 = vsub.f32 %v443, %v317
    %v570 = vsub.f32 %v444, %v318
    %v571 = vsub.f32 %v445, %v319
    %v572 = vsub.f32 %v446, %v320
    %v573 = vsub.f32 %v447, %v321
    %v574 = vsub.f32 %v448, %v322
    %v575 = vsub.f32 %v449, %v323
    %v576 = vsub.f32 %v450, %v324
    %v577 = vsub.f32 %v451, %v325
    %v578 = vsub.f32 %v452, %v326
    %v579 = vsub.f32 %v453, %v327
    %v580 = vsub.f32 %v454, %v328
    %v581 = vsub.f32 %v455, %v329
    %v582 = vsub.f32 %v456, %v330
    %v583 = vsub.f32 %v457, %v331
    %v584 = vsub.f32 %v458, %v332
    %v585 = vsub.f32 %v459, %v333
    %v586 = vsub.f32 %v460, %v334
    %v587 = vsub.f32 %v461, %v335
    %v588 = vsub.f32 %v462, %v336
    %v589 = vsub.f32 %v463, %v337
    %v590 = vsub.f32 %v464, %v338
    %v591 = vsub.f32 %v465, %v339
    %v592 = vsub.f32 %v466, %v340
    %v593 = vsub.f32 %v467, %v341
    %v594 = vsub.f32 %v468, %v342
    %v595 = vsub.f32 %v469, %v343
    %v596 = vsub.f32 %v470, %v344
    %v597 = vsub.f32 %v471, %v345
    %v598 = vsub.f32 %v472, %v346
    %v599 = vsub.f32 %v473, %v347
    %v600 = vsub.f32 %v474, %v348
    %v601 = vsub.f32 %v475, %v349
    %v602 = vsub.f32 %v476, %v350
    %v603 = vsub.f32 %v477, %v351
    %v604 = vsub.f32 %v478, %v352
    %v605 = vsub.f32 %v479, %v353
    %v606 = vsub.f32 %v480, %v354
    %v607 = vsub.f32 %v481, %v355
    %v608 = vsub.f32 %v482, %v356
    %v609 = vsub.f32 %v483, %v357
    %v610 = vsub.f32 %v484, %v358
    %v611 = vsub.f32 %v485, %v359
    %v612 = vsub.f32 %v486, %v360
    %v613 = vsub.f32 %v487, %v361
    %v614 = vsub.f32 %v488, %v362
    %v615 = vsub.f32 %v489, %v363
    %v616 = vsub.f32 %v490, %v364
    %v617 = vsub.f32 %v491, %v365
    %v618 = vsub.f32 %v492, %v366
    %v619 = vsub.f32 %v493, %v367
    %v620 = vsub.f32 %v494, %v368
    %v621 = vsub.f32 %v495, %v369
    %v622 = vsub.f32 %v496, %v370
    %v623 = vsub.f32 %v497, %v371
    %v624 = vsub.f32 %v498, %v372
    %v625 = vsub.f32 %v499, %v373
    %v626 = vsub.f32 %v500, %v374
    %v627 = vsub.f32 %v501, %v375
    %v628 = vsub.f32 %v502, %v376
    %v629 = vsub.f32 %v503, %v377
    %v630 = vsub.f32 %v504, %v378
    %v631 = vsub.f32 %v505, %v379
    %v632 = vsub.f32 %v506, %v380
    %v633 = vsub.f32 %v507, %v381
    %v634 = vsub.f32 %v508, %v382
    %v635 = vsub.f32 %v509, %v383
    %v636 = vsub.f32 %v510, %v384
    %v637 = vsub.f32 %v511, %v385
    %v638 = vsub.f32 %v512, %v386
    %v639 = vsub.f32 %v513, %v387
    %v640 = vsub.f32 %v514, %v388
    %v641 = vsub.f32 %v515, %v389
    %v642 = vsub.f32 %v516, %v390
    %v643 = vsub.f32 %v517, %v391
    %v644 = vsub.f32 %v518, %v392
    %v645 = vsub.f32 %v519, %v393
    %v646 = vsub.f32 %v520, %v394
    %v647 = vsub.f32 %v521, %v395
    %v648 = vsub.f32 %v522, %v396
    %v649 = vsub.f32 %v523, %v397
    %v650 = vsub.f32 %v524, %v398
    %v651 = vsub.f32 %v525, %v399
    %v652 = vsub.f32 %v526, %v400
    %v653 = vsub.f32 %v527, %v401
    %v654 = vsub.f32 %v528, %v402
    %v655 = vsub.f32 %v529, %v403
    %v656 = vsub.f32 %v530, %v404
    %v657 = vsub.f32 %v531, %v405
    %v658 = vsub.f32 %v532, %v406
    %v659 = vsub.f32 %v533, %v407
    %v660 = vsub.f32 %v534, %v408
    %v661 = vsub.f32 %v535, %v409
    %v662 = vsub.f32 %v536, %v410
    %v663 = vsub.f32 %v537, %v411
    %v664 = vsub.f32 %v538, %v412
    %v665 = vsub.f32 %v539, %v413
    %v666 = vsub.f32 %v540, %v414
    %v667 = vsub.f32 %v541, %v415
    %v668 = vsub.f32 %v542, %v416
    %v669 = vsub.f32 %v543, %v417
    %v670 = vsub.f32 %v544, %v418
    %v671 = vsub.f32 %v545, %v419
    %v672 = vsub.f32 %v546, %v420
    %v673 = vsub.f32 %v547, %v421
    %v674 = vsub.f32 %v548, %v422
    %v675 = vsub.f32 %v549, %v423
    %v676 = vsub.f32 %v550, %v424
    %v677 = vsub.f32 %v551, %v425
    %v678 = vsub.f32 %v552, %v426
    %v679 = vsub.f32 %v553, %v427
    %v680 = vsub.f32 %v554, %v428
    %v681 = vsub.f32 %v555, %v429
    %v682 = vsub.f32 %v556, %v430
    %v683 = vsub.f32 %v557, %v431
    %v684 = vsub.f32 %v558, %v432
    %v685 = vsub.f32 %v559, %v433
    %v686 = vsub.f32 %v560, %v434
    %v687 = vsub.f32 %v561, %v435
    %v688 = vsub.f32 %v562, %v436
    %v689 = vsub.f32 %v563, %v437
    %v690 = vand.u32 2147483647, %v564
    %v691 = vand.u32 2147483647, %v565
    %v692 = vand.u32 2147483647, %v566
    %v693 = vand.u32 2147483647, %v567
    %v694 = vand.u32 2147483647, %v568
    %v695 = vand.u32 2147483647, %v569
    %v696 = vand.u32 2147483647, %v570
    %v697 = vand.u32 2147483647, %v571
    %v698 = vand.u32 2147483647, %v572
    %v699 = vand.u32 2147483647, %v573
    %v700 = vand.u32 2147483647, %v574
    %v701 = vand.u32 2147483647, %v575
    %v702 = vand.u32 2147483647, %v576
    %v703 = vand.u32 2147483647, %v577
    %v704 = vand.u32 2147483647, %v578
    %v705 = vand.u32 2147483647, %v579
    %v706 = vand.u32 2147483647, %v580
    %v707 = vand.u32 2147483647, %v581
    %v708 = vand.u32 2147483647, %v582
    %v709 = vand.u32 2147483647, %v583
    %v710 = vand.u32 2147483647, %v584
    %v711 = vand.u32 2147483647, %v585
    %v712 = vand.u32 2147483647, %v586
    %v713 = vand.u32 2147483647, %v587
    %v714 = vand.u32 2147483647, %v588
    %v715 = vand.u32 2147483647, %v589
    %v716 = vand.u32 2147483647, %v590
    %v717 = vand.u32 2147483647, %v591
    %v718 = vand.u32 2147483647, %v592
    %v719 = vand.u32 2147483647, %v593
    %v720 = vand.u32 2147483647, %v594
    %v721 = vand.u32 2147483647, %v595
    %v722 = vand.u32 2147483647, %v596
    %v723 = vand.u32 2147483647, %v597
    %v724 = vand.u32 2147483647, %v598
    %v725 = vand.u32 2147483647, %v599
    %v726 = vand.u32 2147483647, %v600
    %v727 = vand.u32 2147483647, %v601
    %v728 = vand.u32 2147483647, %v602
    %v729 = vand.u32 2147483647, %v603
    %v730 = vand.u32 2147483647, %v604
    %v731 = vand.u32 2147483647, %v605
    %v732 = vand.u32 2147483647, %v606
    %v733 = vand.u32 2147483647, %v607
    %v734 = vand.u32 2147483647, %v608
    %v735 = vand.u32 2147483647, %v609
    %v736 = vand.u32 2147483647, %v610
    %v737 = vand.u32 2147483647, %v611
    %v738 = vand.u32 2147483647, %v612
    %v739 = vand.u32 2147483647, %v613
    %v740 = vand.u32 2147483647, %v614
    %v741 = vand.u32 2147483647, %v615
    %v742 = vand.u32 2147483647, %v616
    %v743 = vand.u32 2147483647, %v617
    %v744 = vand.u32 2147483647, %v618
    %v745 = vand.u32 2147483647, %v619
    %v746 = vand.u32 2147483647, %v620
    %v747 = vand.u32 2147483647, %v621
    %v748 = vand.u32 2147483647, %v622
    %v749 = vand.u32 2147483647, %v623
    %v750 = vand.u32 2147483647, %v624
    %v751 = vand.u32 2147483647, %v625
    %v752 = vand.u32 2147483647, %v626
    %v753 = vand.u32 2147483647, %v627
    %v754 = vand.u32 2147483647, %v628
    %v755 = vand.u32 2147483647, %v629
    %v756 = vand.u32 2147483647, %v630
    %v757 = vand.u32 2147483647, %v631
    %v758 = vand.u32 2147483647, %v632
    %v759 = vand.u32 2147483647, %v633
    %v760 = vand.u32 2147483647, %v634
    %v761 = vand.u32 2147483647, %v635
    %v762 = vand.u32 2147483647, %v636
    %v763 = vand.u32 2147483647, %v637
    %v764 = vand.u32 2147483647, %v638
    %v765 = vand.u32 2147483647, %v639
    %v766 = vand.u32 2147483647, %v640
    %v767 = vand.u32 2147483647, %v641
    %v768 = vand.u32 2147483647, %v642
    %v769 = vand.u32 2147483647, %v643
    %v770 = vand.u32 2147483647, %v644
    %v771 = vand.u32 2147483647, %v645
    %v772 = vand.u32 2147483647, %v646
    %v773 = vand.u32 2147483647, %v647
    %v774 = vand.u32 2147483647, %v648
    %v775 = vand.u32 2147483647, %v649
    %v776 = vand.u32 2147483647, %v650
    %v777 = vand.u32 2147483647, %v651
    %v778 = vand.u32 2147483647, %v652
    %v779 = vand.u32 2147483647, %v653
    %v780 = vand.u32 2147483647, %v654
    %v781 = vand.u32 2147483647, %v655
    %v782 = vand.u32 2147483647, %v656
    %v783 = vand.u32 2147483647, %v657
    %v784 = vand.u32 2147483647, %v658
    %v785 = vand.u32 2147483647, %v659
    %v786 = vand.u32 2147483647, %v660
    %v787 = vand.u32 2147483647, %v661
    %v788 = vand.u32 2147483647, %v662
    %v789 = vand.u32 2147483647, %v663
    %v790 = vand.u32 2147483647, %v664
    %v791 = vand.u32 2147483647, %v665
    %v792 = vand.u32 2147483647, %v666
    %v793 = vand.u32 2147483647, %v667
    %v794 = vand.u32 2147483647, %v668
    %v795 = vand.u32 2147483647, %v669
    %v796 = vand.u32 2147483647, %v670
    %v797 = vand.u32 2147483647, %v671
    %v798 = vand.u32 2147483647, %v672
    %v799 = vand.u32 2147483647, %v673
    %v800 = vand.u32 2147483647, %v674
    %v801 = vand.u32 2147483647, %v675
    %v802 = vand.u32 2147483647, %v676
    %v803 = vand.u32 2147483647, %v677
    %v804 = vand.u32 2147483647, %v678
    %v805 = vand.u32 2147483647, %v679
    %v806 = vand.u32 2147483647, %v680
    %v807 = vand.u32 2147483647, %v681
    %v808 = vand.u32 2147483647, %v682
    %v809 = vand.u32 2147483647, %v683
    %v810 = vand.u32 2147483647, %v684
    %v811 = vand.u32 2147483647, %v685
    %v812 = vand.u32 2147483647, %v686
    %v813 = vand.u32 2147483647, %v687
    %v814 = vand.u32 2147483647, %v688
    %v815 = vand.u32 2147483647, %v689
    %816 = vadd.xlane.f32.xlu0 %v690
    %v817 = vpop.xlane.xlu0 %816
    %818 = vadd.xlane.f32.xlu0 %v691
    %v819 = vpop.xlane.xlu0 %818
    %820 = vadd.xlane.f32.xlu0 %v692
    %v821 = vpop.xlane.xlu0 %820
    %822 = vadd.xlane.f32.xlu0 %v693
    %v823 = vpop.xlane.xlu0 %822
    %824 = vadd.xlane.f32.xlu0 %v694
    %v825 = vpop.xlane.xlu0 %824
    %826 = vadd.xlane.f32.xlu0 %v695
    %v827 = vpop.xlane.xlu0 %826
    %828 = vadd.xlane.f32.xlu0 %v696
    %v829 = vpop.xlane.xlu0 %828
    %830 = vadd.xlane.f32.xlu0 %v697
    %v831 = vpop.xlane.xlu0 %830
    %832 = vadd.xlane.f32.xlu0 %v698
    %v833 = vpop.xlane.xlu0 %832
    %834 = vadd.xlane.f32.xlu0 %v699
    %v835 = vpop.xlane.xlu0 %834
    %836 = vadd.xlane.f32.xlu0 %v700
    %v837 = vpop.xlane.xlu0 %836
    %838 = vadd.xlane.f32.xlu0 %v701
    %v839 = vpop.xlane.xlu0 %838
    %840 = vadd.xlane.f32.xlu0 %v702
    %v841 = vpop.xlane.xlu0 %840
    %842 = vadd.xlane.f32.xlu0 %v703
    %v843 = vpop.xlane.xlu0 %842
    %844 = vadd.xlane.f32.xlu0 %v704
    %v845 = vpop.xlane.xlu0 %844
    %846 = vadd.xlane.f32.xlu0 %v705
    %v847 = vpop.xlane.xlu0 %846
    %848 = vadd.xlane.f32.xlu0 %v706
    %v849 = vpop.xlane.xlu0 %848
    %850 = vadd.xlane.f32.xlu0 %v707
    %v851 = vpop.xlane.xlu0 %850
    %852 = vadd.xlane.f32.xlu0 %v708
    %v853 = vpop.xlane.xlu0 %852
    %854 = vadd.xlane.f32.xlu0 %v709
    %v855 = vpop.xlane.xlu0 %854
    %856 = vadd.xlane.f32.xlu0 %v710
    %v857 = vpop.xlane.xlu0 %856
    %858 = vadd.xlane.f32.xlu0 %v711
    %v859 = vpop.xlane.xlu0 %858
    %860 = vadd.xlane.f32.xlu0 %v712
    %v861 = vpop.xlane.xlu0 %860
    %862 = vadd.xlane.f32.xlu0 %v713
    %v863 = vpop.xlane.xlu0 %862
    %864 = vadd.xlane.f32.xlu0 %v714
    %v865 = vpop.xlane.xlu0 %864
    %866 = vadd.xlane.f32.xlu0 %v715
    %v867 = vpop.xlane.xlu0 %866
    %868 = vadd.xlane.f32.xlu0 %v716
    %v869 = vpop.xlane.xlu0 %868
    %870 = vadd.xlane.f32.xlu0 %v717
    %v871 = vpop.xlane.xlu0 %870
    %872 = vadd.xlane.f32.xlu0 %v718
    %v873 = vpop.xlane.xlu0 %872
    %874 = vadd.xlane.f32.xlu0 %v719
    %v875 = vpop.xlane.xlu0 %874
    %876 = vadd.xlane.f32.xlu0 %v720
    %v877 = vpop.xlane.xlu0 %876
    %878 = vadd.xlane.f32.xlu0 %v721
    %v879 = vpop.xlane.xlu0 %878
    %880 = vadd.xlane.f32.xlu0 %v722
    %v881 = vpop.xlane.xlu0 %880
    %882 = vadd.xlane.f32.xlu0 %v723
    %v883 = vpop.xlane.xlu0 %882
    %884 = vadd.xlane.f32.xlu0 %v724
    %v885 = vpop.xlane.xlu0 %884
    %886 = vadd.xlane.f32.xlu0 %v725
    %v887 = vpop.xlane.xlu0 %886
    %888 = vadd.xlane.f32.xlu0 %v726
    %v889 = vpop.xlane.xlu0 %888
    %890 = vadd.xlane.f32.xlu0 %v727
    %v891 = vpop.xlane.xlu0 %890
    %892 = vadd.xlane.f32.xlu0 %v728
    %v893 = vpop.xlane.xlu0 %892
    %894 = vadd.xlane.f32.xlu0 %v729
    %v895 = vpop.xlane.xlu0 %894
    %896 = vadd.xlane.f32.xlu0 %v730
    %v897 = vpop.xlane.xlu0 %896
    %898 = vadd.xlane.f32.xlu0 %v731
    %v899 = vpop.xlane.xlu0 %898
    %900 = vadd.xlane.f32.xlu0 %v732
    %v901 = vpop.xlane.xlu0 %900
    %902 = vadd.xlane.f32.xlu0 %v733
    %v903 = vpop.xlane.xlu0 %902
    %904 = vadd.xlane.f32.xlu0 %v734
    %v905 = vpop.xlane.xlu0 %904
    %906 = vadd.xlane.f32.xlu0 %v735
    %v907 = vpop.xlane.xlu0 %906
    %908 = vadd.xlane.f32.xlu0 %v736
    %v909 = vpop.xlane.xlu0 %908
    %910 = vadd.xlane.f32.xlu0 %v737
    %v911 = vpop.xlane.xlu0 %910
    %912 = vadd.xlane.f32.xlu0 %v738
    %v913 = vpop.xlane.xlu0 %912
    %914 = vadd.xlane.f32.xlu0 %v739
    %v915 = vpop.xlane.xlu0 %914
    %916 = vadd.xlane.f32.xlu0 %v740
    %v917 = vpop.xlane.xlu0 %916
    %918 = vadd.xlane.f32.xlu0 %v741
    %v919 = vpop.xlane.xlu0 %918
    %920 = vadd.xlane.f32.xlu0 %v742
    %v921 = vpop.xlane.xlu0 %920
    %922 = vadd.xlane.f32.xlu0 %v743
    %v923 = vpop.xlane.xlu0 %922
    %924 = vadd.xlane.f32.xlu0 %v744
    %v925 = vpop.xlane.xlu0 %924
    %926 = vadd.xlane.f32.xlu0 %v745
    %v927 = vpop.xlane.xlu0 %926
    %928 = vadd.xlane.f32.xlu0 %v746
    %v929 = vpop.xlane.xlu0 %928
    %930 = vadd.xlane.f32.xlu0 %v747
    %v931 = vpop.xlane.xlu0 %930
    %932 = vadd.xlane.f32.xlu0 %v748
    %v933 = vpop.xlane.xlu0 %932
    %934 = vadd.xlane.f32.xlu0 %v749
    %v935 = vpop.xlane.xlu0 %934
    %936 = vadd.xlane.f32.xlu0 %v750
    %v937 = vpop.xlane.xlu0 %936
    %938 = vadd.xlane.f32.xlu0 %v751
    %v939 = vpop.xlane.xlu0 %938
    %940 = vadd.xlane.f32.xlu0 %v752
    %v941 = vpop.xlane.xlu0 %940
    %942 = vadd.xlane.f32.xlu0 %v753
    %v943 = vpop.xlane.xlu0 %942
    %944 = vadd.xlane.f32.xlu0 %v754
    %v945 = vpop.xlane.xlu0 %944
    %946 = vadd.xlane.f32.xlu0 %v755
    %v947 = vpop.xlane.xlu0 %946
    %948 = vadd.xlane.f32.xlu0 %v756
    %v949 = vpop.xlane.xlu0 %948
    %950 = vadd.xlane.f32.xlu0 %v757
    %v951 = vpop.xlane.xlu0 %950
    %952 = vadd.xlane.f32.xlu0 %v758
    %v953 = vpop.xlane.xlu0 %952
    %954 = vadd.xlane.f32.xlu0 %v759
    %v955 = vpop.xlane.xlu0 %954
    %956 = vadd.xlane.f32.xlu0 %v760
    %v957 = vpop.xlane.xlu0 %956
    %958 = vadd.xlane.f32.xlu0 %v761
    %v959 = vpop.xlane.xlu0 %958
    %960 = vadd.xlane.f32.xlu0 %v762
    %v961 = vpop.xlane.xlu0 %960
    %962 = vadd.xlane.f32.xlu0 %v763
    %v963 = vpop.xlane.xlu0 %962
    %964 = vadd.xlane.f32.xlu0 %v764
    %v965 = vpop.xlane.xlu0 %964
    %966 = vadd.xlane.f32.xlu0 %v765
    %v967 = vpop.xlane.xlu0 %966
    %968 = vadd.xlane.f32.xlu0 %v766
    %v969 = vpop.xlane.xlu0 %968
    %970 = vadd.xlane.f32.xlu0 %v767
    %v971 = vpop.xlane.xlu0 %970
    %972 = vadd.xlane.f32.xlu0 %v768
    %v973 = vpop.xlane.xlu0 %972
    %974 = vadd.xlane.f32.xlu0 %v769
    %v975 = vpop.xlane.xlu0 %974
    %976 = vadd.xlane.f32.xlu0 %v770
    %v977 = vpop.xlane.xlu0 %976
    %978 = vadd.xlane.f32.xlu0 %v771
    %v979 = vpop.xlane.xlu0 %978
    %980 = vadd.xlane.f32.xlu0 %v772
    %v981 = vpop.xlane.xlu0 %980
    %982 = vadd.xlane.f32.xlu0 %v773
    %v983 = vpop.xlane.xlu0 %982
    %984 = vadd.xlane.f32.xlu0 %v774
    %v985 = vpop.xlane.xlu0 %984
    %986 = vadd.xlane.f32.xlu0 %v775
    %v987 = vpop.xlane.xlu0 %986
    %988 = vadd.xlane.f32.xlu0 %v776
    %v989 = vpop.xlane.xlu0 %988
    %990 = vadd.xlane.f32.xlu0 %v777
    %v991 = vpop.xlane.xlu0 %990
    %992 = vadd.xlane.f32.xlu0 %v778
    %v993 = vpop.xlane.xlu0 %992
    %994 = vadd.xlane.f32.xlu0 %v779
    %v995 = vpop.xlane.xlu0 %994
    %996 = vadd.xlane.f32.xlu0 %v780
    %v997 = vpop.xlane.xlu0 %996
    %998 = vadd.xlane.f32.xlu0 %v781
    %v999 = vpop.xlane.xlu0 %998
    %1000 = vadd.xlane.f32.xlu0 %v782
    %v1001 = vpop.xlane.xlu0 %1000
    %1002 = vadd.xlane.f32.xlu0 %v783
    %v1003 = vpop.xlane.xlu0 %1002
    %1004 = vadd.xlane.f32.xlu0 %v784
    %v1005 = vpop.xlane.xlu0 %1004
    %1006 = vadd.xlane.f32.xlu0 %v785
    %v1007 = vpop.xlane.xlu0 %1006
    %1008 = vadd.xlane.f32.xlu0 %v786
    %v1009 = vpop.xlane.xlu0 %1008
    %1010 = vadd.xlane.f32.xlu0 %v787
    %v1011 = vpop.xlane.xlu0 %1010
    %1012 = vadd.xlane.f32.xlu0 %v788
    %v1013 = vpop.xlane.xlu0 %1012
    %1014 = vadd.xlane.f32.xlu0 %v789
    %v1015 = vpop.xlane.xlu0 %1014
    %1016 = vadd.xlane.f32.xlu0 %v790
    %v1017 = vpop.xlane.xlu0 %1016
    %1018 = vadd.xlane.f32.xlu0 %v791
    %v1019 = vpop.xlane.xlu0 %1018
    %1020 = vadd.xlane.f32.xlu0 %v792
    %v1021 = vpop.xlane.xlu0 %1020
    %1022 = vadd.xlane.f32.xlu0 %v793
    %v1023 = vpop.xlane.xlu0 %1022
    %1024 = vadd.xlane.f32.xlu0 %v794
    %v1025 = vpop.xlane.xlu0 %1024
    %1026 = vadd.xlane.f32.xlu0 %v795
    %v1027 = vpop.xlane.xlu0 %1026
    %1028 = vadd.xlane.f32.xlu0 %v796
    %v1029 = vpop.xlane.xlu0 %1028
    %1030 = vadd.xlane.f32.xlu0 %v797
    %v1031 = vpop.xlane.xlu0 %1030
    %1032 = vadd.xlane.f32.xlu0 %v798
    %v1033 = vpop.xlane.xlu0 %1032
    %1034 = vadd.xlane.f32.xlu0 %v799
    %v1035 = vpop.xlane.xlu0 %1034
    %1036 = vadd.xlane.f32.xlu0 %v800
    %v1037 = vpop.xlane.xlu0 %1036
    %1038 = vadd.xlane.f32.xlu0 %v801
    %v1039 = vpop.xlane.xlu0 %1038
    %1040 = vadd.xlane.f32.xlu0 %v802
    %v1041 = vpop.xlane.xlu0 %1040
    %1042 = vadd.xlane.f32.xlu0 %v803
    %v1043 = vpop.xlane.xlu0 %1042
    %1044 = vadd.xlane.f32.xlu0 %v804
    %v1045 = vpop.xlane.xlu0 %1044
    %1046 = vadd.xlane.f32.xlu0 %v805
    %v1047 = vpop.xlane.xlu0 %1046
    %1048 = vadd.xlane.f32.xlu0 %v806
    %v1049 = vpop.xlane.xlu0 %1048
    %1050 = vadd.xlane.f32.xlu0 %v807
    %v1051 = vpop.xlane.xlu0 %1050
    %1052 = vadd.xlane.f32.xlu0 %v808
    %v1053 = vpop.xlane.xlu0 %1052
    %1054 = vadd.xlane.f32.xlu0 %v809
    %v1055 = vpop.xlane.xlu0 %1054
    %1056 = vadd.xlane.f32.xlu0 %v810
    %v1057 = vpop.xlane.xlu0 %1056
    %1058 = vadd.xlane.f32.xlu0 %v811
    %v1059 = vpop.xlane.xlu0 %1058
    %1060 = vadd.xlane.f32.xlu0 %v812
    %v1061 = vpop.xlane.xlu0 %1060
    %1062 = vadd.xlane.f32.xlu0 %v813
    %v1063 = vpop.xlane.xlu0 %1062
    %1064 = vadd.xlane.f32.xlu0 %v814
    %v1065 = vpop.xlane.xlu0 %1064
    %vm1066 = vcmask 1042432
    %v1067 = vsel %vm1066, %v815, 0.0
    %1068 = vadd.xlane.f32.xlu0 %v1067
    %v1069 = vpop.xlane.xlu0 %1068
    %s1070 = sld [smem:[#allocation2]]
    %v1071 = vstv %s1070
    %v1072 = vsub.f32 %v1071, %v817
    %v1073 = vsub.f32 %v1071, %v819
    %v1074 = vsub.f32 %v1071, %v821
    %v1075 = vsub.f32 %v1071, %v823
    %v1076 = vsub.f32 %v1071, %v825
    %v1077 = vsub.f32 %v1071, %v827
    %v1078 = vsub.f32 %v1071, %v829
    %v1079 = vsub.f32 %v1071, %v831
    %v1080 = vsub.f32 %v1071, %v833
    %v1081 = vsub.f32 %v1071, %v835
    %v1082 = vsub.f32 %v1071, %v837
    %v1083 = vsub.f32 %v1071, %v839
    %v1084 = vsub.f32 %v1071, %v841
    %v1085 = vsub.f32 %v1071, %v843
    %v1086 = vsub.f32 %v1071, %v845
    %v1087 = vsub.f32 %v1071, %v847
    %v1088 = vsub.f32 %v1071, %v849
    %v1089 = vsub.f32 %v1071, %v851
    %v1090 = vsub.f32 %v1071, %v853
    %v1091 = vsub.f32 %v1071, %v855
    %v1092 = vsub.f32 %v1071, %v857
    %v1093 = vsub.f32 %v1071, %v859
    %v1094 = vsub.f32 %v1071, %v861
    %v1095 = vsub.f32 %v1071, %v863
    %v1096 = vsub.f32 %v1071, %v865
    %v1097 = vsub.f32 %v1071, %v867
    %v1098 = vsub.f32 %v1071, %v869
    %v1099 = vsub.f32 %v1071, %v871
    %v1100 = vsub.f32 %v1071, %v873
    %v1101 = vsub.f32 %v1071, %v875
    %v1102 = vsub.f32 %v1071, %v877
    %v1103 = vsub.f32 %v1071, %v879
    %v1104 = vsub.f32 %v1071, %v881
    %v1105 = vsub.f32 %v1071, %v883
    %v1106 = vsub.f32 %v1071, %v885
    %v1107 = vsub.f32 %v1071, %v887
    %v1108 = vsub.f32 %v1071, %v889
    %v1109 = vsub.f32 %v1071, %v891
    %v1110 = vsub.f32 %v1071, %v893
    %v1111 = vsub.f32 %v1071, %v895
    %v1112 = vsub.f32 %v1071, %v897
    %v1113 = vsub.f32 %v1071, %v899
    %v1114 = vsub.f32 %v1071, %v901
    %v1115 = vsub.f32 %v1071, %v903
    %v1116 = vsub.f32 %v1071, %v905
    %v1117 = vsub.f32 %v1071, %v907
    %v1118 = vsub.f32 %v1071, %v909
    %v1119 = vsub.f32 %v1071, %v911
    %v1120 = vsub.f32 %v1071, %v913
    %v1121 = vsub.f32 %v1071, %v915
    %v1122 = vsub.f32 %v1071, %v917
    %v1123 = vsub.f32 %v1071, %v919
    %v1124 = vsub.f32 %v1071, %v921
    %v1125 = vsub.f32 %v1071, %v923
    %v1126 = vsub.f32 %v1071, %v925
    %v1127 = vsub.f32 %v1071, %v927
    %v1128 = vsub.f32 %v1071, %v929
    %v1129 = vsub.f32 %v1071, %v931
    %v1130 = vsub.f32 %v1071, %v933
    %v1131 = vsub.f32 %v1071, %v935
    %v1132 = vsub.f32 %v1071, %v937
    %v1133 = vsub.f32 %v1071, %v939
    %v1134 = vsub.f32 %v1071, %v941
    %v1135 = vsub.f32 %v1071, %v943
    %v1136 = vsub.f32 %v1071, %v945
    %v1137 = vsub.f32 %v1071, %v947
    %v1138 = vsub.f32 %v1071, %v949
    %v1139 = vsub.f32 %v1071, %v951
    %v1140 = vsub.f32 %v1071, %v953
    %v1141 = vsub.f32 %v1071, %v955
    %v1142 = vsub.f32 %v1071, %v957
    %v1143 = vsub.f32 %v1071, %v959
    %v1144 = vsub.f32 %v1071, %v961
    %v1145 = vsub.f32 %v1071, %v963
    %v1146 = vsub.f32 %v1071, %v965
    %v1147 = vsub.f32 %v1071, %v967
    %v1148 = vsub.f32 %v1071, %v969
    %v1149 = vsub.f32 %v1071, %v971
    %v1150 = vsub.f32 %v1071, %v973
    %v1151 = vsub.f32 %v1071, %v975
    %v1152 = vsub.f32 %v1071, %v977
    %v1153 = vsub.f32 %v1071, %v979
    %v1154 = vsub.f32 %v1071, %v981
    %v1155 = vsub.f32 %v1071, %v983
    %v1156 = vsub.f32 %v1071, %v985
    %v1157 = vsub.f32 %v1071, %v987
    %v1158 = vsub.f32 %v1071, %v989
    %v1159 = vsub.f32 %v1071, %v991
    %v1160 = vsub.f32 %v1071, %v993
    %v1161 = vsub.f32 %v1071, %v995
    %v1162 = vsub.f32 %v1071, %v997
    %v1163 = vsub.f32 %v1071, %v999
    %v1164 = vsub.f32 %v1071, %v1001
    %v1165 = vsub.f32 %v1071, %v1003
    %v1166 = vsub.f32 %v1071, %v1005
    %v1167 = vsub.f32 %v1071, %v1007
    %v1168 = vsub.f32 %v1071, %v1009
    %v1169 = vsub.f32 %v1071, %v1011
    %v1170 = vsub.f32 %v1071, %v1013
    %v1171 = vsub.f32 %v1071, %v1015
    %v1172 = vsub.f32 %v1071, %v1017
    %v1173 = vsub.f32 %v1071, %v1019
    %v1174 = vsub.f32 %v1071, %v1021
    %v1175 = vsub.f32 %v1071, %v1023
    %v1176 = vsub.f32 %v1071, %v1025
    %v1177 = vsub.f32 %v1071, %v1027
    %v1178 = vsub.f32 %v1071, %v1029
    %v1179 = vsub.f32 %v1071, %v1031
    %v1180 = vsub.f32 %v1071, %v1033
    %v1181 = vsub.f32 %v1071, %v1035
    %v1182 = vsub.f32 %v1071, %v1037
    %v1183 = vsub.f32 %v1071, %v1039
    %v1184 = vsub.f32 %v1071, %v1041
    %v1185 = vsub.f32 %v1071, %v1043
    %v1186 = vsub.f32 %v1071, %v1045
    %v1187 = vsub.f32 %v1071, %v1047
    %v1188 = vsub.f32 %v1071, %v1049
    %v1189 = vsub.f32 %v1071, %v1051
    %v1190 = vsub.f32 %v1071, %v1053
    %v1191 = vsub.f32 %v1071, %v1055
    %v1192 = vsub.f32 %v1071, %v1057
    %v1193 = vsub.f32 %v1071, %v1059
    %v1194 = vsub.f32 %v1071, %v1061
    %v1195 = vsub.f32 %v1071, %v1063
    %v1196 = vsub.f32 %v1071, %v1065
    %v1197 = vsub.f32 %v1071, %v1069
    %v1324 = vlaneseq
    %v1325 = vshrl.u32 %v1324, 7
    %v1326 = vsub.s32 0, %v1325
    %v1327 = vrot.slane %v1072, %v1326
    %v1328 = vlaneseq
    %v1329 = vshrl.u32 %v1328, 7
    %v1330 = vsub.s32 1, %v1329
    %v1331 = vrot.slane %v1072, %v1330
    %v1332 = vlaneseq
    %v1333 = vshrl.u32 %v1332, 7
    %v1334 = vsub.s32 2, %v1333
    %v1335 = vrot.slane %v1072, %v1334
    %v1336 = vlaneseq
    %v1337 = vshrl.u32 %v1336, 7
    %v1338 = vsub.s32 3, %v1337
    %v1339 = vrot.slane %v1072, %v1338
    %v1340 = vlaneseq
    %v1341 = vshrl.u32 %v1340, 7
    %v1342 = vsub.s32 4, %v1341
    %v1343 = vrot.slane %v1072, %v1342
    %v1344 = vlaneseq
    %v1345 = vshrl.u32 %v1344, 7
    %v1346 = vsub.s32 5, %v1345
    %v1347 = vrot.slane %v1072, %v1346
    %v1348 = vlaneseq
    %v1349 = vshrl.u32 %v1348, 7
    %v1350 = vsub.s32 6, %v1349
    %v1351 = vrot.slane %v1072, %v1350
    %v1352 = vlaneseq
    %v1353 = vshrl.u32 %v1352, 7
    %v1354 = vsub.s32 7, %v1353
    %v1355 = vrot.slane %v1072, %v1354
    %v1356 = vlaneseq
    %v1357 = vshrl.u32 %v1356, 7
    %v1358 = vsub.s32 0, %v1357
    %v1359 = vrot.slane %v1073, %v1358
    %v1360 = vlaneseq
    %v1361 = vshrl.u32 %v1360, 7
    %v1362 = vsub.s32 1, %v1361
    %v1363 = vrot.slane %v1073, %v1362
    %v1364 = vlaneseq
    %v1365 = vshrl.u32 %v1364, 7
    %v1366 = vsub.s32 2, %v1365
    %v1367 = vrot.slane %v1073, %v1366
    %v1368 = vlaneseq
    %v1369 = vshrl.u32 %v1368, 7
    %v1370 = vsub.s32 3, %v1369
    %v1371 = vrot.slane %v1073, %v1370
    %v1372 = vlaneseq
    %v1373 = vshrl.u32 %v1372, 7
    %v1374 = vsub.s32 4, %v1373
    %v1375 = vrot.slane %v1073, %v1374
    %v1376 = vlaneseq
    %v1377 = vshrl.u32 %v1376, 7
    %v1378 = vsub.s32 5, %v1377
    %v1379 = vrot.slane %v1073, %v1378
    %v1380 = vlaneseq
    %v1381 = vshrl.u32 %v1380, 7
    %v1382 = vsub.s32 6, %v1381
    %v1383 = vrot.slane %v1073, %v1382
    %v1384 = vlaneseq
    %v1385 = vshrl.u32 %v1384, 7
    %v1386 = vsub.s32 7, %v1385
    %v1387 = vrot.slane %v1073, %v1386
    %v1388 = vlaneseq
    %v1389 = vshrl.u32 %v1388, 7
    %v1390 = vsub.s32 0, %v1389
    %v1391 = vrot.slane %v1074, %v1390
    %v1392 = vlaneseq
    %v1393 = vshrl.u32 %v1392, 7
    %v1394 = vsub.s32 1, %v1393
    %v1395 = vrot.slane %v1074, %v1394
    %v1396 = vlaneseq
    %v1397 = vshrl.u32 %v1396, 7
    %v1398 = vsub.s32 2, %v1397
    %v1399 = vrot.slane %v1074, %v1398
    %v1400 = vlaneseq
    %v1401 = vshrl.u32 %v1400, 7
    %v1402 = vsub.s32 3, %v1401
    %v1403 = vrot.slane %v1074, %v1402
    %v1404 = vlaneseq
    %v1405 = vshrl.u32 %v1404, 7
    %v1406 = vsub.s32 4, %v1405
    %v1407 = vrot.slane %v1074, %v1406
    %v1408 = vlaneseq
    %v1409 = vshrl.u32 %v1408, 7
    %v1410 = vsub.s32 5, %v1409
    %v1411 = vrot.slane %v1074, %v1410
    %v1412 = vlaneseq
    %v1413 = vshrl.u32 %v1412, 7
    %v1414 = vsub.s32 6, %v1413
    %v1415 = vrot.slane %v1074, %v1414
    %v1416 = vlaneseq
    %v1417 = vshrl.u32 %v1416, 7
    %v1418 = vsub.s32 7, %v1417
    %v1419 = vrot.slane %v1074, %v1418
    %v1420 = vlaneseq
    %v1421 = vshrl.u32 %v1420, 7
    %v1422 = vsub.s32 0, %v1421
    %v1423 = vrot.slane %v1075, %v1422
    %v1424 = vlaneseq
    %v1425 = vshrl.u32 %v1424, 7
    %v1426 = vsub.s32 1, %v1425
    %v1427 = vrot.slane %v1075, %v1426
    %v1428 = vlaneseq
    %v1429 = vshrl.u32 %v1428, 7
    %v1430 = vsub.s32 2, %v1429
    %v1431 = vrot.slane %v1075, %v1430
    %v1432 = vlaneseq
    %v1433 = vshrl.u32 %v1432, 7
    %v1434 = vsub.s32 3, %v1433
    %v1435 = vrot.slane %v1075, %v1434
    %v1436 = vlaneseq
    %v1437 = vshrl.u32 %v1436, 7
    %v1438 = vsub.s32 4, %v1437
    %v1439 = vrot.slane %v1075, %v1438
    %v1440 = vlaneseq
    %v1441 = vshrl.u32 %v1440, 7
    %v1442 = vsub.s32 5, %v1441
    %v1443 = vrot.slane %v1075, %v1442
    %v1444 = vlaneseq
    %v1445 = vshrl.u32 %v1444, 7
    %v1446 = vsub.s32 6, %v1445
    %v1447 = vrot.slane %v1075, %v1446
    %v1448 = vlaneseq
    %v1449 = vshrl.u32 %v1448, 7
    %v1450 = vsub.s32 7, %v1449
    %v1451 = vrot.slane %v1075, %v1450
    %v1452 = vlaneseq
    %v1453 = vshrl.u32 %v1452, 7
    %v1454 = vsub.s32 0, %v1453
    %v1455 = vrot.slane %v1076, %v1454
    %v1456 = vlaneseq
    %v1457 = vshrl.u32 %v1456, 7
    %v1458 = vsub.s32 1, %v1457
    %v1459 = vrot.slane %v1076, %v1458
    %v1460 = vlaneseq
    %v1461 = vshrl.u32 %v1460, 7
    %v1462 = vsub.s32 2, %v1461
    %v1463 = vrot.slane %v1076, %v1462
    %v1464 = vlaneseq
    %v1465 = vshrl.u32 %v1464, 7
    %v1466 = vsub.s32 3, %v1465
    %v1467 = vrot.slane %v1076, %v1466
    %v1468 = vlaneseq
    %v1469 = vshrl.u32 %v1468, 7
    %v1470 = vsub.s32 4, %v1469
    %v1471 = vrot.slane %v1076, %v1470
    %v1472 = vlaneseq
    %v1473 = vshrl.u32 %v1472, 7
    %v1474 = vsub.s32 5, %v1473
    %v1475 = vrot.slane %v1076, %v1474
    %v1476 = vlaneseq
    %v1477 = vshrl.u32 %v1476, 7
    %v1478 = vsub.s32 6, %v1477
    %v1479 = vrot.slane %v1076, %v1478
    %v1480 = vlaneseq
    %v1481 = vshrl.u32 %v1480, 7
    %v1482 = vsub.s32 7, %v1481
    %v1483 = vrot.slane %v1076, %v1482
    %v1484 = vlaneseq
    %v1485 = vshrl.u32 %v1484, 7
    %v1486 = vsub.s32 0, %v1485
    %v1487 = vrot.slane %v1077, %v1486
    %v1488 = vlaneseq
    %v1489 = vshrl.u32 %v1488, 7
    %v1490 = vsub.s32 1, %v1489
    %v1491 = vrot.slane %v1077, %v1490
    %v1492 = vlaneseq
    %v1493 = vshrl.u32 %v1492, 7
    %v1494 = vsub.s32 2, %v1493
    %v1495 = vrot.slane %v1077, %v1494
    %v1496 = vlaneseq
    %v1497 = vshrl.u32 %v1496, 7
    %v1498 = vsub.s32 3, %v1497
    %v1499 = vrot.slane %v1077, %v1498
    %v1500 = vlaneseq
    %v1501 = vshrl.u32 %v1500, 7
    %v1502 = vsub.s32 4, %v1501
    %v1503 = vrot.slane %v1077, %v1502
    %v1504 = vlaneseq
    %v1505 = vshrl.u32 %v1504, 7
    %v1506 = vsub.s32 5, %v1505
    %v1507 = vrot.slane %v1077, %v1506
    %v1508 = vlaneseq
    %v1509 = vshrl.u32 %v1508, 7
    %v1510 = vsub.s32 6, %v1509
    %v1511 = vrot.slane %v1077, %v1510
    %v1512 = vlaneseq
    %v1513 = vshrl.u32 %v1512, 7
    %v1514 = vsub.s32 7, %v1513
    %v1515 = vrot.slane %v1077, %v1514
    %v1516 = vlaneseq
    %v1517 = vshrl.u32 %v1516, 7
    %v1518 = vsub.s32 0, %v1517
    %v1519 = vrot.slane %v1078, %v1518
    %v1520 = vlaneseq
    %v1521 = vshrl.u32 %v1520, 7
    %v1522 = vsub.s32 1, %v1521
    %v1523 = vrot.slane %v1078, %v1522
    %v1524 = vlaneseq
    %v1525 = vshrl.u32 %v1524, 7
    %v1526 = vsub.s32 2, %v1525
    %v1527 = vrot.slane %v1078, %v1526
    %v1528 = vlaneseq
    %v1529 = vshrl.u32 %v1528, 7
    %v1530 = vsub.s32 3, %v1529
    %v1531 = vrot.slane %v1078, %v1530
    %v1532 = vlaneseq
    %v1533 = vshrl.u32 %v1532, 7
    %v1534 = vsub.s32 4, %v1533
    %v1535 = vrot.slane %v1078, %v1534
    %v1536 = vlaneseq
    %v1537 = vshrl.u32 %v1536, 7
    %v1538 = vsub.s32 5, %v1537
    %v1539 = vrot.slane %v1078, %v1538
    %v1540 = vlaneseq
    %v1541 = vshrl.u32 %v1540, 7
    %v1542 = vsub.s32 6, %v1541
    %v1543 = vrot.slane %v1078, %v1542
    %v1544 = vlaneseq
    %v1545 = vshrl.u32 %v1544, 7
    %v1546 = vsub.s32 7, %v1545
    %v1547 = vrot.slane %v1078, %v1546
    %v1548 = vlaneseq
    %v1549 = vshrl.u32 %v1548, 7
    %v1550 = vsub.s32 0, %v1549
    %v1551 = vrot.slane %v1079, %v1550
    %v1552 = vlaneseq
    %v1553 = vshrl.u32 %v1552, 7
    %v1554 = vsub.s32 1, %v1553
    %v1555 = vrot.slane %v1079, %v1554
    %v1556 = vlaneseq
    %v1557 = vshrl.u32 %v1556, 7
    %v1558 = vsub.s32 2, %v1557
    %v1559 = vrot.slane %v1079, %v1558
    %v1560 = vlaneseq
    %v1561 = vshrl.u32 %v1560, 7
    %v1562 = vsub.s32 3, %v1561
    %v1563 = vrot.slane %v1079, %v1562
    %v1564 = vlaneseq
    %v1565 = vshrl.u32 %v1564, 7
    %v1566 = vsub.s32 4, %v1565
    %v1567 = vrot.slane %v1079, %v1566
    %v1568 = vlaneseq
    %v1569 = vshrl.u32 %v1568, 7
    %v1570 = vsub.s32 5, %v1569
    %v1571 = vrot.slane %v1079, %v1570
    %v1572 = vlaneseq
    %v1573 = vshrl.u32 %v1572, 7
    %v1574 = vsub.s32 6, %v1573
    %v1575 = vrot.slane %v1079, %v1574
    %v1576 = vlaneseq
    %v1577 = vshrl.u32 %v1576, 7
    %v1578 = vsub.s32 7, %v1577
    %v1579 = vrot.slane %v1079, %v1578
    %v1580 = vlaneseq
    %v1581 = vshrl.u32 %v1580, 7
    %v1582 = vsub.s32 0, %v1581
    %v1583 = vrot.slane %v1080, %v1582
    %v1584 = vlaneseq
    %v1585 = vshrl.u32 %v1584, 7
    %v1586 = vsub.s32 1, %v1585
    %v1587 = vrot.slane %v1080, %v1586
    %v1588 = vlaneseq
    %v1589 = vshrl.u32 %v1588, 7
    %v1590 = vsub.s32 2, %v1589
    %v1591 = vrot.slane %v1080, %v1590
    %v1592 = vlaneseq
    %v1593 = vshrl.u32 %v1592, 7
    %v1594 = vsub.s32 3, %v1593
    %v1595 = vrot.slane %v1080, %v1594
    %v1596 = vlaneseq
    %v1597 = vshrl.u32 %v1596, 7
    %v1598 = vsub.s32 4, %v1597
    %v1599 = vrot.slane %v1080, %v1598
    %v1600 = vlaneseq
    %v1601 = vshrl.u32 %v1600, 7
    %v1602 = vsub.s32 5, %v1601
    %v1603 = vrot.slane %v1080, %v1602
    %v1604 = vlaneseq
    %v1605 = vshrl.u32 %v1604, 7
    %v1606 = vsub.s32 6, %v1605
    %v1607 = vrot.slane %v1080, %v1606
    %v1608 = vlaneseq
    %v1609 = vshrl.u32 %v1608, 7
    %v1610 = vsub.s32 7, %v1609
    %v1611 = vrot.slane %v1080, %v1610
    %v1612 = vlaneseq
    %v1613 = vshrl.u32 %v1612, 7
    %v1614 = vsub.s32 0, %v1613
    %v1615 = vrot.slane %v1081, %v1614
    %v1616 = vlaneseq
    %v1617 = vshrl.u32 %v1616, 7
    %v1618 = vsub.s32 1, %v1617
    %v1619 = vrot.slane %v1081, %v1618
    %v1620 = vlaneseq
    %v1621 = vshrl.u32 %v1620, 7
    %v1622 = vsub.s32 2, %v1621
    %v1623 = vrot.slane %v1081, %v1622
    %v1624 = vlaneseq
    %v1625 = vshrl.u32 %v1624, 7
    %v1626 = vsub.s32 3, %v1625
    %v1627 = vrot.slane %v1081, %v1626
    %v1628 = vlaneseq
    %v1629 = vshrl.u32 %v1628, 7
    %v1630 = vsub.s32 4, %v1629
    %v1631 = vrot.slane %v1081, %v1630
    %v1632 = vlaneseq
    %v1633 = vshrl.u32 %v1632, 7
    %v1634 = vsub.s32 5, %v1633
    %v1635 = vrot.slane %v1081, %v1634
    %v1636 = vlaneseq
    %v1637 = vshrl.u32 %v1636, 7
    %v1638 = vsub.s32 6, %v1637
    %v1639 = vrot.slane %v1081, %v1638
    %v1640 = vlaneseq
    %v1641 = vshrl.u32 %v1640, 7
    %v1642 = vsub.s32 7, %v1641
    %v1643 = vrot.slane %v1081, %v1642
    %v1644 = vlaneseq
    %v1645 = vshrl.u32 %v1644, 7
    %v1646 = vsub.s32 0, %v1645
    %v1647 = vrot.slane %v1082, %v1646
    %v1648 = vlaneseq
    %v1649 = vshrl.u32 %v1648, 7
    %v1650 = vsub.s32 1, %v1649
    %v1651 = vrot.slane %v1082, %v1650
    %v1652 = vlaneseq
    %v1653 = vshrl.u32 %v1652, 7
    %v1654 = vsub.s32 2, %v1653
    %v1655 = vrot.slane %v1082, %v1654
    %v1656 = vlaneseq
    %v1657 = vshrl.u32 %v1656, 7
    %v1658 = vsub.s32 3, %v1657
    %v1659 = vrot.slane %v1082, %v1658
    %v1660 = vlaneseq
    %v1661 = vshrl.u32 %v1660, 7
    %v1662 = vsub.s32 4, %v1661
    %v1663 = vrot.slane %v1082, %v1662
    %v1664 = vlaneseq
    %v1665 = vshrl.u32 %v1664, 7
    %v1666 = vsub.s32 5, %v1665
    %v1667 = vrot.slane %v1082, %v1666
    %v1668 = vlaneseq
    %v1669 = vshrl.u32 %v1668, 7
    %v1670 = vsub.s32 6, %v1669
    %v1671 = vrot.slane %v1082, %v1670
    %v1672 = vlaneseq
    %v1673 = vshrl.u32 %v1672, 7
    %v1674 = vsub.s32 7, %v1673
    %v1675 = vrot.slane %v1082, %v1674
    %v1676 = vlaneseq
    %v1677 = vshrl.u32 %v1676, 7
    %v1678 = vsub.s32 0, %v1677
    %v1679 = vrot.slane %v1083, %v1678
    %v1680 = vlaneseq
    %v1681 = vshrl.u32 %v1680, 7
    %v1682 = vsub.s32 1, %v1681
    %v1683 = vrot.slane %v1083, %v1682
    %v1684 = vlaneseq
    %v1685 = vshrl.u32 %v1684, 7
    %v1686 = vsub.s32 2, %v1685
    %v1687 = vrot.slane %v1083, %v1686
    %v1688 = vlaneseq
    %v1689 = vshrl.u32 %v1688, 7
    %v1690 = vsub.s32 3, %v1689
    %v1691 = vrot.slane %v1083, %v1690
    %v1692 = vlaneseq
    %v1693 = vshrl.u32 %v1692, 7
    %v1694 = vsub.s32 4, %v1693
    %v1695 = vrot.slane %v1083, %v1694
    %v1696 = vlaneseq
    %v1697 = vshrl.u32 %v1696, 7
    %v1698 = vsub.s32 5, %v1697
    %v1699 = vrot.slane %v1083, %v1698
    %v1700 = vlaneseq
    %v1701 = vshrl.u32 %v1700, 7
    %v1702 = vsub.s32 6, %v1701
    %v1703 = vrot.slane %v1083, %v1702
    %v1704 = vlaneseq
    %v1705 = vshrl.u32 %v1704, 7
    %v1706 = vsub.s32 7, %v1705
    %v1707 = vrot.slane %v1083, %v1706
    %v1708 = vlaneseq
    %v1709 = vshrl.u32 %v1708, 7
    %v1710 = vsub.s32 0, %v1709
    %v1711 = vrot.slane %v1084, %v1710
    %v1712 = vlaneseq
    %v1713 = vshrl.u32 %v1712, 7
    %v1714 = vsub.s32 1, %v1713
    %v1715 = vrot.slane %v1084, %v1714
    %v1716 = vlaneseq
    %v1717 = vshrl.u32 %v1716, 7
    %v1718 = vsub.s32 2, %v1717
    %v1719 = vrot.slane %v1084, %v1718
    %v1720 = vlaneseq
    %v1721 = vshrl.u32 %v1720, 7
    %v1722 = vsub.s32 3, %v1721
    %v1723 = vrot.slane %v1084, %v1722
    %v1724 = vlaneseq
    %v1725 = vshrl.u32 %v1724, 7
    %v1726 = vsub.s32 4, %v1725
    %v1727 = vrot.slane %v1084, %v1726
    %v1728 = vlaneseq
    %v1729 = vshrl.u32 %v1728, 7
    %v1730 = vsub.s32 5, %v1729
    %v1731 = vrot.slane %v1084, %v1730
    %v1732 = vlaneseq
    %v1733 = vshrl.u32 %v1732, 7
    %v1734 = vsub.s32 6, %v1733
    %v1735 = vrot.slane %v1084, %v1734
    %v1736 = vlaneseq
    %v1737 = vshrl.u32 %v1736, 7
    %v1738 = vsub.s32 7, %v1737
    %v1739 = vrot.slane %v1084, %v1738
    %v1740 = vlaneseq
    %v1741 = vshrl.u32 %v1740, 7
    %v1742 = vsub.s32 0, %v1741
    %v1743 = vrot.slane %v1085, %v1742
    %v1744 = vlaneseq
    %v1745 = vshrl.u32 %v1744, 7
    %v1746 = vsub.s32 1, %v1745
    %v1747 = vrot.slane %v1085, %v1746
    %v1748 = vlaneseq
    %v1749 = vshrl.u32 %v1748, 7
    %v1750 = vsub.s32 2, %v1749
    %v1751 = vrot.slane %v1085, %v1750
    %v1752 = vlaneseq
    %v1753 = vshrl.u32 %v1752, 7
    %v1754 = vsub.s32 3, %v1753
    %v1755 = vrot.slane %v1085, %v1754
    %v1756 = vlaneseq
    %v1757 = vshrl.u32 %v1756, 7
    %v1758 = vsub.s32 4, %v1757
    %v1759 = vrot.slane %v1085, %v1758
    %v1760 = vlaneseq
    %v1761 = vshrl.u32 %v1760, 7
    %v1762 = vsub.s32 5, %v1761
    %v1763 = vrot.slane %v1085, %v1762
    %v1764 = vlaneseq
    %v1765 = vshrl.u32 %v1764, 7
    %v1766 = vsub.s32 6, %v1765
    %v1767 = vrot.slane %v1085, %v1766
    %v1768 = vlaneseq
    %v1769 = vshrl.u32 %v1768, 7
    %v1770 = vsub.s32 7, %v1769
    %v1771 = vrot.slane %v1085, %v1770
    %v1772 = vlaneseq
    %v1773 = vshrl.u32 %v1772, 7
    %v1774 = vsub.s32 0, %v1773
    %v1775 = vrot.slane %v1086, %v1774
    %v1776 = vlaneseq
    %v1777 = vshrl.u32 %v1776, 7
    %v1778 = vsub.s32 1, %v1777
    %v1779 = vrot.slane %v1086, %v1778
    %v1780 = vlaneseq
    %v1781 = vshrl.u32 %v1780, 7
    %v1782 = vsub.s32 2, %v1781
    %v1783 = vrot.slane %v1086, %v1782
    %v1784 = vlaneseq
    %v1785 = vshrl.u32 %v1784, 7
    %v1786 = vsub.s32 3, %v1785
    %v1787 = vrot.slane %v1086, %v1786
    %v1788 = vlaneseq
    %v1789 = vshrl.u32 %v1788, 7
    %v1790 = vsub.s32 4, %v1789
    %v1791 = vrot.slane %v1086, %v1790
    %v1792 = vlaneseq
    %v1793 = vshrl.u32 %v1792, 7
    %v1794 = vsub.s32 5, %v1793
    %v1795 = vrot.slane %v1086, %v1794
    %v1796 = vlaneseq
    %v1797 = vshrl.u32 %v1796, 7
    %v1798 = vsub.s32 6, %v1797
    %v1799 = vrot.slane %v1086, %v1798
    %v1800 = vlaneseq
    %v1801 = vshrl.u32 %v1800, 7
    %v1802 = vsub.s32 7, %v1801
    %v1803 = vrot.slane %v1086, %v1802
    %v1804 = vlaneseq
    %v1805 = vshrl.u32 %v1804, 7
    %v1806 = vsub.s32 0, %v1805
    %v1807 = vrot.slane %v1087, %v1806
    %v1808 = vlaneseq
    %v1809 = vshrl.u32 %v1808, 7
    %v1810 = vsub.s32 1, %v1809
    %v1811 = vrot.slane %v1087, %v1810
    %v1812 = vlaneseq
    %v1813 = vshrl.u32 %v1812, 7
    %v1814 = vsub.s32 2, %v1813
    %v1815 = vrot.slane %v1087, %v1814
    %v1816 = vlaneseq
    %v1817 = vshrl.u32 %v1816, 7
    %v1818 = vsub.s32 3, %v1817
    %v1819 = vrot.slane %v1087, %v1818
    %v1820 = vlaneseq
    %v1821 = vshrl.u32 %v1820, 7
    %v1822 = vsub.s32 4, %v1821
    %v1823 = vrot.slane %v1087, %v1822
    %v1824 = vlaneseq
    %v1825 = vshrl.u32 %v1824, 7
    %v1826 = vsub.s32 5, %v1825
    %v1827 = vrot.slane %v1087, %v1826
    %v1828 = vlaneseq
    %v1829 = vshrl.u32 %v1828, 7
    %v1830 = vsub.s32 6, %v1829
    %v1831 = vrot.slane %v1087, %v1830
    %v1832 = vlaneseq
    %v1833 = vshrl.u32 %v1832, 7
    %v1834 = vsub.s32 7, %v1833
    %v1835 = vrot.slane %v1087, %v1834
    %v1836 = vlaneseq
    %v1837 = vshrl.u32 %v1836, 7
    %v1838 = vsub.s32 0, %v1837
    %v1839 = vrot.slane %v1088, %v1838
    %v1840 = vlaneseq
    %v1841 = vshrl.u32 %v1840, 7
    %v1842 = vsub.s32 1, %v1841
    %v1843 = vrot.slane %v1088, %v1842
    %v1844 = vlaneseq
    %v1845 = vshrl.u32 %v1844, 7
    %v1846 = vsub.s32 2, %v1845
    %v1847 = vrot.slane %v1088, %v1846
    %v1848 = vlaneseq
    %v1849 = vshrl.u32 %v1848, 7
    %v1850 = vsub.s32 3, %v1849
    %v1851 = vrot.slane %v1088, %v1850
    %v1852 = vlaneseq
    %v1853 = vshrl.u32 %v1852, 7
    %v1854 = vsub.s32 4, %v1853
    %v1855 = vrot.slane %v1088, %v1854
    %v1856 = vlaneseq
    %v1857 = vshrl.u32 %v1856, 7
    %v1858 = vsub.s32 5, %v1857
    %v1859 = vrot.slane %v1088, %v1858
    %v1860 = vlaneseq
    %v1861 = vshrl.u32 %v1860, 7
    %v1862 = vsub.s32 6, %v1861
    %v1863 = vrot.slane %v1088, %v1862
    %v1864 = vlaneseq
    %v1865 = vshrl.u32 %v1864, 7
    %v1866 = vsub.s32 7, %v1865
    %v1867 = vrot.slane %v1088, %v1866
    %v1868 = vlaneseq
    %v1869 = vshrl.u32 %v1868, 7
    %v1870 = vsub.s32 0, %v1869
    %v1871 = vrot.slane %v1089, %v1870
    %v1872 = vlaneseq
    %v1873 = vshrl.u32 %v1872, 7
    %v1874 = vsub.s32 1, %v1873
    %v1875 = vrot.slane %v1089, %v1874
    %v1876 = vlaneseq
    %v1877 = vshrl.u32 %v1876, 7
    %v1878 = vsub.s32 2, %v1877
    %v1879 = vrot.slane %v1089, %v1878
    %v1880 = vlaneseq
    %v1881 = vshrl.u32 %v1880, 7
    %v1882 = vsub.s32 3, %v1881
    %v1883 = vrot.slane %v1089, %v1882
    %v1884 = vlaneseq
    %v1885 = vshrl.u32 %v1884, 7
    %v1886 = vsub.s32 4, %v1885
    %v1887 = vrot.slane %v1089, %v1886
    %v1888 = vlaneseq
    %v1889 = vshrl.u32 %v1888, 7
    %v1890 = vsub.s32 5, %v1889
    %v1891 = vrot.slane %v1089, %v1890
    %v1892 = vlaneseq
    %v1893 = vshrl.u32 %v1892, 7
    %v1894 = vsub.s32 6, %v1893
    %v1895 = vrot.slane %v1089, %v1894
    %v1896 = vlaneseq
    %v1897 = vshrl.u32 %v1896, 7
    %v1898 = vsub.s32 7, %v1897
    %v1899 = vrot.slane %v1089, %v1898
    %v1900 = vlaneseq
    %v1901 = vshrl.u32 %v1900, 7
    %v1902 = vsub.s32 0, %v1901
    %v1903 = vrot.slane %v1090, %v1902
    %v1904 = vlaneseq
    %v1905 = vshrl.u32 %v1904, 7
    %v1906 = vsub.s32 1, %v1905
    %v1907 = vrot.slane %v1090, %v1906
    %v1908 = vlaneseq
    %v1909 = vshrl.u32 %v1908, 7
    %v1910 = vsub.s32 2, %v1909
    %v1911 = vrot.slane %v1090, %v1910
    %v1912 = vlaneseq
    %v1913 = vshrl.u32 %v1912, 7
    %v1914 = vsub.s32 3, %v1913
    %v1915 = vrot.slane %v1090, %v1914
    %v1916 = vlaneseq
    %v1917 = vshrl.u32 %v1916, 7
    %v1918 = vsub.s32 4, %v1917
    %v1919 = vrot.slane %v1090, %v1918
    %v1920 = vlaneseq
    %v1921 = vshrl.u32 %v1920, 7
    %v1922 = vsub.s32 5, %v1921
    %v1923 = vrot.slane %v1090, %v1922
    %v1924 = vlaneseq
    %v1925 = vshrl.u32 %v1924, 7
    %v1926 = vsub.s32 6, %v1925
    %v1927 = vrot.slane %v1090, %v1926
    %v1928 = vlaneseq
    %v1929 = vshrl.u32 %v1928, 7
    %v1930 = vsub.s32 7, %v1929
    %v1931 = vrot.slane %v1090, %v1930
    %v1932 = vlaneseq
    %v1933 = vshrl.u32 %v1932, 7
    %v1934 = vsub.s32 0, %v1933
    %v1935 = vrot.slane %v1091, %v1934
    %v1936 = vlaneseq
    %v1937 = vshrl.u32 %v1936, 7
    %v1938 = vsub.s32 1, %v1937
    %v1939 = vrot.slane %v1091, %v1938
    %v1940 = vlaneseq
    %v1941 = vshrl.u32 %v1940, 7
    %v1942 = vsub.s32 2, %v1941
    %v1943 = vrot.slane %v1091, %v1942
    %v1944 = vlaneseq
    %v1945 = vshrl.u32 %v1944, 7
    %v1946 = vsub.s32 3, %v1945
    %v1947 = vrot.slane %v1091, %v1946
    %v1948 = vlaneseq
    %v1949 = vshrl.u32 %v1948, 7
    %v1950 = vsub.s32 4, %v1949
    %v1951 = vrot.slane %v1091, %v1950
    %v1952 = vlaneseq
    %v1953 = vshrl.u32 %v1952, 7
    %v1954 = vsub.s32 5, %v1953
    %v1955 = vrot.slane %v1091, %v1954
    %v1956 = vlaneseq
    %v1957 = vshrl.u32 %v1956, 7
    %v1958 = vsub.s32 6, %v1957
    %v1959 = vrot.slane %v1091, %v1958
    %v1960 = vlaneseq
    %v1961 = vshrl.u32 %v1960, 7
    %v1962 = vsub.s32 7, %v1961
    %v1963 = vrot.slane %v1091, %v1962
    %v1964 = vlaneseq
    %v1965 = vshrl.u32 %v1964, 7
    %v1966 = vsub.s32 0, %v1965
    %v1967 = vrot.slane %v1092, %v1966
    %v1968 = vlaneseq
    %v1969 = vshrl.u32 %v1968, 7
    %v1970 = vsub.s32 1, %v1969
    %v1971 = vrot.slane %v1092, %v1970
    %v1972 = vlaneseq
    %v1973 = vshrl.u32 %v1972, 7
    %v1974 = vsub.s32 2, %v1973
    %v1975 = vrot.slane %v1092, %v1974
    %v1976 = vlaneseq
    %v1977 = vshrl.u32 %v1976, 7
    %v1978 = vsub.s32 3, %v1977
    %v1979 = vrot.slane %v1092, %v1978
    %v1980 = vlaneseq
    %v1981 = vshrl.u32 %v1980, 7
    %v1982 = vsub.s32 4, %v1981
    %v1983 = vrot.slane %v1092, %v1982
    %v1984 = vlaneseq
    %v1985 = vshrl.u32 %v1984, 7
    %v1986 = vsub.s32 5, %v1985
    %v1987 = vrot.slane %v1092, %v1986
    %v1988 = vlaneseq
    %v1989 = vshrl.u32 %v1988, 7
    %v1990 = vsub.s32 6, %v1989
    %v1991 = vrot.slane %v1092, %v1990
    %v1992 = vlaneseq
    %v1993 = vshrl.u32 %v1992, 7
    %v1994 = vsub.s32 7, %v1993
    %v1995 = vrot.slane %v1092, %v1994
    %v1996 = vlaneseq
    %v1997 = vshrl.u32 %v1996, 7
    %v1998 = vsub.s32 0, %v1997
    %v1999 = vrot.slane %v1093, %v1998
    %v2000 = vlaneseq
    %v2001 = vshrl.u32 %v2000, 7
    %v2002 = vsub.s32 1, %v2001
    %v2003 = vrot.slane %v1093, %v2002
    %v2004 = vlaneseq
    %v2005 = vshrl.u32 %v2004, 7
    %v2006 = vsub.s32 2, %v2005
    %v2007 = vrot.slane %v1093, %v2006
    %v2008 = vlaneseq
    %v2009 = vshrl.u32 %v2008, 7
    %v2010 = vsub.s32 3, %v2009
    %v2011 = vrot.slane %v1093, %v2010
    %v2012 = vlaneseq
    %v2013 = vshrl.u32 %v2012, 7
    %v2014 = vsub.s32 4, %v2013
    %v2015 = vrot.slane %v1093, %v2014
    %v2016 = vlaneseq
    %v2017 = vshrl.u32 %v2016, 7
    %v2018 = vsub.s32 5, %v2017
    %v2019 = vrot.slane %v1093, %v2018
    %v2020 = vlaneseq
    %v2021 = vshrl.u32 %v2020, 7
    %v2022 = vsub.s32 6, %v2021
    %v2023 = vrot.slane %v1093, %v2022
    %v2024 = vlaneseq
    %v2025 = vshrl.u32 %v2024, 7
    %v2026 = vsub.s32 7, %v2025
    %v2027 = vrot.slane %v1093, %v2026
    %v2028 = vlaneseq
    %v2029 = vshrl.u32 %v2028, 7
    %v2030 = vsub.s32 0, %v2029
    %v2031 = vrot.slane %v1094, %v2030
    %v2032 = vlaneseq
    %v2033 = vshrl.u32 %v2032, 7
    %v2034 = vsub.s32 1, %v2033
    %v2035 = vrot.slane %v1094, %v2034
    %v2036 = vlaneseq
    %v2037 = vshrl.u32 %v2036, 7
    %v2038 = vsub.s32 2, %v2037
    %v2039 = vrot.slane %v1094, %v2038
    %v2040 = vlaneseq
    %v2041 = vshrl.u32 %v2040, 7
    %v2042 = vsub.s32 3, %v2041
    %v2043 = vrot.slane %v1094, %v2042
    %v2044 = vlaneseq
    %v2045 = vshrl.u32 %v2044, 7
    %v2046 = vsub.s32 4, %v2045
    %v2047 = vrot.slane %v1094, %v2046
    %v2048 = vlaneseq
    %v2049 = vshrl.u32 %v2048, 7
    %v2050 = vsub.s32 5, %v2049
    %v2051 = vrot.slane %v1094, %v2050
    %v2052 = vlaneseq
    %v2053 = vshrl.u32 %v2052, 7
    %v2054 = vsub.s32 6, %v2053
    %v2055 = vrot.slane %v1094, %v2054
    %v2056 = vlaneseq
    %v2057 = vshrl.u32 %v2056, 7
    %v2058 = vsub.s32 7, %v2057
    %v2059 = vrot.slane %v1094, %v2058
    %v2060 = vlaneseq
    %v2061 = vshrl.u32 %v2060, 7
    %v2062 = vsub.s32 0, %v2061
    %v2063 = vrot.slane %v1095, %v2062
    %v2064 = vlaneseq
    %v2065 = vshrl.u32 %v2064, 7
    %v2066 = vsub.s32 1, %v2065
    %v2067 = vrot.slane %v1095, %v2066
    %v2068 = vlaneseq
    %v2069 = vshrl.u32 %v2068, 7
    %v2070 = vsub.s32 2, %v2069
    %v2071 = vrot.slane %v1095, %v2070
    %v2072 = vlaneseq
    %v2073 = vshrl.u32 %v2072, 7
    %v2074 = vsub.s32 3, %v2073
    %v2075 = vrot.slane %v1095, %v2074
    %v2076 = vlaneseq
    %v2077 = vshrl.u32 %v2076, 7
    %v2078 = vsub.s32 4, %v2077
    %v2079 = vrot.slane %v1095, %v2078
    %v2080 = vlaneseq
    %v2081 = vshrl.u32 %v2080, 7
    %v2082 = vsub.s32 5, %v2081
    %v2083 = vrot.slane %v1095, %v2082
    %v2084 = vlaneseq
    %v2085 = vshrl.u32 %v2084, 7
    %v2086 = vsub.s32 6, %v2085
    %v2087 = vrot.slane %v1095, %v2086
    %v2088 = vlaneseq
    %v2089 = vshrl.u32 %v2088, 7
    %v2090 = vsub.s32 7, %v2089
    %v2091 = vrot.slane %v1095, %v2090
    %v2092 = vlaneseq
    %v2093 = vshrl.u32 %v2092, 7
    %v2094 = vsub.s32 0, %v2093
    %v2095 = vrot.slane %v1096, %v2094
    %v2096 = vlaneseq
    %v2097 = vshrl.u32 %v2096, 7
    %v2098 = vsub.s32 1, %v2097
    %v2099 = vrot.slane %v1096, %v2098
    %v2100 = vlaneseq
    %v2101 = vshrl.u32 %v2100, 7
    %v2102 = vsub.s32 2, %v2101
    %v2103 = vrot.slane %v1096, %v2102
    %v2104 = vlaneseq
    %v2105 = vshrl.u32 %v2104, 7
    %v2106 = vsub.s32 3, %v2105
    %v2107 = vrot.slane %v1096, %v2106
    %v2108 = vlaneseq
    %v2109 = vshrl.u32 %v2108, 7
    %v2110 = vsub.s32 4, %v2109
    %v2111 = vrot.slane %v1096, %v2110
    %v2112 = vlaneseq
    %v2113 = vshrl.u32 %v2112, 7
    %v2114 = vsub.s32 5, %v2113
    %v2115 = vrot.slane %v1096, %v2114
    %v2116 = vlaneseq
    %v2117 = vshrl.u32 %v2116, 7
    %v2118 = vsub.s32 6, %v2117
    %v2119 = vrot.slane %v1096, %v2118
    %v2120 = vlaneseq
    %v2121 = vshrl.u32 %v2120, 7
    %v2122 = vsub.s32 7, %v2121
    %v2123 = vrot.slane %v1096, %v2122
    %v2124 = vlaneseq
    %v2125 = vshrl.u32 %v2124, 7
    %v2126 = vsub.s32 0, %v2125
    %v2127 = vrot.slane %v1097, %v2126
    %v2128 = vlaneseq
    %v2129 = vshrl.u32 %v2128, 7
    %v2130 = vsub.s32 1, %v2129
    %v2131 = vrot.slane %v1097, %v2130
    %v2132 = vlaneseq
    %v2133 = vshrl.u32 %v2132, 7
    %v2134 = vsub.s32 2, %v2133
    %v2135 = vrot.slane %v1097, %v2134
    %v2136 = vlaneseq
    %v2137 = vshrl.u32 %v2136, 7
    %v2138 = vsub.s32 3, %v2137
    %v2139 = vrot.slane %v1097, %v2138
    %v2140 = vlaneseq
    %v2141 = vshrl.u32 %v2140, 7
    %v2142 = vsub.s32 4, %v2141
    %v2143 = vrot.slane %v1097, %v2142
    %v2144 = vlaneseq
    %v2145 = vshrl.u32 %v2144, 7
    %v2146 = vsub.s32 5, %v2145
    %v2147 = vrot.slane %v1097, %v2146
    %v2148 = vlaneseq
    %v2149 = vshrl.u32 %v2148, 7
    %v2150 = vsub.s32 6, %v2149
    %v2151 = vrot.slane %v1097, %v2150
    %v2152 = vlaneseq
    %v2153 = vshrl.u32 %v2152, 7
    %v2154 = vsub.s32 7, %v2153
    %v2155 = vrot.slane %v1097, %v2154
    %v2156 = vlaneseq
    %v2157 = vshrl.u32 %v2156, 7
    %v2158 = vsub.s32 0, %v2157
    %v2159 = vrot.slane %v1098, %v2158
    %v2160 = vlaneseq
    %v2161 = vshrl.u32 %v2160, 7
    %v2162 = vsub.s32 1, %v2161
    %v2163 = vrot.slane %v1098, %v2162
    %v2164 = vlaneseq
    %v2165 = vshrl.u32 %v2164, 7
    %v2166 = vsub.s32 2, %v2165
    %v2167 = vrot.slane %v1098, %v2166
    %v2168 = vlaneseq
    %v2169 = vshrl.u32 %v2168, 7
    %v2170 = vsub.s32 3, %v2169
    %v2171 = vrot.slane %v1098, %v2170
    %v2172 = vlaneseq
    %v2173 = vshrl.u32 %v2172, 7
    %v2174 = vsub.s32 4, %v2173
    %v2175 = vrot.slane %v1098, %v2174
    %v2176 = vlaneseq
    %v2177 = vshrl.u32 %v2176, 7
    %v2178 = vsub.s32 5, %v2177
    %v2179 = vrot.slane %v1098, %v2178
    %v2180 = vlaneseq
    %v2181 = vshrl.u32 %v2180, 7
    %v2182 = vsub.s32 6, %v2181
    %v2183 = vrot.slane %v1098, %v2182
    %v2184 = vlaneseq
    %v2185 = vshrl.u32 %v2184, 7
    %v2186 = vsub.s32 7, %v2185
    %v2187 = vrot.slane %v1098, %v2186
    %v2188 = vlaneseq
    %v2189 = vshrl.u32 %v2188, 7
    %v2190 = vsub.s32 0, %v2189
    %v2191 = vrot.slane %v1099, %v2190
    %v2192 = vlaneseq
    %v2193 = vshrl.u32 %v2192, 7
    %v2194 = vsub.s32 1, %v2193
    %v2195 = vrot.slane %v1099, %v2194
    %v2196 = vlaneseq
    %v2197 = vshrl.u32 %v2196, 7
    %v2198 = vsub.s32 2, %v2197
    %v2199 = vrot.slane %v1099, %v2198
    %v2200 = vlaneseq
    %v2201 = vshrl.u32 %v2200, 7
    %v2202 = vsub.s32 3, %v2201
    %v2203 = vrot.slane %v1099, %v2202
    %v2204 = vlaneseq
    %v2205 = vshrl.u32 %v2204, 7
    %v2206 = vsub.s32 4, %v2205
    %v2207 = vrot.slane %v1099, %v2206
    %v2208 = vlaneseq
    %v2209 = vshrl.u32 %v2208, 7
    %v2210 = vsub.s32 5, %v2209
    %v2211 = vrot.slane %v1099, %v2210
    %v2212 = vlaneseq
    %v2213 = vshrl.u32 %v2212, 7
    %v2214 = vsub.s32 6, %v2213
    %v2215 = vrot.slane %v1099, %v2214
    %v2216 = vlaneseq
    %v2217 = vshrl.u32 %v2216, 7
    %v2218 = vsub.s32 7, %v2217
    %v2219 = vrot.slane %v1099, %v2218
    %v2220 = vlaneseq
    %v2221 = vshrl.u32 %v2220, 7
    %v2222 = vsub.s32 0, %v2221
    %v2223 = vrot.slane %v1100, %v2222
    %v2224 = vlaneseq
    %v2225 = vshrl.u32 %v2224, 7
    %v2226 = vsub.s32 1, %v2225
    %v2227 = vrot.slane %v1100, %v2226
    %v2228 = vlaneseq
    %v2229 = vshrl.u32 %v2228, 7
    %v2230 = vsub.s32 2, %v2229
    %v2231 = vrot.slane %v1100, %v2230
    %v2232 = vlaneseq
    %v2233 = vshrl.u32 %v2232, 7
    %v2234 = vsub.s32 3, %v2233
    %v2235 = vrot.slane %v1100, %v2234
    %v2236 = vlaneseq
    %v2237 = vshrl.u32 %v2236, 7
    %v2238 = vsub.s32 4, %v2237
    %v2239 = vrot.slane %v1100, %v2238
    %v2240 = vlaneseq
    %v2241 = vshrl.u32 %v2240, 7
    %v2242 = vsub.s32 5, %v2241
    %v2243 = vrot.slane %v1100, %v2242
    %v2244 = vlaneseq
    %v2245 = vshrl.u32 %v2244, 7
    %v2246 = vsub.s32 6, %v2245
    %v2247 = vrot.slane %v1100, %v2246
    %v2248 = vlaneseq
    %v2249 = vshrl.u32 %v2248, 7
    %v2250 = vsub.s32 7, %v2249
    %v2251 = vrot.slane %v1100, %v2250
    %v2252 = vlaneseq
    %v2253 = vshrl.u32 %v2252, 7
    %v2254 = vsub.s32 0, %v2253
    %v2255 = vrot.slane %v1101, %v2254
    %v2256 = vlaneseq
    %v2257 = vshrl.u32 %v2256, 7
    %v2258 = vsub.s32 1, %v2257
    %v2259 = vrot.slane %v1101, %v2258
    %v2260 = vlaneseq
    %v2261 = vshrl.u32 %v2260, 7
    %v2262 = vsub.s32 2, %v2261
    %v2263 = vrot.slane %v1101, %v2262
    %v2264 = vlaneseq
    %v2265 = vshrl.u32 %v2264, 7
    %v2266 = vsub.s32 3, %v2265
    %v2267 = vrot.slane %v1101, %v2266
    %v2268 = vlaneseq
    %v2269 = vshrl.u32 %v2268, 7
    %v2270 = vsub.s32 4, %v2269
    %v2271 = vrot.slane %v1101, %v2270
    %v2272 = vlaneseq
    %v2273 = vshrl.u32 %v2272, 7
    %v2274 = vsub.s32 5, %v2273
    %v2275 = vrot.slane %v1101, %v2274
    %v2276 = vlaneseq
    %v2277 = vshrl.u32 %v2276, 7
    %v2278 = vsub.s32 6, %v2277
    %v2279 = vrot.slane %v1101, %v2278
    %v2280 = vlaneseq
    %v2281 = vshrl.u32 %v2280, 7
    %v2282 = vsub.s32 7, %v2281
    %v2283 = vrot.slane %v1101, %v2282
    %v2284 = vlaneseq
    %v2285 = vshrl.u32 %v2284, 7
    %v2286 = vsub.s32 0, %v2285
    %v2287 = vrot.slane %v1102, %v2286
    %v2288 = vlaneseq
    %v2289 = vshrl.u32 %v2288, 7
    %v2290 = vsub.s32 1, %v2289
    %v2291 = vrot.slane %v1102, %v2290
    %v2292 = vlaneseq
    %v2293 = vshrl.u32 %v2292, 7
    %v2294 = vsub.s32 2, %v2293
    %v2295 = vrot.slane %v1102, %v2294
    %v2296 = vlaneseq
    %v2297 = vshrl.u32 %v2296, 7
    %v2298 = vsub.s32 3, %v2297
    %v2299 = vrot.slane %v1102, %v2298
    %v2300 = vlaneseq
    %v2301 = vshrl.u32 %v2300, 7
    %v2302 = vsub.s32 4, %v2301
    %v2303 = vrot.slane %v1102, %v2302
    %v2304 = vlaneseq
    %v2305 = vshrl.u32 %v2304, 7
    %v2306 = vsub.s32 5, %v2305
    %v2307 = vrot.slane %v1102, %v2306
    %v2308 = vlaneseq
    %v2309 = vshrl.u32 %v2308, 7
    %v2310 = vsub.s32 6, %v2309
    %v2311 = vrot.slane %v1102, %v2310
    %v2312 = vlaneseq
    %v2313 = vshrl.u32 %v2312, 7
    %v2314 = vsub.s32 7, %v2313
    %v2315 = vrot.slane %v1102, %v2314
    %v2316 = vlaneseq
    %v2317 = vshrl.u32 %v2316, 7
    %v2318 = vsub.s32 0, %v2317
    %v2319 = vrot.slane %v1103, %v2318
    %v2320 = vlaneseq
    %v2321 = vshrl.u32 %v2320, 7
    %v2322 = vsub.s32 1, %v2321
    %v2323 = vrot.slane %v1103, %v2322
    %v2324 = vlaneseq
    %v2325 = vshrl.u32 %v2324, 7
    %v2326 = vsub.s32 2, %v2325
    %v2327 = vrot.slane %v1103, %v2326
    %v2328 = vlaneseq
    %v2329 = vshrl.u32 %v2328, 7
    %v2330 = vsub.s32 3, %v2329
    %v2331 = vrot.slane %v1103, %v2330
    %v2332 = vlaneseq
    %v2333 = vshrl.u32 %v2332, 7
    %v2334 = vsub.s32 4, %v2333
    %v2335 = vrot.slane %v1103, %v2334
    %v2336 = vlaneseq
    %v2337 = vshrl.u32 %v2336, 7
    %v2338 = vsub.s32 5, %v2337
    %v2339 = vrot.slane %v1103, %v2338
    %v2340 = vlaneseq
    %v2341 = vshrl.u32 %v2340, 7
    %v2342 = vsub.s32 6, %v2341
    %v2343 = vrot.slane %v1103, %v2342
    %v2344 = vlaneseq
    %v2345 = vshrl.u32 %v2344, 7
    %v2346 = vsub.s32 7, %v2345
    %v2347 = vrot.slane %v1103, %v2346
    %v2348 = vlaneseq
    %v2349 = vshrl.u32 %v2348, 7
    %v2350 = vsub.s32 0, %v2349
    %v2351 = vrot.slane %v1104, %v2350
    %v2352 = vlaneseq
    %v2353 = vshrl.u32 %v2352, 7
    %v2354 = vsub.s32 1, %v2353
    %v2355 = vrot.slane %v1104, %v2354
    %v2356 = vlaneseq
    %v2357 = vshrl.u32 %v2356, 7
    %v2358 = vsub.s32 2, %v2357
    %v2359 = vrot.slane %v1104, %v2358
    %v2360 = vlaneseq
    %v2361 = vshrl.u32 %v2360, 7
    %v2362 = vsub.s32 3, %v2361
    %v2363 = vrot.slane %v1104, %v2362
    %v2364 = vlaneseq
    %v2365 = vshrl.u32 %v2364, 7
    %v2366 = vsub.s32 4, %v2365
    %v2367 = vrot.slane %v1104, %v2366
    %v2368 = vlaneseq
    %v2369 = vshrl.u32 %v2368, 7
    %v2370 = vsub.s32 5, %v2369
    %v2371 = vrot.slane %v1104, %v2370
    %v2372 = vlaneseq
    %v2373 = vshrl.u32 %v2372, 7
    %v2374 = vsub.s32 6, %v2373
    %v2375 = vrot.slane %v1104, %v2374
    %v2376 = vlaneseq
    %v2377 = vshrl.u32 %v2376, 7
    %v2378 = vsub.s32 7, %v2377
    %v2379 = vrot.slane %v1104, %v2378
    %v2380 = vlaneseq
    %v2381 = vshrl.u32 %v2380, 7
    %v2382 = vsub.s32 0, %v2381
    %v2383 = vrot.slane %v1105, %v2382
    %v2384 = vlaneseq
    %v2385 = vshrl.u32 %v2384, 7
    %v2386 = vsub.s32 1, %v2385
    %v2387 = vrot.slane %v1105, %v2386
    %v2388 = vlaneseq
    %v2389 = vshrl.u32 %v2388, 7
    %v2390 = vsub.s32 2, %v2389
    %v2391 = vrot.slane %v1105, %v2390
    %v2392 = vlaneseq
    %v2393 = vshrl.u32 %v2392, 7
    %v2394 = vsub.s32 3, %v2393
    %v2395 = vrot.slane %v1105, %v2394
    %v2396 = vlaneseq
    %v2397 = vshrl.u32 %v2396, 7
    %v2398 = vsub.s32 4, %v2397
    %v2399 = vrot.slane %v1105, %v2398
    %v2400 = vlaneseq
    %v2401 = vshrl.u32 %v2400, 7
    %v2402 = vsub.s32 5, %v2401
    %v2403 = vrot.slane %v1105, %v2402
    %v2404 = vlaneseq
    %v2405 = vshrl.u32 %v2404, 7
    %v2406 = vsub.s32 6, %v2405
    %v2407 = vrot.slane %v1105, %v2406
    %v2408 = vlaneseq
    %v2409 = vshrl.u32 %v2408, 7
    %v2410 = vsub.s32 7, %v2409
    %v2411 = vrot.slane %v1105, %v2410
    %v2412 = vlaneseq
    %v2413 = vshrl.u32 %v2412, 7
    %v2414 = vsub.s32 0, %v2413
    %v2415 = vrot.slane %v1106, %v2414
    %v2416 = vlaneseq
    %v2417 = vshrl.u32 %v2416, 7
    %v2418 = vsub.s32 1, %v2417
    %v2419 = vrot.slane %v1106, %v2418
    %v2420 = vlaneseq
    %v2421 = vshrl.u32 %v2420, 7
    %v2422 = vsub.s32 2, %v2421
    %v2423 = vrot.slane %v1106, %v2422
    %v2424 = vlaneseq
    %v2425 = vshrl.u32 %v2424, 7
    %v2426 = vsub.s32 3, %v2425
    %v2427 = vrot.slane %v1106, %v2426
    %v2428 = vlaneseq
    %v2429 = vshrl.u32 %v2428, 7
    %v2430 = vsub.s32 4, %v2429
    %v2431 = vrot.slane %v1106, %v2430
    %v2432 = vlaneseq
    %v2433 = vshrl.u32 %v2432, 7
    %v2434 = vsub.s32 5, %v2433
    %v2435 = vrot.slane %v1106, %v2434
    %v2436 = vlaneseq
    %v2437 = vshrl.u32 %v2436, 7
    %v2438 = vsub.s32 6, %v2437
    %v2439 = vrot.slane %v1106, %v2438
    %v2440 = vlaneseq
    %v2441 = vshrl.u32 %v2440, 7
    %v2442 = vsub.s32 7, %v2441
    %v2443 = vrot.slane %v1106, %v2442
    %v2444 = vlaneseq
    %v2445 = vshrl.u32 %v2444, 7
    %v2446 = vsub.s32 0, %v2445
    %v2447 = vrot.slane %v1107, %v2446
    %v2448 = vlaneseq
    %v2449 = vshrl.u32 %v2448, 7
    %v2450 = vsub.s32 1, %v2449
    %v2451 = vrot.slane %v1107, %v2450
    %v2452 = vlaneseq
    %v2453 = vshrl.u32 %v2452, 7
    %v2454 = vsub.s32 2, %v2453
    %v2455 = vrot.slane %v1107, %v2454
    %v2456 = vlaneseq
    %v2457 = vshrl.u32 %v2456, 7
    %v2458 = vsub.s32 3, %v2457
    %v2459 = vrot.slane %v1107, %v2458
    %v2460 = vlaneseq
    %v2461 = vshrl.u32 %v2460, 7
    %v2462 = vsub.s32 4, %v2461
    %v2463 = vrot.slane %v1107, %v2462
    %v2464 = vlaneseq
    %v2465 = vshrl.u32 %v2464, 7
    %v2466 = vsub.s32 5, %v2465
    %v2467 = vrot.slane %v1107, %v2466
    %v2468 = vlaneseq
    %v2469 = vshrl.u32 %v2468, 7
    %v2470 = vsub.s32 6, %v2469
    %v2471 = vrot.slane %v1107, %v2470
    %v2472 = vlaneseq
    %v2473 = vshrl.u32 %v2472, 7
    %v2474 = vsub.s32 7, %v2473
    %v2475 = vrot.slane %v1107, %v2474
    %v2476 = vlaneseq
    %v2477 = vshrl.u32 %v2476, 7
    %v2478 = vsub.s32 0, %v2477
    %v2479 = vrot.slane %v1108, %v2478
    %v2480 = vlaneseq
    %v2481 = vshrl.u32 %v2480, 7
    %v2482 = vsub.s32 1, %v2481
    %v2483 = vrot.slane %v1108, %v2482
    %v2484 = vlaneseq
    %v2485 = vshrl.u32 %v2484, 7
    %v2486 = vsub.s32 2, %v2485
    %v2487 = vrot.slane %v1108, %v2486
    %v2488 = vlaneseq
    %v2489 = vshrl.u32 %v2488, 7
    %v2490 = vsub.s32 3, %v2489
    %v2491 = vrot.slane %v1108, %v2490
    %v2492 = vlaneseq
    %v2493 = vshrl.u32 %v2492, 7
    %v2494 = vsub.s32 4, %v2493
    %v2495 = vrot.slane %v1108, %v2494
    %v2496 = vlaneseq
    %v2497 = vshrl.u32 %v2496, 7
    %v2498 = vsub.s32 5, %v2497
    %v2499 = vrot.slane %v1108, %v2498
    %v2500 = vlaneseq
    %v2501 = vshrl.u32 %v2500, 7
    %v2502 = vsub.s32 6, %v2501
    %v2503 = vrot.slane %v1108, %v2502
    %v2504 = vlaneseq
    %v2505 = vshrl.u32 %v2504, 7
    %v2506 = vsub.s32 7, %v2505
    %v2507 = vrot.slane %v1108, %v2506
    %v2508 = vlaneseq
    %v2509 = vshrl.u32 %v2508, 7
    %v2510 = vsub.s32 0, %v2509
    %v2511 = vrot.slane %v1109, %v2510
    %v2512 = vlaneseq
    %v2513 = vshrl.u32 %v2512, 7
    %v2514 = vsub.s32 1, %v2513
    %v2515 = vrot.slane %v1109, %v2514
    %v2516 = vlaneseq
    %v2517 = vshrl.u32 %v2516, 7
    %v2518 = vsub.s32 2, %v2517
    %v2519 = vrot.slane %v1109, %v2518
    %v2520 = vlaneseq
    %v2521 = vshrl.u32 %v2520, 7
    %v2522 = vsub.s32 3, %v2521
    %v2523 = vrot.slane %v1109, %v2522
    %v2524 = vlaneseq
    %v2525 = vshrl.u32 %v2524, 7
    %v2526 = vsub.s32 4, %v2525
    %v2527 = vrot.slane %v1109, %v2526
    %v2528 = vlaneseq
    %v2529 = vshrl.u32 %v2528, 7
    %v2530 = vsub.s32 5, %v2529
    %v2531 = vrot.slane %v1109, %v2530
    %v2532 = vlaneseq
    %v2533 = vshrl.u32 %v2532, 7
    %v2534 = vsub.s32 6, %v2533
    %v2535 = vrot.slane %v1109, %v2534
    %v2536 = vlaneseq
    %v2537 = vshrl.u32 %v2536, 7
    %v2538 = vsub.s32 7, %v2537
    %v2539 = vrot.slane %v1109, %v2538
    %v2540 = vlaneseq
    %v2541 = vshrl.u32 %v2540, 7
    %v2542 = vsub.s32 0, %v2541
    %v2543 = vrot.slane %v1110, %v2542
    %v2544 = vlaneseq
    %v2545 = vshrl.u32 %v2544, 7
    %v2546 = vsub.s32 1, %v2545
    %v2547 = vrot.slane %v1110, %v2546
    %v2548 = vlaneseq
    %v2549 = vshrl.u32 %v2548, 7
    %v2550 = vsub.s32 2, %v2549
    %v2551 = vrot.slane %v1110, %v2550
    %v2552 = vlaneseq
    %v2553 = vshrl.u32 %v2552, 7
    %v2554 = vsub.s32 3, %v2553
    %v2555 = vrot.slane %v1110, %v2554
    %v2556 = vlaneseq
    %v2557 = vshrl.u32 %v2556, 7
    %v2558 = vsub.s32 4, %v2557
    %v2559 = vrot.slane %v1110, %v2558
    %v2560 = vlaneseq
    %v2561 = vshrl.u32 %v2560, 7
    %v2562 = vsub.s32 5, %v2561
    %v2563 = vrot.slane %v1110, %v2562
    %v2564 = vlaneseq
    %v2565 = vshrl.u32 %v2564, 7
    %v2566 = vsub.s32 6, %v2565
    %v2567 = vrot.slane %v1110, %v2566
    %v2568 = vlaneseq
    %v2569 = vshrl.u32 %v2568, 7
    %v2570 = vsub.s32 7, %v2569
    %v2571 = vrot.slane %v1110, %v2570
    %v2572 = vlaneseq
    %v2573 = vshrl.u32 %v2572, 7
    %v2574 = vsub.s32 0, %v2573
    %v2575 = vrot.slane %v1111, %v2574
    %v2576 = vlaneseq
    %v2577 = vshrl.u32 %v2576, 7
    %v2578 = vsub.s32 1, %v2577
    %v2579 = vrot.slane %v1111, %v2578
    %v2580 = vlaneseq
    %v2581 = vshrl.u32 %v2580, 7
    %v2582 = vsub.s32 2, %v2581
    %v2583 = vrot.slane %v1111, %v2582
    %v2584 = vlaneseq
    %v2585 = vshrl.u32 %v2584, 7
    %v2586 = vsub.s32 3, %v2585
    %v2587 = vrot.slane %v1111, %v2586
    %v2588 = vlaneseq
    %v2589 = vshrl.u32 %v2588, 7
    %v2590 = vsub.s32 4, %v2589
    %v2591 = vrot.slane %v1111, %v2590
    %v2592 = vlaneseq
    %v2593 = vshrl.u32 %v2592, 7
    %v2594 = vsub.s32 5, %v2593
    %v2595 = vrot.slane %v1111, %v2594
    %v2596 = vlaneseq
    %v2597 = vshrl.u32 %v2596, 7
    %v2598 = vsub.s32 6, %v2597
    %v2599 = vrot.slane %v1111, %v2598
    %v2600 = vlaneseq
    %v2601 = vshrl.u32 %v2600, 7
    %v2602 = vsub.s32 7, %v2601
    %v2603 = vrot.slane %v1111, %v2602
    %v2604 = vlaneseq
    %v2605 = vshrl.u32 %v2604, 7
    %v2606 = vsub.s32 0, %v2605
    %v2607 = vrot.slane %v1112, %v2606
    %v2608 = vlaneseq
    %v2609 = vshrl.u32 %v2608, 7
    %v2610 = vsub.s32 1, %v2609
    %v2611 = vrot.slane %v1112, %v2610
    %v2612 = vlaneseq
    %v2613 = vshrl.u32 %v2612, 7
    %v2614 = vsub.s32 2, %v2613
    %v2615 = vrot.slane %v1112, %v2614
    %v2616 = vlaneseq
    %v2617 = vshrl.u32 %v2616, 7
    %v2618 = vsub.s32 3, %v2617
    %v2619 = vrot.slane %v1112, %v2618
    %v2620 = vlaneseq
    %v2621 = vshrl.u32 %v2620, 7
    %v2622 = vsub.s32 4, %v2621
    %v2623 = vrot.slane %v1112, %v2622
    %v2624 = vlaneseq
    %v2625 = vshrl.u32 %v2624, 7
    %v2626 = vsub.s32 5, %v2625
    %v2627 = vrot.slane %v1112, %v2626
    %v2628 = vlaneseq
    %v2629 = vshrl.u32 %v2628, 7
    %v2630 = vsub.s32 6, %v2629
    %v2631 = vrot.slane %v1112, %v2630
    %v2632 = vlaneseq
    %v2633 = vshrl.u32 %v2632, 7
    %v2634 = vsub.s32 7, %v2633
    %v2635 = vrot.slane %v1112, %v2634
    %v2636 = vlaneseq
    %v2637 = vshrl.u32 %v2636, 7
    %v2638 = vsub.s32 0, %v2637
    %v2639 = vrot.slane %v1113, %v2638
    %v2640 = vlaneseq
    %v2641 = vshrl.u32 %v2640, 7
    %v2642 = vsub.s32 1, %v2641
    %v2643 = vrot.slane %v1113, %v2642
    %v2644 = vlaneseq
    %v2645 = vshrl.u32 %v2644, 7
    %v2646 = vsub.s32 2, %v2645
    %v2647 = vrot.slane %v1113, %v2646
    %v2648 = vlaneseq
    %v2649 = vshrl.u32 %v2648, 7
    %v2650 = vsub.s32 3, %v2649
    %v2651 = vrot.slane %v1113, %v2650
    %v2652 = vlaneseq
    %v2653 = vshrl.u32 %v2652, 7
    %v2654 = vsub.s32 4, %v2653
    %v2655 = vrot.slane %v1113, %v2654
    %v2656 = vlaneseq
    %v2657 = vshrl.u32 %v2656, 7
    %v2658 = vsub.s32 5, %v2657
    %v2659 = vrot.slane %v1113, %v2658
    %v2660 = vlaneseq
    %v2661 = vshrl.u32 %v2660, 7
    %v2662 = vsub.s32 6, %v2661
    %v2663 = vrot.slane %v1113, %v2662
    %v2664 = vlaneseq
    %v2665 = vshrl.u32 %v2664, 7
    %v2666 = vsub.s32 7, %v2665
    %v2667 = vrot.slane %v1113, %v2666
    %v2668 = vlaneseq
    %v2669 = vshrl.u32 %v2668, 7
    %v2670 = vsub.s32 0, %v2669
    %v2671 = vrot.slane %v1114, %v2670
    %v2672 = vlaneseq
    %v2673 = vshrl.u32 %v2672, 7
    %v2674 = vsub.s32 1, %v2673
    %v2675 = vrot.slane %v1114, %v2674
    %v2676 = vlaneseq
    %v2677 = vshrl.u32 %v2676, 7
    %v2678 = vsub.s32 2, %v2677
    %v2679 = vrot.slane %v1114, %v2678
    %v2680 = vlaneseq
    %v2681 = vshrl.u32 %v2680, 7
    %v2682 = vsub.s32 3, %v2681
    %v2683 = vrot.slane %v1114, %v2682
    %v2684 = vlaneseq
    %v2685 = vshrl.u32 %v2684, 7
    %v2686 = vsub.s32 4, %v2685
    %v2687 = vrot.slane %v1114, %v2686
    %v2688 = vlaneseq
    %v2689 = vshrl.u32 %v2688, 7
    %v2690 = vsub.s32 5, %v2689
    %v2691 = vrot.slane %v1114, %v2690
    %v2692 = vlaneseq
    %v2693 = vshrl.u32 %v2692, 7
    %v2694 = vsub.s32 6, %v2693
    %v2695 = vrot.slane %v1114, %v2694
    %v2696 = vlaneseq
    %v2697 = vshrl.u32 %v2696, 7
    %v2698 = vsub.s32 7, %v2697
    %v2699 = vrot.slane %v1114, %v2698
    %v2700 = vlaneseq
    %v2701 = vshrl.u32 %v2700, 7
    %v2702 = vsub.s32 0, %v2701
    %v2703 = vrot.slane %v1115, %v2702
    %v2704 = vlaneseq
    %v2705 = vshrl.u32 %v2704, 7
    %v2706 = vsub.s32 1, %v2705
    %v2707 = vrot.slane %v1115, %v2706
    %v2708 = vlaneseq
    %v2709 = vshrl.u32 %v2708, 7
    %v2710 = vsub.s32 2, %v2709
    %v2711 = vrot.slane %v1115, %v2710
    %v2712 = vlaneseq
    %v2713 = vshrl.u32 %v2712, 7
    %v2714 = vsub.s32 3, %v2713
    %v2715 = vrot.slane %v1115, %v2714
    %v2716 = vlaneseq
    %v2717 = vshrl.u32 %v2716, 7
    %v2718 = vsub.s32 4, %v2717
    %v2719 = vrot.slane %v1115, %v2718
    %v2720 = vlaneseq
    %v2721 = vshrl.u32 %v2720, 7
    %v2722 = vsub.s32 5, %v2721
    %v2723 = vrot.slane %v1115, %v2722
    %v2724 = vlaneseq
    %v2725 = vshrl.u32 %v2724, 7
    %v2726 = vsub.s32 6, %v2725
    %v2727 = vrot.slane %v1115, %v2726
    %v2728 = vlaneseq
    %v2729 = vshrl.u32 %v2728, 7
    %v2730 = vsub.s32 7, %v2729
    %v2731 = vrot.slane %v1115, %v2730
    %v2732 = vlaneseq
    %v2733 = vshrl.u32 %v2732, 7
    %v2734 = vsub.s32 0, %v2733
    %v2735 = vrot.slane %v1116, %v2734
    %v2736 = vlaneseq
    %v2737 = vshrl.u32 %v2736, 7
    %v2738 = vsub.s32 1, %v2737
    %v2739 = vrot.slane %v1116, %v2738
    %v2740 = vlaneseq
    %v2741 = vshrl.u32 %v2740, 7
    %v2742 = vsub.s32 2, %v2741
    %v2743 = vrot.slane %v1116, %v2742
    %v2744 = vlaneseq
    %v2745 = vshrl.u32 %v2744, 7
    %v2746 = vsub.s32 3, %v2745
    %v2747 = vrot.slane %v1116, %v2746
    %v2748 = vlaneseq
    %v2749 = vshrl.u32 %v2748, 7
    %v2750 = vsub.s32 4, %v2749
    %v2751 = vrot.slane %v1116, %v2750
    %v2752 = vlaneseq
    %v2753 = vshrl.u32 %v2752, 7
    %v2754 = vsub.s32 5, %v2753
    %v2755 = vrot.slane %v1116, %v2754
    %v2756 = vlaneseq
    %v2757 = vshrl.u32 %v2756, 7
    %v2758 = vsub.s32 6, %v2757
    %v2759 = vrot.slane %v1116, %v2758
    %v2760 = vlaneseq
    %v2761 = vshrl.u32 %v2760, 7
    %v2762 = vsub.s32 7, %v2761
    %v2763 = vrot.slane %v1116, %v2762
    %v2764 = vlaneseq
    %v2765 = vshrl.u32 %v2764, 7
    %v2766 = vsub.s32 0, %v2765
    %v2767 = vrot.slane %v1117, %v2766
    %v2768 = vlaneseq
    %v2769 = vshrl.u32 %v2768, 7
    %v2770 = vsub.s32 1, %v2769
    %v2771 = vrot.slane %v1117, %v2770
    %v2772 = vlaneseq
    %v2773 = vshrl.u32 %v2772, 7
    %v2774 = vsub.s32 2, %v2773
    %v2775 = vrot.slane %v1117, %v2774
    %v2776 = vlaneseq
    %v2777 = vshrl.u32 %v2776, 7
    %v2778 = vsub.s32 3, %v2777
    %v2779 = vrot.slane %v1117, %v2778
    %v2780 = vlaneseq
    %v2781 = vshrl.u32 %v2780, 7
    %v2782 = vsub.s32 4, %v2781
    %v2783 = vrot.slane %v1117, %v2782
    %v2784 = vlaneseq
    %v2785 = vshrl.u32 %v2784, 7
    %v2786 = vsub.s32 5, %v2785
    %v2787 = vrot.slane %v1117, %v2786
    %v2788 = vlaneseq
    %v2789 = vshrl.u32 %v2788, 7
    %v2790 = vsub.s32 6, %v2789
    %v2791 = vrot.slane %v1117, %v2790
    %v2792 = vlaneseq
    %v2793 = vshrl.u32 %v2792, 7
    %v2794 = vsub.s32 7, %v2793
    %v2795 = vrot.slane %v1117, %v2794
    %v2796 = vlaneseq
    %v2797 = vshrl.u32 %v2796, 7
    %v2798 = vsub.s32 0, %v2797
    %v2799 = vrot.slane %v1118, %v2798
    %v2800 = vlaneseq
    %v2801 = vshrl.u32 %v2800, 7
    %v2802 = vsub.s32 1, %v2801
    %v2803 = vrot.slane %v1118, %v2802
    %v2804 = vlaneseq
    %v2805 = vshrl.u32 %v2804, 7
    %v2806 = vsub.s32 2, %v2805
    %v2807 = vrot.slane %v1118, %v2806
    %v2808 = vlaneseq
    %v2809 = vshrl.u32 %v2808, 7
    %v2810 = vsub.s32 3, %v2809
    %v2811 = vrot.slane %v1118, %v2810
    %v2812 = vlaneseq
    %v2813 = vshrl.u32 %v2812, 7
    %v2814 = vsub.s32 4, %v2813
    %v2815 = vrot.slane %v1118, %v2814
    %v2816 = vlaneseq
    %v2817 = vshrl.u32 %v2816, 7
    %v2818 = vsub.s32 5, %v2817
    %v2819 = vrot.slane %v1118, %v2818
    %v2820 = vlaneseq
    %v2821 = vshrl.u32 %v2820, 7
    %v2822 = vsub.s32 6, %v2821
    %v2823 = vrot.slane %v1118, %v2822
    %v2824 = vlaneseq
    %v2825 = vshrl.u32 %v2824, 7
    %v2826 = vsub.s32 7, %v2825
    %v2827 = vrot.slane %v1118, %v2826
    %v2828 = vlaneseq
    %v2829 = vshrl.u32 %v2828, 7
    %v2830 = vsub.s32 0, %v2829
    %v2831 = vrot.slane %v1119, %v2830
    %v2832 = vlaneseq
    %v2833 = vshrl.u32 %v2832, 7
    %v2834 = vsub.s32 1, %v2833
    %v2835 = vrot.slane %v1119, %v2834
    %v2836 = vlaneseq
    %v2837 = vshrl.u32 %v2836, 7
    %v2838 = vsub.s32 2, %v2837
    %v2839 = vrot.slane %v1119, %v2838
    %v2840 = vlaneseq
    %v2841 = vshrl.u32 %v2840, 7
    %v2842 = vsub.s32 3, %v2841
    %v2843 = vrot.slane %v1119, %v2842
    %v2844 = vlaneseq
    %v2845 = vshrl.u32 %v2844, 7
    %v2846 = vsub.s32 4, %v2845
    %v2847 = vrot.slane %v1119, %v2846
    %v2848 = vlaneseq
    %v2849 = vshrl.u32 %v2848, 7
    %v2850 = vsub.s32 5, %v2849
    %v2851 = vrot.slane %v1119, %v2850
    %v2852 = vlaneseq
    %v2853 = vshrl.u32 %v2852, 7
    %v2854 = vsub.s32 6, %v2853
    %v2855 = vrot.slane %v1119, %v2854
    %v2856 = vlaneseq
    %v2857 = vshrl.u32 %v2856, 7
    %v2858 = vsub.s32 7, %v2857
    %v2859 = vrot.slane %v1119, %v2858
    %v2860 = vlaneseq
    %v2861 = vshrl.u32 %v2860, 7
    %v2862 = vsub.s32 0, %v2861
    %v2863 = vrot.slane %v1120, %v2862
    %v2864 = vlaneseq
    %v2865 = vshrl.u32 %v2864, 7
    %v2866 = vsub.s32 1, %v2865
    %v2867 = vrot.slane %v1120, %v2866
    %v2868 = vlaneseq
    %v2869 = vshrl.u32 %v2868, 7
    %v2870 = vsub.s32 2, %v2869
    %v2871 = vrot.slane %v1120, %v2870
    %v2872 = vlaneseq
    %v2873 = vshrl.u32 %v2872, 7
    %v2874 = vsub.s32 3, %v2873
    %v2875 = vrot.slane %v1120, %v2874
    %v2876 = vlaneseq
    %v2877 = vshrl.u32 %v2876, 7
    %v2878 = vsub.s32 4, %v2877
    %v2879 = vrot.slane %v1120, %v2878
    %v2880 = vlaneseq
    %v2881 = vshrl.u32 %v2880, 7
    %v2882 = vsub.s32 5, %v2881
    %v2883 = vrot.slane %v1120, %v2882
    %v2884 = vlaneseq
    %v2885 = vshrl.u32 %v2884, 7
    %v2886 = vsub.s32 6, %v2885
    %v2887 = vrot.slane %v1120, %v2886
    %v2888 = vlaneseq
    %v2889 = vshrl.u32 %v2888, 7
    %v2890 = vsub.s32 7, %v2889
    %v2891 = vrot.slane %v1120, %v2890
    %v2892 = vlaneseq
    %v2893 = vshrl.u32 %v2892, 7
    %v2894 = vsub.s32 0, %v2893
    %v2895 = vrot.slane %v1121, %v2894
    %v2896 = vlaneseq
    %v2897 = vshrl.u32 %v2896, 7
    %v2898 = vsub.s32 1, %v2897
    %v2899 = vrot.slane %v1121, %v2898
    %v2900 = vlaneseq
    %v2901 = vshrl.u32 %v2900, 7
    %v2902 = vsub.s32 2, %v2901
    %v2903 = vrot.slane %v1121, %v2902
    %v2904 = vlaneseq
    %v2905 = vshrl.u32 %v2904, 7
    %v2906 = vsub.s32 3, %v2905
    %v2907 = vrot.slane %v1121, %v2906
    %v2908 = vlaneseq
    %v2909 = vshrl.u32 %v2908, 7
    %v2910 = vsub.s32 4, %v2909
    %v2911 = vrot.slane %v1121, %v2910
    %v2912 = vlaneseq
    %v2913 = vshrl.u32 %v2912, 7
    %v2914 = vsub.s32 5, %v2913
    %v2915 = vrot.slane %v1121, %v2914
    %v2916 = vlaneseq
    %v2917 = vshrl.u32 %v2916, 7
    %v2918 = vsub.s32 6, %v2917
    %v2919 = vrot.slane %v1121, %v2918
    %v2920 = vlaneseq
    %v2921 = vshrl.u32 %v2920, 7
    %v2922 = vsub.s32 7, %v2921
    %v2923 = vrot.slane %v1121, %v2922
    %v2924 = vlaneseq
    %v2925 = vshrl.u32 %v2924, 7
    %v2926 = vsub.s32 0, %v2925
    %v2927 = vrot.slane %v1122, %v2926
    %v2928 = vlaneseq
    %v2929 = vshrl.u32 %v2928, 7
    %v2930 = vsub.s32 1, %v2929
    %v2931 = vrot.slane %v1122, %v2930
    %v2932 = vlaneseq
    %v2933 = vshrl.u32 %v2932, 7
    %v2934 = vsub.s32 2, %v2933
    %v2935 = vrot.slane %v1122, %v2934
    %v2936 = vlaneseq
    %v2937 = vshrl.u32 %v2936, 7
    %v2938 = vsub.s32 3, %v2937
    %v2939 = vrot.slane %v1122, %v2938
    %v2940 = vlaneseq
    %v2941 = vshrl.u32 %v2940, 7
    %v2942 = vsub.s32 4, %v2941
    %v2943 = vrot.slane %v1122, %v2942
    %v2944 = vlaneseq
    %v2945 = vshrl.u32 %v2944, 7
    %v2946 = vsub.s32 5, %v2945
    %v2947 = vrot.slane %v1122, %v2946
    %v2948 = vlaneseq
    %v2949 = vshrl.u32 %v2948, 7
    %v2950 = vsub.s32 6, %v2949
    %v2951 = vrot.slane %v1122, %v2950
    %v2952 = vlaneseq
    %v2953 = vshrl.u32 %v2952, 7
    %v2954 = vsub.s32 7, %v2953
    %v2955 = vrot.slane %v1122, %v2954
    %v2956 = vlaneseq
    %v2957 = vshrl.u32 %v2956, 7
    %v2958 = vsub.s32 0, %v2957
    %v2959 = vrot.slane %v1123, %v2958
    %v2960 = vlaneseq
    %v2961 = vshrl.u32 %v2960, 7
    %v2962 = vsub.s32 1, %v2961
    %v2963 = vrot.slane %v1123, %v2962
    %v2964 = vlaneseq
    %v2965 = vshrl.u32 %v2964, 7
    %v2966 = vsub.s32 2, %v2965
    %v2967 = vrot.slane %v1123, %v2966
    %v2968 = vlaneseq
    %v2969 = vshrl.u32 %v2968, 7
    %v2970 = vsub.s32 3, %v2969
    %v2971 = vrot.slane %v1123, %v2970
    %v2972 = vlaneseq
    %v2973 = vshrl.u32 %v2972, 7
    %v2974 = vsub.s32 4, %v2973
    %v2975 = vrot.slane %v1123, %v2974
    %v2976 = vlaneseq
    %v2977 = vshrl.u32 %v2976, 7
    %v2978 = vsub.s32 5, %v2977
    %v2979 = vrot.slane %v1123, %v2978
    %v2980 = vlaneseq
    %v2981 = vshrl.u32 %v2980, 7
    %v2982 = vsub.s32 6, %v2981
    %v2983 = vrot.slane %v1123, %v2982
    %v2984 = vlaneseq
    %v2985 = vshrl.u32 %v2984, 7
    %v2986 = vsub.s32 7, %v2985
    %v2987 = vrot.slane %v1123, %v2986
    %v2988 = vlaneseq
    %v2989 = vshrl.u32 %v2988, 7
    %v2990 = vsub.s32 0, %v2989
    %v2991 = vrot.slane %v1124, %v2990
    %v2992 = vlaneseq
    %v2993 = vshrl.u32 %v2992, 7
    %v2994 = vsub.s32 1, %v2993
    %v2995 = vrot.slane %v1124, %v2994
    %v2996 = vlaneseq
    %v2997 = vshrl.u32 %v2996, 7
    %v2998 = vsub.s32 2, %v2997
    %v2999 = vrot.slane %v1124, %v2998
    %v3000 = vlaneseq
    %v3001 = vshrl.u32 %v3000, 7
    %v3002 = vsub.s32 3, %v3001
    %v3003 = vrot.slane %v1124, %v3002
    %v3004 = vlaneseq
    %v3005 = vshrl.u32 %v3004, 7
    %v3006 = vsub.s32 4, %v3005
    %v3007 = vrot.slane %v1124, %v3006
    %v3008 = vlaneseq
    %v3009 = vshrl.u32 %v3008, 7
    %v3010 = vsub.s32 5, %v3009
    %v3011 = vrot.slane %v1124, %v3010
    %v3012 = vlaneseq
    %v3013 = vshrl.u32 %v3012, 7
    %v3014 = vsub.s32 6, %v3013
    %v3015 = vrot.slane %v1124, %v3014
    %v3016 = vlaneseq
    %v3017 = vshrl.u32 %v3016, 7
    %v3018 = vsub.s32 7, %v3017
    %v3019 = vrot.slane %v1124, %v3018
    %v3020 = vlaneseq
    %v3021 = vshrl.u32 %v3020, 7
    %v3022 = vsub.s32 0, %v3021
    %v3023 = vrot.slane %v1125, %v3022
    %v3024 = vlaneseq
    %v3025 = vshrl.u32 %v3024, 7
    %v3026 = vsub.s32 1, %v3025
    %v3027 = vrot.slane %v1125, %v3026
    %v3028 = vlaneseq
    %v3029 = vshrl.u32 %v3028, 7
    %v3030 = vsub.s32 2, %v3029
    %v3031 = vrot.slane %v1125, %v3030
    %v3032 = vlaneseq
    %v3033 = vshrl.u32 %v3032, 7
    %v3034 = vsub.s32 3, %v3033
    %v3035 = vrot.slane %v1125, %v3034
    %v3036 = vlaneseq
    %v3037 = vshrl.u32 %v3036, 7
    %v3038 = vsub.s32 4, %v3037
    %v3039 = vrot.slane %v1125, %v3038
    %v3040 = vlaneseq
    %v3041 = vshrl.u32 %v3040, 7
    %v3042 = vsub.s32 5, %v3041
    %v3043 = vrot.slane %v1125, %v3042
    %v3044 = vlaneseq
    %v3045 = vshrl.u32 %v3044, 7
    %v3046 = vsub.s32 6, %v3045
    %v3047 = vrot.slane %v1125, %v3046
    %v3048 = vlaneseq
    %v3049 = vshrl.u32 %v3048, 7
    %v3050 = vsub.s32 7, %v3049
    %v3051 = vrot.slane %v1125, %v3050
    %v3052 = vlaneseq
    %v3053 = vshrl.u32 %v3052, 7
    %v3054 = vsub.s32 0, %v3053
    %v3055 = vrot.slane %v1126, %v3054
    %v3056 = vlaneseq
    %v3057 = vshrl.u32 %v3056, 7
    %v3058 = vsub.s32 1, %v3057
    %v3059 = vrot.slane %v1126, %v3058
    %v3060 = vlaneseq
    %v3061 = vshrl.u32 %v3060, 7
    %v3062 = vsub.s32 2, %v3061
    %v3063 = vrot.slane %v1126, %v3062
    %v3064 = vlaneseq
    %v3065 = vshrl.u32 %v3064, 7
    %v3066 = vsub.s32 3, %v3065
    %v3067 = vrot.slane %v1126, %v3066
    %v3068 = vlaneseq
    %v3069 = vshrl.u32 %v3068, 7
    %v3070 = vsub.s32 4, %v3069
    %v3071 = vrot.slane %v1126, %v3070
    %v3072 = vlaneseq
    %v3073 = vshrl.u32 %v3072, 7
    %v3074 = vsub.s32 5, %v3073
    %v3075 = vrot.slane %v1126, %v3074
    %v3076 = vlaneseq
    %v3077 = vshrl.u32 %v3076, 7
    %v3078 = vsub.s32 6, %v3077
    %v3079 = vrot.slane %v1126, %v3078
    %v3080 = vlaneseq
    %v3081 = vshrl.u32 %v3080, 7
    %v3082 = vsub.s32 7, %v3081
    %v3083 = vrot.slane %v1126, %v3082
    %v3084 = vlaneseq
    %v3085 = vshrl.u32 %v3084, 7
    %v3086 = vsub.s32 0, %v3085
    %v3087 = vrot.slane %v1127, %v3086
    %v3088 = vlaneseq
    %v3089 = vshrl.u32 %v3088, 7
    %v3090 = vsub.s32 1, %v3089
    %v3091 = vrot.slane %v1127, %v3090
    %v3092 = vlaneseq
    %v3093 = vshrl.u32 %v3092, 7
    %v3094 = vsub.s32 2, %v3093
    %v3095 = vrot.slane %v1127, %v3094
    %v3096 = vlaneseq
    %v3097 = vshrl.u32 %v3096, 7
    %v3098 = vsub.s32 3, %v3097
    %v3099 = vrot.slane %v1127, %v3098
    %v3100 = vlaneseq
    %v3101 = vshrl.u32 %v3100, 7
    %v3102 = vsub.s32 4, %v3101
    %v3103 = vrot.slane %v1127, %v3102
    %v3104 = vlaneseq
    %v3105 = vshrl.u32 %v3104, 7
    %v3106 = vsub.s32 5, %v3105
    %v3107 = vrot.slane %v1127, %v3106
    %v3108 = vlaneseq
    %v3109 = vshrl.u32 %v3108, 7
    %v3110 = vsub.s32 6, %v3109
    %v3111 = vrot.slane %v1127, %v3110
    %v3112 = vlaneseq
    %v3113 = vshrl.u32 %v3112, 7
    %v3114 = vsub.s32 7, %v3113
    %v3115 = vrot.slane %v1127, %v3114
    %v3116 = vlaneseq
    %v3117 = vshrl.u32 %v3116, 7
    %v3118 = vsub.s32 0, %v3117
    %v3119 = vrot.slane %v1128, %v3118
    %v3120 = vlaneseq
    %v3121 = vshrl.u32 %v3120, 7
    %v3122 = vsub.s32 1, %v3121
    %v3123 = vrot.slane %v1128, %v3122
    %v3124 = vlaneseq
    %v3125 = vshrl.u32 %v3124, 7
    %v3126 = vsub.s32 2, %v3125
    %v3127 = vrot.slane %v1128, %v3126
    %v3128 = vlaneseq
    %v3129 = vshrl.u32 %v3128, 7
    %v3130 = vsub.s32 3, %v3129
    %v3131 = vrot.slane %v1128, %v3130
    %v3132 = vlaneseq
    %v3133 = vshrl.u32 %v3132, 7
    %v3134 = vsub.s32 4, %v3133
    %v3135 = vrot.slane %v1128, %v3134
    %v3136 = vlaneseq
    %v3137 = vshrl.u32 %v3136, 7
    %v3138 = vsub.s32 5, %v3137
    %v3139 = vrot.slane %v1128, %v3138
    %v3140 = vlaneseq
    %v3141 = vshrl.u32 %v3140, 7
    %v3142 = vsub.s32 6, %v3141
    %v3143 = vrot.slane %v1128, %v3142
    %v3144 = vlaneseq
    %v3145 = vshrl.u32 %v3144, 7
    %v3146 = vsub.s32 7, %v3145
    %v3147 = vrot.slane %v1128, %v3146
    %v3148 = vlaneseq
    %v3149 = vshrl.u32 %v3148, 7
    %v3150 = vsub.s32 0, %v3149
    %v3151 = vrot.slane %v1129, %v3150
    %v3152 = vlaneseq
    %v3153 = vshrl.u32 %v3152, 7
    %v3154 = vsub.s32 1, %v3153
    %v3155 = vrot.slane %v1129, %v3154
    %v3156 = vlaneseq
    %v3157 = vshrl.u32 %v3156, 7
    %v3158 = vsub.s32 2, %v3157
    %v3159 = vrot.slane %v1129, %v3158
    %v3160 = vlaneseq
    %v3161 = vshrl.u32 %v3160, 7
    %v3162 = vsub.s32 3, %v3161
    %v3163 = vrot.slane %v1129, %v3162
    %v3164 = vlaneseq
    %v3165 = vshrl.u32 %v3164, 7
    %v3166 = vsub.s32 4, %v3165
    %v3167 = vrot.slane %v1129, %v3166
    %v3168 = vlaneseq
    %v3169 = vshrl.u32 %v3168, 7
    %v3170 = vsub.s32 5, %v3169
    %v3171 = vrot.slane %v1129, %v3170
    %v3172 = vlaneseq
    %v3173 = vshrl.u32 %v3172, 7
    %v3174 = vsub.s32 6, %v3173
    %v3175 = vrot.slane %v1129, %v3174
    %v3176 = vlaneseq
    %v3177 = vshrl.u32 %v3176, 7
    %v3178 = vsub.s32 7, %v3177
    %v3179 = vrot.slane %v1129, %v3178
    %v3180 = vlaneseq
    %v3181 = vshrl.u32 %v3180, 7
    %v3182 = vsub.s32 0, %v3181
    %v3183 = vrot.slane %v1130, %v3182
    %v3184 = vlaneseq
    %v3185 = vshrl.u32 %v3184, 7
    %v3186 = vsub.s32 1, %v3185
    %v3187 = vrot.slane %v1130, %v3186
    %v3188 = vlaneseq
    %v3189 = vshrl.u32 %v3188, 7
    %v3190 = vsub.s32 2, %v3189
    %v3191 = vrot.slane %v1130, %v3190
    %v3192 = vlaneseq
    %v3193 = vshrl.u32 %v3192, 7
    %v3194 = vsub.s32 3, %v3193
    %v3195 = vrot.slane %v1130, %v3194
    %v3196 = vlaneseq
    %v3197 = vshrl.u32 %v3196, 7
    %v3198 = vsub.s32 4, %v3197
    %v3199 = vrot.slane %v1130, %v3198
    %v3200 = vlaneseq
    %v3201 = vshrl.u32 %v3200, 7
    %v3202 = vsub.s32 5, %v3201
    %v3203 = vrot.slane %v1130, %v3202
    %v3204 = vlaneseq
    %v3205 = vshrl.u32 %v3204, 7
    %v3206 = vsub.s32 6, %v3205
    %v3207 = vrot.slane %v1130, %v3206
    %v3208 = vlaneseq
    %v3209 = vshrl.u32 %v3208, 7
    %v3210 = vsub.s32 7, %v3209
    %v3211 = vrot.slane %v1130, %v3210
    %v3212 = vlaneseq
    %v3213 = vshrl.u32 %v3212, 7
    %v3214 = vsub.s32 0, %v3213
    %v3215 = vrot.slane %v1131, %v3214
    %v3216 = vlaneseq
    %v3217 = vshrl.u32 %v3216, 7
    %v3218 = vsub.s32 1, %v3217
    %v3219 = vrot.slane %v1131, %v3218
    %v3220 = vlaneseq
    %v3221 = vshrl.u32 %v3220, 7
    %v3222 = vsub.s32 2, %v3221
    %v3223 = vrot.slane %v1131, %v3222
    %v3224 = vlaneseq
    %v3225 = vshrl.u32 %v3224, 7
    %v3226 = vsub.s32 3, %v3225
    %v3227 = vrot.slane %v1131, %v3226
    %v3228 = vlaneseq
    %v3229 = vshrl.u32 %v3228, 7
    %v3230 = vsub.s32 4, %v3229
    %v3231 = vrot.slane %v1131, %v3230
    %v3232 = vlaneseq
    %v3233 = vshrl.u32 %v3232, 7
    %v3234 = vsub.s32 5, %v3233
    %v3235 = vrot.slane %v1131, %v3234
    %v3236 = vlaneseq
    %v3237 = vshrl.u32 %v3236, 7
    %v3238 = vsub.s32 6, %v3237
    %v3239 = vrot.slane %v1131, %v3238
    %v3240 = vlaneseq
    %v3241 = vshrl.u32 %v3240, 7
    %v3242 = vsub.s32 7, %v3241
    %v3243 = vrot.slane %v1131, %v3242
    %v3244 = vlaneseq
    %v3245 = vshrl.u32 %v3244, 7
    %v3246 = vsub.s32 0, %v3245
    %v3247 = vrot.slane %v1132, %v3246
    %v3248 = vlaneseq
    %v3249 = vshrl.u32 %v3248, 7
    %v3250 = vsub.s32 1, %v3249
    %v3251 = vrot.slane %v1132, %v3250
    %v3252 = vlaneseq
    %v3253 = vshrl.u32 %v3252, 7
    %v3254 = vsub.s32 2, %v3253
    %v3255 = vrot.slane %v1132, %v3254
    %v3256 = vlaneseq
    %v3257 = vshrl.u32 %v3256, 7
    %v3258 = vsub.s32 3, %v3257
    %v3259 = vrot.slane %v1132, %v3258
    %v3260 = vlaneseq
    %v3261 = vshrl.u32 %v3260, 7
    %v3262 = vsub.s32 4, %v3261
    %v3263 = vrot.slane %v1132, %v3262
    %v3264 = vlaneseq
    %v3265 = vshrl.u32 %v3264, 7
    %v3266 = vsub.s32 5, %v3265
    %v3267 = vrot.slane %v1132, %v3266
    %v3268 = vlaneseq
    %v3269 = vshrl.u32 %v3268, 7
    %v3270 = vsub.s32 6, %v3269
    %v3271 = vrot.slane %v1132, %v3270
    %v3272 = vlaneseq
    %v3273 = vshrl.u32 %v3272, 7
    %v3274 = vsub.s32 7, %v3273
    %v3275 = vrot.slane %v1132, %v3274
    %v3276 = vlaneseq
    %v3277 = vshrl.u32 %v3276, 7
    %v3278 = vsub.s32 0, %v3277
    %v3279 = vrot.slane %v1133, %v3278
    %v3280 = vlaneseq
    %v3281 = vshrl.u32 %v3280, 7
    %v3282 = vsub.s32 1, %v3281
    %v3283 = vrot.slane %v1133, %v3282
    %v3284 = vlaneseq
    %v3285 = vshrl.u32 %v3284, 7
    %v3286 = vsub.s32 2, %v3285
    %v3287 = vrot.slane %v1133, %v3286
    %v3288 = vlaneseq
    %v3289 = vshrl.u32 %v3288, 7
    %v3290 = vsub.s32 3, %v3289
    %v3291 = vrot.slane %v1133, %v3290
    %v3292 = vlaneseq
    %v3293 = vshrl.u32 %v3292, 7
    %v3294 = vsub.s32 4, %v3293
    %v3295 = vrot.slane %v1133, %v3294
    %v3296 = vlaneseq
    %v3297 = vshrl.u32 %v3296, 7
    %v3298 = vsub.s32 5, %v3297
    %v3299 = vrot.slane %v1133, %v3298
    %v3300 = vlaneseq
    %v3301 = vshrl.u32 %v3300, 7
    %v3302 = vsub.s32 6, %v3301
    %v3303 = vrot.slane %v1133, %v3302
    %v3304 = vlaneseq
    %v3305 = vshrl.u32 %v3304, 7
    %v3306 = vsub.s32 7, %v3305
    %v3307 = vrot.slane %v1133, %v3306
    %v3308 = vlaneseq
    %v3309 = vshrl.u32 %v3308, 7
    %v3310 = vsub.s32 0, %v3309
    %v3311 = vrot.slane %v1134, %v3310
    %v3312 = vlaneseq
    %v3313 = vshrl.u32 %v3312, 7
    %v3314 = vsub.s32 1, %v3313
    %v3315 = vrot.slane %v1134, %v3314
    %v3316 = vlaneseq
    %v3317 = vshrl.u32 %v3316, 7
    %v3318 = vsub.s32 2, %v3317
    %v3319 = vrot.slane %v1134, %v3318
    %v3320 = vlaneseq
    %v3321 = vshrl.u32 %v3320, 7
    %v3322 = vsub.s32 3, %v3321
    %v3323 = vrot.slane %v1134, %v3322
    %v3324 = vlaneseq
    %v3325 = vshrl.u32 %v3324, 7
    %v3326 = vsub.s32 4, %v3325
    %v3327 = vrot.slane %v1134, %v3326
    %v3328 = vlaneseq
    %v3329 = vshrl.u32 %v3328, 7
    %v3330 = vsub.s32 5, %v3329
    %v3331 = vrot.slane %v1134, %v3330
    %v3332 = vlaneseq
    %v3333 = vshrl.u32 %v3332, 7
    %v3334 = vsub.s32 6, %v3333
    %v3335 = vrot.slane %v1134, %v3334
    %v3336 = vlaneseq
    %v3337 = vshrl.u32 %v3336, 7
    %v3338 = vsub.s32 7, %v3337
    %v3339 = vrot.slane %v1134, %v3338
    %v3340 = vlaneseq
    %v3341 = vshrl.u32 %v3340, 7
    %v3342 = vsub.s32 0, %v3341
    %v3343 = vrot.slane %v1135, %v3342
    %v3344 = vlaneseq
    %v3345 = vshrl.u32 %v3344, 7
    %v3346 = vsub.s32 1, %v3345
    %v3347 = vrot.slane %v1135, %v3346
    %v3348 = vlaneseq
    %v3349 = vshrl.u32 %v3348, 7
    %v3350 = vsub.s32 2, %v3349
    %v3351 = vrot.slane %v1135, %v3350
    %v3352 = vlaneseq
    %v3353 = vshrl.u32 %v3352, 7
    %v3354 = vsub.s32 3, %v3353
    %v3355 = vrot.slane %v1135, %v3354
    %v3356 = vlaneseq
    %v3357 = vshrl.u32 %v3356, 7
    %v3358 = vsub.s32 4, %v3357
    %v3359 = vrot.slane %v1135, %v3358
    %v3360 = vlaneseq
    %v3361 = vshrl.u32 %v3360, 7
    %v3362 = vsub.s32 5, %v3361
    %v3363 = vrot.slane %v1135, %v3362
    %v3364 = vlaneseq
    %v3365 = vshrl.u32 %v3364, 7
    %v3366 = vsub.s32 6, %v3365
    %v3367 = vrot.slane %v1135, %v3366
    %v3368 = vlaneseq
    %v3369 = vshrl.u32 %v3368, 7
    %v3370 = vsub.s32 7, %v3369
    %v3371 = vrot.slane %v1135, %v3370
    %v3372 = vlaneseq
    %v3373 = vshrl.u32 %v3372, 7
    %v3374 = vsub.s32 0, %v3373
    %v3375 = vrot.slane %v1136, %v3374
    %v3376 = vlaneseq
    %v3377 = vshrl.u32 %v3376, 7
    %v3378 = vsub.s32 1, %v3377
    %v3379 = vrot.slane %v1136, %v3378
    %v3380 = vlaneseq
    %v3381 = vshrl.u32 %v3380, 7
    %v3382 = vsub.s32 2, %v3381
    %v3383 = vrot.slane %v1136, %v3382
    %v3384 = vlaneseq
    %v3385 = vshrl.u32 %v3384, 7
    %v3386 = vsub.s32 3, %v3385
    %v3387 = vrot.slane %v1136, %v3386
    %v3388 = vlaneseq
    %v3389 = vshrl.u32 %v3388, 7
    %v3390 = vsub.s32 4, %v3389
    %v3391 = vrot.slane %v1136, %v3390
    %v3392 = vlaneseq
    %v3393 = vshrl.u32 %v3392, 7
    %v3394 = vsub.s32 5, %v3393
    %v3395 = vrot.slane %v1136, %v3394
    %v3396 = vlaneseq
    %v3397 = vshrl.u32 %v3396, 7
    %v3398 = vsub.s32 6, %v3397
    %v3399 = vrot.slane %v1136, %v3398
    %v3400 = vlaneseq
    %v3401 = vshrl.u32 %v3400, 7
    %v3402 = vsub.s32 7, %v3401
    %v3403 = vrot.slane %v1136, %v3402
    %v3404 = vlaneseq
    %v3405 = vshrl.u32 %v3404, 7
    %v3406 = vsub.s32 0, %v3405
    %v3407 = vrot.slane %v1137, %v3406
    %v3408 = vlaneseq
    %v3409 = vshrl.u32 %v3408, 7
    %v3410 = vsub.s32 1, %v3409
    %v3411 = vrot.slane %v1137, %v3410
    %v3412 = vlaneseq
    %v3413 = vshrl.u32 %v3412, 7
    %v3414 = vsub.s32 2, %v3413
    %v3415 = vrot.slane %v1137, %v3414
    %v3416 = vlaneseq
    %v3417 = vshrl.u32 %v3416, 7
    %v3418 = vsub.s32 3, %v3417
    %v3419 = vrot.slane %v1137, %v3418
    %v3420 = vlaneseq
    %v3421 = vshrl.u32 %v3420, 7
    %v3422 = vsub.s32 4, %v3421
    %v3423 = vrot.slane %v1137, %v3422
    %v3424 = vlaneseq
    %v3425 = vshrl.u32 %v3424, 7
    %v3426 = vsub.s32 5, %v3425
    %v3427 = vrot.slane %v1137, %v3426
    %v3428 = vlaneseq
    %v3429 = vshrl.u32 %v3428, 7
    %v3430 = vsub.s32 6, %v3429
    %v3431 = vrot.slane %v1137, %v3430
    %v3432 = vlaneseq
    %v3433 = vshrl.u32 %v3432, 7
    %v3434 = vsub.s32 7, %v3433
    %v3435 = vrot.slane %v1137, %v3434
    %v3436 = vlaneseq
    %v3437 = vshrl.u32 %v3436, 7
    %v3438 = vsub.s32 0, %v3437
    %v3439 = vrot.slane %v1138, %v3438
    %v3440 = vlaneseq
    %v3441 = vshrl.u32 %v3440, 7
    %v3442 = vsub.s32 1, %v3441
    %v3443 = vrot.slane %v1138, %v3442
    %v3444 = vlaneseq
    %v3445 = vshrl.u32 %v3444, 7
    %v3446 = vsub.s32 2, %v3445
    %v3447 = vrot.slane %v1138, %v3446
    %v3448 = vlaneseq
    %v3449 = vshrl.u32 %v3448, 7
    %v3450 = vsub.s32 3, %v3449
    %v3451 = vrot.slane %v1138, %v3450
    %v3452 = vlaneseq
    %v3453 = vshrl.u32 %v3452, 7
    %v3454 = vsub.s32 4, %v3453
    %v3455 = vrot.slane %v1138, %v3454
    %v3456 = vlaneseq
    %v3457 = vshrl.u32 %v3456, 7
    %v3458 = vsub.s32 5, %v3457
    %v3459 = vrot.slane %v1138, %v3458
    %v3460 = vlaneseq
    %v3461 = vshrl.u32 %v3460, 7
    %v3462 = vsub.s32 6, %v3461
    %v3463 = vrot.slane %v1138, %v3462
    %v3464 = vlaneseq
    %v3465 = vshrl.u32 %v3464, 7
    %v3466 = vsub.s32 7, %v3465
    %v3467 = vrot.slane %v1138, %v3466
    %v3468 = vlaneseq
    %v3469 = vshrl.u32 %v3468, 7
    %v3470 = vsub.s32 0, %v3469
    %v3471 = vrot.slane %v1139, %v3470
    %v3472 = vlaneseq
    %v3473 = vshrl.u32 %v3472, 7
    %v3474 = vsub.s32 1, %v3473
    %v3475 = vrot.slane %v1139, %v3474
    %v3476 = vlaneseq
    %v3477 = vshrl.u32 %v3476, 7
    %v3478 = vsub.s32 2, %v3477
    %v3479 = vrot.slane %v1139, %v3478
    %v3480 = vlaneseq
    %v3481 = vshrl.u32 %v3480, 7
    %v3482 = vsub.s32 3, %v3481
    %v3483 = vrot.slane %v1139, %v3482
    %v3484 = vlaneseq
    %v3485 = vshrl.u32 %v3484, 7
    %v3486 = vsub.s32 4, %v3485
    %v3487 = vrot.slane %v1139, %v3486
    %v3488 = vlaneseq
    %v3489 = vshrl.u32 %v3488, 7
    %v3490 = vsub.s32 5, %v3489
    %v3491 = vrot.slane %v1139, %v3490
    %v3492 = vlaneseq
    %v3493 = vshrl.u32 %v3492, 7
    %v3494 = vsub.s32 6, %v3493
    %v3495 = vrot.slane %v1139, %v3494
    %v3496 = vlaneseq
    %v3497 = vshrl.u32 %v3496, 7
    %v3498 = vsub.s32 7, %v3497
    %v3499 = vrot.slane %v1139, %v3498
    %v3500 = vlaneseq
    %v3501 = vshrl.u32 %v3500, 7
    %v3502 = vsub.s32 0, %v3501
    %v3503 = vrot.slane %v1140, %v3502
    %v3504 = vlaneseq
    %v3505 = vshrl.u32 %v3504, 7
    %v3506 = vsub.s32 1, %v3505
    %v3507 = vrot.slane %v1140, %v3506
    %v3508 = vlaneseq
    %v3509 = vshrl.u32 %v3508, 7
    %v3510 = vsub.s32 2, %v3509
    %v3511 = vrot.slane %v1140, %v3510
    %v3512 = vlaneseq
    %v3513 = vshrl.u32 %v3512, 7
    %v3514 = vsub.s32 3, %v3513
    %v3515 = vrot.slane %v1140, %v3514
    %v3516 = vlaneseq
    %v3517 = vshrl.u32 %v3516, 7
    %v3518 = vsub.s32 4, %v3517
    %v3519 = vrot.slane %v1140, %v3518
    %v3520 = vlaneseq
    %v3521 = vshrl.u32 %v3520, 7
    %v3522 = vsub.s32 5, %v3521
    %v3523 = vrot.slane %v1140, %v3522
    %v3524 = vlaneseq
    %v3525 = vshrl.u32 %v3524, 7
    %v3526 = vsub.s32 6, %v3525
    %v3527 = vrot.slane %v1140, %v3526
    %v3528 = vlaneseq
    %v3529 = vshrl.u32 %v3528, 7
    %v3530 = vsub.s32 7, %v3529
    %v3531 = vrot.slane %v1140, %v3530
    %v3532 = vlaneseq
    %v3533 = vshrl.u32 %v3532, 7
    %v3534 = vsub.s32 0, %v3533
    %v3535 = vrot.slane %v1141, %v3534
    %v3536 = vlaneseq
    %v3537 = vshrl.u32 %v3536, 7
    %v3538 = vsub.s32 1, %v3537
    %v3539 = vrot.slane %v1141, %v3538
    %v3540 = vlaneseq
    %v3541 = vshrl.u32 %v3540, 7
    %v3542 = vsub.s32 2, %v3541
    %v3543 = vrot.slane %v1141, %v3542
    %v3544 = vlaneseq
    %v3545 = vshrl.u32 %v3544, 7
    %v3546 = vsub.s32 3, %v3545
    %v3547 = vrot.slane %v1141, %v3546
    %v3548 = vlaneseq
    %v3549 = vshrl.u32 %v3548, 7
    %v3550 = vsub.s32 4, %v3549
    %v3551 = vrot.slane %v1141, %v3550
    %v3552 = vlaneseq
    %v3553 = vshrl.u32 %v3552, 7
    %v3554 = vsub.s32 5, %v3553
    %v3555 = vrot.slane %v1141, %v3554
    %v3556 = vlaneseq
    %v3557 = vshrl.u32 %v3556, 7
    %v3558 = vsub.s32 6, %v3557
    %v3559 = vrot.slane %v1141, %v3558
    %v3560 = vlaneseq
    %v3561 = vshrl.u32 %v3560, 7
    %v3562 = vsub.s32 7, %v3561
    %v3563 = vrot.slane %v1141, %v3562
    %v3564 = vlaneseq
    %v3565 = vshrl.u32 %v3564, 7
    %v3566 = vsub.s32 0, %v3565
    %v3567 = vrot.slane %v1142, %v3566
    %v3568 = vlaneseq
    %v3569 = vshrl.u32 %v3568, 7
    %v3570 = vsub.s32 1, %v3569
    %v3571 = vrot.slane %v1142, %v3570
    %v3572 = vlaneseq
    %v3573 = vshrl.u32 %v3572, 7
    %v3574 = vsub.s32 2, %v3573
    %v3575 = vrot.slane %v1142, %v3574
    %v3576 = vlaneseq
    %v3577 = vshrl.u32 %v3576, 7
    %v3578 = vsub.s32 3, %v3577
    %v3579 = vrot.slane %v1142, %v3578
    %v3580 = vlaneseq
    %v3581 = vshrl.u32 %v3580, 7
    %v3582 = vsub.s32 4, %v3581
    %v3583 = vrot.slane %v1142, %v3582
    %v3584 = vlaneseq
    %v3585 = vshrl.u32 %v3584, 7
    %v3586 = vsub.s32 5, %v3585
    %v3587 = vrot.slane %v1142, %v3586
    %v3588 = vlaneseq
    %v3589 = vshrl.u32 %v3588, 7
    %v3590 = vsub.s32 6, %v3589
    %v3591 = vrot.slane %v1142, %v3590
    %v3592 = vlaneseq
    %v3593 = vshrl.u32 %v3592, 7
    %v3594 = vsub.s32 7, %v3593
    %v3595 = vrot.slane %v1142, %v3594
    %v3596 = vlaneseq
    %v3597 = vshrl.u32 %v3596, 7
    %v3598 = vsub.s32 0, %v3597
    %v3599 = vrot.slane %v1143, %v3598
    %v3600 = vlaneseq
    %v3601 = vshrl.u32 %v3600, 7
    %v3602 = vsub.s32 1, %v3601
    %v3603 = vrot.slane %v1143, %v3602
    %v3604 = vlaneseq
    %v3605 = vshrl.u32 %v3604, 7
    %v3606 = vsub.s32 2, %v3605
    %v3607 = vrot.slane %v1143, %v3606
    %v3608 = vlaneseq
    %v3609 = vshrl.u32 %v3608, 7
    %v3610 = vsub.s32 3, %v3609
    %v3611 = vrot.slane %v1143, %v3610
    %v3612 = vlaneseq
    %v3613 = vshrl.u32 %v3612, 7
    %v3614 = vsub.s32 4, %v3613
    %v3615 = vrot.slane %v1143, %v3614
    %v3616 = vlaneseq
    %v3617 = vshrl.u32 %v3616, 7
    %v3618 = vsub.s32 5, %v3617
    %v3619 = vrot.slane %v1143, %v3618
    %v3620 = vlaneseq
    %v3621 = vshrl.u32 %v3620, 7
    %v3622 = vsub.s32 6, %v3621
    %v3623 = vrot.slane %v1143, %v3622
    %v3624 = vlaneseq
    %v3625 = vshrl.u32 %v3624, 7
    %v3626 = vsub.s32 7, %v3625
    %v3627 = vrot.slane %v1143, %v3626
    %v3628 = vlaneseq
    %v3629 = vshrl.u32 %v3628, 7
    %v3630 = vsub.s32 0, %v3629
    %v3631 = vrot.slane %v1144, %v3630
    %v3632 = vlaneseq
    %v3633 = vshrl.u32 %v3632, 7
    %v3634 = vsub.s32 1, %v3633
    %v3635 = vrot.slane %v1144, %v3634
    %v3636 = vlaneseq
    %v3637 = vshrl.u32 %v3636, 7
    %v3638 = vsub.s32 2, %v3637
    %v3639 = vrot.slane %v1144, %v3638
    %v3640 = vlaneseq
    %v3641 = vshrl.u32 %v3640, 7
    %v3642 = vsub.s32 3, %v3641
    %v3643 = vrot.slane %v1144, %v3642
    %v3644 = vlaneseq
    %v3645 = vshrl.u32 %v3644, 7
    %v3646 = vsub.s32 4, %v3645
    %v3647 = vrot.slane %v1144, %v3646
    %v3648 = vlaneseq
    %v3649 = vshrl.u32 %v3648, 7
    %v3650 = vsub.s32 5, %v3649
    %v3651 = vrot.slane %v1144, %v3650
    %v3652 = vlaneseq
    %v3653 = vshrl.u32 %v3652, 7
    %v3654 = vsub.s32 6, %v3653
    %v3655 = vrot.slane %v1144, %v3654
    %v3656 = vlaneseq
    %v3657 = vshrl.u32 %v3656, 7
    %v3658 = vsub.s32 7, %v3657
    %v3659 = vrot.slane %v1144, %v3658
    %v3660 = vlaneseq
    %v3661 = vshrl.u32 %v3660, 7
    %v3662 = vsub.s32 0, %v3661
    %v3663 = vrot.slane %v1145, %v3662
    %v3664 = vlaneseq
    %v3665 = vshrl.u32 %v3664, 7
    %v3666 = vsub.s32 1, %v3665
    %v3667 = vrot.slane %v1145, %v3666
    %v3668 = vlaneseq
    %v3669 = vshrl.u32 %v3668, 7
    %v3670 = vsub.s32 2, %v3669
    %v3671 = vrot.slane %v1145, %v3670
    %v3672 = vlaneseq
    %v3673 = vshrl.u32 %v3672, 7
    %v3674 = vsub.s32 3, %v3673
    %v3675 = vrot.slane %v1145, %v3674
    %v3676 = vlaneseq
    %v3677 = vshrl.u32 %v3676, 7
    %v3678 = vsub.s32 4, %v3677
    %v3679 = vrot.slane %v1145, %v3678
    %v3680 = vlaneseq
    %v3681 = vshrl.u32 %v3680, 7
    %v3682 = vsub.s32 5, %v3681
    %v3683 = vrot.slane %v1145, %v3682
    %v3684 = vlaneseq
    %v3685 = vshrl.u32 %v3684, 7
    %v3686 = vsub.s32 6, %v3685
    %v3687 = vrot.slane %v1145, %v3686
    %v3688 = vlaneseq
    %v3689 = vshrl.u32 %v3688, 7
    %v3690 = vsub.s32 7, %v3689
    %v3691 = vrot.slane %v1145, %v3690
    %v3692 = vlaneseq
    %v3693 = vshrl.u32 %v3692, 7
    %v3694 = vsub.s32 0, %v3693
    %v3695 = vrot.slane %v1146, %v3694
    %v3696 = vlaneseq
    %v3697 = vshrl.u32 %v3696, 7
    %v3698 = vsub.s32 1, %v3697
    %v3699 = vrot.slane %v1146, %v3698
    %v3700 = vlaneseq
    %v3701 = vshrl.u32 %v3700, 7
    %v3702 = vsub.s32 2, %v3701
    %v3703 = vrot.slane %v1146, %v3702
    %v3704 = vlaneseq
    %v3705 = vshrl.u32 %v3704, 7
    %v3706 = vsub.s32 3, %v3705
    %v3707 = vrot.slane %v1146, %v3706
    %v3708 = vlaneseq
    %v3709 = vshrl.u32 %v3708, 7
    %v3710 = vsub.s32 4, %v3709
    %v3711 = vrot.slane %v1146, %v3710
    %v3712 = vlaneseq
    %v3713 = vshrl.u32 %v3712, 7
    %v3714 = vsub.s32 5, %v3713
    %v3715 = vrot.slane %v1146, %v3714
    %v3716 = vlaneseq
    %v3717 = vshrl.u32 %v3716, 7
    %v3718 = vsub.s32 6, %v3717
    %v3719 = vrot.slane %v1146, %v3718
    %v3720 = vlaneseq
    %v3721 = vshrl.u32 %v3720, 7
    %v3722 = vsub.s32 7, %v3721
    %v3723 = vrot.slane %v1146, %v3722
    %v3724 = vlaneseq
    %v3725 = vshrl.u32 %v3724, 7
    %v3726 = vsub.s32 0, %v3725
    %v3727 = vrot.slane %v1147, %v3726
    %v3728 = vlaneseq
    %v3729 = vshrl.u32 %v3728, 7
    %v3730 = vsub.s32 1, %v3729
    %v3731 = vrot.slane %v1147, %v3730
    %v3732 = vlaneseq
    %v3733 = vshrl.u32 %v3732, 7
    %v3734 = vsub.s32 2, %v3733
    %v3735 = vrot.slane %v1147, %v3734
    %v3736 = vlaneseq
    %v3737 = vshrl.u32 %v3736, 7
    %v3738 = vsub.s32 3, %v3737
    %v3739 = vrot.slane %v1147, %v3738
    %v3740 = vlaneseq
    %v3741 = vshrl.u32 %v3740, 7
    %v3742 = vsub.s32 4, %v3741
    %v3743 = vrot.slane %v1147, %v3742
    %v3744 = vlaneseq
    %v3745 = vshrl.u32 %v3744, 7
    %v3746 = vsub.s32 5, %v3745
    %v3747 = vrot.slane %v1147, %v3746
    %v3748 = vlaneseq
    %v3749 = vshrl.u32 %v3748, 7
    %v3750 = vsub.s32 6, %v3749
    %v3751 = vrot.slane %v1147, %v3750
    %v3752 = vlaneseq
    %v3753 = vshrl.u32 %v3752, 7
    %v3754 = vsub.s32 7, %v3753
    %v3755 = vrot.slane %v1147, %v3754
    %v3756 = vlaneseq
    %v3757 = vshrl.u32 %v3756, 7
    %v3758 = vsub.s32 0, %v3757
    %v3759 = vrot.slane %v1148, %v3758
    %v3760 = vlaneseq
    %v3761 = vshrl.u32 %v3760, 7
    %v3762 = vsub.s32 1, %v3761
    %v3763 = vrot.slane %v1148, %v3762
    %v3764 = vlaneseq
    %v3765 = vshrl.u32 %v3764, 7
    %v3766 = vsub.s32 2, %v3765
    %v3767 = vrot.slane %v1148, %v3766
    %v3768 = vlaneseq
    %v3769 = vshrl.u32 %v3768, 7
    %v3770 = vsub.s32 3, %v3769
    %v3771 = vrot.slane %v1148, %v3770
    %v3772 = vlaneseq
    %v3773 = vshrl.u32 %v3772, 7
    %v3774 = vsub.s32 4, %v3773
    %v3775 = vrot.slane %v1148, %v3774
    %v3776 = vlaneseq
    %v3777 = vshrl.u32 %v3776, 7
    %v3778 = vsub.s32 5, %v3777
    %v3779 = vrot.slane %v1148, %v3778
    %v3780 = vlaneseq
    %v3781 = vshrl.u32 %v3780, 7
    %v3782 = vsub.s32 6, %v3781
    %v3783 = vrot.slane %v1148, %v3782
    %v3784 = vlaneseq
    %v3785 = vshrl.u32 %v3784, 7
    %v3786 = vsub.s32 7, %v3785
    %v3787 = vrot.slane %v1148, %v3786
    %v3788 = vlaneseq
    %v3789 = vshrl.u32 %v3788, 7
    %v3790 = vsub.s32 0, %v3789
    %v3791 = vrot.slane %v1149, %v3790
    %v3792 = vlaneseq
    %v3793 = vshrl.u32 %v3792, 7
    %v3794 = vsub.s32 1, %v3793
    %v3795 = vrot.slane %v1149, %v3794
    %v3796 = vlaneseq
    %v3797 = vshrl.u32 %v3796, 7
    %v3798 = vsub.s32 2, %v3797
    %v3799 = vrot.slane %v1149, %v3798
    %v3800 = vlaneseq
    %v3801 = vshrl.u32 %v3800, 7
    %v3802 = vsub.s32 3, %v3801
    %v3803 = vrot.slane %v1149, %v3802
    %v3804 = vlaneseq
    %v3805 = vshrl.u32 %v3804, 7
    %v3806 = vsub.s32 4, %v3805
    %v3807 = vrot.slane %v1149, %v3806
    %v3808 = vlaneseq
    %v3809 = vshrl.u32 %v3808, 7
    %v3810 = vsub.s32 5, %v3809
    %v3811 = vrot.slane %v1149, %v3810
    %v3812 = vlaneseq
    %v3813 = vshrl.u32 %v3812, 7
    %v3814 = vsub.s32 6, %v3813
    %v3815 = vrot.slane %v1149, %v3814
    %v3816 = vlaneseq
    %v3817 = vshrl.u32 %v3816, 7
    %v3818 = vsub.s32 7, %v3817
    %v3819 = vrot.slane %v1149, %v3818
    %v3820 = vlaneseq
    %v3821 = vshrl.u32 %v3820, 7
    %v3822 = vsub.s32 0, %v3821
    %v3823 = vrot.slane %v1150, %v3822
    %v3824 = vlaneseq
    %v3825 = vshrl.u32 %v3824, 7
    %v3826 = vsub.s32 1, %v3825
    %v3827 = vrot.slane %v1150, %v3826
    %v3828 = vlaneseq
    %v3829 = vshrl.u32 %v3828, 7
    %v3830 = vsub.s32 2, %v3829
    %v3831 = vrot.slane %v1150, %v3830
    %v3832 = vlaneseq
    %v3833 = vshrl.u32 %v3832, 7
    %v3834 = vsub.s32 3, %v3833
    %v3835 = vrot.slane %v1150, %v3834
    %v3836 = vlaneseq
    %v3837 = vshrl.u32 %v3836, 7
    %v3838 = vsub.s32 4, %v3837
    %v3839 = vrot.slane %v1150, %v3838
    %v3840 = vlaneseq
    %v3841 = vshrl.u32 %v3840, 7
    %v3842 = vsub.s32 5, %v3841
    %v3843 = vrot.slane %v1150, %v3842
    %v3844 = vlaneseq
    %v3845 = vshrl.u32 %v3844, 7
    %v3846 = vsub.s32 6, %v3845
    %v3847 = vrot.slane %v1150, %v3846
    %v3848 = vlaneseq
    %v3849 = vshrl.u32 %v3848, 7
    %v3850 = vsub.s32 7, %v3849
    %v3851 = vrot.slane %v1150, %v3850
    %v3852 = vlaneseq
    %v3853 = vshrl.u32 %v3852, 7
    %v3854 = vsub.s32 0, %v3853
    %v3855 = vrot.slane %v1151, %v3854
    %v3856 = vlaneseq
    %v3857 = vshrl.u32 %v3856, 7
    %v3858 = vsub.s32 1, %v3857
    %v3859 = vrot.slane %v1151, %v3858
    %v3860 = vlaneseq
    %v3861 = vshrl.u32 %v3860, 7
    %v3862 = vsub.s32 2, %v3861
    %v3863 = vrot.slane %v1151, %v3862
    %v3864 = vlaneseq
    %v3865 = vshrl.u32 %v3864, 7
    %v3866 = vsub.s32 3, %v3865
    %v3867 = vrot.slane %v1151, %v3866
    %v3868 = vlaneseq
    %v3869 = vshrl.u32 %v3868, 7
    %v3870 = vsub.s32 4, %v3869
    %v3871 = vrot.slane %v1151, %v3870
    %v3872 = vlaneseq
    %v3873 = vshrl.u32 %v3872, 7
    %v3874 = vsub.s32 5, %v3873
    %v3875 = vrot.slane %v1151, %v3874
    %v3876 = vlaneseq
    %v3877 = vshrl.u32 %v3876, 7
    %v3878 = vsub.s32 6, %v3877
    %v3879 = vrot.slane %v1151, %v3878
    %v3880 = vlaneseq
    %v3881 = vshrl.u32 %v3880, 7
    %v3882 = vsub.s32 7, %v3881
    %v3883 = vrot.slane %v1151, %v3882
    %v3884 = vlaneseq
    %v3885 = vshrl.u32 %v3884, 7
    %v3886 = vsub.s32 0, %v3885
    %v3887 = vrot.slane %v1152, %v3886
    %v3888 = vlaneseq
    %v3889 = vshrl.u32 %v3888, 7
    %v3890 = vsub.s32 1, %v3889
    %v3891 = vrot.slane %v1152, %v3890
    %v3892 = vlaneseq
    %v3893 = vshrl.u32 %v3892, 7
    %v3894 = vsub.s32 2, %v3893
    %v3895 = vrot.slane %v1152, %v3894
    %v3896 = vlaneseq
    %v3897 = vshrl.u32 %v3896, 7
    %v3898 = vsub.s32 3, %v3897
    %v3899 = vrot.slane %v1152, %v3898
    %v3900 = vlaneseq
    %v3901 = vshrl.u32 %v3900, 7
    %v3902 = vsub.s32 4, %v3901
    %v3903 = vrot.slane %v1152, %v3902
    %v3904 = vlaneseq
    %v3905 = vshrl.u32 %v3904, 7
    %v3906 = vsub.s32 5, %v3905
    %v3907 = vrot.slane %v1152, %v3906
    %v3908 = vlaneseq
    %v3909 = vshrl.u32 %v3908, 7
    %v3910 = vsub.s32 6, %v3909
    %v3911 = vrot.slane %v1152, %v3910
    %v3912 = vlaneseq
    %v3913 = vshrl.u32 %v3912, 7
    %v3914 = vsub.s32 7, %v3913
    %v3915 = vrot.slane %v1152, %v3914
    %v3916 = vlaneseq
    %v3917 = vshrl.u32 %v3916, 7
    %v3918 = vsub.s32 0, %v3917
    %v3919 = vrot.slane %v1153, %v3918
    %v3920 = vlaneseq
    %v3921 = vshrl.u32 %v3920, 7
    %v3922 = vsub.s32 1, %v3921
    %v3923 = vrot.slane %v1153, %v3922
    %v3924 = vlaneseq
    %v3925 = vshrl.u32 %v3924, 7
    %v3926 = vsub.s32 2, %v3925
    %v3927 = vrot.slane %v1153, %v3926
    %v3928 = vlaneseq
    %v3929 = vshrl.u32 %v3928, 7
    %v3930 = vsub.s32 3, %v3929
    %v3931 = vrot.slane %v1153, %v3930
    %v3932 = vlaneseq
    %v3933 = vshrl.u32 %v3932, 7
    %v3934 = vsub.s32 4, %v3933
    %v3935 = vrot.slane %v1153, %v3934
    %v3936 = vlaneseq
    %v3937 = vshrl.u32 %v3936, 7
    %v3938 = vsub.s32 5, %v3937
    %v3939 = vrot.slane %v1153, %v3938
    %v3940 = vlaneseq
    %v3941 = vshrl.u32 %v3940, 7
    %v3942 = vsub.s32 6, %v3941
    %v3943 = vrot.slane %v1153, %v3942
    %v3944 = vlaneseq
    %v3945 = vshrl.u32 %v3944, 7
    %v3946 = vsub.s32 7, %v3945
    %v3947 = vrot.slane %v1153, %v3946
    %v3948 = vlaneseq
    %v3949 = vshrl.u32 %v3948, 7
    %v3950 = vsub.s32 0, %v3949
    %v3951 = vrot.slane %v1154, %v3950
    %v3952 = vlaneseq
    %v3953 = vshrl.u32 %v3952, 7
    %v3954 = vsub.s32 1, %v3953
    %v3955 = vrot.slane %v1154, %v3954
    %v3956 = vlaneseq
    %v3957 = vshrl.u32 %v3956, 7
    %v3958 = vsub.s32 2, %v3957
    %v3959 = vrot.slane %v1154, %v3958
    %v3960 = vlaneseq
    %v3961 = vshrl.u32 %v3960, 7
    %v3962 = vsub.s32 3, %v3961
    %v3963 = vrot.slane %v1154, %v3962
    %v3964 = vlaneseq
    %v3965 = vshrl.u32 %v3964, 7
    %v3966 = vsub.s32 4, %v3965
    %v3967 = vrot.slane %v1154, %v3966
    %v3968 = vlaneseq
    %v3969 = vshrl.u32 %v3968, 7
    %v3970 = vsub.s32 5, %v3969
    %v3971 = vrot.slane %v1154, %v3970
    %v3972 = vlaneseq
    %v3973 = vshrl.u32 %v3972, 7
    %v3974 = vsub.s32 6, %v3973
    %v3975 = vrot.slane %v1154, %v3974
    %v3976 = vlaneseq
    %v3977 = vshrl.u32 %v3976, 7
    %v3978 = vsub.s32 7, %v3977
    %v3979 = vrot.slane %v1154, %v3978
    %v3980 = vlaneseq
    %v3981 = vshrl.u32 %v3980, 7
    %v3982 = vsub.s32 0, %v3981
    %v3983 = vrot.slane %v1155, %v3982
    %v3984 = vlaneseq
    %v3985 = vshrl.u32 %v3984, 7
    %v3986 = vsub.s32 1, %v3985
    %v3987 = vrot.slane %v1155, %v3986
    %v3988 = vlaneseq
    %v3989 = vshrl.u32 %v3988, 7
    %v3990 = vsub.s32 2, %v3989
    %v3991 = vrot.slane %v1155, %v3990
    %v3992 = vlaneseq
    %v3993 = vshrl.u32 %v3992, 7
    %v3994 = vsub.s32 3, %v3993
    %v3995 = vrot.slane %v1155, %v3994
    %v3996 = vlaneseq
    %v3997 = vshrl.u32 %v3996, 7
    %v3998 = vsub.s32 4, %v3997
    %v3999 = vrot.slane %v1155, %v3998
    %v4000 = vlaneseq
    %v4001 = vshrl.u32 %v4000, 7
    %v4002 = vsub.s32 5, %v4001
    %v4003 = vrot.slane %v1155, %v4002
    %v4004 = vlaneseq
    %v4005 = vshrl.u32 %v4004, 7
    %v4006 = vsub.s32 6, %v4005
    %v4007 = vrot.slane %v1155, %v4006
    %v4008 = vlaneseq
    %v4009 = vshrl.u32 %v4008, 7
    %v4010 = vsub.s32 7, %v4009
    %v4011 = vrot.slane %v1155, %v4010
    %v4012 = vlaneseq
    %v4013 = vshrl.u32 %v4012, 7
    %v4014 = vsub.s32 0, %v4013
    %v4015 = vrot.slane %v1156, %v4014
    %v4016 = vlaneseq
    %v4017 = vshrl.u32 %v4016, 7
    %v4018 = vsub.s32 1, %v4017
    %v4019 = vrot.slane %v1156, %v4018
    %v4020 = vlaneseq
    %v4021 = vshrl.u32 %v4020, 7
    %v4022 = vsub.s32 2, %v4021
    %v4023 = vrot.slane %v1156, %v4022
    %v4024 = vlaneseq
    %v4025 = vshrl.u32 %v4024, 7
    %v4026 = vsub.s32 3, %v4025
    %v4027 = vrot.slane %v1156, %v4026
    %v4028 = vlaneseq
    %v4029 = vshrl.u32 %v4028, 7
    %v4030 = vsub.s32 4, %v4029
    %v4031 = vrot.slane %v1156, %v4030
    %v4032 = vlaneseq
    %v4033 = vshrl.u32 %v4032, 7
    %v4034 = vsub.s32 5, %v4033
    %v4035 = vrot.slane %v1156, %v4034
    %v4036 = vlaneseq
    %v4037 = vshrl.u32 %v4036, 7
    %v4038 = vsub.s32 6, %v4037
    %v4039 = vrot.slane %v1156, %v4038
    %v4040 = vlaneseq
    %v4041 = vshrl.u32 %v4040, 7
    %v4042 = vsub.s32 7, %v4041
    %v4043 = vrot.slane %v1156, %v4042
    %v4044 = vlaneseq
    %v4045 = vshrl.u32 %v4044, 7
    %v4046 = vsub.s32 0, %v4045
    %v4047 = vrot.slane %v1157, %v4046
    %v4048 = vlaneseq
    %v4049 = vshrl.u32 %v4048, 7
    %v4050 = vsub.s32 1, %v4049
    %v4051 = vrot.slane %v1157, %v4050
    %v4052 = vlaneseq
    %v4053 = vshrl.u32 %v4052, 7
    %v4054 = vsub.s32 2, %v4053
    %v4055 = vrot.slane %v1157, %v4054
    %v4056 = vlaneseq
    %v4057 = vshrl.u32 %v4056, 7
    %v4058 = vsub.s32 3, %v4057
    %v4059 = vrot.slane %v1157, %v4058
    %v4060 = vlaneseq
    %v4061 = vshrl.u32 %v4060, 7
    %v4062 = vsub.s32 4, %v4061
    %v4063 = vrot.slane %v1157, %v4062
    %v4064 = vlaneseq
    %v4065 = vshrl.u32 %v4064, 7
    %v4066 = vsub.s32 5, %v4065
    %v4067 = vrot.slane %v1157, %v4066
    %v4068 = vlaneseq
    %v4069 = vshrl.u32 %v4068, 7
    %v4070 = vsub.s32 6, %v4069
    %v4071 = vrot.slane %v1157, %v4070
    %v4072 = vlaneseq
    %v4073 = vshrl.u32 %v4072, 7
    %v4074 = vsub.s32 7, %v4073
    %v4075 = vrot.slane %v1157, %v4074
    %v4076 = vlaneseq
    %v4077 = vshrl.u32 %v4076, 7
    %v4078 = vsub.s32 0, %v4077
    %v4079 = vrot.slane %v1158, %v4078
    %v4080 = vlaneseq
    %v4081 = vshrl.u32 %v4080, 7
    %v4082 = vsub.s32 1, %v4081
    %v4083 = vrot.slane %v1158, %v4082
    %v4084 = vlaneseq
    %v4085 = vshrl.u32 %v4084, 7
    %v4086 = vsub.s32 2, %v4085
    %v4087 = vrot.slane %v1158, %v4086
    %v4088 = vlaneseq
    %v4089 = vshrl.u32 %v4088, 7
    %v4090 = vsub.s32 3, %v4089
    %v4091 = vrot.slane %v1158, %v4090
    %v4092 = vlaneseq
    %v4093 = vshrl.u32 %v4092, 7
    %v4094 = vsub.s32 4, %v4093
    %v4095 = vrot.slane %v1158, %v4094
    %v4096 = vlaneseq
    %v4097 = vshrl.u32 %v4096, 7
    %v4098 = vsub.s32 5, %v4097
    %v4099 = vrot.slane %v1158, %v4098
    %v4100 = vlaneseq
    %v4101 = vshrl.u32 %v4100, 7
    %v4102 = vsub.s32 6, %v4101
    %v4103 = vrot.slane %v1158, %v4102
    %v4104 = vlaneseq
    %v4105 = vshrl.u32 %v4104, 7
    %v4106 = vsub.s32 7, %v4105
    %v4107 = vrot.slane %v1158, %v4106
    %v4108 = vlaneseq
    %v4109 = vshrl.u32 %v4108, 7
    %v4110 = vsub.s32 0, %v4109
    %v4111 = vrot.slane %v1159, %v4110
    %v4112 = vlaneseq
    %v4113 = vshrl.u32 %v4112, 7
    %v4114 = vsub.s32 1, %v4113
    %v4115 = vrot.slane %v1159, %v4114
    %v4116 = vlaneseq
    %v4117 = vshrl.u32 %v4116, 7
    %v4118 = vsub.s32 2, %v4117
    %v4119 = vrot.slane %v1159, %v4118
    %v4120 = vlaneseq
    %v4121 = vshrl.u32 %v4120, 7
    %v4122 = vsub.s32 3, %v4121
    %v4123 = vrot.slane %v1159, %v4122
    %v4124 = vlaneseq
    %v4125 = vshrl.u32 %v4124, 7
    %v4126 = vsub.s32 4, %v4125
    %v4127 = vrot.slane %v1159, %v4126
    %v4128 = vlaneseq
    %v4129 = vshrl.u32 %v4128, 7
    %v4130 = vsub.s32 5, %v4129
    %v4131 = vrot.slane %v1159, %v4130
    %v4132 = vlaneseq
    %v4133 = vshrl.u32 %v4132, 7
    %v4134 = vsub.s32 6, %v4133
    %v4135 = vrot.slane %v1159, %v4134
    %v4136 = vlaneseq
    %v4137 = vshrl.u32 %v4136, 7
    %v4138 = vsub.s32 7, %v4137
    %v4139 = vrot.slane %v1159, %v4138
    %v4140 = vlaneseq
    %v4141 = vshrl.u32 %v4140, 7
    %v4142 = vsub.s32 0, %v4141
    %v4143 = vrot.slane %v1160, %v4142
    %v4144 = vlaneseq
    %v4145 = vshrl.u32 %v4144, 7
    %v4146 = vsub.s32 1, %v4145
    %v4147 = vrot.slane %v1160, %v4146
    %v4148 = vlaneseq
    %v4149 = vshrl.u32 %v4148, 7
    %v4150 = vsub.s32 2, %v4149
    %v4151 = vrot.slane %v1160, %v4150
    %v4152 = vlaneseq
    %v4153 = vshrl.u32 %v4152, 7
    %v4154 = vsub.s32 3, %v4153
    %v4155 = vrot.slane %v1160, %v4154
    %v4156 = vlaneseq
    %v4157 = vshrl.u32 %v4156, 7
    %v4158 = vsub.s32 4, %v4157
    %v4159 = vrot.slane %v1160, %v4158
    %v4160 = vlaneseq
    %v4161 = vshrl.u32 %v4160, 7
    %v4162 = vsub.s32 5, %v4161
    %v4163 = vrot.slane %v1160, %v4162
    %v4164 = vlaneseq
    %v4165 = vshrl.u32 %v4164, 7
    %v4166 = vsub.s32 6, %v4165
    %v4167 = vrot.slane %v1160, %v4166
    %v4168 = vlaneseq
    %v4169 = vshrl.u32 %v4168, 7
    %v4170 = vsub.s32 7, %v4169
    %v4171 = vrot.slane %v1160, %v4170
    %v4172 = vlaneseq
    %v4173 = vshrl.u32 %v4172, 7
    %v4174 = vsub.s32 0, %v4173
    %v4175 = vrot.slane %v1161, %v4174
    %v4176 = vlaneseq
    %v4177 = vshrl.u32 %v4176, 7
    %v4178 = vsub.s32 1, %v4177
    %v4179 = vrot.slane %v1161, %v4178
    %v4180 = vlaneseq
    %v4181 = vshrl.u32 %v4180, 7
    %v4182 = vsub.s32 2, %v4181
    %v4183 = vrot.slane %v1161, %v4182
    %v4184 = vlaneseq
    %v4185 = vshrl.u32 %v4184, 7
    %v4186 = vsub.s32 3, %v4185
    %v4187 = vrot.slane %v1161, %v4186
    %v4188 = vlaneseq
    %v4189 = vshrl.u32 %v4188, 7
    %v4190 = vsub.s32 4, %v4189
    %v4191 = vrot.slane %v1161, %v4190
    %v4192 = vlaneseq
    %v4193 = vshrl.u32 %v4192, 7
    %v4194 = vsub.s32 5, %v4193
    %v4195 = vrot.slane %v1161, %v4194
    %v4196 = vlaneseq
    %v4197 = vshrl.u32 %v4196, 7
    %v4198 = vsub.s32 6, %v4197
    %v4199 = vrot.slane %v1161, %v4198
    %v4200 = vlaneseq
    %v4201 = vshrl.u32 %v4200, 7
    %v4202 = vsub.s32 7, %v4201
    %v4203 = vrot.slane %v1161, %v4202
    %v4204 = vlaneseq
    %v4205 = vshrl.u32 %v4204, 7
    %v4206 = vsub.s32 0, %v4205
    %v4207 = vrot.slane %v1162, %v4206
    %v4208 = vlaneseq
    %v4209 = vshrl.u32 %v4208, 7
    %v4210 = vsub.s32 1, %v4209
    %v4211 = vrot.slane %v1162, %v4210
    %v4212 = vlaneseq
    %v4213 = vshrl.u32 %v4212, 7
    %v4214 = vsub.s32 2, %v4213
    %v4215 = vrot.slane %v1162, %v4214
    %v4216 = vlaneseq
    %v4217 = vshrl.u32 %v4216, 7
    %v4218 = vsub.s32 3, %v4217
    %v4219 = vrot.slane %v1162, %v4218
    %v4220 = vlaneseq
    %v4221 = vshrl.u32 %v4220, 7
    %v4222 = vsub.s32 4, %v4221
    %v4223 = vrot.slane %v1162, %v4222
    %v4224 = vlaneseq
    %v4225 = vshrl.u32 %v4224, 7
    %v4226 = vsub.s32 5, %v4225
    %v4227 = vrot.slane %v1162, %v4226
    %v4228 = vlaneseq
    %v4229 = vshrl.u32 %v4228, 7
    %v4230 = vsub.s32 6, %v4229
    %v4231 = vrot.slane %v1162, %v4230
    %v4232 = vlaneseq
    %v4233 = vshrl.u32 %v4232, 7
    %v4234 = vsub.s32 7, %v4233
    %v4235 = vrot.slane %v1162, %v4234
    %v4236 = vlaneseq
    %v4237 = vshrl.u32 %v4236, 7
    %v4238 = vsub.s32 0, %v4237
    %v4239 = vrot.slane %v1163, %v4238
    %v4240 = vlaneseq
    %v4241 = vshrl.u32 %v4240, 7
    %v4242 = vsub.s32 1, %v4241
    %v4243 = vrot.slane %v1163, %v4242
    %v4244 = vlaneseq
    %v4245 = vshrl.u32 %v4244, 7
    %v4246 = vsub.s32 2, %v4245
    %v4247 = vrot.slane %v1163, %v4246
    %v4248 = vlaneseq
    %v4249 = vshrl.u32 %v4248, 7
    %v4250 = vsub.s32 3, %v4249
    %v4251 = vrot.slane %v1163, %v4250
    %v4252 = vlaneseq
    %v4253 = vshrl.u32 %v4252, 7
    %v4254 = vsub.s32 4, %v4253
    %v4255 = vrot.slane %v1163, %v4254
    %v4256 = vlaneseq
    %v4257 = vshrl.u32 %v4256, 7
    %v4258 = vsub.s32 5, %v4257
    %v4259 = vrot.slane %v1163, %v4258
    %v4260 = vlaneseq
    %v4261 = vshrl.u32 %v4260, 7
    %v4262 = vsub.s32 6, %v4261
    %v4263 = vrot.slane %v1163, %v4262
    %v4264 = vlaneseq
    %v4265 = vshrl.u32 %v4264, 7
    %v4266 = vsub.s32 7, %v4265
    %v4267 = vrot.slane %v1163, %v4266
    %v4268 = vlaneseq
    %v4269 = vshrl.u32 %v4268, 7
    %v4270 = vsub.s32 0, %v4269
    %v4271 = vrot.slane %v1164, %v4270
    %v4272 = vlaneseq
    %v4273 = vshrl.u32 %v4272, 7
    %v4274 = vsub.s32 1, %v4273
    %v4275 = vrot.slane %v1164, %v4274
    %v4276 = vlaneseq
    %v4277 = vshrl.u32 %v4276, 7
    %v4278 = vsub.s32 2, %v4277
    %v4279 = vrot.slane %v1164, %v4278
    %v4280 = vlaneseq
    %v4281 = vshrl.u32 %v4280, 7
    %v4282 = vsub.s32 3, %v4281
    %v4283 = vrot.slane %v1164, %v4282
    %v4284 = vlaneseq
    %v4285 = vshrl.u32 %v4284, 7
    %v4286 = vsub.s32 4, %v4285
    %v4287 = vrot.slane %v1164, %v4286
    %v4288 = vlaneseq
    %v4289 = vshrl.u32 %v4288, 7
    %v4290 = vsub.s32 5, %v4289
    %v4291 = vrot.slane %v1164, %v4290
    %v4292 = vlaneseq
    %v4293 = vshrl.u32 %v4292, 7
    %v4294 = vsub.s32 6, %v4293
    %v4295 = vrot.slane %v1164, %v4294
    %v4296 = vlaneseq
    %v4297 = vshrl.u32 %v4296, 7
    %v4298 = vsub.s32 7, %v4297
    %v4299 = vrot.slane %v1164, %v4298
    %v4300 = vlaneseq
    %v4301 = vshrl.u32 %v4300, 7
    %v4302 = vsub.s32 0, %v4301
    %v4303 = vrot.slane %v1165, %v4302
    %v4304 = vlaneseq
    %v4305 = vshrl.u32 %v4304, 7
    %v4306 = vsub.s32 1, %v4305
    %v4307 = vrot.slane %v1165, %v4306
    %v4308 = vlaneseq
    %v4309 = vshrl.u32 %v4308, 7
    %v4310 = vsub.s32 2, %v4309
    %v4311 = vrot.slane %v1165, %v4310
    %v4312 = vlaneseq
    %v4313 = vshrl.u32 %v4312, 7
    %v4314 = vsub.s32 3, %v4313
    %v4315 = vrot.slane %v1165, %v4314
    %v4316 = vlaneseq
    %v4317 = vshrl.u32 %v4316, 7
    %v4318 = vsub.s32 4, %v4317
    %v4319 = vrot.slane %v1165, %v4318
    %v4320 = vlaneseq
    %v4321 = vshrl.u32 %v4320, 7
    %v4322 = vsub.s32 5, %v4321
    %v4323 = vrot.slane %v1165, %v4322
    %v4324 = vlaneseq
    %v4325 = vshrl.u32 %v4324, 7
    %v4326 = vsub.s32 6, %v4325
    %v4327 = vrot.slane %v1165, %v4326
    %v4328 = vlaneseq
    %v4329 = vshrl.u32 %v4328, 7
    %v4330 = vsub.s32 7, %v4329
    %v4331 = vrot.slane %v1165, %v4330
    %v4332 = vlaneseq
    %v4333 = vshrl.u32 %v4332, 7
    %v4334 = vsub.s32 0, %v4333
    %v4335 = vrot.slane %v1166, %v4334
    %v4336 = vlaneseq
    %v4337 = vshrl.u32 %v4336, 7
    %v4338 = vsub.s32 1, %v4337
    %v4339 = vrot.slane %v1166, %v4338
    %v4340 = vlaneseq
    %v4341 = vshrl.u32 %v4340, 7
    %v4342 = vsub.s32 2, %v4341
    %v4343 = vrot.slane %v1166, %v4342
    %v4344 = vlaneseq
    %v4345 = vshrl.u32 %v4344, 7
    %v4346 = vsub.s32 3, %v4345
    %v4347 = vrot.slane %v1166, %v4346
    %v4348 = vlaneseq
    %v4349 = vshrl.u32 %v4348, 7
    %v4350 = vsub.s32 4, %v4349
    %v4351 = vrot.slane %v1166, %v4350
    %v4352 = vlaneseq
    %v4353 = vshrl.u32 %v4352, 7
    %v4354 = vsub.s32 5, %v4353
    %v4355 = vrot.slane %v1166, %v4354
    %v4356 = vlaneseq
    %v4357 = vshrl.u32 %v4356, 7
    %v4358 = vsub.s32 6, %v4357
    %v4359 = vrot.slane %v1166, %v4358
    %v4360 = vlaneseq
    %v4361 = vshrl.u32 %v4360, 7
    %v4362 = vsub.s32 7, %v4361
    %v4363 = vrot.slane %v1166, %v4362
    %v4364 = vlaneseq
    %v4365 = vshrl.u32 %v4364, 7
    %v4366 = vsub.s32 0, %v4365
    %v4367 = vrot.slane %v1167, %v4366
    %v4368 = vlaneseq
    %v4369 = vshrl.u32 %v4368, 7
    %v4370 = vsub.s32 1, %v4369
    %v4371 = vrot.slane %v1167, %v4370
    %v4372 = vlaneseq
    %v4373 = vshrl.u32 %v4372, 7
    %v4374 = vsub.s32 2, %v4373
    %v4375 = vrot.slane %v1167, %v4374
    %v4376 = vlaneseq
    %v4377 = vshrl.u32 %v4376, 7
    %v4378 = vsub.s32 3, %v4377
    %v4379 = vrot.slane %v1167, %v4378
    %v4380 = vlaneseq
    %v4381 = vshrl.u32 %v4380, 7
    %v4382 = vsub.s32 4, %v4381
    %v4383 = vrot.slane %v1167, %v4382
    %v4384 = vlaneseq
    %v4385 = vshrl.u32 %v4384, 7
    %v4386 = vsub.s32 5, %v4385
    %v4387 = vrot.slane %v1167, %v4386
    %v4388 = vlaneseq
    %v4389 = vshrl.u32 %v4388, 7
    %v4390 = vsub.s32 6, %v4389
    %v4391 = vrot.slane %v1167, %v4390
    %v4392 = vlaneseq
    %v4393 = vshrl.u32 %v4392, 7
    %v4394 = vsub.s32 7, %v4393
    %v4395 = vrot.slane %v1167, %v4394
    %v4396 = vlaneseq
    %v4397 = vshrl.u32 %v4396, 7
    %v4398 = vsub.s32 0, %v4397
    %v4399 = vrot.slane %v1168, %v4398
    %v4400 = vlaneseq
    %v4401 = vshrl.u32 %v4400, 7
    %v4402 = vsub.s32 1, %v4401
    %v4403 = vrot.slane %v1168, %v4402
    %v4404 = vlaneseq
    %v4405 = vshrl.u32 %v4404, 7
    %v4406 = vsub.s32 2, %v4405
    %v4407 = vrot.slane %v1168, %v4406
    %v4408 = vlaneseq
    %v4409 = vshrl.u32 %v4408, 7
    %v4410 = vsub.s32 3, %v4409
    %v4411 = vrot.slane %v1168, %v4410
    %v4412 = vlaneseq
    %v4413 = vshrl.u32 %v4412, 7
    %v4414 = vsub.s32 4, %v4413
    %v4415 = vrot.slane %v1168, %v4414
    %v4416 = vlaneseq
    %v4417 = vshrl.u32 %v4416, 7
    %v4418 = vsub.s32 5, %v4417
    %v4419 = vrot.slane %v1168, %v4418
    %v4420 = vlaneseq
    %v4421 = vshrl.u32 %v4420, 7
    %v4422 = vsub.s32 6, %v4421
    %v4423 = vrot.slane %v1168, %v4422
    %v4424 = vlaneseq
    %v4425 = vshrl.u32 %v4424, 7
    %v4426 = vsub.s32 7, %v4425
    %v4427 = vrot.slane %v1168, %v4426
    %v4428 = vlaneseq
    %v4429 = vshrl.u32 %v4428, 7
    %v4430 = vsub.s32 0, %v4429
    %v4431 = vrot.slane %v1169, %v4430
    %v4432 = vlaneseq
    %v4433 = vshrl.u32 %v4432, 7
    %v4434 = vsub.s32 1, %v4433
    %v4435 = vrot.slane %v1169, %v4434
    %v4436 = vlaneseq
    %v4437 = vshrl.u32 %v4436, 7
    %v4438 = vsub.s32 2, %v4437
    %v4439 = vrot.slane %v1169, %v4438
    %v4440 = vlaneseq
    %v4441 = vshrl.u32 %v4440, 7
    %v4442 = vsub.s32 3, %v4441
    %v4443 = vrot.slane %v1169, %v4442
    %v4444 = vlaneseq
    %v4445 = vshrl.u32 %v4444, 7
    %v4446 = vsub.s32 4, %v4445
    %v4447 = vrot.slane %v1169, %v4446
    %v4448 = vlaneseq
    %v4449 = vshrl.u32 %v4448, 7
    %v4450 = vsub.s32 5, %v4449
    %v4451 = vrot.slane %v1169, %v4450
    %v4452 = vlaneseq
    %v4453 = vshrl.u32 %v4452, 7
    %v4454 = vsub.s32 6, %v4453
    %v4455 = vrot.slane %v1169, %v4454
    %v4456 = vlaneseq
    %v4457 = vshrl.u32 %v4456, 7
    %v4458 = vsub.s32 7, %v4457
    %v4459 = vrot.slane %v1169, %v4458
    %v4460 = vlaneseq
    %v4461 = vshrl.u32 %v4460, 7
    %v4462 = vsub.s32 0, %v4461
    %v4463 = vrot.slane %v1170, %v4462
    %v4464 = vlaneseq
    %v4465 = vshrl.u32 %v4464, 7
    %v4466 = vsub.s32 1, %v4465
    %v4467 = vrot.slane %v1170, %v4466
    %v4468 = vlaneseq
    %v4469 = vshrl.u32 %v4468, 7
    %v4470 = vsub.s32 2, %v4469
    %v4471 = vrot.slane %v1170, %v4470
    %v4472 = vlaneseq
    %v4473 = vshrl.u32 %v4472, 7
    %v4474 = vsub.s32 3, %v4473
    %v4475 = vrot.slane %v1170, %v4474
    %v4476 = vlaneseq
    %v4477 = vshrl.u32 %v4476, 7
    %v4478 = vsub.s32 4, %v4477
    %v4479 = vrot.slane %v1170, %v4478
    %v4480 = vlaneseq
    %v4481 = vshrl.u32 %v4480, 7
    %v4482 = vsub.s32 5, %v4481
    %v4483 = vrot.slane %v1170, %v4482
    %v4484 = vlaneseq
    %v4485 = vshrl.u32 %v4484, 7
    %v4486 = vsub.s32 6, %v4485
    %v4487 = vrot.slane %v1170, %v4486
    %v4488 = vlaneseq
    %v4489 = vshrl.u32 %v4488, 7
    %v4490 = vsub.s32 7, %v4489
    %v4491 = vrot.slane %v1170, %v4490
    %v4492 = vlaneseq
    %v4493 = vshrl.u32 %v4492, 7
    %v4494 = vsub.s32 0, %v4493
    %v4495 = vrot.slane %v1171, %v4494
    %v4496 = vlaneseq
    %v4497 = vshrl.u32 %v4496, 7
    %v4498 = vsub.s32 1, %v4497
    %v4499 = vrot.slane %v1171, %v4498
    %v4500 = vlaneseq
    %v4501 = vshrl.u32 %v4500, 7
    %v4502 = vsub.s32 2, %v4501
    %v4503 = vrot.slane %v1171, %v4502
    %v4504 = vlaneseq
    %v4505 = vshrl.u32 %v4504, 7
    %v4506 = vsub.s32 3, %v4505
    %v4507 = vrot.slane %v1171, %v4506
    %v4508 = vlaneseq
    %v4509 = vshrl.u32 %v4508, 7
    %v4510 = vsub.s32 4, %v4509
    %v4511 = vrot.slane %v1171, %v4510
    %v4512 = vlaneseq
    %v4513 = vshrl.u32 %v4512, 7
    %v4514 = vsub.s32 5, %v4513
    %v4515 = vrot.slane %v1171, %v4514
    %v4516 = vlaneseq
    %v4517 = vshrl.u32 %v4516, 7
    %v4518 = vsub.s32 6, %v4517
    %v4519 = vrot.slane %v1171, %v4518
    %v4520 = vlaneseq
    %v4521 = vshrl.u32 %v4520, 7
    %v4522 = vsub.s32 7, %v4521
    %v4523 = vrot.slane %v1171, %v4522
    %v4524 = vlaneseq
    %v4525 = vshrl.u32 %v4524, 7
    %v4526 = vsub.s32 0, %v4525
    %v4527 = vrot.slane %v1172, %v4526
    %v4528 = vlaneseq
    %v4529 = vshrl.u32 %v4528, 7
    %v4530 = vsub.s32 1, %v4529
    %v4531 = vrot.slane %v1172, %v4530
    %v4532 = vlaneseq
    %v4533 = vshrl.u32 %v4532, 7
    %v4534 = vsub.s32 2, %v4533
    %v4535 = vrot.slane %v1172, %v4534
    %v4536 = vlaneseq
    %v4537 = vshrl.u32 %v4536, 7
    %v4538 = vsub.s32 3, %v4537
    %v4539 = vrot.slane %v1172, %v4538
    %v4540 = vlaneseq
    %v4541 = vshrl.u32 %v4540, 7
    %v4542 = vsub.s32 4, %v4541
    %v4543 = vrot.slane %v1172, %v4542
    %v4544 = vlaneseq
    %v4545 = vshrl.u32 %v4544, 7
    %v4546 = vsub.s32 5, %v4545
    %v4547 = vrot.slane %v1172, %v4546
    %v4548 = vlaneseq
    %v4549 = vshrl.u32 %v4548, 7
    %v4550 = vsub.s32 6, %v4549
    %v4551 = vrot.slane %v1172, %v4550
    %v4552 = vlaneseq
    %v4553 = vshrl.u32 %v4552, 7
    %v4554 = vsub.s32 7, %v4553
    %v4555 = vrot.slane %v1172, %v4554
    %v4556 = vlaneseq
    %v4557 = vshrl.u32 %v4556, 7
    %v4558 = vsub.s32 0, %v4557
    %v4559 = vrot.slane %v1173, %v4558
    %v4560 = vlaneseq
    %v4561 = vshrl.u32 %v4560, 7
    %v4562 = vsub.s32 1, %v4561
    %v4563 = vrot.slane %v1173, %v4562
    %v4564 = vlaneseq
    %v4565 = vshrl.u32 %v4564, 7
    %v4566 = vsub.s32 2, %v4565
    %v4567 = vrot.slane %v1173, %v4566
    %v4568 = vlaneseq
    %v4569 = vshrl.u32 %v4568, 7
    %v4570 = vsub.s32 3, %v4569
    %v4571 = vrot.slane %v1173, %v4570
    %v4572 = vlaneseq
    %v4573 = vshrl.u32 %v4572, 7
    %v4574 = vsub.s32 4, %v4573
    %v4575 = vrot.slane %v1173, %v4574
    %v4576 = vlaneseq
    %v4577 = vshrl.u32 %v4576, 7
    %v4578 = vsub.s32 5, %v4577
    %v4579 = vrot.slane %v1173, %v4578
    %v4580 = vlaneseq
    %v4581 = vshrl.u32 %v4580, 7
    %v4582 = vsub.s32 6, %v4581
    %v4583 = vrot.slane %v1173, %v4582
    %v4584 = vlaneseq
    %v4585 = vshrl.u32 %v4584, 7
    %v4586 = vsub.s32 7, %v4585
    %v4587 = vrot.slane %v1173, %v4586
    %v4588 = vlaneseq
    %v4589 = vshrl.u32 %v4588, 7
    %v4590 = vsub.s32 0, %v4589
    %v4591 = vrot.slane %v1174, %v4590
    %v4592 = vlaneseq
    %v4593 = vshrl.u32 %v4592, 7
    %v4594 = vsub.s32 1, %v4593
    %v4595 = vrot.slane %v1174, %v4594
    %v4596 = vlaneseq
    %v4597 = vshrl.u32 %v4596, 7
    %v4598 = vsub.s32 2, %v4597
    %v4599 = vrot.slane %v1174, %v4598
    %v4600 = vlaneseq
    %v4601 = vshrl.u32 %v4600, 7
    %v4602 = vsub.s32 3, %v4601
    %v4603 = vrot.slane %v1174, %v4602
    %v4604 = vlaneseq
    %v4605 = vshrl.u32 %v4604, 7
    %v4606 = vsub.s32 4, %v4605
    %v4607 = vrot.slane %v1174, %v4606
    %v4608 = vlaneseq
    %v4609 = vshrl.u32 %v4608, 7
    %v4610 = vsub.s32 5, %v4609
    %v4611 = vrot.slane %v1174, %v4610
    %v4612 = vlaneseq
    %v4613 = vshrl.u32 %v4612, 7
    %v4614 = vsub.s32 6, %v4613
    %v4615 = vrot.slane %v1174, %v4614
    %v4616 = vlaneseq
    %v4617 = vshrl.u32 %v4616, 7
    %v4618 = vsub.s32 7, %v4617
    %v4619 = vrot.slane %v1174, %v4618
    %v4620 = vlaneseq
    %v4621 = vshrl.u32 %v4620, 7
    %v4622 = vsub.s32 0, %v4621
    %v4623 = vrot.slane %v1175, %v4622
    %v4624 = vlaneseq
    %v4625 = vshrl.u32 %v4624, 7
    %v4626 = vsub.s32 1, %v4625
    %v4627 = vrot.slane %v1175, %v4626
    %v4628 = vlaneseq
    %v4629 = vshrl.u32 %v4628, 7
    %v4630 = vsub.s32 2, %v4629
    %v4631 = vrot.slane %v1175, %v4630
    %v4632 = vlaneseq
    %v4633 = vshrl.u32 %v4632, 7
    %v4634 = vsub.s32 3, %v4633
    %v4635 = vrot.slane %v1175, %v4634
    %v4636 = vlaneseq
    %v4637 = vshrl.u32 %v4636, 7
    %v4638 = vsub.s32 4, %v4637
    %v4639 = vrot.slane %v1175, %v4638
    %v4640 = vlaneseq
    %v4641 = vshrl.u32 %v4640, 7
    %v4642 = vsub.s32 5, %v4641
    %v4643 = vrot.slane %v1175, %v4642
    %v4644 = vlaneseq
    %v4645 = vshrl.u32 %v4644, 7
    %v4646 = vsub.s32 6, %v4645
    %v4647 = vrot.slane %v1175, %v4646
    %v4648 = vlaneseq
    %v4649 = vshrl.u32 %v4648, 7
    %v4650 = vsub.s32 7, %v4649
    %v4651 = vrot.slane %v1175, %v4650
    %v4652 = vlaneseq
    %v4653 = vshrl.u32 %v4652, 7
    %v4654 = vsub.s32 0, %v4653
    %v4655 = vrot.slane %v1176, %v4654
    %v4656 = vlaneseq
    %v4657 = vshrl.u32 %v4656, 7
    %v4658 = vsub.s32 1, %v4657
    %v4659 = vrot.slane %v1176, %v4658
    %v4660 = vlaneseq
    %v4661 = vshrl.u32 %v4660, 7
    %v4662 = vsub.s32 2, %v4661
    %v4663 = vrot.slane %v1176, %v4662
    %v4664 = vlaneseq
    %v4665 = vshrl.u32 %v4664, 7
    %v4666 = vsub.s32 3, %v4665
    %v4667 = vrot.slane %v1176, %v4666
    %v4668 = vlaneseq
    %v4669 = vshrl.u32 %v4668, 7
    %v4670 = vsub.s32 4, %v4669
    %v4671 = vrot.slane %v1176, %v4670
    %v4672 = vlaneseq
    %v4673 = vshrl.u32 %v4672, 7
    %v4674 = vsub.s32 5, %v4673
    %v4675 = vrot.slane %v1176, %v4674
    %v4676 = vlaneseq
    %v4677 = vshrl.u32 %v4676, 7
    %v4678 = vsub.s32 6, %v4677
    %v4679 = vrot.slane %v1176, %v4678
    %v4680 = vlaneseq
    %v4681 = vshrl.u32 %v4680, 7
    %v4682 = vsub.s32 7, %v4681
    %v4683 = vrot.slane %v1176, %v4682
    %v4684 = vlaneseq
    %v4685 = vshrl.u32 %v4684, 7
    %v4686 = vsub.s32 0, %v4685
    %v4687 = vrot.slane %v1177, %v4686
    %v4688 = vlaneseq
    %v4689 = vshrl.u32 %v4688, 7
    %v4690 = vsub.s32 1, %v4689
    %v4691 = vrot.slane %v1177, %v4690
    %v4692 = vlaneseq
    %v4693 = vshrl.u32 %v4692, 7
    %v4694 = vsub.s32 2, %v4693
    %v4695 = vrot.slane %v1177, %v4694
    %v4696 = vlaneseq
    %v4697 = vshrl.u32 %v4696, 7
    %v4698 = vsub.s32 3, %v4697
    %v4699 = vrot.slane %v1177, %v4698
    %v4700 = vlaneseq
    %v4701 = vshrl.u32 %v4700, 7
    %v4702 = vsub.s32 4, %v4701
    %v4703 = vrot.slane %v1177, %v4702
    %v4704 = vlaneseq
    %v4705 = vshrl.u32 %v4704, 7
    %v4706 = vsub.s32 5, %v4705
    %v4707 = vrot.slane %v1177, %v4706
    %v4708 = vlaneseq
    %v4709 = vshrl.u32 %v4708, 7
    %v4710 = vsub.s32 6, %v4709
    %v4711 = vrot.slane %v1177, %v4710
    %v4712 = vlaneseq
    %v4713 = vshrl.u32 %v4712, 7
    %v4714 = vsub.s32 7, %v4713
    %v4715 = vrot.slane %v1177, %v4714
    %v4716 = vlaneseq
    %v4717 = vshrl.u32 %v4716, 7
    %v4718 = vsub.s32 0, %v4717
    %v4719 = vrot.slane %v1178, %v4718
    %v4720 = vlaneseq
    %v4721 = vshrl.u32 %v4720, 7
    %v4722 = vsub.s32 1, %v4721
    %v4723 = vrot.slane %v1178, %v4722
    %v4724 = vlaneseq
    %v4725 = vshrl.u32 %v4724, 7
    %v4726 = vsub.s32 2, %v4725
    %v4727 = vrot.slane %v1178, %v4726
    %v4728 = vlaneseq
    %v4729 = vshrl.u32 %v4728, 7
    %v4730 = vsub.s32 3, %v4729
    %v4731 = vrot.slane %v1178, %v4730
    %v4732 = vlaneseq
    %v4733 = vshrl.u32 %v4732, 7
    %v4734 = vsub.s32 4, %v4733
    %v4735 = vrot.slane %v1178, %v4734
    %v4736 = vlaneseq
    %v4737 = vshrl.u32 %v4736, 7
    %v4738 = vsub.s32 5, %v4737
    %v4739 = vrot.slane %v1178, %v4738
    %v4740 = vlaneseq
    %v4741 = vshrl.u32 %v4740, 7
    %v4742 = vsub.s32 6, %v4741
    %v4743 = vrot.slane %v1178, %v4742
    %v4744 = vlaneseq
    %v4745 = vshrl.u32 %v4744, 7
    %v4746 = vsub.s32 7, %v4745
    %v4747 = vrot.slane %v1178, %v4746
    %v4748 = vlaneseq
    %v4749 = vshrl.u32 %v4748, 7
    %v4750 = vsub.s32 0, %v4749
    %v4751 = vrot.slane %v1179, %v4750
    %v4752 = vlaneseq
    %v4753 = vshrl.u32 %v4752, 7
    %v4754 = vsub.s32 1, %v4753
    %v4755 = vrot.slane %v1179, %v4754
    %v4756 = vlaneseq
    %v4757 = vshrl.u32 %v4756, 7
    %v4758 = vsub.s32 2, %v4757
    %v4759 = vrot.slane %v1179, %v4758
    %v4760 = vlaneseq
    %v4761 = vshrl.u32 %v4760, 7
    %v4762 = vsub.s32 3, %v4761
    %v4763 = vrot.slane %v1179, %v4762
    %v4764 = vlaneseq
    %v4765 = vshrl.u32 %v4764, 7
    %v4766 = vsub.s32 4, %v4765
    %v4767 = vrot.slane %v1179, %v4766
    %v4768 = vlaneseq
    %v4769 = vshrl.u32 %v4768, 7
    %v4770 = vsub.s32 5, %v4769
    %v4771 = vrot.slane %v1179, %v4770
    %v4772 = vlaneseq
    %v4773 = vshrl.u32 %v4772, 7
    %v4774 = vsub.s32 6, %v4773
    %v4775 = vrot.slane %v1179, %v4774
    %v4776 = vlaneseq
    %v4777 = vshrl.u32 %v4776, 7
    %v4778 = vsub.s32 7, %v4777
    %v4779 = vrot.slane %v1179, %v4778
    %v4780 = vlaneseq
    %v4781 = vshrl.u32 %v4780, 7
    %v4782 = vsub.s32 0, %v4781
    %v4783 = vrot.slane %v1180, %v4782
    %v4784 = vlaneseq
    %v4785 = vshrl.u32 %v4784, 7
    %v4786 = vsub.s32 1, %v4785
    %v4787 = vrot.slane %v1180, %v4786
    %v4788 = vlaneseq
    %v4789 = vshrl.u32 %v4788, 7
    %v4790 = vsub.s32 2, %v4789
    %v4791 = vrot.slane %v1180, %v4790
    %v4792 = vlaneseq
    %v4793 = vshrl.u32 %v4792, 7
    %v4794 = vsub.s32 3, %v4793
    %v4795 = vrot.slane %v1180, %v4794
    %v4796 = vlaneseq
    %v4797 = vshrl.u32 %v4796, 7
    %v4798 = vsub.s32 4, %v4797
    %v4799 = vrot.slane %v1180, %v4798
    %v4800 = vlaneseq
    %v4801 = vshrl.u32 %v4800, 7
    %v4802 = vsub.s32 5, %v4801
    %v4803 = vrot.slane %v1180, %v4802
    %v4804 = vlaneseq
    %v4805 = vshrl.u32 %v4804, 7
    %v4806 = vsub.s32 6, %v4805
    %v4807 = vrot.slane %v1180, %v4806
    %v4808 = vlaneseq
    %v4809 = vshrl.u32 %v4808, 7
    %v4810 = vsub.s32 7, %v4809
    %v4811 = vrot.slane %v1180, %v4810
    %v4812 = vlaneseq
    %v4813 = vshrl.u32 %v4812, 7
    %v4814 = vsub.s32 0, %v4813
    %v4815 = vrot.slane %v1181, %v4814
    %v4816 = vlaneseq
    %v4817 = vshrl.u32 %v4816, 7
    %v4818 = vsub.s32 1, %v4817
    %v4819 = vrot.slane %v1181, %v4818
    %v4820 = vlaneseq
    %v4821 = vshrl.u32 %v4820, 7
    %v4822 = vsub.s32 2, %v4821
    %v4823 = vrot.slane %v1181, %v4822
    %v4824 = vlaneseq
    %v4825 = vshrl.u32 %v4824, 7
    %v4826 = vsub.s32 3, %v4825
    %v4827 = vrot.slane %v1181, %v4826
    %v4828 = vlaneseq
    %v4829 = vshrl.u32 %v4828, 7
    %v4830 = vsub.s32 4, %v4829
    %v4831 = vrot.slane %v1181, %v4830
    %v4832 = vlaneseq
    %v4833 = vshrl.u32 %v4832, 7
    %v4834 = vsub.s32 5, %v4833
    %v4835 = vrot.slane %v1181, %v4834
    %v4836 = vlaneseq
    %v4837 = vshrl.u32 %v4836, 7
    %v4838 = vsub.s32 6, %v4837
    %v4839 = vrot.slane %v1181, %v4838
    %v4840 = vlaneseq
    %v4841 = vshrl.u32 %v4840, 7
    %v4842 = vsub.s32 7, %v4841
    %v4843 = vrot.slane %v1181, %v4842
    %v4844 = vlaneseq
    %v4845 = vshrl.u32 %v4844, 7
    %v4846 = vsub.s32 0, %v4845
    %v4847 = vrot.slane %v1182, %v4846
    %v4848 = vlaneseq
    %v4849 = vshrl.u32 %v4848, 7
    %v4850 = vsub.s32 1, %v4849
    %v4851 = vrot.slane %v1182, %v4850
    %v4852 = vlaneseq
    %v4853 = vshrl.u32 %v4852, 7
    %v4854 = vsub.s32 2, %v4853
    %v4855 = vrot.slane %v1182, %v4854
    %v4856 = vlaneseq
    %v4857 = vshrl.u32 %v4856, 7
    %v4858 = vsub.s32 3, %v4857
    %v4859 = vrot.slane %v1182, %v4858
    %v4860 = vlaneseq
    %v4861 = vshrl.u32 %v4860, 7
    %v4862 = vsub.s32 4, %v4861
    %v4863 = vrot.slane %v1182, %v4862
    %v4864 = vlaneseq
    %v4865 = vshrl.u32 %v4864, 7
    %v4866 = vsub.s32 5, %v4865
    %v4867 = vrot.slane %v1182, %v4866
    %v4868 = vlaneseq
    %v4869 = vshrl.u32 %v4868, 7
    %v4870 = vsub.s32 6, %v4869
    %v4871 = vrot.slane %v1182, %v4870
    %v4872 = vlaneseq
    %v4873 = vshrl.u32 %v4872, 7
    %v4874 = vsub.s32 7, %v4873
    %v4875 = vrot.slane %v1182, %v4874
    %v4876 = vlaneseq
    %v4877 = vshrl.u32 %v4876, 7
    %v4878 = vsub.s32 0, %v4877
    %v4879 = vrot.slane %v1183, %v4878
    %v4880 = vlaneseq
    %v4881 = vshrl.u32 %v4880, 7
    %v4882 = vsub.s32 1, %v4881
    %v4883 = vrot.slane %v1183, %v4882
    %v4884 = vlaneseq
    %v4885 = vshrl.u32 %v4884, 7
    %v4886 = vsub.s32 2, %v4885
    %v4887 = vrot.slane %v1183, %v4886
    %v4888 = vlaneseq
    %v4889 = vshrl.u32 %v4888, 7
    %v4890 = vsub.s32 3, %v4889
    %v4891 = vrot.slane %v1183, %v4890
    %v4892 = vlaneseq
    %v4893 = vshrl.u32 %v4892, 7
    %v4894 = vsub.s32 4, %v4893
    %v4895 = vrot.slane %v1183, %v4894
    %v4896 = vlaneseq
    %v4897 = vshrl.u32 %v4896, 7
    %v4898 = vsub.s32 5, %v4897
    %v4899 = vrot.slane %v1183, %v4898
    %v4900 = vlaneseq
    %v4901 = vshrl.u32 %v4900, 7
    %v4902 = vsub.s32 6, %v4901
    %v4903 = vrot.slane %v1183, %v4902
    %v4904 = vlaneseq
    %v4905 = vshrl.u32 %v4904, 7
    %v4906 = vsub.s32 7, %v4905
    %v4907 = vrot.slane %v1183, %v4906
    %v4908 = vlaneseq
    %v4909 = vshrl.u32 %v4908, 7
    %v4910 = vsub.s32 0, %v4909
    %v4911 = vrot.slane %v1184, %v4910
    %v4912 = vlaneseq
    %v4913 = vshrl.u32 %v4912, 7
    %v4914 = vsub.s32 1, %v4913
    %v4915 = vrot.slane %v1184, %v4914
    %v4916 = vlaneseq
    %v4917 = vshrl.u32 %v4916, 7
    %v4918 = vsub.s32 2, %v4917
    %v4919 = vrot.slane %v1184, %v4918
    %v4920 = vlaneseq
    %v4921 = vshrl.u32 %v4920, 7
    %v4922 = vsub.s32 3, %v4921
    %v4923 = vrot.slane %v1184, %v4922
    %v4924 = vlaneseq
    %v4925 = vshrl.u32 %v4924, 7
    %v4926 = vsub.s32 4, %v4925
    %v4927 = vrot.slane %v1184, %v4926
    %v4928 = vlaneseq
    %v4929 = vshrl.u32 %v4928, 7
    %v4930 = vsub.s32 5, %v4929
    %v4931 = vrot.slane %v1184, %v4930
    %v4932 = vlaneseq
    %v4933 = vshrl.u32 %v4932, 7
    %v4934 = vsub.s32 6, %v4933
    %v4935 = vrot.slane %v1184, %v4934
    %v4936 = vlaneseq
    %v4937 = vshrl.u32 %v4936, 7
    %v4938 = vsub.s32 7, %v4937
    %v4939 = vrot.slane %v1184, %v4938
    %v4940 = vlaneseq
    %v4941 = vshrl.u32 %v4940, 7
    %v4942 = vsub.s32 0, %v4941
    %v4943 = vrot.slane %v1185, %v4942
    %v4944 = vlaneseq
    %v4945 = vshrl.u32 %v4944, 7
    %v4946 = vsub.s32 1, %v4945
    %v4947 = vrot.slane %v1185, %v4946
    %v4948 = vlaneseq
    %v4949 = vshrl.u32 %v4948, 7
    %v4950 = vsub.s32 2, %v4949
    %v4951 = vrot.slane %v1185, %v4950
    %v4952 = vlaneseq
    %v4953 = vshrl.u32 %v4952, 7
    %v4954 = vsub.s32 3, %v4953
    %v4955 = vrot.slane %v1185, %v4954
    %v4956 = vlaneseq
    %v4957 = vshrl.u32 %v4956, 7
    %v4958 = vsub.s32 4, %v4957
    %v4959 = vrot.slane %v1185, %v4958
    %v4960 = vlaneseq
    %v4961 = vshrl.u32 %v4960, 7
    %v4962 = vsub.s32 5, %v4961
    %v4963 = vrot.slane %v1185, %v4962
    %v4964 = vlaneseq
    %v4965 = vshrl.u32 %v4964, 7
    %v4966 = vsub.s32 6, %v4965
    %v4967 = vrot.slane %v1185, %v4966
    %v4968 = vlaneseq
    %v4969 = vshrl.u32 %v4968, 7
    %v4970 = vsub.s32 7, %v4969
    %v4971 = vrot.slane %v1185, %v4970
    %v4972 = vlaneseq
    %v4973 = vshrl.u32 %v4972, 7
    %v4974 = vsub.s32 0, %v4973
    %v4975 = vrot.slane %v1186, %v4974
    %v4976 = vlaneseq
    %v4977 = vshrl.u32 %v4976, 7
    %v4978 = vsub.s32 1, %v4977
    %v4979 = vrot.slane %v1186, %v4978
    %v4980 = vlaneseq
    %v4981 = vshrl.u32 %v4980, 7
    %v4982 = vsub.s32 2, %v4981
    %v4983 = vrot.slane %v1186, %v4982
    %v4984 = vlaneseq
    %v4985 = vshrl.u32 %v4984, 7
    %v4986 = vsub.s32 3, %v4985
    %v4987 = vrot.slane %v1186, %v4986
    %v4988 = vlaneseq
    %v4989 = vshrl.u32 %v4988, 7
    %v4990 = vsub.s32 4, %v4989
    %v4991 = vrot.slane %v1186, %v4990
    %v4992 = vlaneseq
    %v4993 = vshrl.u32 %v4992, 7
    %v4994 = vsub.s32 5, %v4993
    %v4995 = vrot.slane %v1186, %v4994
    %v4996 = vlaneseq
    %v4997 = vshrl.u32 %v4996, 7
    %v4998 = vsub.s32 6, %v4997
    %v4999 = vrot.slane %v1186, %v4998
    %v5000 = vlaneseq
    %v5001 = vshrl.u32 %v5000, 7
    %v5002 = vsub.s32 7, %v5001
    %v5003 = vrot.slane %v1186, %v5002
    %v5004 = vlaneseq
    %v5005 = vshrl.u32 %v5004, 7
    %v5006 = vsub.s32 0, %v5005
    %v5007 = vrot.slane %v1187, %v5006
    %v5008 = vlaneseq
    %v5009 = vshrl.u32 %v5008, 7
    %v5010 = vsub.s32 1, %v5009
    %v5011 = vrot.slane %v1187, %v5010
    %v5012 = vlaneseq
    %v5013 = vshrl.u32 %v5012, 7
    %v5014 = vsub.s32 2, %v5013
    %v5015 = vrot.slane %v1187, %v5014
    %v5016 = vlaneseq
    %v5017 = vshrl.u32 %v5016, 7
    %v5018 = vsub.s32 3, %v5017
    %v5019 = vrot.slane %v1187, %v5018
    %v5020 = vlaneseq
    %v5021 = vshrl.u32 %v5020, 7
    %v5022 = vsub.s32 4, %v5021
    %v5023 = vrot.slane %v1187, %v5022
    %v5024 = vlaneseq
    %v5025 = vshrl.u32 %v5024, 7
    %v5026 = vsub.s32 5, %v5025
    %v5027 = vrot.slane %v1187, %v5026
    %v5028 = vlaneseq
    %v5029 = vshrl.u32 %v5028, 7
    %v5030 = vsub.s32 6, %v5029
    %v5031 = vrot.slane %v1187, %v5030
    %v5032 = vlaneseq
    %v5033 = vshrl.u32 %v5032, 7
    %v5034 = vsub.s32 7, %v5033
    %v5035 = vrot.slane %v1187, %v5034
    %v5036 = vlaneseq
    %v5037 = vshrl.u32 %v5036, 7
    %v5038 = vsub.s32 0, %v5037
    %v5039 = vrot.slane %v1188, %v5038
    %v5040 = vlaneseq
    %v5041 = vshrl.u32 %v5040, 7
    %v5042 = vsub.s32 1, %v5041
    %v5043 = vrot.slane %v1188, %v5042
    %v5044 = vlaneseq
    %v5045 = vshrl.u32 %v5044, 7
    %v5046 = vsub.s32 2, %v5045
    %v5047 = vrot.slane %v1188, %v5046
    %v5048 = vlaneseq
    %v5049 = vshrl.u32 %v5048, 7
    %v5050 = vsub.s32 3, %v5049
    %v5051 = vrot.slane %v1188, %v5050
    %v5052 = vlaneseq
    %v5053 = vshrl.u32 %v5052, 7
    %v5054 = vsub.s32 4, %v5053
    %v5055 = vrot.slane %v1188, %v5054
    %v5056 = vlaneseq
    %v5057 = vshrl.u32 %v5056, 7
    %v5058 = vsub.s32 5, %v5057
    %v5059 = vrot.slane %v1188, %v5058
    %v5060 = vlaneseq
    %v5061 = vshrl.u32 %v5060, 7
    %v5062 = vsub.s32 6, %v5061
    %v5063 = vrot.slane %v1188, %v5062
    %v5064 = vlaneseq
    %v5065 = vshrl.u32 %v5064, 7
    %v5066 = vsub.s32 7, %v5065
    %v5067 = vrot.slane %v1188, %v5066
    %v5068 = vlaneseq
    %v5069 = vshrl.u32 %v5068, 7
    %v5070 = vsub.s32 0, %v5069
    %v5071 = vrot.slane %v1189, %v5070
    %v5072 = vlaneseq
    %v5073 = vshrl.u32 %v5072, 7
    %v5074 = vsub.s32 1, %v5073
    %v5075 = vrot.slane %v1189, %v5074
    %v5076 = vlaneseq
    %v5077 = vshrl.u32 %v5076, 7
    %v5078 = vsub.s32 2, %v5077
    %v5079 = vrot.slane %v1189, %v5078
    %v5080 = vlaneseq
    %v5081 = vshrl.u32 %v5080, 7
    %v5082 = vsub.s32 3, %v5081
    %v5083 = vrot.slane %v1189, %v5082
    %v5084 = vlaneseq
    %v5085 = vshrl.u32 %v5084, 7
    %v5086 = vsub.s32 4, %v5085
    %v5087 = vrot.slane %v1189, %v5086
    %v5088 = vlaneseq
    %v5089 = vshrl.u32 %v5088, 7
    %v5090 = vsub.s32 5, %v5089
    %v5091 = vrot.slane %v1189, %v5090
    %v5092 = vlaneseq
    %v5093 = vshrl.u32 %v5092, 7
    %v5094 = vsub.s32 6, %v5093
    %v5095 = vrot.slane %v1189, %v5094
    %v5096 = vlaneseq
    %v5097 = vshrl.u32 %v5096, 7
    %v5098 = vsub.s32 7, %v5097
    %v5099 = vrot.slane %v1189, %v5098
    %v5100 = vlaneseq
    %v5101 = vshrl.u32 %v5100, 7
    %v5102 = vsub.s32 0, %v5101
    %v5103 = vrot.slane %v1190, %v5102
    %v5104 = vlaneseq
    %v5105 = vshrl.u32 %v5104, 7
    %v5106 = vsub.s32 1, %v5105
    %v5107 = vrot.slane %v1190, %v5106
    %v5108 = vlaneseq
    %v5109 = vshrl.u32 %v5108, 7
    %v5110 = vsub.s32 2, %v5109
    %v5111 = vrot.slane %v1190, %v5110
    %v5112 = vlaneseq
    %v5113 = vshrl.u32 %v5112, 7
    %v5114 = vsub.s32 3, %v5113
    %v5115 = vrot.slane %v1190, %v5114
    %v5116 = vlaneseq
    %v5117 = vshrl.u32 %v5116, 7
    %v5118 = vsub.s32 4, %v5117
    %v5119 = vrot.slane %v1190, %v5118
    %v5120 = vlaneseq
    %v5121 = vshrl.u32 %v5120, 7
    %v5122 = vsub.s32 5, %v5121
    %v5123 = vrot.slane %v1190, %v5122
    %v5124 = vlaneseq
    %v5125 = vshrl.u32 %v5124, 7
    %v5126 = vsub.s32 6, %v5125
    %v5127 = vrot.slane %v1190, %v5126
    %v5128 = vlaneseq
    %v5129 = vshrl.u32 %v5128, 7
    %v5130 = vsub.s32 7, %v5129
    %v5131 = vrot.slane %v1190, %v5130
    %v5132 = vlaneseq
    %v5133 = vshrl.u32 %v5132, 7
    %v5134 = vsub.s32 0, %v5133
    %v5135 = vrot.slane %v1191, %v5134
    %v5136 = vlaneseq
    %v5137 = vshrl.u32 %v5136, 7
    %v5138 = vsub.s32 1, %v5137
    %v5139 = vrot.slane %v1191, %v5138
    %v5140 = vlaneseq
    %v5141 = vshrl.u32 %v5140, 7
    %v5142 = vsub.s32 2, %v5141
    %v5143 = vrot.slane %v1191, %v5142
    %v5144 = vlaneseq
    %v5145 = vshrl.u32 %v5144, 7
    %v5146 = vsub.s32 3, %v5145
    %v5147 = vrot.slane %v1191, %v5146
    %v5148 = vlaneseq
    %v5149 = vshrl.u32 %v5148, 7
    %v5150 = vsub.s32 4, %v5149
    %v5151 = vrot.slane %v1191, %v5150
    %v5152 = vlaneseq
    %v5153 = vshrl.u32 %v5152, 7
    %v5154 = vsub.s32 5, %v5153
    %v5155 = vrot.slane %v1191, %v5154
    %v5156 = vlaneseq
    %v5157 = vshrl.u32 %v5156, 7
    %v5158 = vsub.s32 6, %v5157
    %v5159 = vrot.slane %v1191, %v5158
    %v5160 = vlaneseq
    %v5161 = vshrl.u32 %v5160, 7
    %v5162 = vsub.s32 7, %v5161
    %v5163 = vrot.slane %v1191, %v5162
    %v5164 = vlaneseq
    %v5165 = vshrl.u32 %v5164, 7
    %v5166 = vsub.s32 0, %v5165
    %v5167 = vrot.slane %v1192, %v5166
    %v5168 = vlaneseq
    %v5169 = vshrl.u32 %v5168, 7
    %v5170 = vsub.s32 1, %v5169
    %v5171 = vrot.slane %v1192, %v5170
    %v5172 = vlaneseq
    %v5173 = vshrl.u32 %v5172, 7
    %v5174 = vsub.s32 2, %v5173
    %v5175 = vrot.slane %v1192, %v5174
    %v5176 = vlaneseq
    %v5177 = vshrl.u32 %v5176, 7
    %v5178 = vsub.s32 3, %v5177
    %v5179 = vrot.slane %v1192, %v5178
    %v5180 = vlaneseq
    %v5181 = vshrl.u32 %v5180, 7
    %v5182 = vsub.s32 4, %v5181
    %v5183 = vrot.slane %v1192, %v5182
    %v5184 = vlaneseq
    %v5185 = vshrl.u32 %v5184, 7
    %v5186 = vsub.s32 5, %v5185
    %v5187 = vrot.slane %v1192, %v5186
    %v5188 = vlaneseq
    %v5189 = vshrl.u32 %v5188, 7
    %v5190 = vsub.s32 6, %v5189
    %v5191 = vrot.slane %v1192, %v5190
    %v5192 = vlaneseq
    %v5193 = vshrl.u32 %v5192, 7
    %v5194 = vsub.s32 7, %v5193
    %v5195 = vrot.slane %v1192, %v5194
    %v5196 = vlaneseq
    %v5197 = vshrl.u32 %v5196, 7
    %v5198 = vsub.s32 0, %v5197
    %v5199 = vrot.slane %v1193, %v5198
    %v5200 = vlaneseq
    %v5201 = vshrl.u32 %v5200, 7
    %v5202 = vsub.s32 1, %v5201
    %v5203 = vrot.slane %v1193, %v5202
    %v5204 = vlaneseq
    %v5205 = vshrl.u32 %v5204, 7
    %v5206 = vsub.s32 2, %v5205
    %v5207 = vrot.slane %v1193, %v5206
    %v5208 = vlaneseq
    %v5209 = vshrl.u32 %v5208, 7
    %v5210 = vsub.s32 3, %v5209
    %v5211 = vrot.slane %v1193, %v5210
    %v5212 = vlaneseq
    %v5213 = vshrl.u32 %v5212, 7
    %v5214 = vsub.s32 4, %v5213
    %v5215 = vrot.slane %v1193, %v5214
    %v5216 = vlaneseq
    %v5217 = vshrl.u32 %v5216, 7
    %v5218 = vsub.s32 5, %v5217
    %v5219 = vrot.slane %v1193, %v5218
    %v5220 = vlaneseq
    %v5221 = vshrl.u32 %v5220, 7
    %v5222 = vsub.s32 6, %v5221
    %v5223 = vrot.slane %v1193, %v5222
    %v5224 = vlaneseq
    %v5225 = vshrl.u32 %v5224, 7
    %v5226 = vsub.s32 7, %v5225
    %v5227 = vrot.slane %v1193, %v5226
    %v5228 = vlaneseq
    %v5229 = vshrl.u32 %v5228, 7
    %v5230 = vsub.s32 0, %v5229
    %v5231 = vrot.slane %v1194, %v5230
    %v5232 = vlaneseq
    %v5233 = vshrl.u32 %v5232, 7
    %v5234 = vsub.s32 1, %v5233
    %v5235 = vrot.slane %v1194, %v5234
    %v5236 = vlaneseq
    %v5237 = vshrl.u32 %v5236, 7
    %v5238 = vsub.s32 2, %v5237
    %v5239 = vrot.slane %v1194, %v5238
    %v5240 = vlaneseq
    %v5241 = vshrl.u32 %v5240, 7
    %v5242 = vsub.s32 3, %v5241
    %v5243 = vrot.slane %v1194, %v5242
    %v5244 = vlaneseq
    %v5245 = vshrl.u32 %v5244, 7
    %v5246 = vsub.s32 4, %v5245
    %v5247 = vrot.slane %v1194, %v5246
    %v5248 = vlaneseq
    %v5249 = vshrl.u32 %v5248, 7
    %v5250 = vsub.s32 5, %v5249
    %v5251 = vrot.slane %v1194, %v5250
    %v5252 = vlaneseq
    %v5253 = vshrl.u32 %v5252, 7
    %v5254 = vsub.s32 6, %v5253
    %v5255 = vrot.slane %v1194, %v5254
    %v5256 = vlaneseq
    %v5257 = vshrl.u32 %v5256, 7
    %v5258 = vsub.s32 7, %v5257
    %v5259 = vrot.slane %v1194, %v5258
    %v5260 = vlaneseq
    %v5261 = vshrl.u32 %v5260, 7
    %v5262 = vsub.s32 0, %v5261
    %v5263 = vrot.slane %v1195, %v5262
    %v5264 = vlaneseq
    %v5265 = vshrl.u32 %v5264, 7
    %v5266 = vsub.s32 1, %v5265
    %v5267 = vrot.slane %v1195, %v5266
    %v5268 = vlaneseq
    %v5269 = vshrl.u32 %v5268, 7
    %v5270 = vsub.s32 2, %v5269
    %v5271 = vrot.slane %v1195, %v5270
    %v5272 = vlaneseq
    %v5273 = vshrl.u32 %v5272, 7
    %v5274 = vsub.s32 3, %v5273
    %v5275 = vrot.slane %v1195, %v5274
    %v5276 = vlaneseq
    %v5277 = vshrl.u32 %v5276, 7
    %v5278 = vsub.s32 4, %v5277
    %v5279 = vrot.slane %v1195, %v5278
    %v5280 = vlaneseq
    %v5281 = vshrl.u32 %v5280, 7
    %v5282 = vsub.s32 5, %v5281
    %v5283 = vrot.slane %v1195, %v5282
    %v5284 = vlaneseq
    %v5285 = vshrl.u32 %v5284, 7
    %v5286 = vsub.s32 6, %v5285
    %v5287 = vrot.slane %v1195, %v5286
    %v5288 = vlaneseq
    %v5289 = vshrl.u32 %v5288, 7
    %v5290 = vsub.s32 7, %v5289
    %v5291 = vrot.slane %v1195, %v5290
    %v5292 = vlaneseq
    %v5293 = vshrl.u32 %v5292, 7
    %v5294 = vsub.s32 0, %v5293
    %v5295 = vrot.slane %v1196, %v5294
    %v5296 = vlaneseq
    %v5297 = vshrl.u32 %v5296, 7
    %v5298 = vsub.s32 1, %v5297
    %v5299 = vrot.slane %v1196, %v5298
    %v5300 = vlaneseq
    %v5301 = vshrl.u32 %v5300, 7
    %v5302 = vsub.s32 2, %v5301
    %v5303 = vrot.slane %v1196, %v5302
    %v5304 = vlaneseq
    %v5305 = vshrl.u32 %v5304, 7
    %v5306 = vsub.s32 3, %v5305
    %v5307 = vrot.slane %v1196, %v5306
    %v5308 = vlaneseq
    %v5309 = vshrl.u32 %v5308, 7
    %v5310 = vsub.s32 4, %v5309
    %v5311 = vrot.slane %v1196, %v5310
    %v5312 = vlaneseq
    %v5313 = vshrl.u32 %v5312, 7
    %v5314 = vsub.s32 5, %v5313
    %v5315 = vrot.slane %v1196, %v5314
    %v5316 = vlaneseq
    %v5317 = vshrl.u32 %v5316, 7
    %v5318 = vsub.s32 6, %v5317
    %v5319 = vrot.slane %v1196, %v5318
    %v5320 = vlaneseq
    %v5321 = vshrl.u32 %v5320, 7
    %v5322 = vsub.s32 7, %v5321
    %v5323 = vrot.slane %v1196, %v5322
    %v5324 = vlaneseq
    %v5325 = vshrl.u32 %v5324, 7
    %v5326 = vsub.s32 0, %v5325
    %v5327 = vrot.slane %v1197, %v5326
    %v5328 = vlaneseq
    %v5329 = vshrl.u32 %v5328, 7
    %v5330 = vsub.s32 1, %v5329
    %v5331 = vrot.slane %v1197, %v5330
    %v5332 = vlaneseq
    %v5333 = vshrl.u32 %v5332, 7
    %v5334 = vsub.s32 2, %v5333
    %v5335 = vrot.slane %v1197, %v5334
    %v5336 = vcombine.low %v1327, %v1331
    %v5337 = vcombine.low %v1335, %v1339
    %v5338 = vcombine.low %v1343, %v1347
    %v5339 = vcombine.low %v1351, %v1355
    %v5341 = vunpack.c.l.s4 1966171168
    %v5342 = vunpack.c.0.s8 %v5341
    %v5343 = vlaneseq
    %v5344 = vshrl.u32 %v5343, 7
    %v5345 = vsub.s32 %v5342, %v5344
    %v5346 = vrot.slane %v5336, %v5345
    %v5348 = vunpack.c.l.s4 1966171168
    %v5349 = vunpack.c.0.s8 %v5348
    %v5350 = vlaneseq
    %v5351 = vshrl.u32 %v5350, 7
    %v5352 = vsub.s32 %v5349, %v5351
    %v5353 = vrot.slane %v5337, %v5352
    %v5355 = vunpack.c.l.s4 1966171168
    %v5356 = vunpack.c.0.s8 %v5355
    %v5357 = vlaneseq
    %v5358 = vshrl.u32 %v5357, 7
    %v5359 = vsub.s32 %v5356, %v5358
    %v5360 = vrot.slane %v5338, %v5359
    %v5362 = vunpack.c.l.s4 1966171168
    %v5363 = vunpack.c.0.s8 %v5362
    %v5364 = vlaneseq
    %v5365 = vshrl.u32 %v5364, 7
    %v5366 = vsub.s32 %v5363, %v5365
    %v5367 = vrot.slane %v5339, %v5366
    %v5368 = vcombine.low %v5346, %v5353
    %v5369 = vcombine.low %v5360, %v5367
    %v5371 = vunpack.c.l.s4 1966171168
    %v5372 = vunpack.c.0.s8 %v5371
    %v5373 = vlaneseq
    %v5374 = vshrl.u32 %v5373, 7
    %v5375 = vsub.s32 %v5372, %v5374
    %v5376 = vrot.slane %v5368, %v5375
    %v5378 = vunpack.c.l.s4 1966171168
    %v5379 = vunpack.c.0.s8 %v5378
    %v5380 = vlaneseq
    %v5381 = vshrl.u32 %v5380, 7
    %v5382 = vsub.s32 %v5379, %v5381
    %v5383 = vrot.slane %v5369, %v5382
    %v5384 = vcombine.low %v5376, %v5383
    %v5385 = vcombine.low %v1359, %v1363
    %v5386 = vcombine.low %v1367, %v1371
    %v5387 = vcombine.low %v1375, %v1379
    %v5388 = vcombine.low %v1383, %v1387
    %v5390 = vunpack.c.l.s4 1966171168
    %v5391 = vunpack.c.0.s8 %v5390
    %v5392 = vlaneseq
    %v5393 = vshrl.u32 %v5392, 7
    %v5394 = vsub.s32 %v5391, %v5393
    %v5395 = vrot.slane %v5385, %v5394
    %v5397 = vunpack.c.l.s4 1966171168
    %v5398 = vunpack.c.0.s8 %v5397
    %v5399 = vlaneseq
    %v5400 = vshrl.u32 %v5399, 7
    %v5401 = vsub.s32 %v5398, %v5400
    %v5402 = vrot.slane %v5386, %v5401
    %v5404 = vunpack.c.l.s4 1966171168
    %v5405 = vunpack.c.0.s8 %v5404
    %v5406 = vlaneseq
    %v5407 = vshrl.u32 %v5406, 7
    %v5408 = vsub.s32 %v5405, %v5407
    %v5409 = vrot.slane %v5387, %v5408
    %v5411 = vunpack.c.l.s4 1966171168
    %v5412 = vunpack.c.0.s8 %v5411
    %v5413 = vlaneseq
    %v5414 = vshrl.u32 %v5413, 7
    %v5415 = vsub.s32 %v5412, %v5414
    %v5416 = vrot.slane %v5388, %v5415
    %v5417 = vcombine.low %v5395, %v5402
    %v5418 = vcombine.low %v5409, %v5416
    %v5420 = vunpack.c.l.s4 1966171168
    %v5421 = vunpack.c.0.s8 %v5420
    %v5422 = vlaneseq
    %v5423 = vshrl.u32 %v5422, 7
    %v5424 = vsub.s32 %v5421, %v5423
    %v5425 = vrot.slane %v5417, %v5424
    %v5427 = vunpack.c.l.s4 1966171168
    %v5428 = vunpack.c.0.s8 %v5427
    %v5429 = vlaneseq
    %v5430 = vshrl.u32 %v5429, 7
    %v5431 = vsub.s32 %v5428, %v5430
    %v5432 = vrot.slane %v5418, %v5431
    %v5433 = vcombine.low %v5425, %v5432
    %v5434 = vcombine.low %v1391, %v1395
    %v5435 = vcombine.low %v1399, %v1403
    %v5436 = vcombine.low %v1407, %v1411
    %v5437 = vcombine.low %v1415, %v1419
    %v5439 = vunpack.c.l.s4 1966171168
    %v5440 = vunpack.c.0.s8 %v5439
    %v5441 = vlaneseq
    %v5442 = vshrl.u32 %v5441, 7
    %v5443 = vsub.s32 %v5440, %v5442
    %v5444 = vrot.slane %v5434, %v5443
    %v5446 = vunpack.c.l.s4 1966171168
    %v5447 = vunpack.c.0.s8 %v5446
    %v5448 = vlaneseq
    %v5449 = vshrl.u32 %v5448, 7
    %v5450 = vsub.s32 %v5447, %v5449
    %v5451 = vrot.slane %v5435, %v5450
    %v5453 = vunpack.c.l.s4 1966171168
    %v5454 = vunpack.c.0.s8 %v5453
    %v5455 = vlaneseq
    %v5456 = vshrl.u32 %v5455, 7
    %v5457 = vsub.s32 %v5454, %v5456
    %v5458 = vrot.slane %v5436, %v5457
    %v5460 = vunpack.c.l.s4 1966171168
    %v5461 = vunpack.c.0.s8 %v5460
    %v5462 = vlaneseq
    %v5463 = vshrl.u32 %v5462, 7
    %v5464 = vsub.s32 %v5461, %v5463
    %v5465 = vrot.slane %v5437, %v5464
    %v5466 = vcombine.low %v5444, %v5451
    %v5467 = vcombine.low %v5458, %v5465
    %v5469 = vunpack.c.l.s4 1966171168
    %v5470 = vunpack.c.0.s8 %v5469
    %v5471 = vlaneseq
    %v5472 = vshrl.u32 %v5471, 7
    %v5473 = vsub.s32 %v5470, %v5472
    %v5474 = vrot.slane %v5466, %v5473
    %v5476 = vunpack.c.l.s4 1966171168
    %v5477 = vunpack.c.0.s8 %v5476
    %v5478 = vlaneseq
    %v5479 = vshrl.u32 %v5478, 7
    %v5480 = vsub.s32 %v5477, %v5479
    %v5481 = vrot.slane %v5467, %v5480
    %v5482 = vcombine.low %v5474, %v5481
    %v5483 = vcombine.low %v1423, %v1427
    %v5484 = vcombine.low %v1431, %v1435
    %v5485 = vcombine.low %v1439, %v1443
    %v5486 = vcombine.low %v1447, %v1451
    %v5488 = vunpack.c.l.s4 1966171168
    %v5489 = vunpack.c.0.s8 %v5488
    %v5490 = vlaneseq
    %v5491 = vshrl.u32 %v5490, 7
    %v5492 = vsub.s32 %v5489, %v5491
    %v5493 = vrot.slane %v5483, %v5492
    %v5495 = vunpack.c.l.s4 1966171168
    %v5496 = vunpack.c.0.s8 %v5495
    %v5497 = vlaneseq
    %v5498 = vshrl.u32 %v5497, 7
    %v5499 = vsub.s32 %v5496, %v5498
    %v5500 = vrot.slane %v5484, %v5499
    %v5502 = vunpack.c.l.s4 1966171168
    %v5503 = vunpack.c.0.s8 %v5502
    %v5504 = vlaneseq
    %v5505 = vshrl.u32 %v5504, 7
    %v5506 = vsub.s32 %v5503, %v5505
    %v5507 = vrot.slane %v5485, %v5506
    %v5509 = vunpack.c.l.s4 1966171168
    %v5510 = vunpack.c.0.s8 %v5509
    %v5511 = vlaneseq
    %v5512 = vshrl.u32 %v5511, 7
    %v5513 = vsub.s32 %v5510, %v5512
    %v5514 = vrot.slane %v5486, %v5513
    %v5515 = vcombine.low %v5493, %v5500
    %v5516 = vcombine.low %v5507, %v5514
    %v5518 = vunpack.c.l.s4 1966171168
    %v5519 = vunpack.c.0.s8 %v5518
    %v5520 = vlaneseq
    %v5521 = vshrl.u32 %v5520, 7
    %v5522 = vsub.s32 %v5519, %v5521
    %v5523 = vrot.slane %v5515, %v5522
    %v5525 = vunpack.c.l.s4 1966171168
    %v5526 = vunpack.c.0.s8 %v5525
    %v5527 = vlaneseq
    %v5528 = vshrl.u32 %v5527, 7
    %v5529 = vsub.s32 %v5526, %v5528
    %v5530 = vrot.slane %v5516, %v5529
    %v5531 = vcombine.low %v5523, %v5530
    %v5532 = vcombine.low %v1455, %v1459
    %v5533 = vcombine.low %v1463, %v1467
    %v5534 = vcombine.low %v1471, %v1475
    %v5535 = vcombine.low %v1479, %v1483
    %v5537 = vunpack.c.l.s4 1966171168
    %v5538 = vunpack.c.0.s8 %v5537
    %v5539 = vlaneseq
    %v5540 = vshrl.u32 %v5539, 7
    %v5541 = vsub.s32 %v5538, %v5540
    %v5542 = vrot.slane %v5532, %v5541
    %v5544 = vunpack.c.l.s4 1966171168
    %v5545 = vunpack.c.0.s8 %v5544
    %v5546 = vlaneseq
    %v5547 = vshrl.u32 %v5546, 7
    %v5548 = vsub.s32 %v5545, %v5547
    %v5549 = vrot.slane %v5533, %v5548
    %v5551 = vunpack.c.l.s4 1966171168
    %v5552 = vunpack.c.0.s8 %v5551
    %v5553 = vlaneseq
    %v5554 = vshrl.u32 %v5553, 7
    %v5555 = vsub.s32 %v5552, %v5554
    %v5556 = vrot.slane %v5534, %v5555
    %v5558 = vunpack.c.l.s4 1966171168
    %v5559 = vunpack.c.0.s8 %v5558
    %v5560 = vlaneseq
    %v5561 = vshrl.u32 %v5560, 7
    %v5562 = vsub.s32 %v5559, %v5561
    %v5563 = vrot.slane %v5535, %v5562
    %v5564 = vcombine.low %v5542, %v5549
    %v5565 = vcombine.low %v5556, %v5563
    %v5567 = vunpack.c.l.s4 1966171168
    %v5568 = vunpack.c.0.s8 %v5567
    %v5569 = vlaneseq
    %v5570 = vshrl.u32 %v5569, 7
    %v5571 = vsub.s32 %v5568, %v5570
    %v5572 = vrot.slane %v5564, %v5571
    %v5574 = vunpack.c.l.s4 1966171168
    %v5575 = vunpack.c.0.s8 %v5574
    %v5576 = vlaneseq
    %v5577 = vshrl.u32 %v5576, 7
    %v5578 = vsub.s32 %v5575, %v5577
    %v5579 = vrot.slane %v5565, %v5578
    %v5580 = vcombine.low %v5572, %v5579
    %v5581 = vcombine.low %v1487, %v1491
    %v5582 = vcombine.low %v1495, %v1499
    %v5583 = vcombine.low %v1503, %v1507
    %v5584 = vcombine.low %v1511, %v1515
    %v5586 = vunpack.c.l.s4 1966171168
    %v5587 = vunpack.c.0.s8 %v5586
    %v5588 = vlaneseq
    %v5589 = vshrl.u32 %v5588, 7
    %v5590 = vsub.s32 %v5587, %v5589
    %v5591 = vrot.slane %v5581, %v5590
    %v5593 = vunpack.c.l.s4 1966171168
    %v5594 = vunpack.c.0.s8 %v5593
    %v5595 = vlaneseq
    %v5596 = vshrl.u32 %v5595, 7
    %v5597 = vsub.s32 %v5594, %v5596
    %v5598 = vrot.slane %v5582, %v5597
    %v5600 = vunpack.c.l.s4 1966171168
    %v5601 = vunpack.c.0.s8 %v5600
    %v5602 = vlaneseq
    %v5603 = vshrl.u32 %v5602, 7
    %v5604 = vsub.s32 %v5601, %v5603
    %v5605 = vrot.slane %v5583, %v5604
    %v5607 = vunpack.c.l.s4 1966171168
    %v5608 = vunpack.c.0.s8 %v5607
    %v5609 = vlaneseq
    %v5610 = vshrl.u32 %v5609, 7
    %v5611 = vsub.s32 %v5608, %v5610
    %v5612 = vrot.slane %v5584, %v5611
    %v5613 = vcombine.low %v5591, %v5598
    %v5614 = vcombine.low %v5605, %v5612
    %v5616 = vunpack.c.l.s4 1966171168
    %v5617 = vunpack.c.0.s8 %v5616
    %v5618 = vlaneseq
    %v5619 = vshrl.u32 %v5618, 7
    %v5620 = vsub.s32 %v5617, %v5619
    %v5621 = vrot.slane %v5613, %v5620
    %v5623 = vunpack.c.l.s4 1966171168
    %v5624 = vunpack.c.0.s8 %v5623
    %v5625 = vlaneseq
    %v5626 = vshrl.u32 %v5625, 7
    %v5627 = vsub.s32 %v5624, %v5626
    %v5628 = vrot.slane %v5614, %v5627
    %v5629 = vcombine.low %v5621, %v5628
    %v5630 = vcombine.low %v1519, %v1523
    %v5631 = vcombine.low %v1527, %v1531
    %v5632 = vcombine.low %v1535, %v1539
    %v5633 = vcombine.low %v1543, %v1547
    %v5635 = vunpack.c.l.s4 1966171168
    %v5636 = vunpack.c.0.s8 %v5635
    %v5637 = vlaneseq
    %v5638 = vshrl.u32 %v5637, 7
    %v5639 = vsub.s32 %v5636, %v5638
    %v5640 = vrot.slane %v5630, %v5639
    %v5642 = vunpack.c.l.s4 1966171168
    %v5643 = vunpack.c.0.s8 %v5642
    %v5644 = vlaneseq
    %v5645 = vshrl.u32 %v5644, 7
    %v5646 = vsub.s32 %v5643, %v5645
    %v5647 = vrot.slane %v5631, %v5646
    %v5649 = vunpack.c.l.s4 1966171168
    %v5650 = vunpack.c.0.s8 %v5649
    %v5651 = vlaneseq
    %v5652 = vshrl.u32 %v5651, 7
    %v5653 = vsub.s32 %v5650, %v5652
    %v5654 = vrot.slane %v5632, %v5653
    %v5656 = vunpack.c.l.s4 1966171168
    %v5657 = vunpack.c.0.s8 %v5656
    %v5658 = vlaneseq
    %v5659 = vshrl.u32 %v5658, 7
    %v5660 = vsub.s32 %v5657, %v5659
    %v5661 = vrot.slane %v5633, %v5660
    %v5662 = vcombine.low %v5640, %v5647
    %v5663 = vcombine.low %v5654, %v5661
    %v5665 = vunpack.c.l.s4 1966171168
    %v5666 = vunpack.c.0.s8 %v5665
    %v5667 = vlaneseq
    %v5668 = vshrl.u32 %v5667, 7
    %v5669 = vsub.s32 %v5666, %v5668
    %v5670 = vrot.slane %v5662, %v5669
    %v5672 = vunpack.c.l.s4 1966171168
    %v5673 = vunpack.c.0.s8 %v5672
    %v5674 = vlaneseq
    %v5675 = vshrl.u32 %v5674, 7
    %v5676 = vsub.s32 %v5673, %v5675
    %v5677 = vrot.slane %v5663, %v5676
    %v5678 = vcombine.low %v5670, %v5677
    %v5679 = vcombine.low %v1551, %v1555
    %v5680 = vcombine.low %v1559, %v1563
    %v5681 = vcombine.low %v1567, %v1571
    %v5682 = vcombine.low %v1575, %v1579
    %v5684 = vunpack.c.l.s4 1966171168
    %v5685 = vunpack.c.0.s8 %v5684
    %v5686 = vlaneseq
    %v5687 = vshrl.u32 %v5686, 7
    %v5688 = vsub.s32 %v5685, %v5687
    %v5689 = vrot.slane %v5679, %v5688
    %v5691 = vunpack.c.l.s4 1966171168
    %v5692 = vunpack.c.0.s8 %v5691
    %v5693 = vlaneseq
    %v5694 = vshrl.u32 %v5693, 7
    %v5695 = vsub.s32 %v5692, %v5694
    %v5696 = vrot.slane %v5680, %v5695
    %v5698 = vunpack.c.l.s4 1966171168
    %v5699 = vunpack.c.0.s8 %v5698
    %v5700 = vlaneseq
    %v5701 = vshrl.u32 %v5700, 7
    %v5702 = vsub.s32 %v5699, %v5701
    %v5703 = vrot.slane %v5681, %v5702
    %v5705 = vunpack.c.l.s4 1966171168
    %v5706 = vunpack.c.0.s8 %v5705
    %v5707 = vlaneseq
    %v5708 = vshrl.u32 %v5707, 7
    %v5709 = vsub.s32 %v5706, %v5708
    %v5710 = vrot.slane %v5682, %v5709
    %v5711 = vcombine.low %v5689, %v5696
    %v5712 = vcombine.low %v5703, %v5710
    %v5714 = vunpack.c.l.s4 1966171168
    %v5715 = vunpack.c.0.s8 %v5714
    %v5716 = vlaneseq
    %v5717 = vshrl.u32 %v5716, 7
    %v5718 = vsub.s32 %v5715, %v5717
    %v5719 = vrot.slane %v5711, %v5718
    %v5721 = vunpack.c.l.s4 1966171168
    %v5722 = vunpack.c.0.s8 %v5721
    %v5723 = vlaneseq
    %v5724 = vshrl.u32 %v5723, 7
    %v5725 = vsub.s32 %v5722, %v5724
    %v5726 = vrot.slane %v5712, %v5725
    %v5727 = vcombine.low %v5719, %v5726
    %v5728 = vcombine.low %v1583, %v1587
    %v5729 = vcombine.low %v1591, %v1595
    %v5730 = vcombine.low %v1599, %v1603
    %v5731 = vcombine.low %v1607, %v1611
    %v5733 = vunpack.c.l.s4 1966171168
    %v5734 = vunpack.c.0.s8 %v5733
    %v5735 = vlaneseq
    %v5736 = vshrl.u32 %v5735, 7
    %v5737 = vsub.s32 %v5734, %v5736
    %v5738 = vrot.slane %v5728, %v5737
    %v5740 = vunpack.c.l.s4 1966171168
    %v5741 = vunpack.c.0.s8 %v5740
    %v5742 = vlaneseq
    %v5743 = vshrl.u32 %v5742, 7
    %v5744 = vsub.s32 %v5741, %v5743
    %v5745 = vrot.slane %v5729, %v5744
    %v5747 = vunpack.c.l.s4 1966171168
    %v5748 = vunpack.c.0.s8 %v5747
    %v5749 = vlaneseq
    %v5750 = vshrl.u32 %v5749, 7
    %v5751 = vsub.s32 %v5748, %v5750
    %v5752 = vrot.slane %v5730, %v5751
    %v5754 = vunpack.c.l.s4 1966171168
    %v5755 = vunpack.c.0.s8 %v5754
    %v5756 = vlaneseq
    %v5757 = vshrl.u32 %v5756, 7
    %v5758 = vsub.s32 %v5755, %v5757
    %v5759 = vrot.slane %v5731, %v5758
    %v5760 = vcombine.low %v5738, %v5745
    %v5761 = vcombine.low %v5752, %v5759
    %v5763 = vunpack.c.l.s4 1966171168
    %v5764 = vunpack.c.0.s8 %v5763
    %v5765 = vlaneseq
    %v5766 = vshrl.u32 %v5765, 7
    %v5767 = vsub.s32 %v5764, %v5766
    %v5768 = vrot.slane %v5760, %v5767
    %v5770 = vunpack.c.l.s4 1966171168
    %v5771 = vunpack.c.0.s8 %v5770
    %v5772 = vlaneseq
    %v5773 = vshrl.u32 %v5772, 7
    %v5774 = vsub.s32 %v5771, %v5773
    %v5775 = vrot.slane %v5761, %v5774
    %v5776 = vcombine.low %v5768, %v5775
    %v5777 = vcombine.low %v1615, %v1619
    %v5778 = vcombine.low %v1623, %v1627
    %v5779 = vcombine.low %v1631, %v1635
    %v5780 = vcombine.low %v1639, %v1643
    %v5782 = vunpack.c.l.s4 1966171168
    %v5783 = vunpack.c.0.s8 %v5782
    %v5784 = vlaneseq
    %v5785 = vshrl.u32 %v5784, 7
    %v5786 = vsub.s32 %v5783, %v5785
    %v5787 = vrot.slane %v5777, %v5786
    %v5789 = vunpack.c.l.s4 1966171168
    %v5790 = vunpack.c.0.s8 %v5789
    %v5791 = vlaneseq
    %v5792 = vshrl.u32 %v5791, 7
    %v5793 = vsub.s32 %v5790, %v5792
    %v5794 = vrot.slane %v5778, %v5793
    %v5796 = vunpack.c.l.s4 1966171168
    %v5797 = vunpack.c.0.s8 %v5796
    %v5798 = vlaneseq
    %v5799 = vshrl.u32 %v5798, 7
    %v5800 = vsub.s32 %v5797, %v5799
    %v5801 = vrot.slane %v5779, %v5800
    %v5803 = vunpack.c.l.s4 1966171168
    %v5804 = vunpack.c.0.s8 %v5803
    %v5805 = vlaneseq
    %v5806 = vshrl.u32 %v5805, 7
    %v5807 = vsub.s32 %v5804, %v5806
    %v5808 = vrot.slane %v5780, %v5807
    %v5809 = vcombine.low %v5787, %v5794
    %v5810 = vcombine.low %v5801, %v5808
    %v5812 = vunpack.c.l.s4 1966171168
    %v5813 = vunpack.c.0.s8 %v5812
    %v5814 = vlaneseq
    %v5815 = vshrl.u32 %v5814, 7
    %v5816 = vsub.s32 %v5813, %v5815
    %v5817 = vrot.slane %v5809, %v5816
    %v5819 = vunpack.c.l.s4 1966171168
    %v5820 = vunpack.c.0.s8 %v5819
    %v5821 = vlaneseq
    %v5822 = vshrl.u32 %v5821, 7
    %v5823 = vsub.s32 %v5820, %v5822
    %v5824 = vrot.slane %v5810, %v5823
    %v5825 = vcombine.low %v5817, %v5824
    %v5826 = vcombine.low %v1647, %v1651
    %v5827 = vcombine.low %v1655, %v1659
    %v5828 = vcombine.low %v1663, %v1667
    %v5829 = vcombine.low %v1671, %v1675
    %v5831 = vunpack.c.l.s4 1966171168
    %v5832 = vunpack.c.0.s8 %v5831
    %v5833 = vlaneseq
    %v5834 = vshrl.u32 %v5833, 7
    %v5835 = vsub.s32 %v5832, %v5834
    %v5836 = vrot.slane %v5826, %v5835
    %v5838 = vunpack.c.l.s4 1966171168
    %v5839 = vunpack.c.0.s8 %v5838
    %v5840 = vlaneseq
    %v5841 = vshrl.u32 %v5840, 7
    %v5842 = vsub.s32 %v5839, %v5841
    %v5843 = vrot.slane %v5827, %v5842
    %v5845 = vunpack.c.l.s4 1966171168
    %v5846 = vunpack.c.0.s8 %v5845
    %v5847 = vlaneseq
    %v5848 = vshrl.u32 %v5847, 7
    %v5849 = vsub.s32 %v5846, %v5848
    %v5850 = vrot.slane %v5828, %v5849
    %v5852 = vunpack.c.l.s4 1966171168
    %v5853 = vunpack.c.0.s8 %v5852
    %v5854 = vlaneseq
    %v5855 = vshrl.u32 %v5854, 7
    %v5856 = vsub.s32 %v5853, %v5855
    %v5857 = vrot.slane %v5829, %v5856
    %v5858 = vcombine.low %v5836, %v5843
    %v5859 = vcombine.low %v5850, %v5857
    %v5861 = vunpack.c.l.s4 1966171168
    %v5862 = vunpack.c.0.s8 %v5861
    %v5863 = vlaneseq
    %v5864 = vshrl.u32 %v5863, 7
    %v5865 = vsub.s32 %v5862, %v5864
    %v5866 = vrot.slane %v5858, %v5865
    %v5868 = vunpack.c.l.s4 1966171168
    %v5869 = vunpack.c.0.s8 %v5868
    %v5870 = vlaneseq
    %v5871 = vshrl.u32 %v5870, 7
    %v5872 = vsub.s32 %v5869, %v5871
    %v5873 = vrot.slane %v5859, %v5872
    %v5874 = vcombine.low %v5866, %v5873
    %v5875 = vcombine.low %v1679, %v1683
    %v5876 = vcombine.low %v1687, %v1691
    %v5877 = vcombine.low %v1695, %v1699
    %v5878 = vcombine.low %v1703, %v1707
    %v5880 = vunpack.c.l.s4 1966171168
    %v5881 = vunpack.c.0.s8 %v5880
    %v5882 = vlaneseq
    %v5883 = vshrl.u32 %v5882, 7
    %v5884 = vsub.s32 %v5881, %v5883
    %v5885 = vrot.slane %v5875, %v5884
    %v5887 = vunpack.c.l.s4 1966171168
    %v5888 = vunpack.c.0.s8 %v5887
    %v5889 = vlaneseq
    %v5890 = vshrl.u32 %v5889, 7
    %v5891 = vsub.s32 %v5888, %v5890
    %v5892 = vrot.slane %v5876, %v5891
    %v5894 = vunpack.c.l.s4 1966171168
    %v5895 = vunpack.c.0.s8 %v5894
    %v5896 = vlaneseq
    %v5897 = vshrl.u32 %v5896, 7
    %v5898 = vsub.s32 %v5895, %v5897
    %v5899 = vrot.slane %v5877, %v5898
    %v5901 = vunpack.c.l.s4 1966171168
    %v5902 = vunpack.c.0.s8 %v5901
    %v5903 = vlaneseq
    %v5904 = vshrl.u32 %v5903, 7
    %v5905 = vsub.s32 %v5902, %v5904
    %v5906 = vrot.slane %v5878, %v5905
    %v5907 = vcombine.low %v5885, %v5892
    %v5908 = vcombine.low %v5899, %v5906
    %v5910 = vunpack.c.l.s4 1966171168
    %v5911 = vunpack.c.0.s8 %v5910
    %v5912 = vlaneseq
    %v5913 = vshrl.u32 %v5912, 7
    %v5914 = vsub.s32 %v5911, %v5913
    %v5915 = vrot.slane %v5907, %v5914
    %v5917 = vunpack.c.l.s4 1966171168
    %v5918 = vunpack.c.0.s8 %v5917
    %v5919 = vlaneseq
    %v5920 = vshrl.u32 %v5919, 7
    %v5921 = vsub.s32 %v5918, %v5920
    %v5922 = vrot.slane %v5908, %v5921
    %v5923 = vcombine.low %v5915, %v5922
    %v5924 = vcombine.low %v1711, %v1715
    %v5925 = vcombine.low %v1719, %v1723
    %v5926 = vcombine.low %v1727, %v1731
    %v5927 = vcombine.low %v1735, %v1739
    %v5929 = vunpack.c.l.s4 1966171168
    %v5930 = vunpack.c.0.s8 %v5929
    %v5931 = vlaneseq
    %v5932 = vshrl.u32 %v5931, 7
    %v5933 = vsub.s32 %v5930, %v5932
    %v5934 = vrot.slane %v5924, %v5933
    %v5936 = vunpack.c.l.s4 1966171168
    %v5937 = vunpack.c.0.s8 %v5936
    %v5938 = vlaneseq
    %v5939 = vshrl.u32 %v5938, 7
    %v5940 = vsub.s32 %v5937, %v5939
    %v5941 = vrot.slane %v5925, %v5940
    %v5943 = vunpack.c.l.s4 1966171168
    %v5944 = vunpack.c.0.s8 %v5943
    %v5945 = vlaneseq
    %v5946 = vshrl.u32 %v5945, 7
    %v5947 = vsub.s32 %v5944, %v5946
    %v5948 = vrot.slane %v5926, %v5947
    %v5950 = vunpack.c.l.s4 1966171168
    %v5951 = vunpack.c.0.s8 %v5950
    %v5952 = vlaneseq
    %v5953 = vshrl.u32 %v5952, 7
    %v5954 = vsub.s32 %v5951, %v5953
    %v5955 = vrot.slane %v5927, %v5954
    %v5956 = vcombine.low %v5934, %v5941
    %v5957 = vcombine.low %v5948, %v5955
    %v5959 = vunpack.c.l.s4 1966171168
    %v5960 = vunpack.c.0.s8 %v5959
    %v5961 = vlaneseq
    %v5962 = vshrl.u32 %v5961, 7
    %v5963 = vsub.s32 %v5960, %v5962
    %v5964 = vrot.slane %v5956, %v5963
    %v5966 = vunpack.c.l.s4 1966171168
    %v5967 = vunpack.c.0.s8 %v5966
    %v5968 = vlaneseq
    %v5969 = vshrl.u32 %v5968, 7
    %v5970 = vsub.s32 %v5967, %v5969
    %v5971 = vrot.slane %v5957, %v5970
    %v5972 = vcombine.low %v5964, %v5971
    %v5973 = vcombine.low %v1743, %v1747
    %v5974 = vcombine.low %v1751, %v1755
    %v5975 = vcombine.low %v1759, %v1763
    %v5976 = vcombine.low %v1767, %v1771
    %v5978 = vunpack.c.l.s4 1966171168
    %v5979 = vunpack.c.0.s8 %v5978
    %v5980 = vlaneseq
    %v5981 = vshrl.u32 %v5980, 7
    %v5982 = vsub.s32 %v5979, %v5981
    %v5983 = vrot.slane %v5973, %v5982
    %v5985 = vunpack.c.l.s4 1966171168
    %v5986 = vunpack.c.0.s8 %v5985
    %v5987 = vlaneseq
    %v5988 = vshrl.u32 %v5987, 7
    %v5989 = vsub.s32 %v5986, %v5988
    %v5990 = vrot.slane %v5974, %v5989
    %v5992 = vunpack.c.l.s4 1966171168
    %v5993 = vunpack.c.0.s8 %v5992
    %v5994 = vlaneseq
    %v5995 = vshrl.u32 %v5994, 7
    %v5996 = vsub.s32 %v5993, %v5995
    %v5997 = vrot.slane %v5975, %v5996
    %v5999 = vunpack.c.l.s4 1966171168
    %v6000 = vunpack.c.0.s8 %v5999
    %v6001 = vlaneseq
    %v6002 = vshrl.u32 %v6001, 7
    %v6003 = vsub.s32 %v6000, %v6002
    %v6004 = vrot.slane %v5976, %v6003
    %v6005 = vcombine.low %v5983, %v5990
    %v6006 = vcombine.low %v5997, %v6004
    %v6008 = vunpack.c.l.s4 1966171168
    %v6009 = vunpack.c.0.s8 %v6008
    %v6010 = vlaneseq
    %v6011 = vshrl.u32 %v6010, 7
    %v6012 = vsub.s32 %v6009, %v6011
    %v6013 = vrot.slane %v6005, %v6012
    %v6015 = vunpack.c.l.s4 1966171168
    %v6016 = vunpack.c.0.s8 %v6015
    %v6017 = vlaneseq
    %v6018 = vshrl.u32 %v6017, 7
    %v6019 = vsub.s32 %v6016, %v6018
    %v6020 = vrot.slane %v6006, %v6019
    %v6021 = vcombine.low %v6013, %v6020
    %v6022 = vcombine.low %v1775, %v1779
    %v6023 = vcombine.low %v1783, %v1787
    %v6024 = vcombine.low %v1791, %v1795
    %v6025 = vcombine.low %v1799, %v1803
    %v6027 = vunpack.c.l.s4 1966171168
    %v6028 = vunpack.c.0.s8 %v6027
    %v6029 = vlaneseq
    %v6030 = vshrl.u32 %v6029, 7
    %v6031 = vsub.s32 %v6028, %v6030
    %v6032 = vrot.slane %v6022, %v6031
    %v6034 = vunpack.c.l.s4 1966171168
    %v6035 = vunpack.c.0.s8 %v6034
    %v6036 = vlaneseq
    %v6037 = vshrl.u32 %v6036, 7
    %v6038 = vsub.s32 %v6035, %v6037
    %v6039 = vrot.slane %v6023, %v6038
    %v6041 = vunpack.c.l.s4 1966171168
    %v6042 = vunpack.c.0.s8 %v6041
    %v6043 = vlaneseq
    %v6044 = vshrl.u32 %v6043, 7
    %v6045 = vsub.s32 %v6042, %v6044
    %v6046 = vrot.slane %v6024, %v6045
    %v6048 = vunpack.c.l.s4 1966171168
    %v6049 = vunpack.c.0.s8 %v6048
    %v6050 = vlaneseq
    %v6051 = vshrl.u32 %v6050, 7
    %v6052 = vsub.s32 %v6049, %v6051
    %v6053 = vrot.slane %v6025, %v6052
    %v6054 = vcombine.low %v6032, %v6039
    %v6055 = vcombine.low %v6046, %v6053
    %v6057 = vunpack.c.l.s4 1966171168
    %v6058 = vunpack.c.0.s8 %v6057
    %v6059 = vlaneseq
    %v6060 = vshrl.u32 %v6059, 7
    %v6061 = vsub.s32 %v6058, %v6060
    %v6062 = vrot.slane %v6054, %v6061
    %v6064 = vunpack.c.l.s4 1966171168
    %v6065 = vunpack.c.0.s8 %v6064
    %v6066 = vlaneseq
    %v6067 = vshrl.u32 %v6066, 7
    %v6068 = vsub.s32 %v6065, %v6067
    %v6069 = vrot.slane %v6055, %v6068
    %v6070 = vcombine.low %v6062, %v6069
    %v6071 = vcombine.low %v1807, %v1811
    %v6072 = vcombine.low %v1815, %v1819
    %v6073 = vcombine.low %v1823, %v1827
    %v6074 = vcombine.low %v1831, %v1835
    %v6076 = vunpack.c.l.s4 1966171168
    %v6077 = vunpack.c.0.s8 %v6076
    %v6078 = vlaneseq
    %v6079 = vshrl.u32 %v6078, 7
    %v6080 = vsub.s32 %v6077, %v6079
    %v6081 = vrot.slane %v6071, %v6080
    %v6083 = vunpack.c.l.s4 1966171168
    %v6084 = vunpack.c.0.s8 %v6083
    %v6085 = vlaneseq
    %v6086 = vshrl.u32 %v6085, 7
    %v6087 = vsub.s32 %v6084, %v6086
    %v6088 = vrot.slane %v6072, %v6087
    %v6090 = vunpack.c.l.s4 1966171168
    %v6091 = vunpack.c.0.s8 %v6090
    %v6092 = vlaneseq
    %v6093 = vshrl.u32 %v6092, 7
    %v6094 = vsub.s32 %v6091, %v6093
    %v6095 = vrot.slane %v6073, %v6094
    %v6097 = vunpack.c.l.s4 1966171168
    %v6098 = vunpack.c.0.s8 %v6097
    %v6099 = vlaneseq
    %v6100 = vshrl.u32 %v6099, 7
    %v6101 = vsub.s32 %v6098, %v6100
    %v6102 = vrot.slane %v6074, %v6101
    %v6103 = vcombine.low %v6081, %v6088
    %v6104 = vcombine.low %v6095, %v6102
    %v6106 = vunpack.c.l.s4 1966171168
    %v6107 = vunpack.c.0.s8 %v6106
    %v6108 = vlaneseq
    %v6109 = vshrl.u32 %v6108, 7
    %v6110 = vsub.s32 %v6107, %v6109
    %v6111 = vrot.slane %v6103, %v6110
    %v6113 = vunpack.c.l.s4 1966171168
    %v6114 = vunpack.c.0.s8 %v6113
    %v6115 = vlaneseq
    %v6116 = vshrl.u32 %v6115, 7
    %v6117 = vsub.s32 %v6114, %v6116
    %v6118 = vrot.slane %v6104, %v6117
    %v6119 = vcombine.low %v6111, %v6118
    %v6120 = vcombine.low %v1839, %v1843
    %v6121 = vcombine.low %v1847, %v1851
    %v6122 = vcombine.low %v1855, %v1859
    %v6123 = vcombine.low %v1863, %v1867
    %v6125 = vunpack.c.l.s4 1966171168
    %v6126 = vunpack.c.0.s8 %v6125
    %v6127 = vlaneseq
    %v6128 = vshrl.u32 %v6127, 7
    %v6129 = vsub.s32 %v6126, %v6128
    %v6130 = vrot.slane %v6120, %v6129
    %v6132 = vunpack.c.l.s4 1966171168
    %v6133 = vunpack.c.0.s8 %v6132
    %v6134 = vlaneseq
    %v6135 = vshrl.u32 %v6134, 7
    %v6136 = vsub.s32 %v6133, %v6135
    %v6137 = vrot.slane %v6121, %v6136
    %v6139 = vunpack.c.l.s4 1966171168
    %v6140 = vunpack.c.0.s8 %v6139
    %v6141 = vlaneseq
    %v6142 = vshrl.u32 %v6141, 7
    %v6143 = vsub.s32 %v6140, %v6142
    %v6144 = vrot.slane %v6122, %v6143
    %v6146 = vunpack.c.l.s4 1966171168
    %v6147 = vunpack.c.0.s8 %v6146
    %v6148 = vlaneseq
    %v6149 = vshrl.u32 %v6148, 7
    %v6150 = vsub.s32 %v6147, %v6149
    %v6151 = vrot.slane %v6123, %v6150
    %v6152 = vcombine.low %v6130, %v6137
    %v6153 = vcombine.low %v6144, %v6151
    %v6155 = vunpack.c.l.s4 1966171168
    %v6156 = vunpack.c.0.s8 %v6155
    %v6157 = vlaneseq
    %v6158 = vshrl.u32 %v6157, 7
    %v6159 = vsub.s32 %v6156, %v6158
    %v6160 = vrot.slane %v6152, %v6159
    %v6162 = vunpack.c.l.s4 1966171168
    %v6163 = vunpack.c.0.s8 %v6162
    %v6164 = vlaneseq
    %v6165 = vshrl.u32 %v6164, 7
    %v6166 = vsub.s32 %v6163, %v6165
    %v6167 = vrot.slane %v6153, %v6166
    %v6168 = vcombine.low %v6160, %v6167
    %v6169 = vcombine.low %v1871, %v1875
    %v6170 = vcombine.low %v1879, %v1883
    %v6171 = vcombine.low %v1887, %v1891
    %v6172 = vcombine.low %v1895, %v1899
    %v6174 = vunpack.c.l.s4 1966171168
    %v6175 = vunpack.c.0.s8 %v6174
    %v6176 = vlaneseq
    %v6177 = vshrl.u32 %v6176, 7
    %v6178 = vsub.s32 %v6175, %v6177
    %v6179 = vrot.slane %v6169, %v6178
    %v6181 = vunpack.c.l.s4 1966171168
    %v6182 = vunpack.c.0.s8 %v6181
    %v6183 = vlaneseq
    %v6184 = vshrl.u32 %v6183, 7
    %v6185 = vsub.s32 %v6182, %v6184
    %v6186 = vrot.slane %v6170, %v6185
    %v6188 = vunpack.c.l.s4 1966171168
    %v6189 = vunpack.c.0.s8 %v6188
    %v6190 = vlaneseq
    %v6191 = vshrl.u32 %v6190, 7
    %v6192 = vsub.s32 %v6189, %v6191
    %v6193 = vrot.slane %v6171, %v6192
    %v6195 = vunpack.c.l.s4 1966171168
    %v6196 = vunpack.c.0.s8 %v6195
    %v6197 = vlaneseq
    %v6198 = vshrl.u32 %v6197, 7
    %v6199 = vsub.s32 %v6196, %v6198
    %v6200 = vrot.slane %v6172, %v6199
    %v6201 = vcombine.low %v6179, %v6186
    %v6202 = vcombine.low %v6193, %v6200
    %v6204 = vunpack.c.l.s4 1966171168
    %v6205 = vunpack.c.0.s8 %v6204
    %v6206 = vlaneseq
    %v6207 = vshrl.u32 %v6206, 7
    %v6208 = vsub.s32 %v6205, %v6207
    %v6209 = vrot.slane %v6201, %v6208
    %v6211 = vunpack.c.l.s4 1966171168
    %v6212 = vunpack.c.0.s8 %v6211
    %v6213 = vlaneseq
    %v6214 = vshrl.u32 %v6213, 7
    %v6215 = vsub.s32 %v6212, %v6214
    %v6216 = vrot.slane %v6202, %v6215
    %v6217 = vcombine.low %v6209, %v6216
    %v6218 = vcombine.low %v1903, %v1907
    %v6219 = vcombine.low %v1911, %v1915
    %v6220 = vcombine.low %v1919, %v1923
    %v6221 = vcombine.low %v1927, %v1931
    %v6223 = vunpack.c.l.s4 1966171168
    %v6224 = vunpack.c.0.s8 %v6223
    %v6225 = vlaneseq
    %v6226 = vshrl.u32 %v6225, 7
    %v6227 = vsub.s32 %v6224, %v6226
    %v6228 = vrot.slane %v6218, %v6227
    %v6230 = vunpack.c.l.s4 1966171168
    %v6231 = vunpack.c.0.s8 %v6230
    %v6232 = vlaneseq
    %v6233 = vshrl.u32 %v6232, 7
    %v6234 = vsub.s32 %v6231, %v6233
    %v6235 = vrot.slane %v6219, %v6234
    %v6237 = vunpack.c.l.s4 1966171168
    %v6238 = vunpack.c.0.s8 %v6237
    %v6239 = vlaneseq
    %v6240 = vshrl.u32 %v6239, 7
    %v6241 = vsub.s32 %v6238, %v6240
    %v6242 = vrot.slane %v6220, %v6241
    %v6244 = vunpack.c.l.s4 1966171168
    %v6245 = vunpack.c.0.s8 %v6244
    %v6246 = vlaneseq
    %v6247 = vshrl.u32 %v6246, 7
    %v6248 = vsub.s32 %v6245, %v6247
    %v6249 = vrot.slane %v6221, %v6248
    %v6250 = vcombine.low %v6228, %v6235
    %v6251 = vcombine.low %v6242, %v6249
    %v6253 = vunpack.c.l.s4 1966171168
    %v6254 = vunpack.c.0.s8 %v6253
    %v6255 = vlaneseq
    %v6256 = vshrl.u32 %v6255, 7
    %v6257 = vsub.s32 %v6254, %v6256
    %v6258 = vrot.slane %v6250, %v6257
    %v6260 = vunpack.c.l.s4 1966171168
    %v6261 = vunpack.c.0.s8 %v6260
    %v6262 = vlaneseq
    %v6263 = vshrl.u32 %v6262, 7
    %v6264 = vsub.s32 %v6261, %v6263
    %v6265 = vrot.slane %v6251, %v6264
    %v6266 = vcombine.low %v6258, %v6265
    %v6267 = vcombine.low %v1935, %v1939
    %v6268 = vcombine.low %v1943, %v1947
    %v6269 = vcombine.low %v1951, %v1955
    %v6270 = vcombine.low %v1959, %v1963
    %v6272 = vunpack.c.l.s4 1966171168
    %v6273 = vunpack.c.0.s8 %v6272
    %v6274 = vlaneseq
    %v6275 = vshrl.u32 %v6274, 7
    %v6276 = vsub.s32 %v6273, %v6275
    %v6277 = vrot.slane %v6267, %v6276
    %v6279 = vunpack.c.l.s4 1966171168
    %v6280 = vunpack.c.0.s8 %v6279
    %v6281 = vlaneseq
    %v6282 = vshrl.u32 %v6281, 7
    %v6283 = vsub.s32 %v6280, %v6282
    %v6284 = vrot.slane %v6268, %v6283
    %v6286 = vunpack.c.l.s4 1966171168
    %v6287 = vunpack.c.0.s8 %v6286
    %v6288 = vlaneseq
    %v6289 = vshrl.u32 %v6288, 7
    %v6290 = vsub.s32 %v6287, %v6289
    %v6291 = vrot.slane %v6269, %v6290
    %v6293 = vunpack.c.l.s4 1966171168
    %v6294 = vunpack.c.0.s8 %v6293
    %v6295 = vlaneseq
    %v6296 = vshrl.u32 %v6295, 7
    %v6297 = vsub.s32 %v6294, %v6296
    %v6298 = vrot.slane %v6270, %v6297
    %v6299 = vcombine.low %v6277, %v6284
    %v6300 = vcombine.low %v6291, %v6298
    %v6302 = vunpack.c.l.s4 1966171168
    %v6303 = vunpack.c.0.s8 %v6302
    %v6304 = vlaneseq
    %v6305 = vshrl.u32 %v6304, 7
    %v6306 = vsub.s32 %v6303, %v6305
    %v6307 = vrot.slane %v6299, %v6306
    %v6309 = vunpack.c.l.s4 1966171168
    %v6310 = vunpack.c.0.s8 %v6309
    %v6311 = vlaneseq
    %v6312 = vshrl.u32 %v6311, 7
    %v6313 = vsub.s32 %v6310, %v6312
    %v6314 = vrot.slane %v6300, %v6313
    %v6315 = vcombine.low %v6307, %v6314
    %v6316 = vcombine.low %v1967, %v1971
    %v6317 = vcombine.low %v1975, %v1979
    %v6318 = vcombine.low %v1983, %v1987
    %v6319 = vcombine.low %v1991, %v1995
    %v6321 = vunpack.c.l.s4 1966171168
    %v6322 = vunpack.c.0.s8 %v6321
    %v6323 = vlaneseq
    %v6324 = vshrl.u32 %v6323, 7
    %v6325 = vsub.s32 %v6322, %v6324
    %v6326 = vrot.slane %v6316, %v6325
    %v6328 = vunpack.c.l.s4 1966171168
    %v6329 = vunpack.c.0.s8 %v6328
    %v6330 = vlaneseq
    %v6331 = vshrl.u32 %v6330, 7
    %v6332 = vsub.s32 %v6329, %v6331
    %v6333 = vrot.slane %v6317, %v6332
    %v6335 = vunpack.c.l.s4 1966171168
    %v6336 = vunpack.c.0.s8 %v6335
    %v6337 = vlaneseq
    %v6338 = vshrl.u32 %v6337, 7
    %v6339 = vsub.s32 %v6336, %v6338
    %v6340 = vrot.slane %v6318, %v6339
    %v6342 = vunpack.c.l.s4 1966171168
    %v6343 = vunpack.c.0.s8 %v6342
    %v6344 = vlaneseq
    %v6345 = vshrl.u32 %v6344, 7
    %v6346 = vsub.s32 %v6343, %v6345
    %v6347 = vrot.slane %v6319, %v6346
    %v6348 = vcombine.low %v6326, %v6333
    %v6349 = vcombine.low %v6340, %v6347
    %v6351 = vunpack.c.l.s4 1966171168
    %v6352 = vunpack.c.0.s8 %v6351
    %v6353 = vlaneseq
    %v6354 = vshrl.u32 %v6353, 7
    %v6355 = vsub.s32 %v6352, %v6354
    %v6356 = vrot.slane %v6348, %v6355
    %v6358 = vunpack.c.l.s4 1966171168
    %v6359 = vunpack.c.0.s8 %v6358
    %v6360 = vlaneseq
    %v6361 = vshrl.u32 %v6360, 7
    %v6362 = vsub.s32 %v6359, %v6361
    %v6363 = vrot.slane %v6349, %v6362
    %v6364 = vcombine.low %v6356, %v6363
    %v6365 = vcombine.low %v1999, %v2003
    %v6366 = vcombine.low %v2007, %v2011
    %v6367 = vcombine.low %v2015, %v2019
    %v6368 = vcombine.low %v2023, %v2027
    %v6370 = vunpack.c.l.s4 1966171168
    %v6371 = vunpack.c.0.s8 %v6370
    %v6372 = vlaneseq
    %v6373 = vshrl.u32 %v6372, 7
    %v6374 = vsub.s32 %v6371, %v6373
    %v6375 = vrot.slane %v6365, %v6374
    %v6377 = vunpack.c.l.s4 1966171168
    %v6378 = vunpack.c.0.s8 %v6377
    %v6379 = vlaneseq
    %v6380 = vshrl.u32 %v6379, 7
    %v6381 = vsub.s32 %v6378, %v6380
    %v6382 = vrot.slane %v6366, %v6381
    %v6384 = vunpack.c.l.s4 1966171168
    %v6385 = vunpack.c.0.s8 %v6384
    %v6386 = vlaneseq
    %v6387 = vshrl.u32 %v6386, 7
    %v6388 = vsub.s32 %v6385, %v6387
    %v6389 = vrot.slane %v6367, %v6388
    %v6391 = vunpack.c.l.s4 1966171168
    %v6392 = vunpack.c.0.s8 %v6391
    %v6393 = vlaneseq
    %v6394 = vshrl.u32 %v6393, 7
    %v6395 = vsub.s32 %v6392, %v6394
    %v6396 = vrot.slane %v6368, %v6395
    %v6397 = vcombine.low %v6375, %v6382
    %v6398 = vcombine.low %v6389, %v6396
    %v6400 = vunpack.c.l.s4 1966171168
    %v6401 = vunpack.c.0.s8 %v6400
    %v6402 = vlaneseq
    %v6403 = vshrl.u32 %v6402, 7
    %v6404 = vsub.s32 %v6401, %v6403
    %v6405 = vrot.slane %v6397, %v6404
    %v6407 = vunpack.c.l.s4 1966171168
    %v6408 = vunpack.c.0.s8 %v6407
    %v6409 = vlaneseq
    %v6410 = vshrl.u32 %v6409, 7
    %v6411 = vsub.s32 %v6408, %v6410
    %v6412 = vrot.slane %v6398, %v6411
    %v6413 = vcombine.low %v6405, %v6412
    %v6414 = vcombine.low %v2031, %v2035
    %v6415 = vcombine.low %v2039, %v2043
    %v6416 = vcombine.low %v2047, %v2051
    %v6417 = vcombine.low %v2055, %v2059
    %v6419 = vunpack.c.l.s4 1966171168
    %v6420 = vunpack.c.0.s8 %v6419
    %v6421 = vlaneseq
    %v6422 = vshrl.u32 %v6421, 7
    %v6423 = vsub.s32 %v6420, %v6422
    %v6424 = vrot.slane %v6414, %v6423
    %v6426 = vunpack.c.l.s4 1966171168
    %v6427 = vunpack.c.0.s8 %v6426
    %v6428 = vlaneseq
    %v6429 = vshrl.u32 %v6428, 7
    %v6430 = vsub.s32 %v6427, %v6429
    %v6431 = vrot.slane %v6415, %v6430
    %v6433 = vunpack.c.l.s4 1966171168
    %v6434 = vunpack.c.0.s8 %v6433
    %v6435 = vlaneseq
    %v6436 = vshrl.u32 %v6435, 7
    %v6437 = vsub.s32 %v6434, %v6436
    %v6438 = vrot.slane %v6416, %v6437
    %v6440 = vunpack.c.l.s4 1966171168
    %v6441 = vunpack.c.0.s8 %v6440
    %v6442 = vlaneseq
    %v6443 = vshrl.u32 %v6442, 7
    %v6444 = vsub.s32 %v6441, %v6443
    %v6445 = vrot.slane %v6417, %v6444
    %v6446 = vcombine.low %v6424, %v6431
    %v6447 = vcombine.low %v6438, %v6445
    %v6449 = vunpack.c.l.s4 1966171168
    %v6450 = vunpack.c.0.s8 %v6449
    %v6451 = vlaneseq
    %v6452 = vshrl.u32 %v6451, 7
    %v6453 = vsub.s32 %v6450, %v6452
    %v6454 = vrot.slane %v6446, %v6453
    %v6456 = vunpack.c.l.s4 1966171168
    %v6457 = vunpack.c.0.s8 %v6456
    %v6458 = vlaneseq
    %v6459 = vshrl.u32 %v6458, 7
    %v6460 = vsub.s32 %v6457, %v6459
    %v6461 = vrot.slane %v6447, %v6460
    %v6462 = vcombine.low %v6454, %v6461
    %v6463 = vcombine.low %v2063, %v2067
    %v6464 = vcombine.low %v2071, %v2075
    %v6465 = vcombine.low %v2079, %v2083
    %v6466 = vcombine.low %v2087, %v2091
    %v6468 = vunpack.c.l.s4 1966171168
    %v6469 = vunpack.c.0.s8 %v6468
    %v6470 = vlaneseq
    %v6471 = vshrl.u32 %v6470, 7
    %v6472 = vsub.s32 %v6469, %v6471
    %v6473 = vrot.slane %v6463, %v6472
    %v6475 = vunpack.c.l.s4 1966171168
    %v6476 = vunpack.c.0.s8 %v6475
    %v6477 = vlaneseq
    %v6478 = vshrl.u32 %v6477, 7
    %v6479 = vsub.s32 %v6476, %v6478
    %v6480 = vrot.slane %v6464, %v6479
    %v6482 = vunpack.c.l.s4 1966171168
    %v6483 = vunpack.c.0.s8 %v6482
    %v6484 = vlaneseq
    %v6485 = vshrl.u32 %v6484, 7
    %v6486 = vsub.s32 %v6483, %v6485
    %v6487 = vrot.slane %v6465, %v6486
    %v6489 = vunpack.c.l.s4 1966171168
    %v6490 = vunpack.c.0.s8 %v6489
    %v6491 = vlaneseq
    %v6492 = vshrl.u32 %v6491, 7
    %v6493 = vsub.s32 %v6490, %v6492
    %v6494 = vrot.slane %v6466, %v6493
    %v6495 = vcombine.low %v6473, %v6480
    %v6496 = vcombine.low %v6487, %v6494
    %v6498 = vunpack.c.l.s4 1966171168
    %v6499 = vunpack.c.0.s8 %v6498
    %v6500 = vlaneseq
    %v6501 = vshrl.u32 %v6500, 7
    %v6502 = vsub.s32 %v6499, %v6501
    %v6503 = vrot.slane %v6495, %v6502
    %v6505 = vunpack.c.l.s4 1966171168
    %v6506 = vunpack.c.0.s8 %v6505
    %v6507 = vlaneseq
    %v6508 = vshrl.u32 %v6507, 7
    %v6509 = vsub.s32 %v6506, %v6508
    %v6510 = vrot.slane %v6496, %v6509
    %v6511 = vcombine.low %v6503, %v6510
    %v6512 = vcombine.low %v2095, %v2099
    %v6513 = vcombine.low %v2103, %v2107
    %v6514 = vcombine.low %v2111, %v2115
    %v6515 = vcombine.low %v2119, %v2123
    %v6517 = vunpack.c.l.s4 1966171168
    %v6518 = vunpack.c.0.s8 %v6517
    %v6519 = vlaneseq
    %v6520 = vshrl.u32 %v6519, 7
    %v6521 = vsub.s32 %v6518, %v6520
    %v6522 = vrot.slane %v6512, %v6521
    %v6524 = vunpack.c.l.s4 1966171168
    %v6525 = vunpack.c.0.s8 %v6524
    %v6526 = vlaneseq
    %v6527 = vshrl.u32 %v6526, 7
    %v6528 = vsub.s32 %v6525, %v6527
    %v6529 = vrot.slane %v6513, %v6528
    %v6531 = vunpack.c.l.s4 1966171168
    %v6532 = vunpack.c.0.s8 %v6531
    %v6533 = vlaneseq
    %v6534 = vshrl.u32 %v6533, 7
    %v6535 = vsub.s32 %v6532, %v6534
    %v6536 = vrot.slane %v6514, %v6535
    %v6538 = vunpack.c.l.s4 1966171168
    %v6539 = vunpack.c.0.s8 %v6538
    %v6540 = vlaneseq
    %v6541 = vshrl.u32 %v6540, 7
    %v6542 = vsub.s32 %v6539, %v6541
    %v6543 = vrot.slane %v6515, %v6542
    %v6544 = vcombine.low %v6522, %v6529
    %v6545 = vcombine.low %v6536, %v6543
    %v6547 = vunpack.c.l.s4 1966171168
    %v6548 = vunpack.c.0.s8 %v6547
    %v6549 = vlaneseq
    %v6550 = vshrl.u32 %v6549, 7
    %v6551 = vsub.s32 %v6548, %v6550
    %v6552 = vrot.slane %v6544, %v6551
    %v6554 = vunpack.c.l.s4 1966171168
    %v6555 = vunpack.c.0.s8 %v6554
    %v6556 = vlaneseq
    %v6557 = vshrl.u32 %v6556, 7
    %v6558 = vsub.s32 %v6555, %v6557
    %v6559 = vrot.slane %v6545, %v6558
    %v6560 = vcombine.low %v6552, %v6559
    %v6561 = vcombine.low %v2127, %v2131
    %v6562 = vcombine.low %v2135, %v2139
    %v6563 = vcombine.low %v2143, %v2147
    %v6564 = vcombine.low %v2151, %v2155
    %v6566 = vunpack.c.l.s4 1966171168
    %v6567 = vunpack.c.0.s8 %v6566
    %v6568 = vlaneseq
    %v6569 = vshrl.u32 %v6568, 7
    %v6570 = vsub.s32 %v6567, %v6569
    %v6571 = vrot.slane %v6561, %v6570
    %v6573 = vunpack.c.l.s4 1966171168
    %v6574 = vunpack.c.0.s8 %v6573
    %v6575 = vlaneseq
    %v6576 = vshrl.u32 %v6575, 7
    %v6577 = vsub.s32 %v6574, %v6576
    %v6578 = vrot.slane %v6562, %v6577
    %v6580 = vunpack.c.l.s4 1966171168
    %v6581 = vunpack.c.0.s8 %v6580
    %v6582 = vlaneseq
    %v6583 = vshrl.u32 %v6582, 7
    %v6584 = vsub.s32 %v6581, %v6583
    %v6585 = vrot.slane %v6563, %v6584
    %v6587 = vunpack.c.l.s4 1966171168
    %v6588 = vunpack.c.0.s8 %v6587
    %v6589 = vlaneseq
    %v6590 = vshrl.u32 %v6589, 7
    %v6591 = vsub.s32 %v6588, %v6590
    %v6592 = vrot.slane %v6564, %v6591
    %v6593 = vcombine.low %v6571, %v6578
    %v6594 = vcombine.low %v6585, %v6592
    %v6596 = vunpack.c.l.s4 1966171168
    %v6597 = vunpack.c.0.s8 %v6596
    %v6598 = vlaneseq
    %v6599 = vshrl.u32 %v6598, 7
    %v6600 = vsub.s32 %v6597, %v6599
    %v6601 = vrot.slane %v6593, %v6600
    %v6603 = vunpack.c.l.s4 1966171168
    %v6604 = vunpack.c.0.s8 %v6603
    %v6605 = vlaneseq
    %v6606 = vshrl.u32 %v6605, 7
    %v6607 = vsub.s32 %v6604, %v6606
    %v6608 = vrot.slane %v6594, %v6607
    %v6609 = vcombine.low %v6601, %v6608
    %v6610 = vcombine.low %v2159, %v2163
    %v6611 = vcombine.low %v2167, %v2171
    %v6612 = vcombine.low %v2175, %v2179
    %v6613 = vcombine.low %v2183, %v2187
    %v6615 = vunpack.c.l.s4 1966171168
    %v6616 = vunpack.c.0.s8 %v6615
    %v6617 = vlaneseq
    %v6618 = vshrl.u32 %v6617, 7
    %v6619 = vsub.s32 %v6616, %v6618
    %v6620 = vrot.slane %v6610, %v6619
    %v6622 = vunpack.c.l.s4 1966171168
    %v6623 = vunpack.c.0.s8 %v6622
    %v6624 = vlaneseq
    %v6625 = vshrl.u32 %v6624, 7
    %v6626 = vsub.s32 %v6623, %v6625
    %v6627 = vrot.slane %v6611, %v6626
    %v6629 = vunpack.c.l.s4 1966171168
    %v6630 = vunpack.c.0.s8 %v6629
    %v6631 = vlaneseq
    %v6632 = vshrl.u32 %v6631, 7
    %v6633 = vsub.s32 %v6630, %v6632
    %v6634 = vrot.slane %v6612, %v6633
    %v6636 = vunpack.c.l.s4 1966171168
    %v6637 = vunpack.c.0.s8 %v6636
    %v6638 = vlaneseq
    %v6639 = vshrl.u32 %v6638, 7
    %v6640 = vsub.s32 %v6637, %v6639
    %v6641 = vrot.slane %v6613, %v6640
    %v6642 = vcombine.low %v6620, %v6627
    %v6643 = vcombine.low %v6634, %v6641
    %v6645 = vunpack.c.l.s4 1966171168
    %v6646 = vunpack.c.0.s8 %v6645
    %v6647 = vlaneseq
    %v6648 = vshrl.u32 %v6647, 7
    %v6649 = vsub.s32 %v6646, %v6648
    %v6650 = vrot.slane %v6642, %v6649
    %v6652 = vunpack.c.l.s4 1966171168
    %v6653 = vunpack.c.0.s8 %v6652
    %v6654 = vlaneseq
    %v6655 = vshrl.u32 %v6654, 7
    %v6656 = vsub.s32 %v6653, %v6655
    %v6657 = vrot.slane %v6643, %v6656
    %v6658 = vcombine.low %v6650, %v6657
    %v6659 = vcombine.low %v2191, %v2195
    %v6660 = vcombine.low %v2199, %v2203
    %v6661 = vcombine.low %v2207, %v2211
    %v6662 = vcombine.low %v2215, %v2219
    %v6664 = vunpack.c.l.s4 1966171168
    %v6665 = vunpack.c.0.s8 %v6664
    %v6666 = vlaneseq
    %v6667 = vshrl.u32 %v6666, 7
    %v6668 = vsub.s32 %v6665, %v6667
    %v6669 = vrot.slane %v6659, %v6668
    %v6671 = vunpack.c.l.s4 1966171168
    %v6672 = vunpack.c.0.s8 %v6671
    %v6673 = vlaneseq
    %v6674 = vshrl.u32 %v6673, 7
    %v6675 = vsub.s32 %v6672, %v6674
    %v6676 = vrot.slane %v6660, %v6675
    %v6678 = vunpack.c.l.s4 1966171168
    %v6679 = vunpack.c.0.s8 %v6678
    %v6680 = vlaneseq
    %v6681 = vshrl.u32 %v6680, 7
    %v6682 = vsub.s32 %v6679, %v6681
    %v6683 = vrot.slane %v6661, %v6682
    %v6685 = vunpack.c.l.s4 1966171168
    %v6686 = vunpack.c.0.s8 %v6685
    %v6687 = vlaneseq
    %v6688 = vshrl.u32 %v6687, 7
    %v6689 = vsub.s32 %v6686, %v6688
    %v6690 = vrot.slane %v6662, %v6689
    %v6691 = vcombine.low %v6669, %v6676
    %v6692 = vcombine.low %v6683, %v6690
    %v6694 = vunpack.c.l.s4 1966171168
    %v6695 = vunpack.c.0.s8 %v6694
    %v6696 = vlaneseq
    %v6697 = vshrl.u32 %v6696, 7
    %v6698 = vsub.s32 %v6695, %v6697
    %v6699 = vrot.slane %v6691, %v6698
    %v6701 = vunpack.c.l.s4 1966171168
    %v6702 = vunpack.c.0.s8 %v6701
    %v6703 = vlaneseq
    %v6704 = vshrl.u32 %v6703, 7
    %v6705 = vsub.s32 %v6702, %v6704
    %v6706 = vrot.slane %v6692, %v6705
    %v6707 = vcombine.low %v6699, %v6706
    %v6708 = vcombine.low %v2223, %v2227
    %v6709 = vcombine.low %v2231, %v2235
    %v6710 = vcombine.low %v2239, %v2243
    %v6711 = vcombine.low %v2247, %v2251
    %v6713 = vunpack.c.l.s4 1966171168
    %v6714 = vunpack.c.0.s8 %v6713
    %v6715 = vlaneseq
    %v6716 = vshrl.u32 %v6715, 7
    %v6717 = vsub.s32 %v6714, %v6716
    %v6718 = vrot.slane %v6708, %v6717
    %v6720 = vunpack.c.l.s4 1966171168
    %v6721 = vunpack.c.0.s8 %v6720
    %v6722 = vlaneseq
    %v6723 = vshrl.u32 %v6722, 7
    %v6724 = vsub.s32 %v6721, %v6723
    %v6725 = vrot.slane %v6709, %v6724
    %v6727 = vunpack.c.l.s4 1966171168
    %v6728 = vunpack.c.0.s8 %v6727
    %v6729 = vlaneseq
    %v6730 = vshrl.u32 %v6729, 7
    %v6731 = vsub.s32 %v6728, %v6730
    %v6732 = vrot.slane %v6710, %v6731
    %v6734 = vunpack.c.l.s4 1966171168
    %v6735 = vunpack.c.0.s8 %v6734
    %v6736 = vlaneseq
    %v6737 = vshrl.u32 %v6736, 7
    %v6738 = vsub.s32 %v6735, %v6737
    %v6739 = vrot.slane %v6711, %v6738
    %v6740 = vcombine.low %v6718, %v6725
    %v6741 = vcombine.low %v6732, %v6739
    %v6743 = vunpack.c.l.s4 1966171168
    %v6744 = vunpack.c.0.s8 %v6743
    %v6745 = vlaneseq
    %v6746 = vshrl.u32 %v6745, 7
    %v6747 = vsub.s32 %v6744, %v6746
    %v6748 = vrot.slane %v6740, %v6747
    %v6750 = vunpack.c.l.s4 1966171168
    %v6751 = vunpack.c.0.s8 %v6750
    %v6752 = vlaneseq
    %v6753 = vshrl.u32 %v6752, 7
    %v6754 = vsub.s32 %v6751, %v6753
    %v6755 = vrot.slane %v6741, %v6754
    %v6756 = vcombine.low %v6748, %v6755
    %v6757 = vcombine.low %v2255, %v2259
    %v6758 = vcombine.low %v2263, %v2267
    %v6759 = vcombine.low %v2271, %v2275
    %v6760 = vcombine.low %v2279, %v2283
    %v6762 = vunpack.c.l.s4 1966171168
    %v6763 = vunpack.c.0.s8 %v6762
    %v6764 = vlaneseq
    %v6765 = vshrl.u32 %v6764, 7
    %v6766 = vsub.s32 %v6763, %v6765
    %v6767 = vrot.slane %v6757, %v6766
    %v6769 = vunpack.c.l.s4 1966171168
    %v6770 = vunpack.c.0.s8 %v6769
    %v6771 = vlaneseq
    %v6772 = vshrl.u32 %v6771, 7
    %v6773 = vsub.s32 %v6770, %v6772
    %v6774 = vrot.slane %v6758, %v6773
    %v6776 = vunpack.c.l.s4 1966171168
    %v6777 = vunpack.c.0.s8 %v6776
    %v6778 = vlaneseq
    %v6779 = vshrl.u32 %v6778, 7
    %v6780 = vsub.s32 %v6777, %v6779
    %v6781 = vrot.slane %v6759, %v6780
    %v6783 = vunpack.c.l.s4 1966171168
    %v6784 = vunpack.c.0.s8 %v6783
    %v6785 = vlaneseq
    %v6786 = vshrl.u32 %v6785, 7
    %v6787 = vsub.s32 %v6784, %v6786
    %v6788 = vrot.slane %v6760, %v6787
    %v6789 = vcombine.low %v6767, %v6774
    %v6790 = vcombine.low %v6781, %v6788
    %v6792 = vunpack.c.l.s4 1966171168
    %v6793 = vunpack.c.0.s8 %v6792
    %v6794 = vlaneseq
    %v6795 = vshrl.u32 %v6794, 7
    %v6796 = vsub.s32 %v6793, %v6795
    %v6797 = vrot.slane %v6789, %v6796
    %v6799 = vunpack.c.l.s4 1966171168
    %v6800 = vunpack.c.0.s8 %v6799
    %v6801 = vlaneseq
    %v6802 = vshrl.u32 %v6801, 7
    %v6803 = vsub.s32 %v6800, %v6802
    %v6804 = vrot.slane %v6790, %v6803
    %v6805 = vcombine.low %v6797, %v6804
    %v6806 = vcombine.low %v2287, %v2291
    %v6807 = vcombine.low %v2295, %v2299
    %v6808 = vcombine.low %v2303, %v2307
    %v6809 = vcombine.low %v2311, %v2315
    %v6811 = vunpack.c.l.s4 1966171168
    %v6812 = vunpack.c.0.s8 %v6811
    %v6813 = vlaneseq
    %v6814 = vshrl.u32 %v6813, 7
    %v6815 = vsub.s32 %v6812, %v6814
    %v6816 = vrot.slane %v6806, %v6815
    %v6818 = vunpack.c.l.s4 1966171168
    %v6819 = vunpack.c.0.s8 %v6818
    %v6820 = vlaneseq
    %v6821 = vshrl.u32 %v6820, 7
    %v6822 = vsub.s32 %v6819, %v6821
    %v6823 = vrot.slane %v6807, %v6822
    %v6825 = vunpack.c.l.s4 1966171168
    %v6826 = vunpack.c.0.s8 %v6825
    %v6827 = vlaneseq
    %v6828 = vshrl.u32 %v6827, 7
    %v6829 = vsub.s32 %v6826, %v6828
    %v6830 = vrot.slane %v6808, %v6829
    %v6832 = vunpack.c.l.s4 1966171168
    %v6833 = vunpack.c.0.s8 %v6832
    %v6834 = vlaneseq
    %v6835 = vshrl.u32 %v6834, 7
    %v6836 = vsub.s32 %v6833, %v6835
    %v6837 = vrot.slane %v6809, %v6836
    %v6838 = vcombine.low %v6816, %v6823
    %v6839 = vcombine.low %v6830, %v6837
    %v6841 = vunpack.c.l.s4 1966171168
    %v6842 = vunpack.c.0.s8 %v6841
    %v6843 = vlaneseq
    %v6844 = vshrl.u32 %v6843, 7
    %v6845 = vsub.s32 %v6842, %v6844
    %v6846 = vrot.slane %v6838, %v6845
    %v6848 = vunpack.c.l.s4 1966171168
    %v6849 = vunpack.c.0.s8 %v6848
    %v6850 = vlaneseq
    %v6851 = vshrl.u32 %v6850, 7
    %v6852 = vsub.s32 %v6849, %v6851
    %v6853 = vrot.slane %v6839, %v6852
    %v6854 = vcombine.low %v6846, %v6853
    %v6855 = vcombine.low %v2319, %v2323
    %v6856 = vcombine.low %v2327, %v2331
    %v6857 = vcombine.low %v2335, %v2339
    %v6858 = vcombine.low %v2343, %v2347
    %v6860 = vunpack.c.l.s4 1966171168
    %v6861 = vunpack.c.0.s8 %v6860
    %v6862 = vlaneseq
    %v6863 = vshrl.u32 %v6862, 7
    %v6864 = vsub.s32 %v6861, %v6863
    %v6865 = vrot.slane %v6855, %v6864
    %v6867 = vunpack.c.l.s4 1966171168
    %v6868 = vunpack.c.0.s8 %v6867
    %v6869 = vlaneseq
    %v6870 = vshrl.u32 %v6869, 7
    %v6871 = vsub.s32 %v6868, %v6870
    %v6872 = vrot.slane %v6856, %v6871
    %v6874 = vunpack.c.l.s4 1966171168
    %v6875 = vunpack.c.0.s8 %v6874
    %v6876 = vlaneseq
    %v6877 = vshrl.u32 %v6876, 7
    %v6878 = vsub.s32 %v6875, %v6877
    %v6879 = vrot.slane %v6857, %v6878
    %v6881 = vunpack.c.l.s4 1966171168
    %v6882 = vunpack.c.0.s8 %v6881
    %v6883 = vlaneseq
    %v6884 = vshrl.u32 %v6883, 7
    %v6885 = vsub.s32 %v6882, %v6884
    %v6886 = vrot.slane %v6858, %v6885
    %v6887 = vcombine.low %v6865, %v6872
    %v6888 = vcombine.low %v6879, %v6886
    %v6890 = vunpack.c.l.s4 1966171168
    %v6891 = vunpack.c.0.s8 %v6890
    %v6892 = vlaneseq
    %v6893 = vshrl.u32 %v6892, 7
    %v6894 = vsub.s32 %v6891, %v6893
    %v6895 = vrot.slane %v6887, %v6894
    %v6897 = vunpack.c.l.s4 1966171168
    %v6898 = vunpack.c.0.s8 %v6897
    %v6899 = vlaneseq
    %v6900 = vshrl.u32 %v6899, 7
    %v6901 = vsub.s32 %v6898, %v6900
    %v6902 = vrot.slane %v6888, %v6901
    %v6903 = vcombine.low %v6895, %v6902
    %v6904 = vcombine.low %v2351, %v2355
    %v6905 = vcombine.low %v2359, %v2363
    %v6906 = vcombine.low %v2367, %v2371
    %v6907 = vcombine.low %v2375, %v2379
    %v6909 = vunpack.c.l.s4 1966171168
    %v6910 = vunpack.c.0.s8 %v6909
    %v6911 = vlaneseq
    %v6912 = vshrl.u32 %v6911, 7
    %v6913 = vsub.s32 %v6910, %v6912
    %v6914 = vrot.slane %v6904, %v6913
    %v6916 = vunpack.c.l.s4 1966171168
    %v6917 = vunpack.c.0.s8 %v6916
    %v6918 = vlaneseq
    %v6919 = vshrl.u32 %v6918, 7
    %v6920 = vsub.s32 %v6917, %v6919
    %v6921 = vrot.slane %v6905, %v6920
    %v6923 = vunpack.c.l.s4 1966171168
    %v6924 = vunpack.c.0.s8 %v6923
    %v6925 = vlaneseq
    %v6926 = vshrl.u32 %v6925, 7
    %v6927 = vsub.s32 %v6924, %v6926
    %v6928 = vrot.slane %v6906, %v6927
    %v6930 = vunpack.c.l.s4 1966171168
    %v6931 = vunpack.c.0.s8 %v6930
    %v6932 = vlaneseq
    %v6933 = vshrl.u32 %v6932, 7
    %v6934 = vsub.s32 %v6931, %v6933
    %v6935 = vrot.slane %v6907, %v6934
    %v6936 = vcombine.low %v6914, %v6921
    %v6937 = vcombine.low %v6928, %v6935
    %v6939 = vunpack.c.l.s4 1966171168
    %v6940 = vunpack.c.0.s8 %v6939
    %v6941 = vlaneseq
    %v6942 = vshrl.u32 %v6941, 7
    %v6943 = vsub.s32 %v6940, %v6942
    %v6944 = vrot.slane %v6936, %v6943
    %v6946 = vunpack.c.l.s4 1966171168
    %v6947 = vunpack.c.0.s8 %v6946
    %v6948 = vlaneseq
    %v6949 = vshrl.u32 %v6948, 7
    %v6950 = vsub.s32 %v6947, %v6949
    %v6951 = vrot.slane %v6937, %v6950
    %v6952 = vcombine.low %v6944, %v6951
    %v6953 = vcombine.low %v2383, %v2387
    %v6954 = vcombine.low %v2391, %v2395
    %v6955 = vcombine.low %v2399, %v2403
    %v6956 = vcombine.low %v2407, %v2411
    %v6958 = vunpack.c.l.s4 1966171168
    %v6959 = vunpack.c.0.s8 %v6958
    %v6960 = vlaneseq
    %v6961 = vshrl.u32 %v6960, 7
    %v6962 = vsub.s32 %v6959, %v6961
    %v6963 = vrot.slane %v6953, %v6962
    %v6965 = vunpack.c.l.s4 1966171168
    %v6966 = vunpack.c.0.s8 %v6965
    %v6967 = vlaneseq
    %v6968 = vshrl.u32 %v6967, 7
    %v6969 = vsub.s32 %v6966, %v6968
    %v6970 = vrot.slane %v6954, %v6969
    %v6972 = vunpack.c.l.s4 1966171168
    %v6973 = vunpack.c.0.s8 %v6972
    %v6974 = vlaneseq
    %v6975 = vshrl.u32 %v6974, 7
    %v6976 = vsub.s32 %v6973, %v6975
    %v6977 = vrot.slane %v6955, %v6976
    %v6979 = vunpack.c.l.s4 1966171168
    %v6980 = vunpack.c.0.s8 %v6979
    %v6981 = vlaneseq
    %v6982 = vshrl.u32 %v6981, 7
    %v6983 = vsub.s32 %v6980, %v6982
    %v6984 = vrot.slane %v6956, %v6983
    %v6985 = vcombine.low %v6963, %v6970
    %v6986 = vcombine.low %v6977, %v6984
    %v6988 = vunpack.c.l.s4 1966171168
    %v6989 = vunpack.c.0.s8 %v6988
    %v6990 = vlaneseq
    %v6991 = vshrl.u32 %v6990, 7
    %v6992 = vsub.s32 %v6989, %v6991
    %v6993 = vrot.slane %v6985, %v6992
    %v6995 = vunpack.c.l.s4 1966171168
    %v6996 = vunpack.c.0.s8 %v6995
    %v6997 = vlaneseq
    %v6998 = vshrl.u32 %v6997, 7
    %v6999 = vsub.s32 %v6996, %v6998
    %v7000 = vrot.slane %v6986, %v6999
    %v7001 = vcombine.low %v6993, %v7000
    %v7002 = vcombine.low %v2415, %v2419
    %v7003 = vcombine.low %v2423, %v2427
    %v7004 = vcombine.low %v2431, %v2435
    %v7005 = vcombine.low %v2439, %v2443
    %v7007 = vunpack.c.l.s4 1966171168
    %v7008 = vunpack.c.0.s8 %v7007
    %v7009 = vlaneseq
    %v7010 = vshrl.u32 %v7009, 7
    %v7011 = vsub.s32 %v7008, %v7010
    %v7012 = vrot.slane %v7002, %v7011
    %v7014 = vunpack.c.l.s4 1966171168
    %v7015 = vunpack.c.0.s8 %v7014
    %v7016 = vlaneseq
    %v7017 = vshrl.u32 %v7016, 7
    %v7018 = vsub.s32 %v7015, %v7017
    %v7019 = vrot.slane %v7003, %v7018
    %v7021 = vunpack.c.l.s4 1966171168
    %v7022 = vunpack.c.0.s8 %v7021
    %v7023 = vlaneseq
    %v7024 = vshrl.u32 %v7023, 7
    %v7025 = vsub.s32 %v7022, %v7024
    %v7026 = vrot.slane %v7004, %v7025
    %v7028 = vunpack.c.l.s4 1966171168
    %v7029 = vunpack.c.0.s8 %v7028
    %v7030 = vlaneseq
    %v7031 = vshrl.u32 %v7030, 7
    %v7032 = vsub.s32 %v7029, %v7031
    %v7033 = vrot.slane %v7005, %v7032
    %v7034 = vcombine.low %v7012, %v7019
    %v7035 = vcombine.low %v7026, %v7033
    %v7037 = vunpack.c.l.s4 1966171168
    %v7038 = vunpack.c.0.s8 %v7037
    %v7039 = vlaneseq
    %v7040 = vshrl.u32 %v7039, 7
    %v7041 = vsub.s32 %v7038, %v7040
    %v7042 = vrot.slane %v7034, %v7041
    %v7044 = vunpack.c.l.s4 1966171168
    %v7045 = vunpack.c.0.s8 %v7044
    %v7046 = vlaneseq
    %v7047 = vshrl.u32 %v7046, 7
    %v7048 = vsub.s32 %v7045, %v7047
    %v7049 = vrot.slane %v7035, %v7048
    %v7050 = vcombine.low %v7042, %v7049
    %v7051 = vcombine.low %v2447, %v2451
    %v7052 = vcombine.low %v2455, %v2459
    %v7053 = vcombine.low %v2463, %v2467
    %v7054 = vcombine.low %v2471, %v2475
    %v7056 = vunpack.c.l.s4 1966171168
    %v7057 = vunpack.c.0.s8 %v7056
    %v7058 = vlaneseq
    %v7059 = vshrl.u32 %v7058, 7
    %v7060 = vsub.s32 %v7057, %v7059
    %v7061 = vrot.slane %v7051, %v7060
    %v7063 = vunpack.c.l.s4 1966171168
    %v7064 = vunpack.c.0.s8 %v7063
    %v7065 = vlaneseq
    %v7066 = vshrl.u32 %v7065, 7
    %v7067 = vsub.s32 %v7064, %v7066
    %v7068 = vrot.slane %v7052, %v7067
    %v7070 = vunpack.c.l.s4 1966171168
    %v7071 = vunpack.c.0.s8 %v7070
    %v7072 = vlaneseq
    %v7073 = vshrl.u32 %v7072, 7
    %v7074 = vsub.s32 %v7071, %v7073
    %v7075 = vrot.slane %v7053, %v7074
    %v7077 = vunpack.c.l.s4 1966171168
    %v7078 = vunpack.c.0.s8 %v7077
    %v7079 = vlaneseq
    %v7080 = vshrl.u32 %v7079, 7
    %v7081 = vsub.s32 %v7078, %v7080
    %v7082 = vrot.slane %v7054, %v7081
    %v7083 = vcombine.low %v7061, %v7068
    %v7084 = vcombine.low %v7075, %v7082
    %v7086 = vunpack.c.l.s4 1966171168
    %v7087 = vunpack.c.0.s8 %v7086
    %v7088 = vlaneseq
    %v7089 = vshrl.u32 %v7088, 7
    %v7090 = vsub.s32 %v7087, %v7089
    %v7091 = vrot.slane %v7083, %v7090
    %v7093 = vunpack.c.l.s4 1966171168
    %v7094 = vunpack.c.0.s8 %v7093
    %v7095 = vlaneseq
    %v7096 = vshrl.u32 %v7095, 7
    %v7097 = vsub.s32 %v7094, %v7096
    %v7098 = vrot.slane %v7084, %v7097
    %v7099 = vcombine.low %v7091, %v7098
    %v7100 = vcombine.low %v2479, %v2483
    %v7101 = vcombine.low %v2487, %v2491
    %v7102 = vcombine.low %v2495, %v2499
    %v7103 = vcombine.low %v2503, %v2507
    %v7105 = vunpack.c.l.s4 1966171168
    %v7106 = vunpack.c.0.s8 %v7105
    %v7107 = vlaneseq
    %v7108 = vshrl.u32 %v7107, 7
    %v7109 = vsub.s32 %v7106, %v7108
    %v7110 = vrot.slane %v7100, %v7109
    %v7112 = vunpack.c.l.s4 1966171168
    %v7113 = vunpack.c.0.s8 %v7112
    %v7114 = vlaneseq
    %v7115 = vshrl.u32 %v7114, 7
    %v7116 = vsub.s32 %v7113, %v7115
    %v7117 = vrot.slane %v7101, %v7116
    %v7119 = vunpack.c.l.s4 1966171168
    %v7120 = vunpack.c.0.s8 %v7119
    %v7121 = vlaneseq
    %v7122 = vshrl.u32 %v7121, 7
    %v7123 = vsub.s32 %v7120, %v7122
    %v7124 = vrot.slane %v7102, %v7123
    %v7126 = vunpack.c.l.s4 1966171168
    %v7127 = vunpack.c.0.s8 %v7126
    %v7128 = vlaneseq
    %v7129 = vshrl.u32 %v7128, 7
    %v7130 = vsub.s32 %v7127, %v7129
    %v7131 = vrot.slane %v7103, %v7130
    %v7132 = vcombine.low %v7110, %v7117
    %v7133 = vcombine.low %v7124, %v7131
    %v7135 = vunpack.c.l.s4 1966171168
    %v7136 = vunpack.c.0.s8 %v7135
    %v7137 = vlaneseq
    %v7138 = vshrl.u32 %v7137, 7
    %v7139 = vsub.s32 %v7136, %v7138
    %v7140 = vrot.slane %v7132, %v7139
    %v7142 = vunpack.c.l.s4 1966171168
    %v7143 = vunpack.c.0.s8 %v7142
    %v7144 = vlaneseq
    %v7145 = vshrl.u32 %v7144, 7
    %v7146 = vsub.s32 %v7143, %v7145
    %v7147 = vrot.slane %v7133, %v7146
    %v7148 = vcombine.low %v7140, %v7147
    %v7149 = vcombine.low %v2511, %v2515
    %v7150 = vcombine.low %v2519, %v2523
    %v7151 = vcombine.low %v2527, %v2531
    %v7152 = vcombine.low %v2535, %v2539
    %v7154 = vunpack.c.l.s4 1966171168
    %v7155 = vunpack.c.0.s8 %v7154
    %v7156 = vlaneseq
    %v7157 = vshrl.u32 %v7156, 7
    %v7158 = vsub.s32 %v7155, %v7157
    %v7159 = vrot.slane %v7149, %v7158
    %v7161 = vunpack.c.l.s4 1966171168
    %v7162 = vunpack.c.0.s8 %v7161
    %v7163 = vlaneseq
    %v7164 = vshrl.u32 %v7163, 7
    %v7165 = vsub.s32 %v7162, %v7164
    %v7166 = vrot.slane %v7150, %v7165
    %v7168 = vunpack.c.l.s4 1966171168
    %v7169 = vunpack.c.0.s8 %v7168
    %v7170 = vlaneseq
    %v7171 = vshrl.u32 %v7170, 7
    %v7172 = vsub.s32 %v7169, %v7171
    %v7173 = vrot.slane %v7151, %v7172
    %v7175 = vunpack.c.l.s4 1966171168
    %v7176 = vunpack.c.0.s8 %v7175
    %v7177 = vlaneseq
    %v7178 = vshrl.u32 %v7177, 7
    %v7179 = vsub.s32 %v7176, %v7178
    %v7180 = vrot.slane %v7152, %v7179
    %v7181 = vcombine.low %v7159, %v7166
    %v7182 = vcombine.low %v7173, %v7180
    %v7184 = vunpack.c.l.s4 1966171168
    %v7185 = vunpack.c.0.s8 %v7184
    %v7186 = vlaneseq
    %v7187 = vshrl.u32 %v7186, 7
    %v7188 = vsub.s32 %v7185, %v7187
    %v7189 = vrot.slane %v7181, %v7188
    %v7191 = vunpack.c.l.s4 1966171168
    %v7192 = vunpack.c.0.s8 %v7191
    %v7193 = vlaneseq
    %v7194 = vshrl.u32 %v7193, 7
    %v7195 = vsub.s32 %v7192, %v7194
    %v7196 = vrot.slane %v7182, %v7195
    %v7197 = vcombine.low %v7189, %v7196
    %v7198 = vcombine.low %v2543, %v2547
    %v7199 = vcombine.low %v2551, %v2555
    %v7200 = vcombine.low %v2559, %v2563
    %v7201 = vcombine.low %v2567, %v2571
    %v7203 = vunpack.c.l.s4 1966171168
    %v7204 = vunpack.c.0.s8 %v7203
    %v7205 = vlaneseq
    %v7206 = vshrl.u32 %v7205, 7
    %v7207 = vsub.s32 %v7204, %v7206
    %v7208 = vrot.slane %v7198, %v7207
    %v7210 = vunpack.c.l.s4 1966171168
    %v7211 = vunpack.c.0.s8 %v7210
    %v7212 = vlaneseq
    %v7213 = vshrl.u32 %v7212, 7
    %v7214 = vsub.s32 %v7211, %v7213
    %v7215 = vrot.slane %v7199, %v7214
    %v7217 = vunpack.c.l.s4 1966171168
    %v7218 = vunpack.c.0.s8 %v7217
    %v7219 = vlaneseq
    %v7220 = vshrl.u32 %v7219, 7
    %v7221 = vsub.s32 %v7218, %v7220
    %v7222 = vrot.slane %v7200, %v7221
    %v7224 = vunpack.c.l.s4 1966171168
    %v7225 = vunpack.c.0.s8 %v7224
    %v7226 = vlaneseq
    %v7227 = vshrl.u32 %v7226, 7
    %v7228 = vsub.s32 %v7225, %v7227
    %v7229 = vrot.slane %v7201, %v7228
    %v7230 = vcombine.low %v7208, %v7215
    %v7231 = vcombine.low %v7222, %v7229
    %v7233 = vunpack.c.l.s4 1966171168
    %v7234 = vunpack.c.0.s8 %v7233
    %v7235 = vlaneseq
    %v7236 = vshrl.u32 %v7235, 7
    %v7237 = vsub.s32 %v7234, %v7236
    %v7238 = vrot.slane %v7230, %v7237
    %v7240 = vunpack.c.l.s4 1966171168
    %v7241 = vunpack.c.0.s8 %v7240
    %v7242 = vlaneseq
    %v7243 = vshrl.u32 %v7242, 7
    %v7244 = vsub.s32 %v7241, %v7243
    %v7245 = vrot.slane %v7231, %v7244
    %v7246 = vcombine.low %v7238, %v7245
    %v7247 = vcombine.low %v2575, %v2579
    %v7248 = vcombine.low %v2583, %v2587
    %v7249 = vcombine.low %v2591, %v2595
    %v7250 = vcombine.low %v2599, %v2603
    %v7252 = vunpack.c.l.s4 1966171168
    %v7253 = vunpack.c.0.s8 %v7252
    %v7254 = vlaneseq
    %v7255 = vshrl.u32 %v7254, 7
    %v7256 = vsub.s32 %v7253, %v7255
    %v7257 = vrot.slane %v7247, %v7256
    %v7259 = vunpack.c.l.s4 1966171168
    %v7260 = vunpack.c.0.s8 %v7259
    %v7261 = vlaneseq
    %v7262 = vshrl.u32 %v7261, 7
    %v7263 = vsub.s32 %v7260, %v7262
    %v7264 = vrot.slane %v7248, %v7263
    %v7266 = vunpack.c.l.s4 1966171168
    %v7267 = vunpack.c.0.s8 %v7266
    %v7268 = vlaneseq
    %v7269 = vshrl.u32 %v7268, 7
    %v7270 = vsub.s32 %v7267, %v7269
    %v7271 = vrot.slane %v7249, %v7270
    %v7273 = vunpack.c.l.s4 1966171168
    %v7274 = vunpack.c.0.s8 %v7273
    %v7275 = vlaneseq
    %v7276 = vshrl.u32 %v7275, 7
    %v7277 = vsub.s32 %v7274, %v7276
    %v7278 = vrot.slane %v7250, %v7277
    %v7279 = vcombine.low %v7257, %v7264
    %v7280 = vcombine.low %v7271, %v7278
    %v7282 = vunpack.c.l.s4 1966171168
    %v7283 = vunpack.c.0.s8 %v7282
    %v7284 = vlaneseq
    %v7285 = vshrl.u32 %v7284, 7
    %v7286 = vsub.s32 %v7283, %v7285
    %v7287 = vrot.slane %v7279, %v7286
    %v7289 = vunpack.c.l.s4 1966171168
    %v7290 = vunpack.c.0.s8 %v7289
    %v7291 = vlaneseq
    %v7292 = vshrl.u32 %v7291, 7
    %v7293 = vsub.s32 %v7290, %v7292
    %v7294 = vrot.slane %v7280, %v7293
    %v7295 = vcombine.low %v7287, %v7294
    %v7296 = vcombine.low %v2607, %v2611
    %v7297 = vcombine.low %v2615, %v2619
    %v7298 = vcombine.low %v2623, %v2627
    %v7299 = vcombine.low %v2631, %v2635
    %v7301 = vunpack.c.l.s4 1966171168
    %v7302 = vunpack.c.0.s8 %v7301
    %v7303 = vlaneseq
    %v7304 = vshrl.u32 %v7303, 7
    %v7305 = vsub.s32 %v7302, %v7304
    %v7306 = vrot.slane %v7296, %v7305
    %v7308 = vunpack.c.l.s4 1966171168
    %v7309 = vunpack.c.0.s8 %v7308
    %v7310 = vlaneseq
    %v7311 = vshrl.u32 %v7310, 7
    %v7312 = vsub.s32 %v7309, %v7311
    %v7313 = vrot.slane %v7297, %v7312
    %v7315 = vunpack.c.l.s4 1966171168
    %v7316 = vunpack.c.0.s8 %v7315
    %v7317 = vlaneseq
    %v7318 = vshrl.u32 %v7317, 7
    %v7319 = vsub.s32 %v7316, %v7318
    %v7320 = vrot.slane %v7298, %v7319
    %v7322 = vunpack.c.l.s4 1966171168
    %v7323 = vunpack.c.0.s8 %v7322
    %v7324 = vlaneseq
    %v7325 = vshrl.u32 %v7324, 7
    %v7326 = vsub.s32 %v7323, %v7325
    %v7327 = vrot.slane %v7299, %v7326
    %v7328 = vcombine.low %v7306, %v7313
    %v7329 = vcombine.low %v7320, %v7327
    %v7331 = vunpack.c.l.s4 1966171168
    %v7332 = vunpack.c.0.s8 %v7331
    %v7333 = vlaneseq
    %v7334 = vshrl.u32 %v7333, 7
    %v7335 = vsub.s32 %v7332, %v7334
    %v7336 = vrot.slane %v7328, %v7335
    %v7338 = vunpack.c.l.s4 1966171168
    %v7339 = vunpack.c.0.s8 %v7338
    %v7340 = vlaneseq
    %v7341 = vshrl.u32 %v7340, 7
    %v7342 = vsub.s32 %v7339, %v7341
    %v7343 = vrot.slane %v7329, %v7342
    %v7344 = vcombine.low %v7336, %v7343
    %v7345 = vcombine.low %v2639, %v2643
    %v7346 = vcombine.low %v2647, %v2651
    %v7347 = vcombine.low %v2655, %v2659
    %v7348 = vcombine.low %v2663, %v2667
    %v7350 = vunpack.c.l.s4 1966171168
    %v7351 = vunpack.c.0.s8 %v7350
    %v7352 = vlaneseq
    %v7353 = vshrl.u32 %v7352, 7
    %v7354 = vsub.s32 %v7351, %v7353
    %v7355 = vrot.slane %v7345, %v7354
    %v7357 = vunpack.c.l.s4 1966171168
    %v7358 = vunpack.c.0.s8 %v7357
    %v7359 = vlaneseq
    %v7360 = vshrl.u32 %v7359, 7
    %v7361 = vsub.s32 %v7358, %v7360
    %v7362 = vrot.slane %v7346, %v7361
    %v7364 = vunpack.c.l.s4 1966171168
    %v7365 = vunpack.c.0.s8 %v7364
    %v7366 = vlaneseq
    %v7367 = vshrl.u32 %v7366, 7
    %v7368 = vsub.s32 %v7365, %v7367
    %v7369 = vrot.slane %v7347, %v7368
    %v7371 = vunpack.c.l.s4 1966171168
    %v7372 = vunpack.c.0.s8 %v7371
    %v7373 = vlaneseq
    %v7374 = vshrl.u32 %v7373, 7
    %v7375 = vsub.s32 %v7372, %v7374
    %v7376 = vrot.slane %v7348, %v7375
    %v7377 = vcombine.low %v7355, %v7362
    %v7378 = vcombine.low %v7369, %v7376
    %v7380 = vunpack.c.l.s4 1966171168
    %v7381 = vunpack.c.0.s8 %v7380
    %v7382 = vlaneseq
    %v7383 = vshrl.u32 %v7382, 7
    %v7384 = vsub.s32 %v7381, %v7383
    %v7385 = vrot.slane %v7377, %v7384
    %v7387 = vunpack.c.l.s4 1966171168
    %v7388 = vunpack.c.0.s8 %v7387
    %v7389 = vlaneseq
    %v7390 = vshrl.u32 %v7389, 7
    %v7391 = vsub.s32 %v7388, %v7390
    %v7392 = vrot.slane %v7378, %v7391
    %v7393 = vcombine.low %v7385, %v7392
    %v7394 = vcombine.low %v2671, %v2675
    %v7395 = vcombine.low %v2679, %v2683
    %v7396 = vcombine.low %v2687, %v2691
    %v7397 = vcombine.low %v2695, %v2699
    %v7399 = vunpack.c.l.s4 1966171168
    %v7400 = vunpack.c.0.s8 %v7399
    %v7401 = vlaneseq
    %v7402 = vshrl.u32 %v7401, 7
    %v7403 = vsub.s32 %v7400, %v7402
    %v7404 = vrot.slane %v7394, %v7403
    %v7406 = vunpack.c.l.s4 1966171168
    %v7407 = vunpack.c.0.s8 %v7406
    %v7408 = vlaneseq
    %v7409 = vshrl.u32 %v7408, 7
    %v7410 = vsub.s32 %v7407, %v7409
    %v7411 = vrot.slane %v7395, %v7410
    %v7413 = vunpack.c.l.s4 1966171168
    %v7414 = vunpack.c.0.s8 %v7413
    %v7415 = vlaneseq
    %v7416 = vshrl.u32 %v7415, 7
    %v7417 = vsub.s32 %v7414, %v7416
    %v7418 = vrot.slane %v7396, %v7417
    %v7420 = vunpack.c.l.s4 1966171168
    %v7421 = vunpack.c.0.s8 %v7420
    %v7422 = vlaneseq
    %v7423 = vshrl.u32 %v7422, 7
    %v7424 = vsub.s32 %v7421, %v7423
    %v7425 = vrot.slane %v7397, %v7424
    %v7426 = vcombine.low %v7404, %v7411
    %v7427 = vcombine.low %v7418, %v7425
    %v7429 = vunpack.c.l.s4 1966171168
    %v7430 = vunpack.c.0.s8 %v7429
    %v7431 = vlaneseq
    %v7432 = vshrl.u32 %v7431, 7
    %v7433 = vsub.s32 %v7430, %v7432
    %v7434 = vrot.slane %v7426, %v7433
    %v7436 = vunpack.c.l.s4 1966171168
    %v7437 = vunpack.c.0.s8 %v7436
    %v7438 = vlaneseq
    %v7439 = vshrl.u32 %v7438, 7
    %v7440 = vsub.s32 %v7437, %v7439
    %v7441 = vrot.slane %v7427, %v7440
    %v7442 = vcombine.low %v7434, %v7441
    %v7443 = vcombine.low %v2703, %v2707
    %v7444 = vcombine.low %v2711, %v2715
    %v7445 = vcombine.low %v2719, %v2723
    %v7446 = vcombine.low %v2727, %v2731
    %v7448 = vunpack.c.l.s4 1966171168
    %v7449 = vunpack.c.0.s8 %v7448
    %v7450 = vlaneseq
    %v7451 = vshrl.u32 %v7450, 7
    %v7452 = vsub.s32 %v7449, %v7451
    %v7453 = vrot.slane %v7443, %v7452
    %v7455 = vunpack.c.l.s4 1966171168
    %v7456 = vunpack.c.0.s8 %v7455
    %v7457 = vlaneseq
    %v7458 = vshrl.u32 %v7457, 7
    %v7459 = vsub.s32 %v7456, %v7458
    %v7460 = vrot.slane %v7444, %v7459
    %v7462 = vunpack.c.l.s4 1966171168
    %v7463 = vunpack.c.0.s8 %v7462
    %v7464 = vlaneseq
    %v7465 = vshrl.u32 %v7464, 7
    %v7466 = vsub.s32 %v7463, %v7465
    %v7467 = vrot.slane %v7445, %v7466
    %v7469 = vunpack.c.l.s4 1966171168
    %v7470 = vunpack.c.0.s8 %v7469
    %v7471 = vlaneseq
    %v7472 = vshrl.u32 %v7471, 7
    %v7473 = vsub.s32 %v7470, %v7472
    %v7474 = vrot.slane %v7446, %v7473
    %v7475 = vcombine.low %v7453, %v7460
    %v7476 = vcombine.low %v7467, %v7474
    %v7478 = vunpack.c.l.s4 1966171168
    %v7479 = vunpack.c.0.s8 %v7478
    %v7480 = vlaneseq
    %v7481 = vshrl.u32 %v7480, 7
    %v7482 = vsub.s32 %v7479, %v7481
    %v7483 = vrot.slane %v7475, %v7482
    %v7485 = vunpack.c.l.s4 1966171168
    %v7486 = vunpack.c.0.s8 %v7485
    %v7487 = vlaneseq
    %v7488 = vshrl.u32 %v7487, 7
    %v7489 = vsub.s32 %v7486, %v7488
    %v7490 = vrot.slane %v7476, %v7489
    %v7491 = vcombine.low %v7483, %v7490
    %v7492 = vcombine.low %v2735, %v2739
    %v7493 = vcombine.low %v2743, %v2747
    %v7494 = vcombine.low %v2751, %v2755
    %v7495 = vcombine.low %v2759, %v2763
    %v7497 = vunpack.c.l.s4 1966171168
    %v7498 = vunpack.c.0.s8 %v7497
    %v7499 = vlaneseq
    %v7500 = vshrl.u32 %v7499, 7
    %v7501 = vsub.s32 %v7498, %v7500
    %v7502 = vrot.slane %v7492, %v7501
    %v7504 = vunpack.c.l.s4 1966171168
    %v7505 = vunpack.c.0.s8 %v7504
    %v7506 = vlaneseq
    %v7507 = vshrl.u32 %v7506, 7
    %v7508 = vsub.s32 %v7505, %v7507
    %v7509 = vrot.slane %v7493, %v7508
    %v7511 = vunpack.c.l.s4 1966171168
    %v7512 = vunpack.c.0.s8 %v7511
    %v7513 = vlaneseq
    %v7514 = vshrl.u32 %v7513, 7
    %v7515 = vsub.s32 %v7512, %v7514
    %v7516 = vrot.slane %v7494, %v7515
    %v7518 = vunpack.c.l.s4 1966171168
    %v7519 = vunpack.c.0.s8 %v7518
    %v7520 = vlaneseq
    %v7521 = vshrl.u32 %v7520, 7
    %v7522 = vsub.s32 %v7519, %v7521
    %v7523 = vrot.slane %v7495, %v7522
    %v7524 = vcombine.low %v7502, %v7509
    %v7525 = vcombine.low %v7516, %v7523
    %v7527 = vunpack.c.l.s4 1966171168
    %v7528 = vunpack.c.0.s8 %v7527
    %v7529 = vlaneseq
    %v7530 = vshrl.u32 %v7529, 7
    %v7531 = vsub.s32 %v7528, %v7530
    %v7532 = vrot.slane %v7524, %v7531
    %v7534 = vunpack.c.l.s4 1966171168
    %v7535 = vunpack.c.0.s8 %v7534
    %v7536 = vlaneseq
    %v7537 = vshrl.u32 %v7536, 7
    %v7538 = vsub.s32 %v7535, %v7537
    %v7539 = vrot.slane %v7525, %v7538
    %v7540 = vcombine.low %v7532, %v7539
    %v7541 = vcombine.low %v2767, %v2771
    %v7542 = vcombine.low %v2775, %v2779
    %v7543 = vcombine.low %v2783, %v2787
    %v7544 = vcombine.low %v2791, %v2795
    %v7546 = vunpack.c.l.s4 1966171168
    %v7547 = vunpack.c.0.s8 %v7546
    %v7548 = vlaneseq
    %v7549 = vshrl.u32 %v7548, 7
    %v7550 = vsub.s32 %v7547, %v7549
    %v7551 = vrot.slane %v7541, %v7550
    %v7553 = vunpack.c.l.s4 1966171168
    %v7554 = vunpack.c.0.s8 %v7553
    %v7555 = vlaneseq
    %v7556 = vshrl.u32 %v7555, 7
    %v7557 = vsub.s32 %v7554, %v7556
    %v7558 = vrot.slane %v7542, %v7557
    %v7560 = vunpack.c.l.s4 1966171168
    %v7561 = vunpack.c.0.s8 %v7560
    %v7562 = vlaneseq
    %v7563 = vshrl.u32 %v7562, 7
    %v7564 = vsub.s32 %v7561, %v7563
    %v7565 = vrot.slane %v7543, %v7564
    %v7567 = vunpack.c.l.s4 1966171168
    %v7568 = vunpack.c.0.s8 %v7567
    %v7569 = vlaneseq
    %v7570 = vshrl.u32 %v7569, 7
    %v7571 = vsub.s32 %v7568, %v7570
    %v7572 = vrot.slane %v7544, %v7571
    %v7573 = vcombine.low %v7551, %v7558
    %v7574 = vcombine.low %v7565, %v7572
    %v7576 = vunpack.c.l.s4 1966171168
    %v7577 = vunpack.c.0.s8 %v7576
    %v7578 = vlaneseq
    %v7579 = vshrl.u32 %v7578, 7
    %v7580 = vsub.s32 %v7577, %v7579
    %v7581 = vrot.slane %v7573, %v7580
    %v7583 = vunpack.c.l.s4 1966171168
    %v7584 = vunpack.c.0.s8 %v7583
    %v7585 = vlaneseq
    %v7586 = vshrl.u32 %v7585, 7
    %v7587 = vsub.s32 %v7584, %v7586
    %v7588 = vrot.slane %v7574, %v7587
    %v7589 = vcombine.low %v7581, %v7588
    %v7590 = vcombine.low %v2799, %v2803
    %v7591 = vcombine.low %v2807, %v2811
    %v7592 = vcombine.low %v2815, %v2819
    %v7593 = vcombine.low %v2823, %v2827
    %v7595 = vunpack.c.l.s4 1966171168
    %v7596 = vunpack.c.0.s8 %v7595
    %v7597 = vlaneseq
    %v7598 = vshrl.u32 %v7597, 7
    %v7599 = vsub.s32 %v7596, %v7598
    %v7600 = vrot.slane %v7590, %v7599
    %v7602 = vunpack.c.l.s4 1966171168
    %v7603 = vunpack.c.0.s8 %v7602
    %v7604 = vlaneseq
    %v7605 = vshrl.u32 %v7604, 7
    %v7606 = vsub.s32 %v7603, %v7605
    %v7607 = vrot.slane %v7591, %v7606
    %v7609 = vunpack.c.l.s4 1966171168
    %v7610 = vunpack.c.0.s8 %v7609
    %v7611 = vlaneseq
    %v7612 = vshrl.u32 %v7611, 7
    %v7613 = vsub.s32 %v7610, %v7612
    %v7614 = vrot.slane %v7592, %v7613
    %v7616 = vunpack.c.l.s4 1966171168
    %v7617 = vunpack.c.0.s8 %v7616
    %v7618 = vlaneseq
    %v7619 = vshrl.u32 %v7618, 7
    %v7620 = vsub.s32 %v7617, %v7619
    %v7621 = vrot.slane %v7593, %v7620
    %v7622 = vcombine.low %v7600, %v7607
    %v7623 = vcombine.low %v7614, %v7621
    %v7625 = vunpack.c.l.s4 1966171168
    %v7626 = vunpack.c.0.s8 %v7625
    %v7627 = vlaneseq
    %v7628 = vshrl.u32 %v7627, 7
    %v7629 = vsub.s32 %v7626, %v7628
    %v7630 = vrot.slane %v7622, %v7629
    %v7632 = vunpack.c.l.s4 1966171168
    %v7633 = vunpack.c.0.s8 %v7632
    %v7634 = vlaneseq
    %v7635 = vshrl.u32 %v7634, 7
    %v7636 = vsub.s32 %v7633, %v7635
    %v7637 = vrot.slane %v7623, %v7636
    %v7638 = vcombine.low %v7630, %v7637
    %v7639 = vcombine.low %v2831, %v2835
    %v7640 = vcombine.low %v2839, %v2843
    %v7641 = vcombine.low %v2847, %v2851
    %v7642 = vcombine.low %v2855, %v2859
    %v7644 = vunpack.c.l.s4 1966171168
    %v7645 = vunpack.c.0.s8 %v7644
    %v7646 = vlaneseq
    %v7647 = vshrl.u32 %v7646, 7
    %v7648 = vsub.s32 %v7645, %v7647
    %v7649 = vrot.slane %v7639, %v7648
    %v7651 = vunpack.c.l.s4 1966171168
    %v7652 = vunpack.c.0.s8 %v7651
    %v7653 = vlaneseq
    %v7654 = vshrl.u32 %v7653, 7
    %v7655 = vsub.s32 %v7652, %v7654
    %v7656 = vrot.slane %v7640, %v7655
    %v7658 = vunpack.c.l.s4 1966171168
    %v7659 = vunpack.c.0.s8 %v7658
    %v7660 = vlaneseq
    %v7661 = vshrl.u32 %v7660, 7
    %v7662 = vsub.s32 %v7659, %v7661
    %v7663 = vrot.slane %v7641, %v7662
    %v7665 = vunpack.c.l.s4 1966171168
    %v7666 = vunpack.c.0.s8 %v7665
    %v7667 = vlaneseq
    %v7668 = vshrl.u32 %v7667, 7
    %v7669 = vsub.s32 %v7666, %v7668
    %v7670 = vrot.slane %v7642, %v7669
    %v7671 = vcombine.low %v7649, %v7656
    %v7672 = vcombine.low %v7663, %v7670
    %v7674 = vunpack.c.l.s4 1966171168
    %v7675 = vunpack.c.0.s8 %v7674
    %v7676 = vlaneseq
    %v7677 = vshrl.u32 %v7676, 7
    %v7678 = vsub.s32 %v7675, %v7677
    %v7679 = vrot.slane %v7671, %v7678
    %v7681 = vunpack.c.l.s4 1966171168
    %v7682 = vunpack.c.0.s8 %v7681
    %v7683 = vlaneseq
    %v7684 = vshrl.u32 %v7683, 7
    %v7685 = vsub.s32 %v7682, %v7684
    %v7686 = vrot.slane %v7672, %v7685
    %v7687 = vcombine.low %v7679, %v7686
    %v7688 = vcombine.low %v2863, %v2867
    %v7689 = vcombine.low %v2871, %v2875
    %v7690 = vcombine.low %v2879, %v2883
    %v7691 = vcombine.low %v2887, %v2891
    %v7693 = vunpack.c.l.s4 1966171168
    %v7694 = vunpack.c.0.s8 %v7693
    %v7695 = vlaneseq
    %v7696 = vshrl.u32 %v7695, 7
    %v7697 = vsub.s32 %v7694, %v7696
    %v7698 = vrot.slane %v7688, %v7697
    %v7700 = vunpack.c.l.s4 1966171168
    %v7701 = vunpack.c.0.s8 %v7700
    %v7702 = vlaneseq
    %v7703 = vshrl.u32 %v7702, 7
    %v7704 = vsub.s32 %v7701, %v7703
    %v7705 = vrot.slane %v7689, %v7704
    %v7707 = vunpack.c.l.s4 1966171168
    %v7708 = vunpack.c.0.s8 %v7707
    %v7709 = vlaneseq
    %v7710 = vshrl.u32 %v7709, 7
    %v7711 = vsub.s32 %v7708, %v7710
    %v7712 = vrot.slane %v7690, %v7711
    %v7714 = vunpack.c.l.s4 1966171168
    %v7715 = vunpack.c.0.s8 %v7714
    %v7716 = vlaneseq
    %v7717 = vshrl.u32 %v7716, 7
    %v7718 = vsub.s32 %v7715, %v7717
    %v7719 = vrot.slane %v7691, %v7718
    %v7720 = vcombine.low %v7698, %v7705
    %v7721 = vcombine.low %v7712, %v7719
    %v7723 = vunpack.c.l.s4 1966171168
    %v7724 = vunpack.c.0.s8 %v7723
    %v7725 = vlaneseq
    %v7726 = vshrl.u32 %v7725, 7
    %v7727 = vsub.s32 %v7724, %v7726
    %v7728 = vrot.slane %v7720, %v7727
    %v7730 = vunpack.c.l.s4 1966171168
    %v7731 = vunpack.c.0.s8 %v7730
    %v7732 = vlaneseq
    %v7733 = vshrl.u32 %v7732, 7
    %v7734 = vsub.s32 %v7731, %v7733
    %v7735 = vrot.slane %v7721, %v7734
    %v7736 = vcombine.low %v7728, %v7735
    %v7737 = vcombine.low %v2895, %v2899
    %v7738 = vcombine.low %v2903, %v2907
    %v7739 = vcombine.low %v2911, %v2915
    %v7740 = vcombine.low %v2919, %v2923
    %v7742 = vunpack.c.l.s4 1966171168
    %v7743 = vunpack.c.0.s8 %v7742
    %v7744 = vlaneseq
    %v7745 = vshrl.u32 %v7744, 7
    %v7746 = vsub.s32 %v7743, %v7745
    %v7747 = vrot.slane %v7737, %v7746
    %v7749 = vunpack.c.l.s4 1966171168
    %v7750 = vunpack.c.0.s8 %v7749
    %v7751 = vlaneseq
    %v7752 = vshrl.u32 %v7751, 7
    %v7753 = vsub.s32 %v7750, %v7752
    %v7754 = vrot.slane %v7738, %v7753
    %v7756 = vunpack.c.l.s4 1966171168
    %v7757 = vunpack.c.0.s8 %v7756
    %v7758 = vlaneseq
    %v7759 = vshrl.u32 %v7758, 7
    %v7760 = vsub.s32 %v7757, %v7759
    %v7761 = vrot.slane %v7739, %v7760
    %v7763 = vunpack.c.l.s4 1966171168
    %v7764 = vunpack.c.0.s8 %v7763
    %v7765 = vlaneseq
    %v7766 = vshrl.u32 %v7765, 7
    %v7767 = vsub.s32 %v7764, %v7766
    %v7768 = vrot.slane %v7740, %v7767
    %v7769 = vcombine.low %v7747, %v7754
    %v7770 = vcombine.low %v7761, %v7768
    %v7772 = vunpack.c.l.s4 1966171168
    %v7773 = vunpack.c.0.s8 %v7772
    %v7774 = vlaneseq
    %v7775 = vshrl.u32 %v7774, 7
    %v7776 = vsub.s32 %v7773, %v7775
    %v7777 = vrot.slane %v7769, %v7776
    %v7779 = vunpack.c.l.s4 1966171168
    %v7780 = vunpack.c.0.s8 %v7779
    %v7781 = vlaneseq
    %v7782 = vshrl.u32 %v7781, 7
    %v7783 = vsub.s32 %v7780, %v7782
    %v7784 = vrot.slane %v7770, %v7783
    %v7785 = vcombine.low %v7777, %v7784
    %v7786 = vcombine.low %v2927, %v2931
    %v7787 = vcombine.low %v2935, %v2939
    %v7788 = vcombine.low %v2943, %v2947
    %v7789 = vcombine.low %v2951, %v2955
    %v7791 = vunpack.c.l.s4 1966171168
    %v7792 = vunpack.c.0.s8 %v7791
    %v7793 = vlaneseq
    %v7794 = vshrl.u32 %v7793, 7
    %v7795 = vsub.s32 %v7792, %v7794
    %v7796 = vrot.slane %v7786, %v7795
    %v7798 = vunpack.c.l.s4 1966171168
    %v7799 = vunpack.c.0.s8 %v7798
    %v7800 = vlaneseq
    %v7801 = vshrl.u32 %v7800, 7
    %v7802 = vsub.s32 %v7799, %v7801
    %v7803 = vrot.slane %v7787, %v7802
    %v7805 = vunpack.c.l.s4 1966171168
    %v7806 = vunpack.c.0.s8 %v7805
    %v7807 = vlaneseq
    %v7808 = vshrl.u32 %v7807, 7
    %v7809 = vsub.s32 %v7806, %v7808
    %v7810 = vrot.slane %v7788, %v7809
    %v7812 = vunpack.c.l.s4 1966171168
    %v7813 = vunpack.c.0.s8 %v7812
    %v7814 = vlaneseq
    %v7815 = vshrl.u32 %v7814, 7
    %v7816 = vsub.s32 %v7813, %v7815
    %v7817 = vrot.slane %v7789, %v7816
    %v7818 = vcombine.low %v7796, %v7803
    %v7819 = vcombine.low %v7810, %v7817
    %v7821 = vunpack.c.l.s4 1966171168
    %v7822 = vunpack.c.0.s8 %v7821
    %v7823 = vlaneseq
    %v7824 = vshrl.u32 %v7823, 7
    %v7825 = vsub.s32 %v7822, %v7824
    %v7826 = vrot.slane %v7818, %v7825
    %v7828 = vunpack.c.l.s4 1966171168
    %v7829 = vunpack.c.0.s8 %v7828
    %v7830 = vlaneseq
    %v7831 = vshrl.u32 %v7830, 7
    %v7832 = vsub.s32 %v7829, %v7831
    %v7833 = vrot.slane %v7819, %v7832
    %v7834 = vcombine.low %v7826, %v7833
    %v7835 = vcombine.low %v2959, %v2963
    %v7836 = vcombine.low %v2967, %v2971
    %v7837 = vcombine.low %v2975, %v2979
    %v7838 = vcombine.low %v2983, %v2987
    %v7840 = vunpack.c.l.s4 1966171168
    %v7841 = vunpack.c.0.s8 %v7840
    %v7842 = vlaneseq
    %v7843 = vshrl.u32 %v7842, 7
    %v7844 = vsub.s32 %v7841, %v7843
    %v7845 = vrot.slane %v7835, %v7844
    %v7847 = vunpack.c.l.s4 1966171168
    %v7848 = vunpack.c.0.s8 %v7847
    %v7849 = vlaneseq
    %v7850 = vshrl.u32 %v7849, 7
    %v7851 = vsub.s32 %v7848, %v7850
    %v7852 = vrot.slane %v7836, %v7851
    %v7854 = vunpack.c.l.s4 1966171168
    %v7855 = vunpack.c.0.s8 %v7854
    %v7856 = vlaneseq
    %v7857 = vshrl.u32 %v7856, 7
    %v7858 = vsub.s32 %v7855, %v7857
    %v7859 = vrot.slane %v7837, %v7858
    %v7861 = vunpack.c.l.s4 1966171168
    %v7862 = vunpack.c.0.s8 %v7861
    %v7863 = vlaneseq
    %v7864 = vshrl.u32 %v7863, 7
    %v7865 = vsub.s32 %v7862, %v7864
    %v7866 = vrot.slane %v7838, %v7865
    %v7867 = vcombine.low %v7845, %v7852
    %v7868 = vcombine.low %v7859, %v7866
    %v7870 = vunpack.c.l.s4 1966171168
    %v7871 = vunpack.c.0.s8 %v7870
    %v7872 = vlaneseq
    %v7873 = vshrl.u32 %v7872, 7
    %v7874 = vsub.s32 %v7871, %v7873
    %v7875 = vrot.slane %v7867, %v7874
    %v7877 = vunpack.c.l.s4 1966171168
    %v7878 = vunpack.c.0.s8 %v7877
    %v7879 = vlaneseq
    %v7880 = vshrl.u32 %v7879, 7
    %v7881 = vsub.s32 %v7878, %v7880
    %v7882 = vrot.slane %v7868, %v7881
    %v7883 = vcombine.low %v7875, %v7882
    %v7884 = vcombine.low %v2991, %v2995
    %v7885 = vcombine.low %v2999, %v3003
    %v7886 = vcombine.low %v3007, %v3011
    %v7887 = vcombine.low %v3015, %v3019
    %v7889 = vunpack.c.l.s4 1966171168
    %v7890 = vunpack.c.0.s8 %v7889
    %v7891 = vlaneseq
    %v7892 = vshrl.u32 %v7891, 7
    %v7893 = vsub.s32 %v7890, %v7892
    %v7894 = vrot.slane %v7884, %v7893
    %v7896 = vunpack.c.l.s4 1966171168
    %v7897 = vunpack.c.0.s8 %v7896
    %v7898 = vlaneseq
    %v7899 = vshrl.u32 %v7898, 7
    %v7900 = vsub.s32 %v7897, %v7899
    %v7901 = vrot.slane %v7885, %v7900
    %v7903 = vunpack.c.l.s4 1966171168
    %v7904 = vunpack.c.0.s8 %v7903
    %v7905 = vlaneseq
    %v7906 = vshrl.u32 %v7905, 7
    %v7907 = vsub.s32 %v7904, %v7906
    %v7908 = vrot.slane %v7886, %v7907
    %v7910 = vunpack.c.l.s4 1966171168
    %v7911 = vunpack.c.0.s8 %v7910
    %v7912 = vlaneseq
    %v7913 = vshrl.u32 %v7912, 7
    %v7914 = vsub.s32 %v7911, %v7913
    %v7915 = vrot.slane %v7887, %v7914
    %v7916 = vcombine.low %v7894, %v7901
    %v7917 = vcombine.low %v7908, %v7915
    %v7919 = vunpack.c.l.s4 1966171168
    %v7920 = vunpack.c.0.s8 %v7919
    %v7921 = vlaneseq
    %v7922 = vshrl.u32 %v7921, 7
    %v7923 = vsub.s32 %v7920, %v7922
    %v7924 = vrot.slane %v7916, %v7923
    %v7926 = vunpack.c.l.s4 1966171168
    %v7927 = vunpack.c.0.s8 %v7926
    %v7928 = vlaneseq
    %v7929 = vshrl.u32 %v7928, 7
    %v7930 = vsub.s32 %v7927, %v7929
    %v7931 = vrot.slane %v7917, %v7930
    %v7932 = vcombine.low %v7924, %v7931
    %v7933 = vcombine.low %v3023, %v3027
    %v7934 = vcombine.low %v3031, %v3035
    %v7935 = vcombine.low %v3039, %v3043
    %v7936 = vcombine.low %v3047, %v3051
    %v7938 = vunpack.c.l.s4 1966171168
    %v7939 = vunpack.c.0.s8 %v7938
    %v7940 = vlaneseq
    %v7941 = vshrl.u32 %v7940, 7
    %v7942 = vsub.s32 %v7939, %v7941
    %v7943 = vrot.slane %v7933, %v7942
    %v7945 = vunpack.c.l.s4 1966171168
    %v7946 = vunpack.c.0.s8 %v7945
    %v7947 = vlaneseq
    %v7948 = vshrl.u32 %v7947, 7
    %v7949 = vsub.s32 %v7946, %v7948
    %v7950 = vrot.slane %v7934, %v7949
    %v7952 = vunpack.c.l.s4 1966171168
    %v7953 = vunpack.c.0.s8 %v7952
    %v7954 = vlaneseq
    %v7955 = vshrl.u32 %v7954, 7
    %v7956 = vsub.s32 %v7953, %v7955
    %v7957 = vrot.slane %v7935, %v7956
    %v7959 = vunpack.c.l.s4 1966171168
    %v7960 = vunpack.c.0.s8 %v7959
    %v7961 = vlaneseq
    %v7962 = vshrl.u32 %v7961, 7
    %v7963 = vsub.s32 %v7960, %v7962
    %v7964 = vrot.slane %v7936, %v7963
    %v7965 = vcombine.low %v7943, %v7950
    %v7966 = vcombine.low %v7957, %v7964
    %v7968 = vunpack.c.l.s4 1966171168
    %v7969 = vunpack.c.0.s8 %v7968
    %v7970 = vlaneseq
    %v7971 = vshrl.u32 %v7970, 7
    %v7972 = vsub.s32 %v7969, %v7971
    %v7973 = vrot.slane %v7965, %v7972
    %v7975 = vunpack.c.l.s4 1966171168
    %v7976 = vunpack.c.0.s8 %v7975
    %v7977 = vlaneseq
    %v7978 = vshrl.u32 %v7977, 7
    %v7979 = vsub.s32 %v7976, %v7978
    %v7980 = vrot.slane %v7966, %v7979
    %v7981 = vcombine.low %v7973, %v7980
    %v7982 = vcombine.low %v3055, %v3059
    %v7983 = vcombine.low %v3063, %v3067
    %v7984 = vcombine.low %v3071, %v3075
    %v7985 = vcombine.low %v3079, %v3083
    %v7987 = vunpack.c.l.s4 1966171168
    %v7988 = vunpack.c.0.s8 %v7987
    %v7989 = vlaneseq
    %v7990 = vshrl.u32 %v7989, 7
    %v7991 = vsub.s32 %v7988, %v7990
    %v7992 = vrot.slane %v7982, %v7991
    %v7994 = vunpack.c.l.s4 1966171168
    %v7995 = vunpack.c.0.s8 %v7994
    %v7996 = vlaneseq
    %v7997 = vshrl.u32 %v7996, 7
    %v7998 = vsub.s32 %v7995, %v7997
    %v7999 = vrot.slane %v7983, %v7998
    %v8001 = vunpack.c.l.s4 1966171168
    %v8002 = vunpack.c.0.s8 %v8001
    %v8003 = vlaneseq
    %v8004 = vshrl.u32 %v8003, 7
    %v8005 = vsub.s32 %v8002, %v8004
    %v8006 = vrot.slane %v7984, %v8005
    %v8008 = vunpack.c.l.s4 1966171168
    %v8009 = vunpack.c.0.s8 %v8008
    %v8010 = vlaneseq
    %v8011 = vshrl.u32 %v8010, 7
    %v8012 = vsub.s32 %v8009, %v8011
    %v8013 = vrot.slane %v7985, %v8012
    %v8014 = vcombine.low %v7992, %v7999
    %v8015 = vcombine.low %v8006, %v8013
    %v8017 = vunpack.c.l.s4 1966171168
    %v8018 = vunpack.c.0.s8 %v8017
    %v8019 = vlaneseq
    %v8020 = vshrl.u32 %v8019, 7
    %v8021 = vsub.s32 %v8018, %v8020
    %v8022 = vrot.slane %v8014, %v8021
    %v8024 = vunpack.c.l.s4 1966171168
    %v8025 = vunpack.c.0.s8 %v8024
    %v8026 = vlaneseq
    %v8027 = vshrl.u32 %v8026, 7
    %v8028 = vsub.s32 %v8025, %v8027
    %v8029 = vrot.slane %v8015, %v8028
    %v8030 = vcombine.low %v8022, %v8029
    %v8031 = vcombine.low %v3087, %v3091
    %v8032 = vcombine.low %v3095, %v3099
    %v8033 = vcombine.low %v3103, %v3107
    %v8034 = vcombine.low %v3111, %v3115
    %v8036 = vunpack.c.l.s4 1966171168
    %v8037 = vunpack.c.0.s8 %v8036
    %v8038 = vlaneseq
    %v8039 = vshrl.u32 %v8038, 7
    %v8040 = vsub.s32 %v8037, %v8039
    %v8041 = vrot.slane %v8031, %v8040
    %v8043 = vunpack.c.l.s4 1966171168
    %v8044 = vunpack.c.0.s8 %v8043
    %v8045 = vlaneseq
    %v8046 = vshrl.u32 %v8045, 7
    %v8047 = vsub.s32 %v8044, %v8046
    %v8048 = vrot.slane %v8032, %v8047
    %v8050 = vunpack.c.l.s4 1966171168
    %v8051 = vunpack.c.0.s8 %v8050
    %v8052 = vlaneseq
    %v8053 = vshrl.u32 %v8052, 7
    %v8054 = vsub.s32 %v8051, %v8053
    %v8055 = vrot.slane %v8033, %v8054
    %v8057 = vunpack.c.l.s4 1966171168
    %v8058 = vunpack.c.0.s8 %v8057
    %v8059 = vlaneseq
    %v8060 = vshrl.u32 %v8059, 7
    %v8061 = vsub.s32 %v8058, %v8060
    %v8062 = vrot.slane %v8034, %v8061
    %v8063 = vcombine.low %v8041, %v8048
    %v8064 = vcombine.low %v8055, %v8062
    %v8066 = vunpack.c.l.s4 1966171168
    %v8067 = vunpack.c.0.s8 %v8066
    %v8068 = vlaneseq
    %v8069 = vshrl.u32 %v8068, 7
    %v8070 = vsub.s32 %v8067, %v8069
    %v8071 = vrot.slane %v8063, %v8070
    %v8073 = vunpack.c.l.s4 1966171168
    %v8074 = vunpack.c.0.s8 %v8073
    %v8075 = vlaneseq
    %v8076 = vshrl.u32 %v8075, 7
    %v8077 = vsub.s32 %v8074, %v8076
    %v8078 = vrot.slane %v8064, %v8077
    %v8079 = vcombine.low %v8071, %v8078
    %v8080 = vcombine.low %v3119, %v3123
    %v8081 = vcombine.low %v3127, %v3131
    %v8082 = vcombine.low %v3135, %v3139
    %v8083 = vcombine.low %v3143, %v3147
    %v8085 = vunpack.c.l.s4 1966171168
    %v8086 = vunpack.c.0.s8 %v8085
    %v8087 = vlaneseq
    %v8088 = vshrl.u32 %v8087, 7
    %v8089 = vsub.s32 %v8086, %v8088
    %v8090 = vrot.slane %v8080, %v8089
    %v8092 = vunpack.c.l.s4 1966171168
    %v8093 = vunpack.c.0.s8 %v8092
    %v8094 = vlaneseq
    %v8095 = vshrl.u32 %v8094, 7
    %v8096 = vsub.s32 %v8093, %v8095
    %v8097 = vrot.slane %v8081, %v8096
    %v8099 = vunpack.c.l.s4 1966171168
    %v8100 = vunpack.c.0.s8 %v8099
    %v8101 = vlaneseq
    %v8102 = vshrl.u32 %v8101, 7
    %v8103 = vsub.s32 %v8100, %v8102
    %v8104 = vrot.slane %v8082, %v8103
    %v8106 = vunpack.c.l.s4 1966171168
    %v8107 = vunpack.c.0.s8 %v8106
    %v8108 = vlaneseq
    %v8109 = vshrl.u32 %v8108, 7
    %v8110 = vsub.s32 %v8107, %v8109
    %v8111 = vrot.slane %v8083, %v8110
    %v8112 = vcombine.low %v8090, %v8097
    %v8113 = vcombine.low %v8104, %v8111
    %v8115 = vunpack.c.l.s4 1966171168
    %v8116 = vunpack.c.0.s8 %v8115
    %v8117 = vlaneseq
    %v8118 = vshrl.u32 %v8117, 7
    %v8119 = vsub.s32 %v8116, %v8118
    %v8120 = vrot.slane %v8112, %v8119
    %v8122 = vunpack.c.l.s4 1966171168
    %v8123 = vunpack.c.0.s8 %v8122
    %v8124 = vlaneseq
    %v8125 = vshrl.u32 %v8124, 7
    %v8126 = vsub.s32 %v8123, %v8125
    %v8127 = vrot.slane %v8113, %v8126
    %v8128 = vcombine.low %v8120, %v8127
    %v8129 = vcombine.low %v3151, %v3155
    %v8130 = vcombine.low %v3159, %v3163
    %v8131 = vcombine.low %v3167, %v3171
    %v8132 = vcombine.low %v3175, %v3179
    %v8134 = vunpack.c.l.s4 1966171168
    %v8135 = vunpack.c.0.s8 %v8134
    %v8136 = vlaneseq
    %v8137 = vshrl.u32 %v8136, 7
    %v8138 = vsub.s32 %v8135, %v8137
    %v8139 = vrot.slane %v8129, %v8138
    %v8141 = vunpack.c.l.s4 1966171168
    %v8142 = vunpack.c.0.s8 %v8141
    %v8143 = vlaneseq
    %v8144 = vshrl.u32 %v8143, 7
    %v8145 = vsub.s32 %v8142, %v8144
    %v8146 = vrot.slane %v8130, %v8145
    %v8148 = vunpack.c.l.s4 1966171168
    %v8149 = vunpack.c.0.s8 %v8148
    %v8150 = vlaneseq
    %v8151 = vshrl.u32 %v8150, 7
    %v8152 = vsub.s32 %v8149, %v8151
    %v8153 = vrot.slane %v8131, %v8152
    %v8155 = vunpack.c.l.s4 1966171168
    %v8156 = vunpack.c.0.s8 %v8155
    %v8157 = vlaneseq
    %v8158 = vshrl.u32 %v8157, 7
    %v8159 = vsub.s32 %v8156, %v8158
    %v8160 = vrot.slane %v8132, %v8159
    %v8161 = vcombine.low %v8139, %v8146
    %v8162 = vcombine.low %v8153, %v8160
    %v8164 = vunpack.c.l.s4 1966171168
    %v8165 = vunpack.c.0.s8 %v8164
    %v8166 = vlaneseq
    %v8167 = vshrl.u32 %v8166, 7
    %v8168 = vsub.s32 %v8165, %v8167
    %v8169 = vrot.slane %v8161, %v8168
    %v8171 = vunpack.c.l.s4 1966171168
    %v8172 = vunpack.c.0.s8 %v8171
    %v8173 = vlaneseq
    %v8174 = vshrl.u32 %v8173, 7
    %v8175 = vsub.s32 %v8172, %v8174
    %v8176 = vrot.slane %v8162, %v8175
    %v8177 = vcombine.low %v8169, %v8176
    %v8178 = vcombine.low %v3183, %v3187
    %v8179 = vcombine.low %v3191, %v3195
    %v8180 = vcombine.low %v3199, %v3203
    %v8181 = vcombine.low %v3207, %v3211
    %v8183 = vunpack.c.l.s4 1966171168
    %v8184 = vunpack.c.0.s8 %v8183
    %v8185 = vlaneseq
    %v8186 = vshrl.u32 %v8185, 7
    %v8187 = vsub.s32 %v8184, %v8186
    %v8188 = vrot.slane %v8178, %v8187
    %v8190 = vunpack.c.l.s4 1966171168
    %v8191 = vunpack.c.0.s8 %v8190
    %v8192 = vlaneseq
    %v8193 = vshrl.u32 %v8192, 7
    %v8194 = vsub.s32 %v8191, %v8193
    %v8195 = vrot.slane %v8179, %v8194
    %v8197 = vunpack.c.l.s4 1966171168
    %v8198 = vunpack.c.0.s8 %v8197
    %v8199 = vlaneseq
    %v8200 = vshrl.u32 %v8199, 7
    %v8201 = vsub.s32 %v8198, %v8200
    %v8202 = vrot.slane %v8180, %v8201
    %v8204 = vunpack.c.l.s4 1966171168
    %v8205 = vunpack.c.0.s8 %v8204
    %v8206 = vlaneseq
    %v8207 = vshrl.u32 %v8206, 7
    %v8208 = vsub.s32 %v8205, %v8207
    %v8209 = vrot.slane %v8181, %v8208
    %v8210 = vcombine.low %v8188, %v8195
    %v8211 = vcombine.low %v8202, %v8209
    %v8213 = vunpack.c.l.s4 1966171168
    %v8214 = vunpack.c.0.s8 %v8213
    %v8215 = vlaneseq
    %v8216 = vshrl.u32 %v8215, 7
    %v8217 = vsub.s32 %v8214, %v8216
    %v8218 = vrot.slane %v8210, %v8217
    %v8220 = vunpack.c.l.s4 1966171168
    %v8221 = vunpack.c.0.s8 %v8220
    %v8222 = vlaneseq
    %v8223 = vshrl.u32 %v8222, 7
    %v8224 = vsub.s32 %v8221, %v8223
    %v8225 = vrot.slane %v8211, %v8224
    %v8226 = vcombine.low %v8218, %v8225
    %v8227 = vcombine.low %v3215, %v3219
    %v8228 = vcombine.low %v3223, %v3227
    %v8229 = vcombine.low %v3231, %v3235
    %v8230 = vcombine.low %v3239, %v3243
    %v8232 = vunpack.c.l.s4 1966171168
    %v8233 = vunpack.c.0.s8 %v8232
    %v8234 = vlaneseq
    %v8235 = vshrl.u32 %v8234, 7
    %v8236 = vsub.s32 %v8233, %v8235
    %v8237 = vrot.slane %v8227, %v8236
    %v8239 = vunpack.c.l.s4 1966171168
    %v8240 = vunpack.c.0.s8 %v8239
    %v8241 = vlaneseq
    %v8242 = vshrl.u32 %v8241, 7
    %v8243 = vsub.s32 %v8240, %v8242
    %v8244 = vrot.slane %v8228, %v8243
    %v8246 = vunpack.c.l.s4 1966171168
    %v8247 = vunpack.c.0.s8 %v8246
    %v8248 = vlaneseq
    %v8249 = vshrl.u32 %v8248, 7
    %v8250 = vsub.s32 %v8247, %v8249
    %v8251 = vrot.slane %v8229, %v8250
    %v8253 = vunpack.c.l.s4 1966171168
    %v8254 = vunpack.c.0.s8 %v8253
    %v8255 = vlaneseq
    %v8256 = vshrl.u32 %v8255, 7
    %v8257 = vsub.s32 %v8254, %v8256
    %v8258 = vrot.slane %v8230, %v8257
    %v8259 = vcombine.low %v8237, %v8244
    %v8260 = vcombine.low %v8251, %v8258
    %v8262 = vunpack.c.l.s4 1966171168
    %v8263 = vunpack.c.0.s8 %v8262
    %v8264 = vlaneseq
    %v8265 = vshrl.u32 %v8264, 7
    %v8266 = vsub.s32 %v8263, %v8265
    %v8267 = vrot.slane %v8259, %v8266
    %v8269 = vunpack.c.l.s4 1966171168
    %v8270 = vunpack.c.0.s8 %v8269
    %v8271 = vlaneseq
    %v8272 = vshrl.u32 %v8271, 7
    %v8273 = vsub.s32 %v8270, %v8272
    %v8274 = vrot.slane %v8260, %v8273
    %v8275 = vcombine.low %v8267, %v8274
    %v8276 = vcombine.low %v3247, %v3251
    %v8277 = vcombine.low %v3255, %v3259
    %v8278 = vcombine.low %v3263, %v3267
    %v8279 = vcombine.low %v3271, %v3275
    %v8281 = vunpack.c.l.s4 1966171168
    %v8282 = vunpack.c.0.s8 %v8281
    %v8283 = vlaneseq
    %v8284 = vshrl.u32 %v8283, 7
    %v8285 = vsub.s32 %v8282, %v8284
    %v8286 = vrot.slane %v8276, %v8285
    %v8288 = vunpack.c.l.s4 1966171168
    %v8289 = vunpack.c.0.s8 %v8288
    %v8290 = vlaneseq
    %v8291 = vshrl.u32 %v8290, 7
    %v8292 = vsub.s32 %v8289, %v8291
    %v8293 = vrot.slane %v8277, %v8292
    %v8295 = vunpack.c.l.s4 1966171168
    %v8296 = vunpack.c.0.s8 %v8295
    %v8297 = vlaneseq
    %v8298 = vshrl.u32 %v8297, 7
    %v8299 = vsub.s32 %v8296, %v8298
    %v8300 = vrot.slane %v8278, %v8299
    %v8302 = vunpack.c.l.s4 1966171168
    %v8303 = vunpack.c.0.s8 %v8302
    %v8304 = vlaneseq
    %v8305 = vshrl.u32 %v8304, 7
    %v8306 = vsub.s32 %v8303, %v8305
    %v8307 = vrot.slane %v8279, %v8306
    %v8308 = vcombine.low %v8286, %v8293
    %v8309 = vcombine.low %v8300, %v8307
    %v8311 = vunpack.c.l.s4 1966171168
    %v8312 = vunpack.c.0.s8 %v8311
    %v8313 = vlaneseq
    %v8314 = vshrl.u32 %v8313, 7
    %v8315 = vsub.s32 %v8312, %v8314
    %v8316 = vrot.slane %v8308, %v8315
    %v8318 = vunpack.c.l.s4 1966171168
    %v8319 = vunpack.c.0.s8 %v8318
    %v8320 = vlaneseq
    %v8321 = vshrl.u32 %v8320, 7
    %v8322 = vsub.s32 %v8319, %v8321
    %v8323 = vrot.slane %v8309, %v8322
    %v8324 = vcombine.low %v8316, %v8323
    %v8325 = vcombine.low %v3279, %v3283
    %v8326 = vcombine.low %v3287, %v3291
    %v8327 = vcombine.low %v3295, %v3299
    %v8328 = vcombine.low %v3303, %v3307
    %v8330 = vunpack.c.l.s4 1966171168
    %v8331 = vunpack.c.0.s8 %v8330
    %v8332 = vlaneseq
    %v8333 = vshrl.u32 %v8332, 7
    %v8334 = vsub.s32 %v8331, %v8333
    %v8335 = vrot.slane %v8325, %v8334
    %v8337 = vunpack.c.l.s4 1966171168
    %v8338 = vunpack.c.0.s8 %v8337
    %v8339 = vlaneseq
    %v8340 = vshrl.u32 %v8339, 7
    %v8341 = vsub.s32 %v8338, %v8340
    %v8342 = vrot.slane %v8326, %v8341
    %v8344 = vunpack.c.l.s4 1966171168
    %v8345 = vunpack.c.0.s8 %v8344
    %v8346 = vlaneseq
    %v8347 = vshrl.u32 %v8346, 7
    %v8348 = vsub.s32 %v8345, %v8347
    %v8349 = vrot.slane %v8327, %v8348
    %v8351 = vunpack.c.l.s4 1966171168
    %v8352 = vunpack.c.0.s8 %v8351
    %v8353 = vlaneseq
    %v8354 = vshrl.u32 %v8353, 7
    %v8355 = vsub.s32 %v8352, %v8354
    %v8356 = vrot.slane %v8328, %v8355
    %v8357 = vcombine.low %v8335, %v8342
    %v8358 = vcombine.low %v8349, %v8356
    %v8360 = vunpack.c.l.s4 1966171168
    %v8361 = vunpack.c.0.s8 %v8360
    %v8362 = vlaneseq
    %v8363 = vshrl.u32 %v8362, 7
    %v8364 = vsub.s32 %v8361, %v8363
    %v8365 = vrot.slane %v8357, %v8364
    %v8367 = vunpack.c.l.s4 1966171168
    %v8368 = vunpack.c.0.s8 %v8367
    %v8369 = vlaneseq
    %v8370 = vshrl.u32 %v8369, 7
    %v8371 = vsub.s32 %v8368, %v8370
    %v8372 = vrot.slane %v8358, %v8371
    %v8373 = vcombine.low %v8365, %v8372
    %v8374 = vcombine.low %v3311, %v3315
    %v8375 = vcombine.low %v3319, %v3323
    %v8376 = vcombine.low %v3327, %v3331
    %v8377 = vcombine.low %v3335, %v3339
    %v8379 = vunpack.c.l.s4 1966171168
    %v8380 = vunpack.c.0.s8 %v8379
    %v8381 = vlaneseq
    %v8382 = vshrl.u32 %v8381, 7
    %v8383 = vsub.s32 %v8380, %v8382
    %v8384 = vrot.slane %v8374, %v8383
    %v8386 = vunpack.c.l.s4 1966171168
    %v8387 = vunpack.c.0.s8 %v8386
    %v8388 = vlaneseq
    %v8389 = vshrl.u32 %v8388, 7
    %v8390 = vsub.s32 %v8387, %v8389
    %v8391 = vrot.slane %v8375, %v8390
    %v8393 = vunpack.c.l.s4 1966171168
    %v8394 = vunpack.c.0.s8 %v8393
    %v8395 = vlaneseq
    %v8396 = vshrl.u32 %v8395, 7
    %v8397 = vsub.s32 %v8394, %v8396
    %v8398 = vrot.slane %v8376, %v8397
    %v8400 = vunpack.c.l.s4 1966171168
    %v8401 = vunpack.c.0.s8 %v8400
    %v8402 = vlaneseq
    %v8403 = vshrl.u32 %v8402, 7
    %v8404 = vsub.s32 %v8401, %v8403
    %v8405 = vrot.slane %v8377, %v8404
    %v8406 = vcombine.low %v8384, %v8391
    %v8407 = vcombine.low %v8398, %v8405
    %v8409 = vunpack.c.l.s4 1966171168
    %v8410 = vunpack.c.0.s8 %v8409
    %v8411 = vlaneseq
    %v8412 = vshrl.u32 %v8411, 7
    %v8413 = vsub.s32 %v8410, %v8412
    %v8414 = vrot.slane %v8406, %v8413
    %v8416 = vunpack.c.l.s4 1966171168
    %v8417 = vunpack.c.0.s8 %v8416
    %v8418 = vlaneseq
    %v8419 = vshrl.u32 %v8418, 7
    %v8420 = vsub.s32 %v8417, %v8419
    %v8421 = vrot.slane %v8407, %v8420
    %v8422 = vcombine.low %v8414, %v8421
    %v8423 = vcombine.low %v3343, %v3347
    %v8424 = vcombine.low %v3351, %v3355
    %v8425 = vcombine.low %v3359, %v3363
    %v8426 = vcombine.low %v3367, %v3371
    %v8428 = vunpack.c.l.s4 1966171168
    %v8429 = vunpack.c.0.s8 %v8428
    %v8430 = vlaneseq
    %v8431 = vshrl.u32 %v8430, 7
    %v8432 = vsub.s32 %v8429, %v8431
    %v8433 = vrot.slane %v8423, %v8432
    %v8435 = vunpack.c.l.s4 1966171168
    %v8436 = vunpack.c.0.s8 %v8435
    %v8437 = vlaneseq
    %v8438 = vshrl.u32 %v8437, 7
    %v8439 = vsub.s32 %v8436, %v8438
    %v8440 = vrot.slane %v8424, %v8439
    %v8442 = vunpack.c.l.s4 1966171168
    %v8443 = vunpack.c.0.s8 %v8442
    %v8444 = vlaneseq
    %v8445 = vshrl.u32 %v8444, 7
    %v8446 = vsub.s32 %v8443, %v8445
    %v8447 = vrot.slane %v8425, %v8446
    %v8449 = vunpack.c.l.s4 1966171168
    %v8450 = vunpack.c.0.s8 %v8449
    %v8451 = vlaneseq
    %v8452 = vshrl.u32 %v8451, 7
    %v8453 = vsub.s32 %v8450, %v8452
    %v8454 = vrot.slane %v8426, %v8453
    %v8455 = vcombine.low %v8433, %v8440
    %v8456 = vcombine.low %v8447, %v8454
    %v8458 = vunpack.c.l.s4 1966171168
    %v8459 = vunpack.c.0.s8 %v8458
    %v8460 = vlaneseq
    %v8461 = vshrl.u32 %v8460, 7
    %v8462 = vsub.s32 %v8459, %v8461
    %v8463 = vrot.slane %v8455, %v8462
    %v8465 = vunpack.c.l.s4 1966171168
    %v8466 = vunpack.c.0.s8 %v8465
    %v8467 = vlaneseq
    %v8468 = vshrl.u32 %v8467, 7
    %v8469 = vsub.s32 %v8466, %v8468
    %v8470 = vrot.slane %v8456, %v8469
    %v8471 = vcombine.low %v8463, %v8470
    %v8472 = vcombine.low %v3375, %v3379
    %v8473 = vcombine.low %v3383, %v3387
    %v8474 = vcombine.low %v3391, %v3395
    %v8475 = vcombine.low %v3399, %v3403
    %v8477 = vunpack.c.l.s4 1966171168
    %v8478 = vunpack.c.0.s8 %v8477
    %v8479 = vlaneseq
    %v8480 = vshrl.u32 %v8479, 7
    %v8481 = vsub.s32 %v8478, %v8480
    %v8482 = vrot.slane %v8472, %v8481
    %v8484 = vunpack.c.l.s4 1966171168
    %v8485 = vunpack.c.0.s8 %v8484
    %v8486 = vlaneseq
    %v8487 = vshrl.u32 %v8486, 7
    %v8488 = vsub.s32 %v8485, %v8487
    %v8489 = vrot.slane %v8473, %v8488
    %v8491 = vunpack.c.l.s4 1966171168
    %v8492 = vunpack.c.0.s8 %v8491
    %v8493 = vlaneseq
    %v8494 = vshrl.u32 %v8493, 7
    %v8495 = vsub.s32 %v8492, %v8494
    %v8496 = vrot.slane %v8474, %v8495
    %v8498 = vunpack.c.l.s4 1966171168
    %v8499 = vunpack.c.0.s8 %v8498
    %v8500 = vlaneseq
    %v8501 = vshrl.u32 %v8500, 7
    %v8502 = vsub.s32 %v8499, %v8501
    %v8503 = vrot.slane %v8475, %v8502
    %v8504 = vcombine.low %v8482, %v8489
    %v8505 = vcombine.low %v8496, %v8503
    %v8507 = vunpack.c.l.s4 1966171168
    %v8508 = vunpack.c.0.s8 %v8507
    %v8509 = vlaneseq
    %v8510 = vshrl.u32 %v8509, 7
    %v8511 = vsub.s32 %v8508, %v8510
    %v8512 = vrot.slane %v8504, %v8511
    %v8514 = vunpack.c.l.s4 1966171168
    %v8515 = vunpack.c.0.s8 %v8514
    %v8516 = vlaneseq
    %v8517 = vshrl.u32 %v8516, 7
    %v8518 = vsub.s32 %v8515, %v8517
    %v8519 = vrot.slane %v8505, %v8518
    %v8520 = vcombine.low %v8512, %v8519
    %v8521 = vcombine.low %v3407, %v3411
    %v8522 = vcombine.low %v3415, %v3419
    %v8523 = vcombine.low %v3423, %v3427
    %v8524 = vcombine.low %v3431, %v3435
    %v8526 = vunpack.c.l.s4 1966171168
    %v8527 = vunpack.c.0.s8 %v8526
    %v8528 = vlaneseq
    %v8529 = vshrl.u32 %v8528, 7
    %v8530 = vsub.s32 %v8527, %v8529
    %v8531 = vrot.slane %v8521, %v8530
    %v8533 = vunpack.c.l.s4 1966171168
    %v8534 = vunpack.c.0.s8 %v8533
    %v8535 = vlaneseq
    %v8536 = vshrl.u32 %v8535, 7
    %v8537 = vsub.s32 %v8534, %v8536
    %v8538 = vrot.slane %v8522, %v8537
    %v8540 = vunpack.c.l.s4 1966171168
    %v8541 = vunpack.c.0.s8 %v8540
    %v8542 = vlaneseq
    %v8543 = vshrl.u32 %v8542, 7
    %v8544 = vsub.s32 %v8541, %v8543
    %v8545 = vrot.slane %v8523, %v8544
    %v8547 = vunpack.c.l.s4 1966171168
    %v8548 = vunpack.c.0.s8 %v8547
    %v8549 = vlaneseq
    %v8550 = vshrl.u32 %v8549, 7
    %v8551 = vsub.s32 %v8548, %v8550
    %v8552 = vrot.slane %v8524, %v8551
    %v8553 = vcombine.low %v8531, %v8538
    %v8554 = vcombine.low %v8545, %v8552
    %v8556 = vunpack.c.l.s4 1966171168
    %v8557 = vunpack.c.0.s8 %v8556
    %v8558 = vlaneseq
    %v8559 = vshrl.u32 %v8558, 7
    %v8560 = vsub.s32 %v8557, %v8559
    %v8561 = vrot.slane %v8553, %v8560
    %v8563 = vunpack.c.l.s4 1966171168
    %v8564 = vunpack.c.0.s8 %v8563
    %v8565 = vlaneseq
    %v8566 = vshrl.u32 %v8565, 7
    %v8567 = vsub.s32 %v8564, %v8566
    %v8568 = vrot.slane %v8554, %v8567
    %v8569 = vcombine.low %v8561, %v8568
    %v8570 = vcombine.low %v3439, %v3443
    %v8571 = vcombine.low %v3447, %v3451
    %v8572 = vcombine.low %v3455, %v3459
    %v8573 = vcombine.low %v3463, %v3467
    %v8575 = vunpack.c.l.s4 1966171168
    %v8576 = vunpack.c.0.s8 %v8575
    %v8577 = vlaneseq
    %v8578 = vshrl.u32 %v8577, 7
    %v8579 = vsub.s32 %v8576, %v8578
    %v8580 = vrot.slane %v8570, %v8579
    %v8582 = vunpack.c.l.s4 1966171168
    %v8583 = vunpack.c.0.s8 %v8582
    %v8584 = vlaneseq
    %v8585 = vshrl.u32 %v8584, 7
    %v8586 = vsub.s32 %v8583, %v8585
    %v8587 = vrot.slane %v8571, %v8586
    %v8589 = vunpack.c.l.s4 1966171168
    %v8590 = vunpack.c.0.s8 %v8589
    %v8591 = vlaneseq
    %v8592 = vshrl.u32 %v8591, 7
    %v8593 = vsub.s32 %v8590, %v8592
    %v8594 = vrot.slane %v8572, %v8593
    %v8596 = vunpack.c.l.s4 1966171168
    %v8597 = vunpack.c.0.s8 %v8596
    %v8598 = vlaneseq
    %v8599 = vshrl.u32 %v8598, 7
    %v8600 = vsub.s32 %v8597, %v8599
    %v8601 = vrot.slane %v8573, %v8600
    %v8602 = vcombine.low %v8580, %v8587
    %v8603 = vcombine.low %v8594, %v8601
    %v8605 = vunpack.c.l.s4 1966171168
    %v8606 = vunpack.c.0.s8 %v8605
    %v8607 = vlaneseq
    %v8608 = vshrl.u32 %v8607, 7
    %v8609 = vsub.s32 %v8606, %v8608
    %v8610 = vrot.slane %v8602, %v8609
    %v8612 = vunpack.c.l.s4 1966171168
    %v8613 = vunpack.c.0.s8 %v8612
    %v8614 = vlaneseq
    %v8615 = vshrl.u32 %v8614, 7
    %v8616 = vsub.s32 %v8613, %v8615
    %v8617 = vrot.slane %v8603, %v8616
    %v8618 = vcombine.low %v8610, %v8617
    %v8619 = vcombine.low %v3471, %v3475
    %v8620 = vcombine.low %v3479, %v3483
    %v8621 = vcombine.low %v3487, %v3491
    %v8622 = vcombine.low %v3495, %v3499
    %v8624 = vunpack.c.l.s4 1966171168
    %v8625 = vunpack.c.0.s8 %v8624
    %v8626 = vlaneseq
    %v8627 = vshrl.u32 %v8626, 7
    %v8628 = vsub.s32 %v8625, %v8627
    %v8629 = vrot.slane %v8619, %v8628
    %v8631 = vunpack.c.l.s4 1966171168
    %v8632 = vunpack.c.0.s8 %v8631
    %v8633 = vlaneseq
    %v8634 = vshrl.u32 %v8633, 7
    %v8635 = vsub.s32 %v8632, %v8634
    %v8636 = vrot.slane %v8620, %v8635
    %v8638 = vunpack.c.l.s4 1966171168
    %v8639 = vunpack.c.0.s8 %v8638
    %v8640 = vlaneseq
    %v8641 = vshrl.u32 %v8640, 7
    %v8642 = vsub.s32 %v8639, %v8641
    %v8643 = vrot.slane %v8621, %v8642
    %v8645 = vunpack.c.l.s4 1966171168
    %v8646 = vunpack.c.0.s8 %v8645
    %v8647 = vlaneseq
    %v8648 = vshrl.u32 %v8647, 7
    %v8649 = vsub.s32 %v8646, %v8648
    %v8650 = vrot.slane %v8622, %v8649
    %v8651 = vcombine.low %v8629, %v8636
    %v8652 = vcombine.low %v8643, %v8650
    %v8654 = vunpack.c.l.s4 1966171168
    %v8655 = vunpack.c.0.s8 %v8654
    %v8656 = vlaneseq
    %v8657 = vshrl.u32 %v8656, 7
    %v8658 = vsub.s32 %v8655, %v8657
    %v8659 = vrot.slane %v8651, %v8658
    %v8661 = vunpack.c.l.s4 1966171168
    %v8662 = vunpack.c.0.s8 %v8661
    %v8663 = vlaneseq
    %v8664 = vshrl.u32 %v8663, 7
    %v8665 = vsub.s32 %v8662, %v8664
    %v8666 = vrot.slane %v8652, %v8665
    %v8667 = vcombine.low %v8659, %v8666
    %v8668 = vcombine.low %v3503, %v3507
    %v8669 = vcombine.low %v3511, %v3515
    %v8670 = vcombine.low %v3519, %v3523
    %v8671 = vcombine.low %v3527, %v3531
    %v8673 = vunpack.c.l.s4 1966171168
    %v8674 = vunpack.c.0.s8 %v8673
    %v8675 = vlaneseq
    %v8676 = vshrl.u32 %v8675, 7
    %v8677 = vsub.s32 %v8674, %v8676
    %v8678 = vrot.slane %v8668, %v8677
    %v8680 = vunpack.c.l.s4 1966171168
    %v8681 = vunpack.c.0.s8 %v8680
    %v8682 = vlaneseq
    %v8683 = vshrl.u32 %v8682, 7
    %v8684 = vsub.s32 %v8681, %v8683
    %v8685 = vrot.slane %v8669, %v8684
    %v8687 = vunpack.c.l.s4 1966171168
    %v8688 = vunpack.c.0.s8 %v8687
    %v8689 = vlaneseq
    %v8690 = vshrl.u32 %v8689, 7
    %v8691 = vsub.s32 %v8688, %v8690
    %v8692 = vrot.slane %v8670, %v8691
    %v8694 = vunpack.c.l.s4 1966171168
    %v8695 = vunpack.c.0.s8 %v8694
    %v8696 = vlaneseq
    %v8697 = vshrl.u32 %v8696, 7
    %v8698 = vsub.s32 %v8695, %v8697
    %v8699 = vrot.slane %v8671, %v8698
    %v8700 = vcombine.low %v8678, %v8685
    %v8701 = vcombine.low %v8692, %v8699
    %v8703 = vunpack.c.l.s4 1966171168
    %v8704 = vunpack.c.0.s8 %v8703
    %v8705 = vlaneseq
    %v8706 = vshrl.u32 %v8705, 7
    %v8707 = vsub.s32 %v8704, %v8706
    %v8708 = vrot.slane %v8700, %v8707
    %v8710 = vunpack.c.l.s4 1966171168
    %v8711 = vunpack.c.0.s8 %v8710
    %v8712 = vlaneseq
    %v8713 = vshrl.u32 %v8712, 7
    %v8714 = vsub.s32 %v8711, %v8713
    %v8715 = vrot.slane %v8701, %v8714
    %v8716 = vcombine.low %v8708, %v8715
    %v8717 = vcombine.low %v3535, %v3539
    %v8718 = vcombine.low %v3543, %v3547
    %v8719 = vcombine.low %v3551, %v3555
    %v8720 = vcombine.low %v3559, %v3563
    %v8722 = vunpack.c.l.s4 1966171168
    %v8723 = vunpack.c.0.s8 %v8722
    %v8724 = vlaneseq
    %v8725 = vshrl.u32 %v8724, 7
    %v8726 = vsub.s32 %v8723, %v8725
    %v8727 = vrot.slane %v8717, %v8726
    %v8729 = vunpack.c.l.s4 1966171168
    %v8730 = vunpack.c.0.s8 %v8729
    %v8731 = vlaneseq
    %v8732 = vshrl.u32 %v8731, 7
    %v8733 = vsub.s32 %v8730, %v8732
    %v8734 = vrot.slane %v8718, %v8733
    %v8736 = vunpack.c.l.s4 1966171168
    %v8737 = vunpack.c.0.s8 %v8736
    %v8738 = vlaneseq
    %v8739 = vshrl.u32 %v8738, 7
    %v8740 = vsub.s32 %v8737, %v8739
    %v8741 = vrot.slane %v8719, %v8740
    %v8743 = vunpack.c.l.s4 1966171168
    %v8744 = vunpack.c.0.s8 %v8743
    %v8745 = vlaneseq
    %v8746 = vshrl.u32 %v8745, 7
    %v8747 = vsub.s32 %v8744, %v8746
    %v8748 = vrot.slane %v8720, %v8747
    %v8749 = vcombine.low %v8727, %v8734
    %v8750 = vcombine.low %v8741, %v8748
    %v8752 = vunpack.c.l.s4 1966171168
    %v8753 = vunpack.c.0.s8 %v8752
    %v8754 = vlaneseq
    %v8755 = vshrl.u32 %v8754, 7
    %v8756 = vsub.s32 %v8753, %v8755
    %v8757 = vrot.slane %v8749, %v8756
    %v8759 = vunpack.c.l.s4 1966171168
    %v8760 = vunpack.c.0.s8 %v8759
    %v8761 = vlaneseq
    %v8762 = vshrl.u32 %v8761, 7
    %v8763 = vsub.s32 %v8760, %v8762
    %v8764 = vrot.slane %v8750, %v8763
    %v8765 = vcombine.low %v8757, %v8764
    %v8766 = vcombine.low %v3567, %v3571
    %v8767 = vcombine.low %v3575, %v3579
    %v8768 = vcombine.low %v3583, %v3587
    %v8769 = vcombine.low %v3591, %v3595
    %v8771 = vunpack.c.l.s4 1966171168
    %v8772 = vunpack.c.0.s8 %v8771
    %v8773 = vlaneseq
    %v8774 = vshrl.u32 %v8773, 7
    %v8775 = vsub.s32 %v8772, %v8774
    %v8776 = vrot.slane %v8766, %v8775
    %v8778 = vunpack.c.l.s4 1966171168
    %v8779 = vunpack.c.0.s8 %v8778
    %v8780 = vlaneseq
    %v8781 = vshrl.u32 %v8780, 7
    %v8782 = vsub.s32 %v8779, %v8781
    %v8783 = vrot.slane %v8767, %v8782
    %v8785 = vunpack.c.l.s4 1966171168
    %v8786 = vunpack.c.0.s8 %v8785
    %v8787 = vlaneseq
    %v8788 = vshrl.u32 %v8787, 7
    %v8789 = vsub.s32 %v8786, %v8788
    %v8790 = vrot.slane %v8768, %v8789
    %v8792 = vunpack.c.l.s4 1966171168
    %v8793 = vunpack.c.0.s8 %v8792
    %v8794 = vlaneseq
    %v8795 = vshrl.u32 %v8794, 7
    %v8796 = vsub.s32 %v8793, %v8795
    %v8797 = vrot.slane %v8769, %v8796
    %v8798 = vcombine.low %v8776, %v8783
    %v8799 = vcombine.low %v8790, %v8797
    %v8801 = vunpack.c.l.s4 1966171168
    %v8802 = vunpack.c.0.s8 %v8801
    %v8803 = vlaneseq
    %v8804 = vshrl.u32 %v8803, 7
    %v8805 = vsub.s32 %v8802, %v8804
    %v8806 = vrot.slane %v8798, %v8805
    %v8808 = vunpack.c.l.s4 1966171168
    %v8809 = vunpack.c.0.s8 %v8808
    %v8810 = vlaneseq
    %v8811 = vshrl.u32 %v8810, 7
    %v8812 = vsub.s32 %v8809, %v8811
    %v8813 = vrot.slane %v8799, %v8812
    %v8814 = vcombine.low %v8806, %v8813
    %v8815 = vcombine.low %v3599, %v3603
    %v8816 = vcombine.low %v3607, %v3611
    %v8817 = vcombine.low %v3615, %v3619
    %v8818 = vcombine.low %v3623, %v3627
    %v8820 = vunpack.c.l.s4 1966171168
    %v8821 = vunpack.c.0.s8 %v8820
    %v8822 = vlaneseq
    %v8823 = vshrl.u32 %v8822, 7
    %v8824 = vsub.s32 %v8821, %v8823
    %v8825 = vrot.slane %v8815, %v8824
    %v8827 = vunpack.c.l.s4 1966171168
    %v8828 = vunpack.c.0.s8 %v8827
    %v8829 = vlaneseq
    %v8830 = vshrl.u32 %v8829, 7
    %v8831 = vsub.s32 %v8828, %v8830
    %v8832 = vrot.slane %v8816, %v8831
    %v8834 = vunpack.c.l.s4 1966171168
    %v8835 = vunpack.c.0.s8 %v8834
    %v8836 = vlaneseq
    %v8837 = vshrl.u32 %v8836, 7
    %v8838 = vsub.s32 %v8835, %v8837
    %v8839 = vrot.slane %v8817, %v8838
    %v8841 = vunpack.c.l.s4 1966171168
    %v8842 = vunpack.c.0.s8 %v8841
    %v8843 = vlaneseq
    %v8844 = vshrl.u32 %v8843, 7
    %v8845 = vsub.s32 %v8842, %v8844
    %v8846 = vrot.slane %v8818, %v8845
    %v8847 = vcombine.low %v8825, %v8832
    %v8848 = vcombine.low %v8839, %v8846
    %v8850 = vunpack.c.l.s4 1966171168
    %v8851 = vunpack.c.0.s8 %v8850
    %v8852 = vlaneseq
    %v8853 = vshrl.u32 %v8852, 7
    %v8854 = vsub.s32 %v8851, %v8853
    %v8855 = vrot.slane %v8847, %v8854
    %v8857 = vunpack.c.l.s4 1966171168
    %v8858 = vunpack.c.0.s8 %v8857
    %v8859 = vlaneseq
    %v8860 = vshrl.u32 %v8859, 7
    %v8861 = vsub.s32 %v8858, %v8860
    %v8862 = vrot.slane %v8848, %v8861
    %v8863 = vcombine.low %v8855, %v8862
    %v8864 = vcombine.low %v3631, %v3635
    %v8865 = vcombine.low %v3639, %v3643
    %v8866 = vcombine.low %v3647, %v3651
    %v8867 = vcombine.low %v3655, %v3659
    %v8869 = vunpack.c.l.s4 1966171168
    %v8870 = vunpack.c.0.s8 %v8869
    %v8871 = vlaneseq
    %v8872 = vshrl.u32 %v8871, 7
    %v8873 = vsub.s32 %v8870, %v8872
    %v8874 = vrot.slane %v8864, %v8873
    %v8876 = vunpack.c.l.s4 1966171168
    %v8877 = vunpack.c.0.s8 %v8876
    %v8878 = vlaneseq
    %v8879 = vshrl.u32 %v8878, 7
    %v8880 = vsub.s32 %v8877, %v8879
    %v8881 = vrot.slane %v8865, %v8880
    %v8883 = vunpack.c.l.s4 1966171168
    %v8884 = vunpack.c.0.s8 %v8883
    %v8885 = vlaneseq
    %v8886 = vshrl.u32 %v8885, 7
    %v8887 = vsub.s32 %v8884, %v8886
    %v8888 = vrot.slane %v8866, %v8887
    %v8890 = vunpack.c.l.s4 1966171168
    %v8891 = vunpack.c.0.s8 %v8890
    %v8892 = vlaneseq
    %v8893 = vshrl.u32 %v8892, 7
    %v8894 = vsub.s32 %v8891, %v8893
    %v8895 = vrot.slane %v8867, %v8894
    %v8896 = vcombine.low %v8874, %v8881
    %v8897 = vcombine.low %v8888, %v8895
    %v8899 = vunpack.c.l.s4 1966171168
    %v8900 = vunpack.c.0.s8 %v8899
    %v8901 = vlaneseq
    %v8902 = vshrl.u32 %v8901, 7
    %v8903 = vsub.s32 %v8900, %v8902
    %v8904 = vrot.slane %v8896, %v8903
    %v8906 = vunpack.c.l.s4 1966171168
    %v8907 = vunpack.c.0.s8 %v8906
    %v8908 = vlaneseq
    %v8909 = vshrl.u32 %v8908, 7
    %v8910 = vsub.s32 %v8907, %v8909
    %v8911 = vrot.slane %v8897, %v8910
    %v8912 = vcombine.low %v8904, %v8911
    %v8913 = vcombine.low %v3663, %v3667
    %v8914 = vcombine.low %v3671, %v3675
    %v8915 = vcombine.low %v3679, %v3683
    %v8916 = vcombine.low %v3687, %v3691
    %v8918 = vunpack.c.l.s4 1966171168
    %v8919 = vunpack.c.0.s8 %v8918
    %v8920 = vlaneseq
    %v8921 = vshrl.u32 %v8920, 7
    %v8922 = vsub.s32 %v8919, %v8921
    %v8923 = vrot.slane %v8913, %v8922
    %v8925 = vunpack.c.l.s4 1966171168
    %v8926 = vunpack.c.0.s8 %v8925
    %v8927 = vlaneseq
    %v8928 = vshrl.u32 %v8927, 7
    %v8929 = vsub.s32 %v8926, %v8928
    %v8930 = vrot.slane %v8914, %v8929
    %v8932 = vunpack.c.l.s4 1966171168
    %v8933 = vunpack.c.0.s8 %v8932
    %v8934 = vlaneseq
    %v8935 = vshrl.u32 %v8934, 7
    %v8936 = vsub.s32 %v8933, %v8935
    %v8937 = vrot.slane %v8915, %v8936
    %v8939 = vunpack.c.l.s4 1966171168
    %v8940 = vunpack.c.0.s8 %v8939
    %v8941 = vlaneseq
    %v8942 = vshrl.u32 %v8941, 7
    %v8943 = vsub.s32 %v8940, %v8942
    %v8944 = vrot.slane %v8916, %v8943
    %v8945 = vcombine.low %v8923, %v8930
    %v8946 = vcombine.low %v8937, %v8944
    %v8948 = vunpack.c.l.s4 1966171168
    %v8949 = vunpack.c.0.s8 %v8948
    %v8950 = vlaneseq
    %v8951 = vshrl.u32 %v8950, 7
    %v8952 = vsub.s32 %v8949, %v8951
    %v8953 = vrot.slane %v8945, %v8952
    %v8955 = vunpack.c.l.s4 1966171168
    %v8956 = vunpack.c.0.s8 %v8955
    %v8957 = vlaneseq
    %v8958 = vshrl.u32 %v8957, 7
    %v8959 = vsub.s32 %v8956, %v8958
    %v8960 = vrot.slane %v8946, %v8959
    %v8961 = vcombine.low %v8953, %v8960
    %v8962 = vcombine.low %v3695, %v3699
    %v8963 = vcombine.low %v3703, %v3707
    %v8964 = vcombine.low %v3711, %v3715
    %v8965 = vcombine.low %v3719, %v3723
    %v8967 = vunpack.c.l.s4 1966171168
    %v8968 = vunpack.c.0.s8 %v8967
    %v8969 = vlaneseq
    %v8970 = vshrl.u32 %v8969, 7
    %v8971 = vsub.s32 %v8968, %v8970
    %v8972 = vrot.slane %v8962, %v8971
    %v8974 = vunpack.c.l.s4 1966171168
    %v8975 = vunpack.c.0.s8 %v8974
    %v8976 = vlaneseq
    %v8977 = vshrl.u32 %v8976, 7
    %v8978 = vsub.s32 %v8975, %v8977
    %v8979 = vrot.slane %v8963, %v8978
    %v8981 = vunpack.c.l.s4 1966171168
    %v8982 = vunpack.c.0.s8 %v8981
    %v8983 = vlaneseq
    %v8984 = vshrl.u32 %v8983, 7
    %v8985 = vsub.s32 %v8982, %v8984
    %v8986 = vrot.slane %v8964, %v8985
    %v8988 = vunpack.c.l.s4 1966171168
    %v8989 = vunpack.c.0.s8 %v8988
    %v8990 = vlaneseq
    %v8991 = vshrl.u32 %v8990, 7
    %v8992 = vsub.s32 %v8989, %v8991
    %v8993 = vrot.slane %v8965, %v8992
    %v8994 = vcombine.low %v8972, %v8979
    %v8995 = vcombine.low %v8986, %v8993
    %v8997 = vunpack.c.l.s4 1966171168
    %v8998 = vunpack.c.0.s8 %v8997
    %v8999 = vlaneseq
    %v9000 = vshrl.u32 %v8999, 7
    %v9001 = vsub.s32 %v8998, %v9000
    %v9002 = vrot.slane %v8994, %v9001
    %v9004 = vunpack.c.l.s4 1966171168
    %v9005 = vunpack.c.0.s8 %v9004
    %v9006 = vlaneseq
    %v9007 = vshrl.u32 %v9006, 7
    %v9008 = vsub.s32 %v9005, %v9007
    %v9009 = vrot.slane %v8995, %v9008
    %v9010 = vcombine.low %v9002, %v9009
    %v9011 = vcombine.low %v3727, %v3731
    %v9012 = vcombine.low %v3735, %v3739
    %v9013 = vcombine.low %v3743, %v3747
    %v9014 = vcombine.low %v3751, %v3755
    %v9016 = vunpack.c.l.s4 1966171168
    %v9017 = vunpack.c.0.s8 %v9016
    %v9018 = vlaneseq
    %v9019 = vshrl.u32 %v9018, 7
    %v9020 = vsub.s32 %v9017, %v9019
    %v9021 = vrot.slane %v9011, %v9020
    %v9023 = vunpack.c.l.s4 1966171168
    %v9024 = vunpack.c.0.s8 %v9023
    %v9025 = vlaneseq
    %v9026 = vshrl.u32 %v9025, 7
    %v9027 = vsub.s32 %v9024, %v9026
    %v9028 = vrot.slane %v9012, %v9027
    %v9030 = vunpack.c.l.s4 1966171168
    %v9031 = vunpack.c.0.s8 %v9030
    %v9032 = vlaneseq
    %v9033 = vshrl.u32 %v9032, 7
    %v9034 = vsub.s32 %v9031, %v9033
    %v9035 = vrot.slane %v9013, %v9034
    %v9037 = vunpack.c.l.s4 1966171168
    %v9038 = vunpack.c.0.s8 %v9037
    %v9039 = vlaneseq
    %v9040 = vshrl.u32 %v9039, 7
    %v9041 = vsub.s32 %v9038, %v9040
    %v9042 = vrot.slane %v9014, %v9041
    %v9043 = vcombine.low %v9021, %v9028
    %v9044 = vcombine.low %v9035, %v9042
    %v9046 = vunpack.c.l.s4 1966171168
    %v9047 = vunpack.c.0.s8 %v9046
    %v9048 = vlaneseq
    %v9049 = vshrl.u32 %v9048, 7
    %v9050 = vsub.s32 %v9047, %v9049
    %v9051 = vrot.slane %v9043, %v9050
    %v9053 = vunpack.c.l.s4 1966171168
    %v9054 = vunpack.c.0.s8 %v9053
    %v9055 = vlaneseq
    %v9056 = vshrl.u32 %v9055, 7
    %v9057 = vsub.s32 %v9054, %v9056
    %v9058 = vrot.slane %v9044, %v9057
    %v9059 = vcombine.low %v9051, %v9058
    %v9060 = vcombine.low %v3759, %v3763
    %v9061 = vcombine.low %v3767, %v3771
    %v9062 = vcombine.low %v3775, %v3779
    %v9063 = vcombine.low %v3783, %v3787
    %v9065 = vunpack.c.l.s4 1966171168
    %v9066 = vunpack.c.0.s8 %v9065
    %v9067 = vlaneseq
    %v9068 = vshrl.u32 %v9067, 7
    %v9069 = vsub.s32 %v9066, %v9068
    %v9070 = vrot.slane %v9060, %v9069
    %v9072 = vunpack.c.l.s4 1966171168
    %v9073 = vunpack.c.0.s8 %v9072
    %v9074 = vlaneseq
    %v9075 = vshrl.u32 %v9074, 7
    %v9076 = vsub.s32 %v9073, %v9075
    %v9077 = vrot.slane %v9061, %v9076
    %v9079 = vunpack.c.l.s4 1966171168
    %v9080 = vunpack.c.0.s8 %v9079
    %v9081 = vlaneseq
    %v9082 = vshrl.u32 %v9081, 7
    %v9083 = vsub.s32 %v9080, %v9082
    %v9084 = vrot.slane %v9062, %v9083
    %v9086 = vunpack.c.l.s4 1966171168
    %v9087 = vunpack.c.0.s8 %v9086
    %v9088 = vlaneseq
    %v9089 = vshrl.u32 %v9088, 7
    %v9090 = vsub.s32 %v9087, %v9089
    %v9091 = vrot.slane %v9063, %v9090
    %v9092 = vcombine.low %v9070, %v9077
    %v9093 = vcombine.low %v9084, %v9091
    %v9095 = vunpack.c.l.s4 1966171168
    %v9096 = vunpack.c.0.s8 %v9095
    %v9097 = vlaneseq
    %v9098 = vshrl.u32 %v9097, 7
    %v9099 = vsub.s32 %v9096, %v9098
    %v9100 = vrot.slane %v9092, %v9099
    %v9102 = vunpack.c.l.s4 1966171168
    %v9103 = vunpack.c.0.s8 %v9102
    %v9104 = vlaneseq
    %v9105 = vshrl.u32 %v9104, 7
    %v9106 = vsub.s32 %v9103, %v9105
    %v9107 = vrot.slane %v9093, %v9106
    %v9108 = vcombine.low %v9100, %v9107
    %v9109 = vcombine.low %v3791, %v3795
    %v9110 = vcombine.low %v3799, %v3803
    %v9111 = vcombine.low %v3807, %v3811
    %v9112 = vcombine.low %v3815, %v3819
    %v9114 = vunpack.c.l.s4 1966171168
    %v9115 = vunpack.c.0.s8 %v9114
    %v9116 = vlaneseq
    %v9117 = vshrl.u32 %v9116, 7
    %v9118 = vsub.s32 %v9115, %v9117
    %v9119 = vrot.slane %v9109, %v9118
    %v9121 = vunpack.c.l.s4 1966171168
    %v9122 = vunpack.c.0.s8 %v9121
    %v9123 = vlaneseq
    %v9124 = vshrl.u32 %v9123, 7
    %v9125 = vsub.s32 %v9122, %v9124
    %v9126 = vrot.slane %v9110, %v9125
    %v9128 = vunpack.c.l.s4 1966171168
    %v9129 = vunpack.c.0.s8 %v9128
    %v9130 = vlaneseq
    %v9131 = vshrl.u32 %v9130, 7
    %v9132 = vsub.s32 %v9129, %v9131
    %v9133 = vrot.slane %v9111, %v9132
    %v9135 = vunpack.c.l.s4 1966171168
    %v9136 = vunpack.c.0.s8 %v9135
    %v9137 = vlaneseq
    %v9138 = vshrl.u32 %v9137, 7
    %v9139 = vsub.s32 %v9136, %v9138
    %v9140 = vrot.slane %v9112, %v9139
    %v9141 = vcombine.low %v9119, %v9126
    %v9142 = vcombine.low %v9133, %v9140
    %v9144 = vunpack.c.l.s4 1966171168
    %v9145 = vunpack.c.0.s8 %v9144
    %v9146 = vlaneseq
    %v9147 = vshrl.u32 %v9146, 7
    %v9148 = vsub.s32 %v9145, %v9147
    %v9149 = vrot.slane %v9141, %v9148
    %v9151 = vunpack.c.l.s4 1966171168
    %v9152 = vunpack.c.0.s8 %v9151
    %v9153 = vlaneseq
    %v9154 = vshrl.u32 %v9153, 7
    %v9155 = vsub.s32 %v9152, %v9154
    %v9156 = vrot.slane %v9142, %v9155
    %v9157 = vcombine.low %v9149, %v9156
    %v9158 = vcombine.low %v3823, %v3827
    %v9159 = vcombine.low %v3831, %v3835
    %v9160 = vcombine.low %v3839, %v3843
    %v9161 = vcombine.low %v3847, %v3851
    %v9163 = vunpack.c.l.s4 1966171168
    %v9164 = vunpack.c.0.s8 %v9163
    %v9165 = vlaneseq
    %v9166 = vshrl.u32 %v9165, 7
    %v9167 = vsub.s32 %v9164, %v9166
    %v9168 = vrot.slane %v9158, %v9167
    %v9170 = vunpack.c.l.s4 1966171168
    %v9171 = vunpack.c.0.s8 %v9170
    %v9172 = vlaneseq
    %v9173 = vshrl.u32 %v9172, 7
    %v9174 = vsub.s32 %v9171, %v9173
    %v9175 = vrot.slane %v9159, %v9174
    %v9177 = vunpack.c.l.s4 1966171168
    %v9178 = vunpack.c.0.s8 %v9177
    %v9179 = vlaneseq
    %v9180 = vshrl.u32 %v9179, 7
    %v9181 = vsub.s32 %v9178, %v9180
    %v9182 = vrot.slane %v9160, %v9181
    %v9184 = vunpack.c.l.s4 1966171168
    %v9185 = vunpack.c.0.s8 %v9184
    %v9186 = vlaneseq
    %v9187 = vshrl.u32 %v9186, 7
    %v9188 = vsub.s32 %v9185, %v9187
    %v9189 = vrot.slane %v9161, %v9188
    %v9190 = vcombine.low %v9168, %v9175
    %v9191 = vcombine.low %v9182, %v9189
    %v9193 = vunpack.c.l.s4 1966171168
    %v9194 = vunpack.c.0.s8 %v9193
    %v9195 = vlaneseq
    %v9196 = vshrl.u32 %v9195, 7
    %v9197 = vsub.s32 %v9194, %v9196
    %v9198 = vrot.slane %v9190, %v9197
    %v9200 = vunpack.c.l.s4 1966171168
    %v9201 = vunpack.c.0.s8 %v9200
    %v9202 = vlaneseq
    %v9203 = vshrl.u32 %v9202, 7
    %v9204 = vsub.s32 %v9201, %v9203
    %v9205 = vrot.slane %v9191, %v9204
    %v9206 = vcombine.low %v9198, %v9205
    %v9207 = vcombine.low %v3855, %v3859
    %v9208 = vcombine.low %v3863, %v3867
    %v9209 = vcombine.low %v3871, %v3875
    %v9210 = vcombine.low %v3879, %v3883
    %v9212 = vunpack.c.l.s4 1966171168
    %v9213 = vunpack.c.0.s8 %v9212
    %v9214 = vlaneseq
    %v9215 = vshrl.u32 %v9214, 7
    %v9216 = vsub.s32 %v9213, %v9215
    %v9217 = vrot.slane %v9207, %v9216
    %v9219 = vunpack.c.l.s4 1966171168
    %v9220 = vunpack.c.0.s8 %v9219
    %v9221 = vlaneseq
    %v9222 = vshrl.u32 %v9221, 7
    %v9223 = vsub.s32 %v9220, %v9222
    %v9224 = vrot.slane %v9208, %v9223
    %v9226 = vunpack.c.l.s4 1966171168
    %v9227 = vunpack.c.0.s8 %v9226
    %v9228 = vlaneseq
    %v9229 = vshrl.u32 %v9228, 7
    %v9230 = vsub.s32 %v9227, %v9229
    %v9231 = vrot.slane %v9209, %v9230
    %v9233 = vunpack.c.l.s4 1966171168
    %v9234 = vunpack.c.0.s8 %v9233
    %v9235 = vlaneseq
    %v9236 = vshrl.u32 %v9235, 7
    %v9237 = vsub.s32 %v9234, %v9236
    %v9238 = vrot.slane %v9210, %v9237
    %v9239 = vcombine.low %v9217, %v9224
    %v9240 = vcombine.low %v9231, %v9238
    %v9242 = vunpack.c.l.s4 1966171168
    %v9243 = vunpack.c.0.s8 %v9242
    %v9244 = vlaneseq
    %v9245 = vshrl.u32 %v9244, 7
    %v9246 = vsub.s32 %v9243, %v9245
    %v9247 = vrot.slane %v9239, %v9246
    %v9249 = vunpack.c.l.s4 1966171168
    %v9250 = vunpack.c.0.s8 %v9249
    %v9251 = vlaneseq
    %v9252 = vshrl.u32 %v9251, 7
    %v9253 = vsub.s32 %v9250, %v9252
    %v9254 = vrot.slane %v9240, %v9253
    %v9255 = vcombine.low %v9247, %v9254
    %v9256 = vcombine.low %v3887, %v3891
    %v9257 = vcombine.low %v3895, %v3899
    %v9258 = vcombine.low %v3903, %v3907
    %v9259 = vcombine.low %v3911, %v3915
    %v9261 = vunpack.c.l.s4 1966171168
    %v9262 = vunpack.c.0.s8 %v9261
    %v9263 = vlaneseq
    %v9264 = vshrl.u32 %v9263, 7
    %v9265 = vsub.s32 %v9262, %v9264
    %v9266 = vrot.slane %v9256, %v9265
    %v9268 = vunpack.c.l.s4 1966171168
    %v9269 = vunpack.c.0.s8 %v9268
    %v9270 = vlaneseq
    %v9271 = vshrl.u32 %v9270, 7
    %v9272 = vsub.s32 %v9269, %v9271
    %v9273 = vrot.slane %v9257, %v9272
    %v9275 = vunpack.c.l.s4 1966171168
    %v9276 = vunpack.c.0.s8 %v9275
    %v9277 = vlaneseq
    %v9278 = vshrl.u32 %v9277, 7
    %v9279 = vsub.s32 %v9276, %v9278
    %v9280 = vrot.slane %v9258, %v9279
    %v9282 = vunpack.c.l.s4 1966171168
    %v9283 = vunpack.c.0.s8 %v9282
    %v9284 = vlaneseq
    %v9285 = vshrl.u32 %v9284, 7
    %v9286 = vsub.s32 %v9283, %v9285
    %v9287 = vrot.slane %v9259, %v9286
    %v9288 = vcombine.low %v9266, %v9273
    %v9289 = vcombine.low %v9280, %v9287
    %v9291 = vunpack.c.l.s4 1966171168
    %v9292 = vunpack.c.0.s8 %v9291
    %v9293 = vlaneseq
    %v9294 = vshrl.u32 %v9293, 7
    %v9295 = vsub.s32 %v9292, %v9294
    %v9296 = vrot.slane %v9288, %v9295
    %v9298 = vunpack.c.l.s4 1966171168
    %v9299 = vunpack.c.0.s8 %v9298
    %v9300 = vlaneseq
    %v9301 = vshrl.u32 %v9300, 7
    %v9302 = vsub.s32 %v9299, %v9301
    %v9303 = vrot.slane %v9289, %v9302
    %v9304 = vcombine.low %v9296, %v9303
    %v9305 = vcombine.low %v3919, %v3923
    %v9306 = vcombine.low %v3927, %v3931
    %v9307 = vcombine.low %v3935, %v3939
    %v9308 = vcombine.low %v3943, %v3947
    %v9310 = vunpack.c.l.s4 1966171168
    %v9311 = vunpack.c.0.s8 %v9310
    %v9312 = vlaneseq
    %v9313 = vshrl.u32 %v9312, 7
    %v9314 = vsub.s32 %v9311, %v9313
    %v9315 = vrot.slane %v9305, %v9314
    %v9317 = vunpack.c.l.s4 1966171168
    %v9318 = vunpack.c.0.s8 %v9317
    %v9319 = vlaneseq
    %v9320 = vshrl.u32 %v9319, 7
    %v9321 = vsub.s32 %v9318, %v9320
    %v9322 = vrot.slane %v9306, %v9321
    %v9324 = vunpack.c.l.s4 1966171168
    %v9325 = vunpack.c.0.s8 %v9324
    %v9326 = vlaneseq
    %v9327 = vshrl.u32 %v9326, 7
    %v9328 = vsub.s32 %v9325, %v9327
    %v9329 = vrot.slane %v9307, %v9328
    %v9331 = vunpack.c.l.s4 1966171168
    %v9332 = vunpack.c.0.s8 %v9331
    %v9333 = vlaneseq
    %v9334 = vshrl.u32 %v9333, 7
    %v9335 = vsub.s32 %v9332, %v9334
    %v9336 = vrot.slane %v9308, %v9335
    %v9337 = vcombine.low %v9315, %v9322
    %v9338 = vcombine.low %v9329, %v9336
    %v9340 = vunpack.c.l.s4 1966171168
    %v9341 = vunpack.c.0.s8 %v9340
    %v9342 = vlaneseq
    %v9343 = vshrl.u32 %v9342, 7
    %v9344 = vsub.s32 %v9341, %v9343
    %v9345 = vrot.slane %v9337, %v9344
    %v9347 = vunpack.c.l.s4 1966171168
    %v9348 = vunpack.c.0.s8 %v9347
    %v9349 = vlaneseq
    %v9350 = vshrl.u32 %v9349, 7
    %v9351 = vsub.s32 %v9348, %v9350
    %v9352 = vrot.slane %v9338, %v9351
    %v9353 = vcombine.low %v9345, %v9352
    %v9354 = vcombine.low %v3951, %v3955
    %v9355 = vcombine.low %v3959, %v3963
    %v9356 = vcombine.low %v3967, %v3971
    %v9357 = vcombine.low %v3975, %v3979
    %v9359 = vunpack.c.l.s4 1966171168
    %v9360 = vunpack.c.0.s8 %v9359
    %v9361 = vlaneseq
    %v9362 = vshrl.u32 %v9361, 7
    %v9363 = vsub.s32 %v9360, %v9362
    %v9364 = vrot.slane %v9354, %v9363
    %v9366 = vunpack.c.l.s4 1966171168
    %v9367 = vunpack.c.0.s8 %v9366
    %v9368 = vlaneseq
    %v9369 = vshrl.u32 %v9368, 7
    %v9370 = vsub.s32 %v9367, %v9369
    %v9371 = vrot.slane %v9355, %v9370
    %v9373 = vunpack.c.l.s4 1966171168
    %v9374 = vunpack.c.0.s8 %v9373
    %v9375 = vlaneseq
    %v9376 = vshrl.u32 %v9375, 7
    %v9377 = vsub.s32 %v9374, %v9376
    %v9378 = vrot.slane %v9356, %v9377
    %v9380 = vunpack.c.l.s4 1966171168
    %v9381 = vunpack.c.0.s8 %v9380
    %v9382 = vlaneseq
    %v9383 = vshrl.u32 %v9382, 7
    %v9384 = vsub.s32 %v9381, %v9383
    %v9385 = vrot.slane %v9357, %v9384
    %v9386 = vcombine.low %v9364, %v9371
    %v9387 = vcombine.low %v9378, %v9385
    %v9389 = vunpack.c.l.s4 1966171168
    %v9390 = vunpack.c.0.s8 %v9389
    %v9391 = vlaneseq
    %v9392 = vshrl.u32 %v9391, 7
    %v9393 = vsub.s32 %v9390, %v9392
    %v9394 = vrot.slane %v9386, %v9393
    %v9396 = vunpack.c.l.s4 1966171168
    %v9397 = vunpack.c.0.s8 %v9396
    %v9398 = vlaneseq
    %v9399 = vshrl.u32 %v9398, 7
    %v9400 = vsub.s32 %v9397, %v9399
    %v9401 = vrot.slane %v9387, %v9400
    %v9402 = vcombine.low %v9394, %v9401
    %v9403 = vcombine.low %v3983, %v3987
    %v9404 = vcombine.low %v3991, %v3995
    %v9405 = vcombine.low %v3999, %v4003
    %v9406 = vcombine.low %v4007, %v4011
    %v9408 = vunpack.c.l.s4 1966171168
    %v9409 = vunpack.c.0.s8 %v9408
    %v9410 = vlaneseq
    %v9411 = vshrl.u32 %v9410, 7
    %v9412 = vsub.s32 %v9409, %v9411
    %v9413 = vrot.slane %v9403, %v9412
    %v9415 = vunpack.c.l.s4 1966171168
    %v9416 = vunpack.c.0.s8 %v9415
    %v9417 = vlaneseq
    %v9418 = vshrl.u32 %v9417, 7
    %v9419 = vsub.s32 %v9416, %v9418
    %v9420 = vrot.slane %v9404, %v9419
    %v9422 = vunpack.c.l.s4 1966171168
    %v9423 = vunpack.c.0.s8 %v9422
    %v9424 = vlaneseq
    %v9425 = vshrl.u32 %v9424, 7
    %v9426 = vsub.s32 %v9423, %v9425
    %v9427 = vrot.slane %v9405, %v9426
    %v9429 = vunpack.c.l.s4 1966171168
    %v9430 = vunpack.c.0.s8 %v9429
    %v9431 = vlaneseq
    %v9432 = vshrl.u32 %v9431, 7
    %v9433 = vsub.s32 %v9430, %v9432
    %v9434 = vrot.slane %v9406, %v9433
    %v9435 = vcombine.low %v9413, %v9420
    %v9436 = vcombine.low %v9427, %v9434
    %v9438 = vunpack.c.l.s4 1966171168
    %v9439 = vunpack.c.0.s8 %v9438
    %v9440 = vlaneseq
    %v9441 = vshrl.u32 %v9440, 7
    %v9442 = vsub.s32 %v9439, %v9441
    %v9443 = vrot.slane %v9435, %v9442
    %v9445 = vunpack.c.l.s4 1966171168
    %v9446 = vunpack.c.0.s8 %v9445
    %v9447 = vlaneseq
    %v9448 = vshrl.u32 %v9447, 7
    %v9449 = vsub.s32 %v9446, %v9448
    %v9450 = vrot.slane %v9436, %v9449
    %v9451 = vcombine.low %v9443, %v9450
    %v9452 = vcombine.low %v4015, %v4019
    %v9453 = vcombine.low %v4023, %v4027
    %v9454 = vcombine.low %v4031, %v4035
    %v9455 = vcombine.low %v4039, %v4043
    %v9457 = vunpack.c.l.s4 1966171168
    %v9458 = vunpack.c.0.s8 %v9457
    %v9459 = vlaneseq
    %v9460 = vshrl.u32 %v9459, 7
    %v9461 = vsub.s32 %v9458, %v9460
    %v9462 = vrot.slane %v9452, %v9461
    %v9464 = vunpack.c.l.s4 1966171168
    %v9465 = vunpack.c.0.s8 %v9464
    %v9466 = vlaneseq
    %v9467 = vshrl.u32 %v9466, 7
    %v9468 = vsub.s32 %v9465, %v9467
    %v9469 = vrot.slane %v9453, %v9468
    %v9471 = vunpack.c.l.s4 1966171168
    %v9472 = vunpack.c.0.s8 %v9471
    %v9473 = vlaneseq
    %v9474 = vshrl.u32 %v9473, 7
    %v9475 = vsub.s32 %v9472, %v9474
    %v9476 = vrot.slane %v9454, %v9475
    %v9478 = vunpack.c.l.s4 1966171168
    %v9479 = vunpack.c.0.s8 %v9478
    %v9480 = vlaneseq
    %v9481 = vshrl.u32 %v9480, 7
    %v9482 = vsub.s32 %v9479, %v9481
    %v9483 = vrot.slane %v9455, %v9482
    %v9484 = vcombine.low %v9462, %v9469
    %v9485 = vcombine.low %v9476, %v9483
    %v9487 = vunpack.c.l.s4 1966171168
    %v9488 = vunpack.c.0.s8 %v9487
    %v9489 = vlaneseq
    %v9490 = vshrl.u32 %v9489, 7
    %v9491 = vsub.s32 %v9488, %v9490
    %v9492 = vrot.slane %v9484, %v9491
    %v9494 = vunpack.c.l.s4 1966171168
    %v9495 = vunpack.c.0.s8 %v9494
    %v9496 = vlaneseq
    %v9497 = vshrl.u32 %v9496, 7
    %v9498 = vsub.s32 %v9495, %v9497
    %v9499 = vrot.slane %v9485, %v9498
    %v9500 = vcombine.low %v9492, %v9499
    %v9501 = vcombine.low %v4047, %v4051
    %v9502 = vcombine.low %v4055, %v4059
    %v9503 = vcombine.low %v4063, %v4067
    %v9504 = vcombine.low %v4071, %v4075
    %v9506 = vunpack.c.l.s4 1966171168
    %v9507 = vunpack.c.0.s8 %v9506
    %v9508 = vlaneseq
    %v9509 = vshrl.u32 %v9508, 7
    %v9510 = vsub.s32 %v9507, %v9509
    %v9511 = vrot.slane %v9501, %v9510
    %v9513 = vunpack.c.l.s4 1966171168
    %v9514 = vunpack.c.0.s8 %v9513
    %v9515 = vlaneseq
    %v9516 = vshrl.u32 %v9515, 7
    %v9517 = vsub.s32 %v9514, %v9516
    %v9518 = vrot.slane %v9502, %v9517
    %v9520 = vunpack.c.l.s4 1966171168
    %v9521 = vunpack.c.0.s8 %v9520
    %v9522 = vlaneseq
    %v9523 = vshrl.u32 %v9522, 7
    %v9524 = vsub.s32 %v9521, %v9523
    %v9525 = vrot.slane %v9503, %v9524
    %v9527 = vunpack.c.l.s4 1966171168
    %v9528 = vunpack.c.0.s8 %v9527
    %v9529 = vlaneseq
    %v9530 = vshrl.u32 %v9529, 7
    %v9531 = vsub.s32 %v9528, %v9530
    %v9532 = vrot.slane %v9504, %v9531
    %v9533 = vcombine.low %v9511, %v9518
    %v9534 = vcombine.low %v9525, %v9532
    %v9536 = vunpack.c.l.s4 1966171168
    %v9537 = vunpack.c.0.s8 %v9536
    %v9538 = vlaneseq
    %v9539 = vshrl.u32 %v9538, 7
    %v9540 = vsub.s32 %v9537, %v9539
    %v9541 = vrot.slane %v9533, %v9540
    %v9543 = vunpack.c.l.s4 1966171168
    %v9544 = vunpack.c.0.s8 %v9543
    %v9545 = vlaneseq
    %v9546 = vshrl.u32 %v9545, 7
    %v9547 = vsub.s32 %v9544, %v9546
    %v9548 = vrot.slane %v9534, %v9547
    %v9549 = vcombine.low %v9541, %v9548
    %v9550 = vcombine.low %v4079, %v4083
    %v9551 = vcombine.low %v4087, %v4091
    %v9552 = vcombine.low %v4095, %v4099
    %v9553 = vcombine.low %v4103, %v4107
    %v9555 = vunpack.c.l.s4 1966171168
    %v9556 = vunpack.c.0.s8 %v9555
    %v9557 = vlaneseq
    %v9558 = vshrl.u32 %v9557, 7
    %v9559 = vsub.s32 %v9556, %v9558
    %v9560 = vrot.slane %v9550, %v9559
    %v9562 = vunpack.c.l.s4 1966171168
    %v9563 = vunpack.c.0.s8 %v9562
    %v9564 = vlaneseq
    %v9565 = vshrl.u32 %v9564, 7
    %v9566 = vsub.s32 %v9563, %v9565
    %v9567 = vrot.slane %v9551, %v9566
    %v9569 = vunpack.c.l.s4 1966171168
    %v9570 = vunpack.c.0.s8 %v9569
    %v9571 = vlaneseq
    %v9572 = vshrl.u32 %v9571, 7
    %v9573 = vsub.s32 %v9570, %v9572
    %v9574 = vrot.slane %v9552, %v9573
    %v9576 = vunpack.c.l.s4 1966171168
    %v9577 = vunpack.c.0.s8 %v9576
    %v9578 = vlaneseq
    %v9579 = vshrl.u32 %v9578, 7
    %v9580 = vsub.s32 %v9577, %v9579
    %v9581 = vrot.slane %v9553, %v9580
    %v9582 = vcombine.low %v9560, %v9567
    %v9583 = vcombine.low %v9574, %v9581
    %v9585 = vunpack.c.l.s4 1966171168
    %v9586 = vunpack.c.0.s8 %v9585
    %v9587 = vlaneseq
    %v9588 = vshrl.u32 %v9587, 7
    %v9589 = vsub.s32 %v9586, %v9588
    %v9590 = vrot.slane %v9582, %v9589
    %v9592 = vunpack.c.l.s4 1966171168
    %v9593 = vunpack.c.0.s8 %v9592
    %v9594 = vlaneseq
    %v9595 = vshrl.u32 %v9594, 7
    %v9596 = vsub.s32 %v9593, %v9595
    %v9597 = vrot.slane %v9583, %v9596
    %v9598 = vcombine.low %v9590, %v9597
    %v9599 = vcombine.low %v4111, %v4115
    %v9600 = vcombine.low %v4119, %v4123
    %v9601 = vcombine.low %v4127, %v4131
    %v9602 = vcombine.low %v4135, %v4139
    %v9604 = vunpack.c.l.s4 1966171168
    %v9605 = vunpack.c.0.s8 %v9604
    %v9606 = vlaneseq
    %v9607 = vshrl.u32 %v9606, 7
    %v9608 = vsub.s32 %v9605, %v9607
    %v9609 = vrot.slane %v9599, %v9608
    %v9611 = vunpack.c.l.s4 1966171168
    %v9612 = vunpack.c.0.s8 %v9611
    %v9613 = vlaneseq
    %v9614 = vshrl.u32 %v9613, 7
    %v9615 = vsub.s32 %v9612, %v9614
    %v9616 = vrot.slane %v9600, %v9615
    %v9618 = vunpack.c.l.s4 1966171168
    %v9619 = vunpack.c.0.s8 %v9618
    %v9620 = vlaneseq
    %v9621 = vshrl.u32 %v9620, 7
    %v9622 = vsub.s32 %v9619, %v9621
    %v9623 = vrot.slane %v9601, %v9622
    %v9625 = vunpack.c.l.s4 1966171168
    %v9626 = vunpack.c.0.s8 %v9625
    %v9627 = vlaneseq
    %v9628 = vshrl.u32 %v9627, 7
    %v9629 = vsub.s32 %v9626, %v9628
    %v9630 = vrot.slane %v9602, %v9629
    %v9631 = vcombine.low %v9609, %v9616
    %v9632 = vcombine.low %v9623, %v9630
    %v9634 = vunpack.c.l.s4 1966171168
    %v9635 = vunpack.c.0.s8 %v9634
    %v9636 = vlaneseq
    %v9637 = vshrl.u32 %v9636, 7
    %v9638 = vsub.s32 %v9635, %v9637
    %v9639 = vrot.slane %v9631, %v9638
    %v9641 = vunpack.c.l.s4 1966171168
    %v9642 = vunpack.c.0.s8 %v9641
    %v9643 = vlaneseq
    %v9644 = vshrl.u32 %v9643, 7
    %v9645 = vsub.s32 %v9642, %v9644
    %v9646 = vrot.slane %v9632, %v9645
    %v9647 = vcombine.low %v9639, %v9646
    %v9648 = vcombine.low %v4143, %v4147
    %v9649 = vcombine.low %v4151, %v4155
    %v9650 = vcombine.low %v4159, %v4163
    %v9651 = vcombine.low %v4167, %v4171
    %v9653 = vunpack.c.l.s4 1966171168
    %v9654 = vunpack.c.0.s8 %v9653
    %v9655 = vlaneseq
    %v9656 = vshrl.u32 %v9655, 7
    %v9657 = vsub.s32 %v9654, %v9656
    %v9658 = vrot.slane %v9648, %v9657
    %v9660 = vunpack.c.l.s4 1966171168
    %v9661 = vunpack.c.0.s8 %v9660
    %v9662 = vlaneseq
    %v9663 = vshrl.u32 %v9662, 7
    %v9664 = vsub.s32 %v9661, %v9663
    %v9665 = vrot.slane %v9649, %v9664
    %v9667 = vunpack.c.l.s4 1966171168
    %v9668 = vunpack.c.0.s8 %v9667
    %v9669 = vlaneseq
    %v9670 = vshrl.u32 %v9669, 7
    %v9671 = vsub.s32 %v9668, %v9670
    %v9672 = vrot.slane %v9650, %v9671
    %v9674 = vunpack.c.l.s4 1966171168
    %v9675 = vunpack.c.0.s8 %v9674
    %v9676 = vlaneseq
    %v9677 = vshrl.u32 %v9676, 7
    %v9678 = vsub.s32 %v9675, %v9677
    %v9679 = vrot.slane %v9651, %v9678
    %v9680 = vcombine.low %v9658, %v9665
    %v9681 = vcombine.low %v9672, %v9679
    %v9683 = vunpack.c.l.s4 1966171168
    %v9684 = vunpack.c.0.s8 %v9683
    %v9685 = vlaneseq
    %v9686 = vshrl.u32 %v9685, 7
    %v9687 = vsub.s32 %v9684, %v9686
    %v9688 = vrot.slane %v9680, %v9687
    %v9690 = vunpack.c.l.s4 1966171168
    %v9691 = vunpack.c.0.s8 %v9690
    %v9692 = vlaneseq
    %v9693 = vshrl.u32 %v9692, 7
    %v9694 = vsub.s32 %v9691, %v9693
    %v9695 = vrot.slane %v9681, %v9694
    %v9696 = vcombine.low %v9688, %v9695
    %v9697 = vcombine.low %v4175, %v4179
    %v9698 = vcombine.low %v4183, %v4187
    %v9699 = vcombine.low %v4191, %v4195
    %v9700 = vcombine.low %v4199, %v4203
    %v9702 = vunpack.c.l.s4 1966171168
    %v9703 = vunpack.c.0.s8 %v9702
    %v9704 = vlaneseq
    %v9705 = vshrl.u32 %v9704, 7
    %v9706 = vsub.s32 %v9703, %v9705
    %v9707 = vrot.slane %v9697, %v9706
    %v9709 = vunpack.c.l.s4 1966171168
    %v9710 = vunpack.c.0.s8 %v9709
    %v9711 = vlaneseq
    %v9712 = vshrl.u32 %v9711, 7
    %v9713 = vsub.s32 %v9710, %v9712
    %v9714 = vrot.slane %v9698, %v9713
    %v9716 = vunpack.c.l.s4 1966171168
    %v9717 = vunpack.c.0.s8 %v9716
    %v9718 = vlaneseq
    %v9719 = vshrl.u32 %v9718, 7
    %v9720 = vsub.s32 %v9717, %v9719
    %v9721 = vrot.slane %v9699, %v9720
    %v9723 = vunpack.c.l.s4 1966171168
    %v9724 = vunpack.c.0.s8 %v9723
    %v9725 = vlaneseq
    %v9726 = vshrl.u32 %v9725, 7
    %v9727 = vsub.s32 %v9724, %v9726
    %v9728 = vrot.slane %v9700, %v9727
    %v9729 = vcombine.low %v9707, %v9714
    %v9730 = vcombine.low %v9721, %v9728
    %v9732 = vunpack.c.l.s4 1966171168
    %v9733 = vunpack.c.0.s8 %v9732
    %v9734 = vlaneseq
    %v9735 = vshrl.u32 %v9734, 7
    %v9736 = vsub.s32 %v9733, %v9735
    %v9737 = vrot.slane %v9729, %v9736
    %v9739 = vunpack.c.l.s4 1966171168
    %v9740 = vunpack.c.0.s8 %v9739
    %v9741 = vlaneseq
    %v9742 = vshrl.u32 %v9741, 7
    %v9743 = vsub.s32 %v9740, %v9742
    %v9744 = vrot.slane %v9730, %v9743
    %v9745 = vcombine.low %v9737, %v9744
    %v9746 = vcombine.low %v4207, %v4211
    %v9747 = vcombine.low %v4215, %v4219
    %v9748 = vcombine.low %v4223, %v4227
    %v9749 = vcombine.low %v4231, %v4235
    %v9751 = vunpack.c.l.s4 1966171168
    %v9752 = vunpack.c.0.s8 %v9751
    %v9753 = vlaneseq
    %v9754 = vshrl.u32 %v9753, 7
    %v9755 = vsub.s32 %v9752, %v9754
    %v9756 = vrot.slane %v9746, %v9755
    %v9758 = vunpack.c.l.s4 1966171168
    %v9759 = vunpack.c.0.s8 %v9758
    %v9760 = vlaneseq
    %v9761 = vshrl.u32 %v9760, 7
    %v9762 = vsub.s32 %v9759, %v9761
    %v9763 = vrot.slane %v9747, %v9762
    %v9765 = vunpack.c.l.s4 1966171168
    %v9766 = vunpack.c.0.s8 %v9765
    %v9767 = vlaneseq
    %v9768 = vshrl.u32 %v9767, 7
    %v9769 = vsub.s32 %v9766, %v9768
    %v9770 = vrot.slane %v9748, %v9769
    %v9772 = vunpack.c.l.s4 1966171168
    %v9773 = vunpack.c.0.s8 %v9772
    %v9774 = vlaneseq
    %v9775 = vshrl.u32 %v9774, 7
    %v9776 = vsub.s32 %v9773, %v9775
    %v9777 = vrot.slane %v9749, %v9776
    %v9778 = vcombine.low %v9756, %v9763
    %v9779 = vcombine.low %v9770, %v9777
    %v9781 = vunpack.c.l.s4 1966171168
    %v9782 = vunpack.c.0.s8 %v9781
    %v9783 = vlaneseq
    %v9784 = vshrl.u32 %v9783, 7
    %v9785 = vsub.s32 %v9782, %v9784
    %v9786 = vrot.slane %v9778, %v9785
    %v9788 = vunpack.c.l.s4 1966171168
    %v9789 = vunpack.c.0.s8 %v9788
    %v9790 = vlaneseq
    %v9791 = vshrl.u32 %v9790, 7
    %v9792 = vsub.s32 %v9789, %v9791
    %v9793 = vrot.slane %v9779, %v9792
    %v9794 = vcombine.low %v9786, %v9793
    %v9795 = vcombine.low %v4239, %v4243
    %v9796 = vcombine.low %v4247, %v4251
    %v9797 = vcombine.low %v4255, %v4259
    %v9798 = vcombine.low %v4263, %v4267
    %v9800 = vunpack.c.l.s4 1966171168
    %v9801 = vunpack.c.0.s8 %v9800
    %v9802 = vlaneseq
    %v9803 = vshrl.u32 %v9802, 7
    %v9804 = vsub.s32 %v9801, %v9803
    %v9805 = vrot.slane %v9795, %v9804
    %v9807 = vunpack.c.l.s4 1966171168
    %v9808 = vunpack.c.0.s8 %v9807
    %v9809 = vlaneseq
    %v9810 = vshrl.u32 %v9809, 7
    %v9811 = vsub.s32 %v9808, %v9810
    %v9812 = vrot.slane %v9796, %v9811
    %v9814 = vunpack.c.l.s4 1966171168
    %v9815 = vunpack.c.0.s8 %v9814
    %v9816 = vlaneseq
    %v9817 = vshrl.u32 %v9816, 7
    %v9818 = vsub.s32 %v9815, %v9817
    %v9819 = vrot.slane %v9797, %v9818
    %v9821 = vunpack.c.l.s4 1966171168
    %v9822 = vunpack.c.0.s8 %v9821
    %v9823 = vlaneseq
    %v9824 = vshrl.u32 %v9823, 7
    %v9825 = vsub.s32 %v9822, %v9824
    %v9826 = vrot.slane %v9798, %v9825
    %v9827 = vcombine.low %v9805, %v9812
    %v9828 = vcombine.low %v9819, %v9826
    %v9830 = vunpack.c.l.s4 1966171168
    %v9831 = vunpack.c.0.s8 %v9830
    %v9832 = vlaneseq
    %v9833 = vshrl.u32 %v9832, 7
    %v9834 = vsub.s32 %v9831, %v9833
    %v9835 = vrot.slane %v9827, %v9834
    %v9837 = vunpack.c.l.s4 1966171168
    %v9838 = vunpack.c.0.s8 %v9837
    %v9839 = vlaneseq
    %v9840 = vshrl.u32 %v9839, 7
    %v9841 = vsub.s32 %v9838, %v9840
    %v9842 = vrot.slane %v9828, %v9841
    %v9843 = vcombine.low %v9835, %v9842
    %v9844 = vcombine.low %v4271, %v4275
    %v9845 = vcombine.low %v4279, %v4283
    %v9846 = vcombine.low %v4287, %v4291
    %v9847 = vcombine.low %v4295, %v4299
    %v9849 = vunpack.c.l.s4 1966171168
    %v9850 = vunpack.c.0.s8 %v9849
    %v9851 = vlaneseq
    %v9852 = vshrl.u32 %v9851, 7
    %v9853 = vsub.s32 %v9850, %v9852
    %v9854 = vrot.slane %v9844, %v9853
    %v9856 = vunpack.c.l.s4 1966171168
    %v9857 = vunpack.c.0.s8 %v9856
    %v9858 = vlaneseq
    %v9859 = vshrl.u32 %v9858, 7
    %v9860 = vsub.s32 %v9857, %v9859
    %v9861 = vrot.slane %v9845, %v9860
    %v9863 = vunpack.c.l.s4 1966171168
    %v9864 = vunpack.c.0.s8 %v9863
    %v9865 = vlaneseq
    %v9866 = vshrl.u32 %v9865, 7
    %v9867 = vsub.s32 %v9864, %v9866
    %v9868 = vrot.slane %v9846, %v9867
    %v9870 = vunpack.c.l.s4 1966171168
    %v9871 = vunpack.c.0.s8 %v9870
    %v9872 = vlaneseq
    %v9873 = vshrl.u32 %v9872, 7
    %v9874 = vsub.s32 %v9871, %v9873
    %v9875 = vrot.slane %v9847, %v9874
    %v9876 = vcombine.low %v9854, %v9861
    %v9877 = vcombine.low %v9868, %v9875
    %v9879 = vunpack.c.l.s4 1966171168
    %v9880 = vunpack.c.0.s8 %v9879
    %v9881 = vlaneseq
    %v9882 = vshrl.u32 %v9881, 7
    %v9883 = vsub.s32 %v9880, %v9882
    %v9884 = vrot.slane %v9876, %v9883
    %v9886 = vunpack.c.l.s4 1966171168
    %v9887 = vunpack.c.0.s8 %v9886
    %v9888 = vlaneseq
    %v9889 = vshrl.u32 %v9888, 7
    %v9890 = vsub.s32 %v9887, %v9889
    %v9891 = vrot.slane %v9877, %v9890
    %v9892 = vcombine.low %v9884, %v9891
    %v9893 = vcombine.low %v4303, %v4307
    %v9894 = vcombine.low %v4311, %v4315
    %v9895 = vcombine.low %v4319, %v4323
    %v9896 = vcombine.low %v4327, %v4331
    %v9898 = vunpack.c.l.s4 1966171168
    %v9899 = vunpack.c.0.s8 %v9898
    %v9900 = vlaneseq
    %v9901 = vshrl.u32 %v9900, 7
    %v9902 = vsub.s32 %v9899, %v9901
    %v9903 = vrot.slane %v9893, %v9902
    %v9905 = vunpack.c.l.s4 1966171168
    %v9906 = vunpack.c.0.s8 %v9905
    %v9907 = vlaneseq
    %v9908 = vshrl.u32 %v9907, 7
    %v9909 = vsub.s32 %v9906, %v9908
    %v9910 = vrot.slane %v9894, %v9909
    %v9912 = vunpack.c.l.s4 1966171168
    %v9913 = vunpack.c.0.s8 %v9912
    %v9914 = vlaneseq
    %v9915 = vshrl.u32 %v9914, 7
    %v9916 = vsub.s32 %v9913, %v9915
    %v9917 = vrot.slane %v9895, %v9916
    %v9919 = vunpack.c.l.s4 1966171168
    %v9920 = vunpack.c.0.s8 %v9919
    %v9921 = vlaneseq
    %v9922 = vshrl.u32 %v9921, 7
    %v9923 = vsub.s32 %v9920, %v9922
    %v9924 = vrot.slane %v9896, %v9923
    %v9925 = vcombine.low %v9903, %v9910
    %v9926 = vcombine.low %v9917, %v9924
    %v9928 = vunpack.c.l.s4 1966171168
    %v9929 = vunpack.c.0.s8 %v9928
    %v9930 = vlaneseq
    %v9931 = vshrl.u32 %v9930, 7
    %v9932 = vsub.s32 %v9929, %v9931
    %v9933 = vrot.slane %v9925, %v9932
    %v9935 = vunpack.c.l.s4 1966171168
    %v9936 = vunpack.c.0.s8 %v9935
    %v9937 = vlaneseq
    %v9938 = vshrl.u32 %v9937, 7
    %v9939 = vsub.s32 %v9936, %v9938
    %v9940 = vrot.slane %v9926, %v9939
    %v9941 = vcombine.low %v9933, %v9940
    %v9942 = vcombine.low %v4335, %v4339
    %v9943 = vcombine.low %v4343, %v4347
    %v9944 = vcombine.low %v4351, %v4355
    %v9945 = vcombine.low %v4359, %v4363
    %v9947 = vunpack.c.l.s4 1966171168
    %v9948 = vunpack.c.0.s8 %v9947
    %v9949 = vlaneseq
    %v9950 = vshrl.u32 %v9949, 7
    %v9951 = vsub.s32 %v9948, %v9950
    %v9952 = vrot.slane %v9942, %v9951
    %v9954 = vunpack.c.l.s4 1966171168
    %v9955 = vunpack.c.0.s8 %v9954
    %v9956 = vlaneseq
    %v9957 = vshrl.u32 %v9956, 7
    %v9958 = vsub.s32 %v9955, %v9957
    %v9959 = vrot.slane %v9943, %v9958
    %v9961 = vunpack.c.l.s4 1966171168
    %v9962 = vunpack.c.0.s8 %v9961
    %v9963 = vlaneseq
    %v9964 = vshrl.u32 %v9963, 7
    %v9965 = vsub.s32 %v9962, %v9964
    %v9966 = vrot.slane %v9944, %v9965
    %v9968 = vunpack.c.l.s4 1966171168
    %v9969 = vunpack.c.0.s8 %v9968
    %v9970 = vlaneseq
    %v9971 = vshrl.u32 %v9970, 7
    %v9972 = vsub.s32 %v9969, %v9971
    %v9973 = vrot.slane %v9945, %v9972
    %v9974 = vcombine.low %v9952, %v9959
    %v9975 = vcombine.low %v9966, %v9973
    %v9977 = vunpack.c.l.s4 1966171168
    %v9978 = vunpack.c.0.s8 %v9977
    %v9979 = vlaneseq
    %v9980 = vshrl.u32 %v9979, 7
    %v9981 = vsub.s32 %v9978, %v9980
    %v9982 = vrot.slane %v9974, %v9981
    %v9984 = vunpack.c.l.s4 1966171168
    %v9985 = vunpack.c.0.s8 %v9984
    %v9986 = vlaneseq
    %v9987 = vshrl.u32 %v9986, 7
    %v9988 = vsub.s32 %v9985, %v9987
    %v9989 = vrot.slane %v9975, %v9988
    %v9990 = vcombine.low %v9982, %v9989
    %v9991 = vcombine.low %v4367, %v4371
    %v9992 = vcombine.low %v4375, %v4379
    %v9993 = vcombine.low %v4383, %v4387
    %v9994 = vcombine.low %v4391, %v4395
    %v9996 = vunpack.c.l.s4 1966171168
    %v9997 = vunpack.c.0.s8 %v9996
    %v9998 = vlaneseq
    %v9999 = vshrl.u32 %v9998, 7
    %v10000 = vsub.s32 %v9997, %v9999
    %v10001 = vrot.slane %v9991, %v10000
    %v10003 = vunpack.c.l.s4 1966171168
    %v10004 = vunpack.c.0.s8 %v10003
    %v10005 = vlaneseq
    %v10006 = vshrl.u32 %v10005, 7
    %v10007 = vsub.s32 %v10004, %v10006
    %v10008 = vrot.slane %v9992, %v10007
    %v10010 = vunpack.c.l.s4 1966171168
    %v10011 = vunpack.c.0.s8 %v10010
    %v10012 = vlaneseq
    %v10013 = vshrl.u32 %v10012, 7
    %v10014 = vsub.s32 %v10011, %v10013
    %v10015 = vrot.slane %v9993, %v10014
    %v10017 = vunpack.c.l.s4 1966171168
    %v10018 = vunpack.c.0.s8 %v10017
    %v10019 = vlaneseq
    %v10020 = vshrl.u32 %v10019, 7
    %v10021 = vsub.s32 %v10018, %v10020
    %v10022 = vrot.slane %v9994, %v10021
    %v10023 = vcombine.low %v10001, %v10008
    %v10024 = vcombine.low %v10015, %v10022
    %v10026 = vunpack.c.l.s4 1966171168
    %v10027 = vunpack.c.0.s8 %v10026
    %v10028 = vlaneseq
    %v10029 = vshrl.u32 %v10028, 7
    %v10030 = vsub.s32 %v10027, %v10029
    %v10031 = vrot.slane %v10023, %v10030
    %v10033 = vunpack.c.l.s4 1966171168
    %v10034 = vunpack.c.0.s8 %v10033
    %v10035 = vlaneseq
    %v10036 = vshrl.u32 %v10035, 7
    %v10037 = vsub.s32 %v10034, %v10036
    %v10038 = vrot.slane %v10024, %v10037
    %v10039 = vcombine.low %v10031, %v10038
    %v10040 = vcombine.low %v4399, %v4403
    %v10041 = vcombine.low %v4407, %v4411
    %v10042 = vcombine.low %v4415, %v4419
    %v10043 = vcombine.low %v4423, %v4427
    %v10045 = vunpack.c.l.s4 1966171168
    %v10046 = vunpack.c.0.s8 %v10045
    %v10047 = vlaneseq
    %v10048 = vshrl.u32 %v10047, 7
    %v10049 = vsub.s32 %v10046, %v10048
    %v10050 = vrot.slane %v10040, %v10049
    %v10052 = vunpack.c.l.s4 1966171168
    %v10053 = vunpack.c.0.s8 %v10052
    %v10054 = vlaneseq
    %v10055 = vshrl.u32 %v10054, 7
    %v10056 = vsub.s32 %v10053, %v10055
    %v10057 = vrot.slane %v10041, %v10056
    %v10059 = vunpack.c.l.s4 1966171168
    %v10060 = vunpack.c.0.s8 %v10059
    %v10061 = vlaneseq
    %v10062 = vshrl.u32 %v10061, 7
    %v10063 = vsub.s32 %v10060, %v10062
    %v10064 = vrot.slane %v10042, %v10063
    %v10066 = vunpack.c.l.s4 1966171168
    %v10067 = vunpack.c.0.s8 %v10066
    %v10068 = vlaneseq
    %v10069 = vshrl.u32 %v10068, 7
    %v10070 = vsub.s32 %v10067, %v10069
    %v10071 = vrot.slane %v10043, %v10070
    %v10072 = vcombine.low %v10050, %v10057
    %v10073 = vcombine.low %v10064, %v10071
    %v10075 = vunpack.c.l.s4 1966171168
    %v10076 = vunpack.c.0.s8 %v10075
    %v10077 = vlaneseq
    %v10078 = vshrl.u32 %v10077, 7
    %v10079 = vsub.s32 %v10076, %v10078
    %v10080 = vrot.slane %v10072, %v10079
    %v10082 = vunpack.c.l.s4 1966171168
    %v10083 = vunpack.c.0.s8 %v10082
    %v10084 = vlaneseq
    %v10085 = vshrl.u32 %v10084, 7
    %v10086 = vsub.s32 %v10083, %v10085
    %v10087 = vrot.slane %v10073, %v10086
    %v10088 = vcombine.low %v10080, %v10087
    %v10089 = vcombine.low %v4431, %v4435
    %v10090 = vcombine.low %v4439, %v4443
    %v10091 = vcombine.low %v4447, %v4451
    %v10092 = vcombine.low %v4455, %v4459
    %v10094 = vunpack.c.l.s4 1966171168
    %v10095 = vunpack.c.0.s8 %v10094
    %v10096 = vlaneseq
    %v10097 = vshrl.u32 %v10096, 7
    %v10098 = vsub.s32 %v10095, %v10097
    %v10099 = vrot.slane %v10089, %v10098
    %v10101 = vunpack.c.l.s4 1966171168
    %v10102 = vunpack.c.0.s8 %v10101
    %v10103 = vlaneseq
    %v10104 = vshrl.u32 %v10103, 7
    %v10105 = vsub.s32 %v10102, %v10104
    %v10106 = vrot.slane %v10090, %v10105
    %v10108 = vunpack.c.l.s4 1966171168
    %v10109 = vunpack.c.0.s8 %v10108
    %v10110 = vlaneseq
    %v10111 = vshrl.u32 %v10110, 7
    %v10112 = vsub.s32 %v10109, %v10111
    %v10113 = vrot.slane %v10091, %v10112
    %v10115 = vunpack.c.l.s4 1966171168
    %v10116 = vunpack.c.0.s8 %v10115
    %v10117 = vlaneseq
    %v10118 = vshrl.u32 %v10117, 7
    %v10119 = vsub.s32 %v10116, %v10118
    %v10120 = vrot.slane %v10092, %v10119
    %v10121 = vcombine.low %v10099, %v10106
    %v10122 = vcombine.low %v10113, %v10120
    %v10124 = vunpack.c.l.s4 1966171168
    %v10125 = vunpack.c.0.s8 %v10124
    %v10126 = vlaneseq
    %v10127 = vshrl.u32 %v10126, 7
    %v10128 = vsub.s32 %v10125, %v10127
    %v10129 = vrot.slane %v10121, %v10128
    %v10131 = vunpack.c.l.s4 1966171168
    %v10132 = vunpack.c.0.s8 %v10131
    %v10133 = vlaneseq
    %v10134 = vshrl.u32 %v10133, 7
    %v10135 = vsub.s32 %v10132, %v10134
    %v10136 = vrot.slane %v10122, %v10135
    %v10137 = vcombine.low %v10129, %v10136
    %v10138 = vcombine.low %v4463, %v4467
    %v10139 = vcombine.low %v4471, %v4475
    %v10140 = vcombine.low %v4479, %v4483
    %v10141 = vcombine.low %v4487, %v4491
    %v10143 = vunpack.c.l.s4 1966171168
    %v10144 = vunpack.c.0.s8 %v10143
    %v10145 = vlaneseq
    %v10146 = vshrl.u32 %v10145, 7
    %v10147 = vsub.s32 %v10144, %v10146
    %v10148 = vrot.slane %v10138, %v10147
    %v10150 = vunpack.c.l.s4 1966171168
    %v10151 = vunpack.c.0.s8 %v10150
    %v10152 = vlaneseq
    %v10153 = vshrl.u32 %v10152, 7
    %v10154 = vsub.s32 %v10151, %v10153
    %v10155 = vrot.slane %v10139, %v10154
    %v10157 = vunpack.c.l.s4 1966171168
    %v10158 = vunpack.c.0.s8 %v10157
    %v10159 = vlaneseq
    %v10160 = vshrl.u32 %v10159, 7
    %v10161 = vsub.s32 %v10158, %v10160
    %v10162 = vrot.slane %v10140, %v10161
    %v10164 = vunpack.c.l.s4 1966171168
    %v10165 = vunpack.c.0.s8 %v10164
    %v10166 = vlaneseq
    %v10167 = vshrl.u32 %v10166, 7
    %v10168 = vsub.s32 %v10165, %v10167
    %v10169 = vrot.slane %v10141, %v10168
    %v10170 = vcombine.low %v10148, %v10155
    %v10171 = vcombine.low %v10162, %v10169
    %v10173 = vunpack.c.l.s4 1966171168
    %v10174 = vunpack.c.0.s8 %v10173
    %v10175 = vlaneseq
    %v10176 = vshrl.u32 %v10175, 7
    %v10177 = vsub.s32 %v10174, %v10176
    %v10178 = vrot.slane %v10170, %v10177
    %v10180 = vunpack.c.l.s4 1966171168
    %v10181 = vunpack.c.0.s8 %v10180
    %v10182 = vlaneseq
    %v10183 = vshrl.u32 %v10182, 7
    %v10184 = vsub.s32 %v10181, %v10183
    %v10185 = vrot.slane %v10171, %v10184
    %v10186 = vcombine.low %v10178, %v10185
    %v10187 = vcombine.low %v4495, %v4499
    %v10188 = vcombine.low %v4503, %v4507
    %v10189 = vcombine.low %v4511, %v4515
    %v10190 = vcombine.low %v4519, %v4523
    %v10192 = vunpack.c.l.s4 1966171168
    %v10193 = vunpack.c.0.s8 %v10192
    %v10194 = vlaneseq
    %v10195 = vshrl.u32 %v10194, 7
    %v10196 = vsub.s32 %v10193, %v10195
    %v10197 = vrot.slane %v10187, %v10196
    %v10199 = vunpack.c.l.s4 1966171168
    %v10200 = vunpack.c.0.s8 %v10199
    %v10201 = vlaneseq
    %v10202 = vshrl.u32 %v10201, 7
    %v10203 = vsub.s32 %v10200, %v10202
    %v10204 = vrot.slane %v10188, %v10203
    %v10206 = vunpack.c.l.s4 1966171168
    %v10207 = vunpack.c.0.s8 %v10206
    %v10208 = vlaneseq
    %v10209 = vshrl.u32 %v10208, 7
    %v10210 = vsub.s32 %v10207, %v10209
    %v10211 = vrot.slane %v10189, %v10210
    %v10213 = vunpack.c.l.s4 1966171168
    %v10214 = vunpack.c.0.s8 %v10213
    %v10215 = vlaneseq
    %v10216 = vshrl.u32 %v10215, 7
    %v10217 = vsub.s32 %v10214, %v10216
    %v10218 = vrot.slane %v10190, %v10217
    %v10219 = vcombine.low %v10197, %v10204
    %v10220 = vcombine.low %v10211, %v10218
    %v10222 = vunpack.c.l.s4 1966171168
    %v10223 = vunpack.c.0.s8 %v10222
    %v10224 = vlaneseq
    %v10225 = vshrl.u32 %v10224, 7
    %v10226 = vsub.s32 %v10223, %v10225
    %v10227 = vrot.slane %v10219, %v10226
    %v10229 = vunpack.c.l.s4 1966171168
    %v10230 = vunpack.c.0.s8 %v10229
    %v10231 = vlaneseq
    %v10232 = vshrl.u32 %v10231, 7
    %v10233 = vsub.s32 %v10230, %v10232
    %v10234 = vrot.slane %v10220, %v10233
    %v10235 = vcombine.low %v10227, %v10234
    %v10236 = vcombine.low %v4527, %v4531
    %v10237 = vcombine.low %v4535, %v4539
    %v10238 = vcombine.low %v4543, %v4547
    %v10239 = vcombine.low %v4551, %v4555
    %v10241 = vunpack.c.l.s4 1966171168
    %v10242 = vunpack.c.0.s8 %v10241
    %v10243 = vlaneseq
    %v10244 = vshrl.u32 %v10243, 7
    %v10245 = vsub.s32 %v10242, %v10244
    %v10246 = vrot.slane %v10236, %v10245
    %v10248 = vunpack.c.l.s4 1966171168
    %v10249 = vunpack.c.0.s8 %v10248
    %v10250 = vlaneseq
    %v10251 = vshrl.u32 %v10250, 7
    %v10252 = vsub.s32 %v10249, %v10251
    %v10253 = vrot.slane %v10237, %v10252
    %v10255 = vunpack.c.l.s4 1966171168
    %v10256 = vunpack.c.0.s8 %v10255
    %v10257 = vlaneseq
    %v10258 = vshrl.u32 %v10257, 7
    %v10259 = vsub.s32 %v10256, %v10258
    %v10260 = vrot.slane %v10238, %v10259
    %v10262 = vunpack.c.l.s4 1966171168
    %v10263 = vunpack.c.0.s8 %v10262
    %v10264 = vlaneseq
    %v10265 = vshrl.u32 %v10264, 7
    %v10266 = vsub.s32 %v10263, %v10265
    %v10267 = vrot.slane %v10239, %v10266
    %v10268 = vcombine.low %v10246, %v10253
    %v10269 = vcombine.low %v10260, %v10267
    %v10271 = vunpack.c.l.s4 1966171168
    %v10272 = vunpack.c.0.s8 %v10271
    %v10273 = vlaneseq
    %v10274 = vshrl.u32 %v10273, 7
    %v10275 = vsub.s32 %v10272, %v10274
    %v10276 = vrot.slane %v10268, %v10275
    %v10278 = vunpack.c.l.s4 1966171168
    %v10279 = vunpack.c.0.s8 %v10278
    %v10280 = vlaneseq
    %v10281 = vshrl.u32 %v10280, 7
    %v10282 = vsub.s32 %v10279, %v10281
    %v10283 = vrot.slane %v10269, %v10282
    %v10284 = vcombine.low %v10276, %v10283
    %v10285 = vcombine.low %v4559, %v4563
    %v10286 = vcombine.low %v4567, %v4571
    %v10287 = vcombine.low %v4575, %v4579
    %v10288 = vcombine.low %v4583, %v4587
    %v10290 = vunpack.c.l.s4 1966171168
    %v10291 = vunpack.c.0.s8 %v10290
    %v10292 = vlaneseq
    %v10293 = vshrl.u32 %v10292, 7
    %v10294 = vsub.s32 %v10291, %v10293
    %v10295 = vrot.slane %v10285, %v10294
    %v10297 = vunpack.c.l.s4 1966171168
    %v10298 = vunpack.c.0.s8 %v10297
    %v10299 = vlaneseq
    %v10300 = vshrl.u32 %v10299, 7
    %v10301 = vsub.s32 %v10298, %v10300
    %v10302 = vrot.slane %v10286, %v10301
    %v10304 = vunpack.c.l.s4 1966171168
    %v10305 = vunpack.c.0.s8 %v10304
    %v10306 = vlaneseq
    %v10307 = vshrl.u32 %v10306, 7
    %v10308 = vsub.s32 %v10305, %v10307
    %v10309 = vrot.slane %v10287, %v10308
    %v10311 = vunpack.c.l.s4 1966171168
    %v10312 = vunpack.c.0.s8 %v10311
    %v10313 = vlaneseq
    %v10314 = vshrl.u32 %v10313, 7
    %v10315 = vsub.s32 %v10312, %v10314
    %v10316 = vrot.slane %v10288, %v10315
    %v10317 = vcombine.low %v10295, %v10302
    %v10318 = vcombine.low %v10309, %v10316
    %v10320 = vunpack.c.l.s4 1966171168
    %v10321 = vunpack.c.0.s8 %v10320
    %v10322 = vlaneseq
    %v10323 = vshrl.u32 %v10322, 7
    %v10324 = vsub.s32 %v10321, %v10323
    %v10325 = vrot.slane %v10317, %v10324
    %v10327 = vunpack.c.l.s4 1966171168
    %v10328 = vunpack.c.0.s8 %v10327
    %v10329 = vlaneseq
    %v10330 = vshrl.u32 %v10329, 7
    %v10331 = vsub.s32 %v10328, %v10330
    %v10332 = vrot.slane %v10318, %v10331
    %v10333 = vcombine.low %v10325, %v10332
    %v10334 = vcombine.low %v4591, %v4595
    %v10335 = vcombine.low %v4599, %v4603
    %v10336 = vcombine.low %v4607, %v4611
    %v10337 = vcombine.low %v4615, %v4619
    %v10339 = vunpack.c.l.s4 1966171168
    %v10340 = vunpack.c.0.s8 %v10339
    %v10341 = vlaneseq
    %v10342 = vshrl.u32 %v10341, 7
    %v10343 = vsub.s32 %v10340, %v10342
    %v10344 = vrot.slane %v10334, %v10343
    %v10346 = vunpack.c.l.s4 1966171168
    %v10347 = vunpack.c.0.s8 %v10346
    %v10348 = vlaneseq
    %v10349 = vshrl.u32 %v10348, 7
    %v10350 = vsub.s32 %v10347, %v10349
    %v10351 = vrot.slane %v10335, %v10350
    %v10353 = vunpack.c.l.s4 1966171168
    %v10354 = vunpack.c.0.s8 %v10353
    %v10355 = vlaneseq
    %v10356 = vshrl.u32 %v10355, 7
    %v10357 = vsub.s32 %v10354, %v10356
    %v10358 = vrot.slane %v10336, %v10357
    %v10360 = vunpack.c.l.s4 1966171168
    %v10361 = vunpack.c.0.s8 %v10360
    %v10362 = vlaneseq
    %v10363 = vshrl.u32 %v10362, 7
    %v10364 = vsub.s32 %v10361, %v10363
    %v10365 = vrot.slane %v10337, %v10364
    %v10366 = vcombine.low %v10344, %v10351
    %v10367 = vcombine.low %v10358, %v10365
    %v10369 = vunpack.c.l.s4 1966171168
    %v10370 = vunpack.c.0.s8 %v10369
    %v10371 = vlaneseq
    %v10372 = vshrl.u32 %v10371, 7
    %v10373 = vsub.s32 %v10370, %v10372
    %v10374 = vrot.slane %v10366, %v10373
    %v10376 = vunpack.c.l.s4 1966171168
    %v10377 = vunpack.c.0.s8 %v10376
    %v10378 = vlaneseq
    %v10379 = vshrl.u32 %v10378, 7
    %v10380 = vsub.s32 %v10377, %v10379
    %v10381 = vrot.slane %v10367, %v10380
    %v10382 = vcombine.low %v10374, %v10381
    %v10383 = vcombine.low %v4623, %v4627
    %v10384 = vcombine.low %v4631, %v4635
    %v10385 = vcombine.low %v4639, %v4643
    %v10386 = vcombine.low %v4647, %v4651
    %v10388 = vunpack.c.l.s4 1966171168
    %v10389 = vunpack.c.0.s8 %v10388
    %v10390 = vlaneseq
    %v10391 = vshrl.u32 %v10390, 7
    %v10392 = vsub.s32 %v10389, %v10391
    %v10393 = vrot.slane %v10383, %v10392
    %v10395 = vunpack.c.l.s4 1966171168
    %v10396 = vunpack.c.0.s8 %v10395
    %v10397 = vlaneseq
    %v10398 = vshrl.u32 %v10397, 7
    %v10399 = vsub.s32 %v10396, %v10398
    %v10400 = vrot.slane %v10384, %v10399
    %v10402 = vunpack.c.l.s4 1966171168
    %v10403 = vunpack.c.0.s8 %v10402
    %v10404 = vlaneseq
    %v10405 = vshrl.u32 %v10404, 7
    %v10406 = vsub.s32 %v10403, %v10405
    %v10407 = vrot.slane %v10385, %v10406
    %v10409 = vunpack.c.l.s4 1966171168
    %v10410 = vunpack.c.0.s8 %v10409
    %v10411 = vlaneseq
    %v10412 = vshrl.u32 %v10411, 7
    %v10413 = vsub.s32 %v10410, %v10412
    %v10414 = vrot.slane %v10386, %v10413
    %v10415 = vcombine.low %v10393, %v10400
    %v10416 = vcombine.low %v10407, %v10414
    %v10418 = vunpack.c.l.s4 1966171168
    %v10419 = vunpack.c.0.s8 %v10418
    %v10420 = vlaneseq
    %v10421 = vshrl.u32 %v10420, 7
    %v10422 = vsub.s32 %v10419, %v10421
    %v10423 = vrot.slane %v10415, %v10422
    %v10425 = vunpack.c.l.s4 1966171168
    %v10426 = vunpack.c.0.s8 %v10425
    %v10427 = vlaneseq
    %v10428 = vshrl.u32 %v10427, 7
    %v10429 = vsub.s32 %v10426, %v10428
    %v10430 = vrot.slane %v10416, %v10429
    %v10431 = vcombine.low %v10423, %v10430
    %v10432 = vcombine.low %v4655, %v4659
    %v10433 = vcombine.low %v4663, %v4667
    %v10434 = vcombine.low %v4671, %v4675
    %v10435 = vcombine.low %v4679, %v4683
    %v10437 = vunpack.c.l.s4 1966171168
    %v10438 = vunpack.c.0.s8 %v10437
    %v10439 = vlaneseq
    %v10440 = vshrl.u32 %v10439, 7
    %v10441 = vsub.s32 %v10438, %v10440
    %v10442 = vrot.slane %v10432, %v10441
    %v10444 = vunpack.c.l.s4 1966171168
    %v10445 = vunpack.c.0.s8 %v10444
    %v10446 = vlaneseq
    %v10447 = vshrl.u32 %v10446, 7
    %v10448 = vsub.s32 %v10445, %v10447
    %v10449 = vrot.slane %v10433, %v10448
    %v10451 = vunpack.c.l.s4 1966171168
    %v10452 = vunpack.c.0.s8 %v10451
    %v10453 = vlaneseq
    %v10454 = vshrl.u32 %v10453, 7
    %v10455 = vsub.s32 %v10452, %v10454
    %v10456 = vrot.slane %v10434, %v10455
    %v10458 = vunpack.c.l.s4 1966171168
    %v10459 = vunpack.c.0.s8 %v10458
    %v10460 = vlaneseq
    %v10461 = vshrl.u32 %v10460, 7
    %v10462 = vsub.s32 %v10459, %v10461
    %v10463 = vrot.slane %v10435, %v10462
    %v10464 = vcombine.low %v10442, %v10449
    %v10465 = vcombine.low %v10456, %v10463
    %v10467 = vunpack.c.l.s4 1966171168
    %v10468 = vunpack.c.0.s8 %v10467
    %v10469 = vlaneseq
    %v10470 = vshrl.u32 %v10469, 7
    %v10471 = vsub.s32 %v10468, %v10470
    %v10472 = vrot.slane %v10464, %v10471
    %v10474 = vunpack.c.l.s4 1966171168
    %v10475 = vunpack.c.0.s8 %v10474
    %v10476 = vlaneseq
    %v10477 = vshrl.u32 %v10476, 7
    %v10478 = vsub.s32 %v10475, %v10477
    %v10479 = vrot.slane %v10465, %v10478
    %v10480 = vcombine.low %v10472, %v10479
    %v10481 = vcombine.low %v4687, %v4691
    %v10482 = vcombine.low %v4695, %v4699
    %v10483 = vcombine.low %v4703, %v4707
    %v10484 = vcombine.low %v4711, %v4715
    %v10486 = vunpack.c.l.s4 1966171168
    %v10487 = vunpack.c.0.s8 %v10486
    %v10488 = vlaneseq
    %v10489 = vshrl.u32 %v10488, 7
    %v10490 = vsub.s32 %v10487, %v10489
    %v10491 = vrot.slane %v10481, %v10490
    %v10493 = vunpack.c.l.s4 1966171168
    %v10494 = vunpack.c.0.s8 %v10493
    %v10495 = vlaneseq
    %v10496 = vshrl.u32 %v10495, 7
    %v10497 = vsub.s32 %v10494, %v10496
    %v10498 = vrot.slane %v10482, %v10497
    %v10500 = vunpack.c.l.s4 1966171168
    %v10501 = vunpack.c.0.s8 %v10500
    %v10502 = vlaneseq
    %v10503 = vshrl.u32 %v10502, 7
    %v10504 = vsub.s32 %v10501, %v10503
    %v10505 = vrot.slane %v10483, %v10504
    %v10507 = vunpack.c.l.s4 1966171168
    %v10508 = vunpack.c.0.s8 %v10507
    %v10509 = vlaneseq
    %v10510 = vshrl.u32 %v10509, 7
    %v10511 = vsub.s32 %v10508, %v10510
    %v10512 = vrot.slane %v10484, %v10511
    %v10513 = vcombine.low %v10491, %v10498
    %v10514 = vcombine.low %v10505, %v10512
    %v10516 = vunpack.c.l.s4 1966171168
    %v10517 = vunpack.c.0.s8 %v10516
    %v10518 = vlaneseq
    %v10519 = vshrl.u32 %v10518, 7
    %v10520 = vsub.s32 %v10517, %v10519
    %v10521 = vrot.slane %v10513, %v10520
    %v10523 = vunpack.c.l.s4 1966171168
    %v10524 = vunpack.c.0.s8 %v10523
    %v10525 = vlaneseq
    %v10526 = vshrl.u32 %v10525, 7
    %v10527 = vsub.s32 %v10524, %v10526
    %v10528 = vrot.slane %v10514, %v10527
    %v10529 = vcombine.low %v10521, %v10528
    %v10530 = vcombine.low %v4719, %v4723
    %v10531 = vcombine.low %v4727, %v4731
    %v10532 = vcombine.low %v4735, %v4739
    %v10533 = vcombine.low %v4743, %v4747
    %v10535 = vunpack.c.l.s4 1966171168
    %v10536 = vunpack.c.0.s8 %v10535
    %v10537 = vlaneseq
    %v10538 = vshrl.u32 %v10537, 7
    %v10539 = vsub.s32 %v10536, %v10538
    %v10540 = vrot.slane %v10530, %v10539
    %v10542 = vunpack.c.l.s4 1966171168
    %v10543 = vunpack.c.0.s8 %v10542
    %v10544 = vlaneseq
    %v10545 = vshrl.u32 %v10544, 7
    %v10546 = vsub.s32 %v10543, %v10545
    %v10547 = vrot.slane %v10531, %v10546
    %v10549 = vunpack.c.l.s4 1966171168
    %v10550 = vunpack.c.0.s8 %v10549
    %v10551 = vlaneseq
    %v10552 = vshrl.u32 %v10551, 7
    %v10553 = vsub.s32 %v10550, %v10552
    %v10554 = vrot.slane %v10532, %v10553
    %v10556 = vunpack.c.l.s4 1966171168
    %v10557 = vunpack.c.0.s8 %v10556
    %v10558 = vlaneseq
    %v10559 = vshrl.u32 %v10558, 7
    %v10560 = vsub.s32 %v10557, %v10559
    %v10561 = vrot.slane %v10533, %v10560
    %v10562 = vcombine.low %v10540, %v10547
    %v10563 = vcombine.low %v10554, %v10561
    %v10565 = vunpack.c.l.s4 1966171168
    %v10566 = vunpack.c.0.s8 %v10565
    %v10567 = vlaneseq
    %v10568 = vshrl.u32 %v10567, 7
    %v10569 = vsub.s32 %v10566, %v10568
    %v10570 = vrot.slane %v10562, %v10569
    %v10572 = vunpack.c.l.s4 1966171168
    %v10573 = vunpack.c.0.s8 %v10572
    %v10574 = vlaneseq
    %v10575 = vshrl.u32 %v10574, 7
    %v10576 = vsub.s32 %v10573, %v10575
    %v10577 = vrot.slane %v10563, %v10576
    %v10578 = vcombine.low %v10570, %v10577
    %v10579 = vcombine.low %v4751, %v4755
    %v10580 = vcombine.low %v4759, %v4763
    %v10581 = vcombine.low %v4767, %v4771
    %v10582 = vcombine.low %v4775, %v4779
    %v10584 = vunpack.c.l.s4 1966171168
    %v10585 = vunpack.c.0.s8 %v10584
    %v10586 = vlaneseq
    %v10587 = vshrl.u32 %v10586, 7
    %v10588 = vsub.s32 %v10585, %v10587
    %v10589 = vrot.slane %v10579, %v10588
    %v10591 = vunpack.c.l.s4 1966171168
    %v10592 = vunpack.c.0.s8 %v10591
    %v10593 = vlaneseq
    %v10594 = vshrl.u32 %v10593, 7
    %v10595 = vsub.s32 %v10592, %v10594
    %v10596 = vrot.slane %v10580, %v10595
    %v10598 = vunpack.c.l.s4 1966171168
    %v10599 = vunpack.c.0.s8 %v10598
    %v10600 = vlaneseq
    %v10601 = vshrl.u32 %v10600, 7
    %v10602 = vsub.s32 %v10599, %v10601
    %v10603 = vrot.slane %v10581, %v10602
    %v10605 = vunpack.c.l.s4 1966171168
    %v10606 = vunpack.c.0.s8 %v10605
    %v10607 = vlaneseq
    %v10608 = vshrl.u32 %v10607, 7
    %v10609 = vsub.s32 %v10606, %v10608
    %v10610 = vrot.slane %v10582, %v10609
    %v10611 = vcombine.low %v10589, %v10596
    %v10612 = vcombine.low %v10603, %v10610
    %v10614 = vunpack.c.l.s4 1966171168
    %v10615 = vunpack.c.0.s8 %v10614
    %v10616 = vlaneseq
    %v10617 = vshrl.u32 %v10616, 7
    %v10618 = vsub.s32 %v10615, %v10617
    %v10619 = vrot.slane %v10611, %v10618
    %v10621 = vunpack.c.l.s4 1966171168
    %v10622 = vunpack.c.0.s8 %v10621
    %v10623 = vlaneseq
    %v10624 = vshrl.u32 %v10623, 7
    %v10625 = vsub.s32 %v10622, %v10624
    %v10626 = vrot.slane %v10612, %v10625
    %v10627 = vcombine.low %v10619, %v10626
    %v10628 = vcombine.low %v4783, %v4787
    %v10629 = vcombine.low %v4791, %v4795
    %v10630 = vcombine.low %v4799, %v4803
    %v10631 = vcombine.low %v4807, %v4811
    %v10633 = vunpack.c.l.s4 1966171168
    %v10634 = vunpack.c.0.s8 %v10633
    %v10635 = vlaneseq
    %v10636 = vshrl.u32 %v10635, 7
    %v10637 = vsub.s32 %v10634, %v10636
    %v10638 = vrot.slane %v10628, %v10637
    %v10640 = vunpack.c.l.s4 1966171168
    %v10641 = vunpack.c.0.s8 %v10640
    %v10642 = vlaneseq
    %v10643 = vshrl.u32 %v10642, 7
    %v10644 = vsub.s32 %v10641, %v10643
    %v10645 = vrot.slane %v10629, %v10644
    %v10647 = vunpack.c.l.s4 1966171168
    %v10648 = vunpack.c.0.s8 %v10647
    %v10649 = vlaneseq
    %v10650 = vshrl.u32 %v10649, 7
    %v10651 = vsub.s32 %v10648, %v10650
    %v10652 = vrot.slane %v10630, %v10651
    %v10654 = vunpack.c.l.s4 1966171168
    %v10655 = vunpack.c.0.s8 %v10654
    %v10656 = vlaneseq
    %v10657 = vshrl.u32 %v10656, 7
    %v10658 = vsub.s32 %v10655, %v10657
    %v10659 = vrot.slane %v10631, %v10658
    %v10660 = vcombine.low %v10638, %v10645
    %v10661 = vcombine.low %v10652, %v10659
    %v10663 = vunpack.c.l.s4 1966171168
    %v10664 = vunpack.c.0.s8 %v10663
    %v10665 = vlaneseq
    %v10666 = vshrl.u32 %v10665, 7
    %v10667 = vsub.s32 %v10664, %v10666
    %v10668 = vrot.slane %v10660, %v10667
    %v10670 = vunpack.c.l.s4 1966171168
    %v10671 = vunpack.c.0.s8 %v10670
    %v10672 = vlaneseq
    %v10673 = vshrl.u32 %v10672, 7
    %v10674 = vsub.s32 %v10671, %v10673
    %v10675 = vrot.slane %v10661, %v10674
    %v10676 = vcombine.low %v10668, %v10675
    %v10677 = vcombine.low %v4815, %v4819
    %v10678 = vcombine.low %v4823, %v4827
    %v10679 = vcombine.low %v4831, %v4835
    %v10680 = vcombine.low %v4839, %v4843
    %v10682 = vunpack.c.l.s4 1966171168
    %v10683 = vunpack.c.0.s8 %v10682
    %v10684 = vlaneseq
    %v10685 = vshrl.u32 %v10684, 7
    %v10686 = vsub.s32 %v10683, %v10685
    %v10687 = vrot.slane %v10677, %v10686
    %v10689 = vunpack.c.l.s4 1966171168
    %v10690 = vunpack.c.0.s8 %v10689
    %v10691 = vlaneseq
    %v10692 = vshrl.u32 %v10691, 7
    %v10693 = vsub.s32 %v10690, %v10692
    %v10694 = vrot.slane %v10678, %v10693
    %v10696 = vunpack.c.l.s4 1966171168
    %v10697 = vunpack.c.0.s8 %v10696
    %v10698 = vlaneseq
    %v10699 = vshrl.u32 %v10698, 7
    %v10700 = vsub.s32 %v10697, %v10699
    %v10701 = vrot.slane %v10679, %v10700
    %v10703 = vunpack.c.l.s4 1966171168
    %v10704 = vunpack.c.0.s8 %v10703
    %v10705 = vlaneseq
    %v10706 = vshrl.u32 %v10705, 7
    %v10707 = vsub.s32 %v10704, %v10706
    %v10708 = vrot.slane %v10680, %v10707
    %v10709 = vcombine.low %v10687, %v10694
    %v10710 = vcombine.low %v10701, %v10708
    %v10712 = vunpack.c.l.s4 1966171168
    %v10713 = vunpack.c.0.s8 %v10712
    %v10714 = vlaneseq
    %v10715 = vshrl.u32 %v10714, 7
    %v10716 = vsub.s32 %v10713, %v10715
    %v10717 = vrot.slane %v10709, %v10716
    %v10719 = vunpack.c.l.s4 1966171168
    %v10720 = vunpack.c.0.s8 %v10719
    %v10721 = vlaneseq
    %v10722 = vshrl.u32 %v10721, 7
    %v10723 = vsub.s32 %v10720, %v10722
    %v10724 = vrot.slane %v10710, %v10723
    %v10725 = vcombine.low %v10717, %v10724
    %v10726 = vcombine.low %v4847, %v4851
    %v10727 = vcombine.low %v4855, %v4859
    %v10728 = vcombine.low %v4863, %v4867
    %v10729 = vcombine.low %v4871, %v4875
    %v10731 = vunpack.c.l.s4 1966171168
    %v10732 = vunpack.c.0.s8 %v10731
    %v10733 = vlaneseq
    %v10734 = vshrl.u32 %v10733, 7
    %v10735 = vsub.s32 %v10732, %v10734
    %v10736 = vrot.slane %v10726, %v10735
    %v10738 = vunpack.c.l.s4 1966171168
    %v10739 = vunpack.c.0.s8 %v10738
    %v10740 = vlaneseq
    %v10741 = vshrl.u32 %v10740, 7
    %v10742 = vsub.s32 %v10739, %v10741
    %v10743 = vrot.slane %v10727, %v10742
    %v10745 = vunpack.c.l.s4 1966171168
    %v10746 = vunpack.c.0.s8 %v10745
    %v10747 = vlaneseq
    %v10748 = vshrl.u32 %v10747, 7
    %v10749 = vsub.s32 %v10746, %v10748
    %v10750 = vrot.slane %v10728, %v10749
    %v10752 = vunpack.c.l.s4 1966171168
    %v10753 = vunpack.c.0.s8 %v10752
    %v10754 = vlaneseq
    %v10755 = vshrl.u32 %v10754, 7
    %v10756 = vsub.s32 %v10753, %v10755
    %v10757 = vrot.slane %v10729, %v10756
    %v10758 = vcombine.low %v10736, %v10743
    %v10759 = vcombine.low %v10750, %v10757
    %v10761 = vunpack.c.l.s4 1966171168
    %v10762 = vunpack.c.0.s8 %v10761
    %v10763 = vlaneseq
    %v10764 = vshrl.u32 %v10763, 7
    %v10765 = vsub.s32 %v10762, %v10764
    %v10766 = vrot.slane %v10758, %v10765
    %v10768 = vunpack.c.l.s4 1966171168
    %v10769 = vunpack.c.0.s8 %v10768
    %v10770 = vlaneseq
    %v10771 = vshrl.u32 %v10770, 7
    %v10772 = vsub.s32 %v10769, %v10771
    %v10773 = vrot.slane %v10759, %v10772
    %v10774 = vcombine.low %v10766, %v10773
    %v10775 = vcombine.low %v4879, %v4883
    %v10776 = vcombine.low %v4887, %v4891
    %v10777 = vcombine.low %v4895, %v4899
    %v10778 = vcombine.low %v4903, %v4907
    %v10780 = vunpack.c.l.s4 1966171168
    %v10781 = vunpack.c.0.s8 %v10780
    %v10782 = vlaneseq
    %v10783 = vshrl.u32 %v10782, 7
    %v10784 = vsub.s32 %v10781, %v10783
    %v10785 = vrot.slane %v10775, %v10784
    %v10787 = vunpack.c.l.s4 1966171168
    %v10788 = vunpack.c.0.s8 %v10787
    %v10789 = vlaneseq
    %v10790 = vshrl.u32 %v10789, 7
    %v10791 = vsub.s32 %v10788, %v10790
    %v10792 = vrot.slane %v10776, %v10791
    %v10794 = vunpack.c.l.s4 1966171168
    %v10795 = vunpack.c.0.s8 %v10794
    %v10796 = vlaneseq
    %v10797 = vshrl.u32 %v10796, 7
    %v10798 = vsub.s32 %v10795, %v10797
    %v10799 = vrot.slane %v10777, %v10798
    %v10801 = vunpack.c.l.s4 1966171168
    %v10802 = vunpack.c.0.s8 %v10801
    %v10803 = vlaneseq
    %v10804 = vshrl.u32 %v10803, 7
    %v10805 = vsub.s32 %v10802, %v10804
    %v10806 = vrot.slane %v10778, %v10805
    %v10807 = vcombine.low %v10785, %v10792
    %v10808 = vcombine.low %v10799, %v10806
    %v10810 = vunpack.c.l.s4 1966171168
    %v10811 = vunpack.c.0.s8 %v10810
    %v10812 = vlaneseq
    %v10813 = vshrl.u32 %v10812, 7
    %v10814 = vsub.s32 %v10811, %v10813
    %v10815 = vrot.slane %v10807, %v10814
    %v10817 = vunpack.c.l.s4 1966171168
    %v10818 = vunpack.c.0.s8 %v10817
    %v10819 = vlaneseq
    %v10820 = vshrl.u32 %v10819, 7
    %v10821 = vsub.s32 %v10818, %v10820
    %v10822 = vrot.slane %v10808, %v10821
    %v10823 = vcombine.low %v10815, %v10822
    %v10824 = vcombine.low %v4911, %v4915
    %v10825 = vcombine.low %v4919, %v4923
    %v10826 = vcombine.low %v4927, %v4931
    %v10827 = vcombine.low %v4935, %v4939
    %v10829 = vunpack.c.l.s4 1966171168
    %v10830 = vunpack.c.0.s8 %v10829
    %v10831 = vlaneseq
    %v10832 = vshrl.u32 %v10831, 7
    %v10833 = vsub.s32 %v10830, %v10832
    %v10834 = vrot.slane %v10824, %v10833
    %v10836 = vunpack.c.l.s4 1966171168
    %v10837 = vunpack.c.0.s8 %v10836
    %v10838 = vlaneseq
    %v10839 = vshrl.u32 %v10838, 7
    %v10840 = vsub.s32 %v10837, %v10839
    %v10841 = vrot.slane %v10825, %v10840
    %v10843 = vunpack.c.l.s4 1966171168
    %v10844 = vunpack.c.0.s8 %v10843
    %v10845 = vlaneseq
    %v10846 = vshrl.u32 %v10845, 7
    %v10847 = vsub.s32 %v10844, %v10846
    %v10848 = vrot.slane %v10826, %v10847
    %v10850 = vunpack.c.l.s4 1966171168
    %v10851 = vunpack.c.0.s8 %v10850
    %v10852 = vlaneseq
    %v10853 = vshrl.u32 %v10852, 7
    %v10854 = vsub.s32 %v10851, %v10853
    %v10855 = vrot.slane %v10827, %v10854
    %v10856 = vcombine.low %v10834, %v10841
    %v10857 = vcombine.low %v10848, %v10855
    %v10859 = vunpack.c.l.s4 1966171168
    %v10860 = vunpack.c.0.s8 %v10859
    %v10861 = vlaneseq
    %v10862 = vshrl.u32 %v10861, 7
    %v10863 = vsub.s32 %v10860, %v10862
    %v10864 = vrot.slane %v10856, %v10863
    %v10866 = vunpack.c.l.s4 1966171168
    %v10867 = vunpack.c.0.s8 %v10866
    %v10868 = vlaneseq
    %v10869 = vshrl.u32 %v10868, 7
    %v10870 = vsub.s32 %v10867, %v10869
    %v10871 = vrot.slane %v10857, %v10870
    %v10872 = vcombine.low %v10864, %v10871
    %v10873 = vcombine.low %v4943, %v4947
    %v10874 = vcombine.low %v4951, %v4955
    %v10875 = vcombine.low %v4959, %v4963
    %v10876 = vcombine.low %v4967, %v4971
    %v10878 = vunpack.c.l.s4 1966171168
    %v10879 = vunpack.c.0.s8 %v10878
    %v10880 = vlaneseq
    %v10881 = vshrl.u32 %v10880, 7
    %v10882 = vsub.s32 %v10879, %v10881
    %v10883 = vrot.slane %v10873, %v10882
    %v10885 = vunpack.c.l.s4 1966171168
    %v10886 = vunpack.c.0.s8 %v10885
    %v10887 = vlaneseq
    %v10888 = vshrl.u32 %v10887, 7
    %v10889 = vsub.s32 %v10886, %v10888
    %v10890 = vrot.slane %v10874, %v10889
    %v10892 = vunpack.c.l.s4 1966171168
    %v10893 = vunpack.c.0.s8 %v10892
    %v10894 = vlaneseq
    %v10895 = vshrl.u32 %v10894, 7
    %v10896 = vsub.s32 %v10893, %v10895
    %v10897 = vrot.slane %v10875, %v10896
    %v10899 = vunpack.c.l.s4 1966171168
    %v10900 = vunpack.c.0.s8 %v10899
    %v10901 = vlaneseq
    %v10902 = vshrl.u32 %v10901, 7
    %v10903 = vsub.s32 %v10900, %v10902
    %v10904 = vrot.slane %v10876, %v10903
    %v10905 = vcombine.low %v10883, %v10890
    %v10906 = vcombine.low %v10897, %v10904
    %v10908 = vunpack.c.l.s4 1966171168
    %v10909 = vunpack.c.0.s8 %v10908
    %v10910 = vlaneseq
    %v10911 = vshrl.u32 %v10910, 7
    %v10912 = vsub.s32 %v10909, %v10911
    %v10913 = vrot.slane %v10905, %v10912
    %v10915 = vunpack.c.l.s4 1966171168
    %v10916 = vunpack.c.0.s8 %v10915
    %v10917 = vlaneseq
    %v10918 = vshrl.u32 %v10917, 7
    %v10919 = vsub.s32 %v10916, %v10918
    %v10920 = vrot.slane %v10906, %v10919
    %v10921 = vcombine.low %v10913, %v10920
    %v10922 = vcombine.low %v4975, %v4979
    %v10923 = vcombine.low %v4983, %v4987
    %v10924 = vcombine.low %v4991, %v4995
    %v10925 = vcombine.low %v4999, %v5003
    %v10927 = vunpack.c.l.s4 1966171168
    %v10928 = vunpack.c.0.s8 %v10927
    %v10929 = vlaneseq
    %v10930 = vshrl.u32 %v10929, 7
    %v10931 = vsub.s32 %v10928, %v10930
    %v10932 = vrot.slane %v10922, %v10931
    %v10934 = vunpack.c.l.s4 1966171168
    %v10935 = vunpack.c.0.s8 %v10934
    %v10936 = vlaneseq
    %v10937 = vshrl.u32 %v10936, 7
    %v10938 = vsub.s32 %v10935, %v10937
    %v10939 = vrot.slane %v10923, %v10938
    %v10941 = vunpack.c.l.s4 1966171168
    %v10942 = vunpack.c.0.s8 %v10941
    %v10943 = vlaneseq
    %v10944 = vshrl.u32 %v10943, 7
    %v10945 = vsub.s32 %v10942, %v10944
    %v10946 = vrot.slane %v10924, %v10945
    %v10948 = vunpack.c.l.s4 1966171168
    %v10949 = vunpack.c.0.s8 %v10948
    %v10950 = vlaneseq
    %v10951 = vshrl.u32 %v10950, 7
    %v10952 = vsub.s32 %v10949, %v10951
    %v10953 = vrot.slane %v10925, %v10952
    %v10954 = vcombine.low %v10932, %v10939
    %v10955 = vcombine.low %v10946, %v10953
    %v10957 = vunpack.c.l.s4 1966171168
    %v10958 = vunpack.c.0.s8 %v10957
    %v10959 = vlaneseq
    %v10960 = vshrl.u32 %v10959, 7
    %v10961 = vsub.s32 %v10958, %v10960
    %v10962 = vrot.slane %v10954, %v10961
    %v10964 = vunpack.c.l.s4 1966171168
    %v10965 = vunpack.c.0.s8 %v10964
    %v10966 = vlaneseq
    %v10967 = vshrl.u32 %v10966, 7
    %v10968 = vsub.s32 %v10965, %v10967
    %v10969 = vrot.slane %v10955, %v10968
    %v10970 = vcombine.low %v10962, %v10969
    %v10971 = vcombine.low %v5007, %v5011
    %v10972 = vcombine.low %v5015, %v5019
    %v10973 = vcombine.low %v5023, %v5027
    %v10974 = vcombine.low %v5031, %v5035
    %v10976 = vunpack.c.l.s4 1966171168
    %v10977 = vunpack.c.0.s8 %v10976
    %v10978 = vlaneseq
    %v10979 = vshrl.u32 %v10978, 7
    %v10980 = vsub.s32 %v10977, %v10979
    %v10981 = vrot.slane %v10971, %v10980
    %v10983 = vunpack.c.l.s4 1966171168
    %v10984 = vunpack.c.0.s8 %v10983
    %v10985 = vlaneseq
    %v10986 = vshrl.u32 %v10985, 7
    %v10987 = vsub.s32 %v10984, %v10986
    %v10988 = vrot.slane %v10972, %v10987
    %v10990 = vunpack.c.l.s4 1966171168
    %v10991 = vunpack.c.0.s8 %v10990
    %v10992 = vlaneseq
    %v10993 = vshrl.u32 %v10992, 7
    %v10994 = vsub.s32 %v10991, %v10993
    %v10995 = vrot.slane %v10973, %v10994
    %v10997 = vunpack.c.l.s4 1966171168
    %v10998 = vunpack.c.0.s8 %v10997
    %v10999 = vlaneseq
    %v11000 = vshrl.u32 %v10999, 7
    %v11001 = vsub.s32 %v10998, %v11000
    %v11002 = vrot.slane %v10974, %v11001
    %v11003 = vcombine.low %v10981, %v10988
    %v11004 = vcombine.low %v10995, %v11002
    %v11006 = vunpack.c.l.s4 1966171168
    %v11007 = vunpack.c.0.s8 %v11006
    %v11008 = vlaneseq
    %v11009 = vshrl.u32 %v11008, 7
    %v11010 = vsub.s32 %v11007, %v11009
    %v11011 = vrot.slane %v11003, %v11010
    %v11013 = vunpack.c.l.s4 1966171168
    %v11014 = vunpack.c.0.s8 %v11013
    %v11015 = vlaneseq
    %v11016 = vshrl.u32 %v11015, 7
    %v11017 = vsub.s32 %v11014, %v11016
    %v11018 = vrot.slane %v11004, %v11017
    %v11019 = vcombine.low %v11011, %v11018
    %v11020 = vcombine.low %v5039, %v5043
    %v11021 = vcombine.low %v5047, %v5051
    %v11022 = vcombine.low %v5055, %v5059
    %v11023 = vcombine.low %v5063, %v5067
    %v11025 = vunpack.c.l.s4 1966171168
    %v11026 = vunpack.c.0.s8 %v11025
    %v11027 = vlaneseq
    %v11028 = vshrl.u32 %v11027, 7
    %v11029 = vsub.s32 %v11026, %v11028
    %v11030 = vrot.slane %v11020, %v11029
    %v11032 = vunpack.c.l.s4 1966171168
    %v11033 = vunpack.c.0.s8 %v11032
    %v11034 = vlaneseq
    %v11035 = vshrl.u32 %v11034, 7
    %v11036 = vsub.s32 %v11033, %v11035
    %v11037 = vrot.slane %v11021, %v11036
    %v11039 = vunpack.c.l.s4 1966171168
    %v11040 = vunpack.c.0.s8 %v11039
    %v11041 = vlaneseq
    %v11042 = vshrl.u32 %v11041, 7
    %v11043 = vsub.s32 %v11040, %v11042
    %v11044 = vrot.slane %v11022, %v11043
    %v11046 = vunpack.c.l.s4 1966171168
    %v11047 = vunpack.c.0.s8 %v11046
    %v11048 = vlaneseq
    %v11049 = vshrl.u32 %v11048, 7
    %v11050 = vsub.s32 %v11047, %v11049
    %v11051 = vrot.slane %v11023, %v11050
    %v11052 = vcombine.low %v11030, %v11037
    %v11053 = vcombine.low %v11044, %v11051
    %v11055 = vunpack.c.l.s4 1966171168
    %v11056 = vunpack.c.0.s8 %v11055
    %v11057 = vlaneseq
    %v11058 = vshrl.u32 %v11057, 7
    %v11059 = vsub.s32 %v11056, %v11058
    %v11060 = vrot.slane %v11052, %v11059
    %v11062 = vunpack.c.l.s4 1966171168
    %v11063 = vunpack.c.0.s8 %v11062
    %v11064 = vlaneseq
    %v11065 = vshrl.u32 %v11064, 7
    %v11066 = vsub.s32 %v11063, %v11065
    %v11067 = vrot.slane %v11053, %v11066
    %v11068 = vcombine.low %v11060, %v11067
    %v11069 = vcombine.low %v5071, %v5075
    %v11070 = vcombine.low %v5079, %v5083
    %v11071 = vcombine.low %v5087, %v5091
    %v11072 = vcombine.low %v5095, %v5099
    %v11074 = vunpack.c.l.s4 1966171168
    %v11075 = vunpack.c.0.s8 %v11074
    %v11076 = vlaneseq
    %v11077 = vshrl.u32 %v11076, 7
    %v11078 = vsub.s32 %v11075, %v11077
    %v11079 = vrot.slane %v11069, %v11078
    %v11081 = vunpack.c.l.s4 1966171168
    %v11082 = vunpack.c.0.s8 %v11081
    %v11083 = vlaneseq
    %v11084 = vshrl.u32 %v11083, 7
    %v11085 = vsub.s32 %v11082, %v11084
    %v11086 = vrot.slane %v11070, %v11085
    %v11088 = vunpack.c.l.s4 1966171168
    %v11089 = vunpack.c.0.s8 %v11088
    %v11090 = vlaneseq
    %v11091 = vshrl.u32 %v11090, 7
    %v11092 = vsub.s32 %v11089, %v11091
    %v11093 = vrot.slane %v11071, %v11092
    %v11095 = vunpack.c.l.s4 1966171168
    %v11096 = vunpack.c.0.s8 %v11095
    %v11097 = vlaneseq
    %v11098 = vshrl.u32 %v11097, 7
    %v11099 = vsub.s32 %v11096, %v11098
    %v11100 = vrot.slane %v11072, %v11099
    %v11101 = vcombine.low %v11079, %v11086
    %v11102 = vcombine.low %v11093, %v11100
    %v11104 = vunpack.c.l.s4 1966171168
    %v11105 = vunpack.c.0.s8 %v11104
    %v11106 = vlaneseq
    %v11107 = vshrl.u32 %v11106, 7
    %v11108 = vsub.s32 %v11105, %v11107
    %v11109 = vrot.slane %v11101, %v11108
    %v11111 = vunpack.c.l.s4 1966171168
    %v11112 = vunpack.c.0.s8 %v11111
    %v11113 = vlaneseq
    %v11114 = vshrl.u32 %v11113, 7
    %v11115 = vsub.s32 %v11112, %v11114
    %v11116 = vrot.slane %v11102, %v11115
    %v11117 = vcombine.low %v11109, %v11116
    %v11118 = vcombine.low %v5103, %v5107
    %v11119 = vcombine.low %v5111, %v5115
    %v11120 = vcombine.low %v5119, %v5123
    %v11121 = vcombine.low %v5127, %v5131
    %v11123 = vunpack.c.l.s4 1966171168
    %v11124 = vunpack.c.0.s8 %v11123
    %v11125 = vlaneseq
    %v11126 = vshrl.u32 %v11125, 7
    %v11127 = vsub.s32 %v11124, %v11126
    %v11128 = vrot.slane %v11118, %v11127
    %v11130 = vunpack.c.l.s4 1966171168
    %v11131 = vunpack.c.0.s8 %v11130
    %v11132 = vlaneseq
    %v11133 = vshrl.u32 %v11132, 7
    %v11134 = vsub.s32 %v11131, %v11133
    %v11135 = vrot.slane %v11119, %v11134
    %v11137 = vunpack.c.l.s4 1966171168
    %v11138 = vunpack.c.0.s8 %v11137
    %v11139 = vlaneseq
    %v11140 = vshrl.u32 %v11139, 7
    %v11141 = vsub.s32 %v11138, %v11140
    %v11142 = vrot.slane %v11120, %v11141
    %v11144 = vunpack.c.l.s4 1966171168
    %v11145 = vunpack.c.0.s8 %v11144
    %v11146 = vlaneseq
    %v11147 = vshrl.u32 %v11146, 7
    %v11148 = vsub.s32 %v11145, %v11147
    %v11149 = vrot.slane %v11121, %v11148
    %v11150 = vcombine.low %v11128, %v11135
    %v11151 = vcombine.low %v11142, %v11149
    %v11153 = vunpack.c.l.s4 1966171168
    %v11154 = vunpack.c.0.s8 %v11153
    %v11155 = vlaneseq
    %v11156 = vshrl.u32 %v11155, 7
    %v11157 = vsub.s32 %v11154, %v11156
    %v11158 = vrot.slane %v11150, %v11157
    %v11160 = vunpack.c.l.s4 1966171168
    %v11161 = vunpack.c.0.s8 %v11160
    %v11162 = vlaneseq
    %v11163 = vshrl.u32 %v11162, 7
    %v11164 = vsub.s32 %v11161, %v11163
    %v11165 = vrot.slane %v11151, %v11164
    %v11166 = vcombine.low %v11158, %v11165
    %v11167 = vcombine.low %v5135, %v5139
    %v11168 = vcombine.low %v5143, %v5147
    %v11169 = vcombine.low %v5151, %v5155
    %v11170 = vcombine.low %v5159, %v5163
    %v11172 = vunpack.c.l.s4 1966171168
    %v11173 = vunpack.c.0.s8 %v11172
    %v11174 = vlaneseq
    %v11175 = vshrl.u32 %v11174, 7
    %v11176 = vsub.s32 %v11173, %v11175
    %v11177 = vrot.slane %v11167, %v11176
    %v11179 = vunpack.c.l.s4 1966171168
    %v11180 = vunpack.c.0.s8 %v11179
    %v11181 = vlaneseq
    %v11182 = vshrl.u32 %v11181, 7
    %v11183 = vsub.s32 %v11180, %v11182
    %v11184 = vrot.slane %v11168, %v11183
    %v11186 = vunpack.c.l.s4 1966171168
    %v11187 = vunpack.c.0.s8 %v11186
    %v11188 = vlaneseq
    %v11189 = vshrl.u32 %v11188, 7
    %v11190 = vsub.s32 %v11187, %v11189
    %v11191 = vrot.slane %v11169, %v11190
    %v11193 = vunpack.c.l.s4 1966171168
    %v11194 = vunpack.c.0.s8 %v11193
    %v11195 = vlaneseq
    %v11196 = vshrl.u32 %v11195, 7
    %v11197 = vsub.s32 %v11194, %v11196
    %v11198 = vrot.slane %v11170, %v11197
    %v11199 = vcombine.low %v11177, %v11184
    %v11200 = vcombine.low %v11191, %v11198
    %v11202 = vunpack.c.l.s4 1966171168
    %v11203 = vunpack.c.0.s8 %v11202
    %v11204 = vlaneseq
    %v11205 = vshrl.u32 %v11204, 7
    %v11206 = vsub.s32 %v11203, %v11205
    %v11207 = vrot.slane %v11199, %v11206
    %v11209 = vunpack.c.l.s4 1966171168
    %v11210 = vunpack.c.0.s8 %v11209
    %v11211 = vlaneseq
    %v11212 = vshrl.u32 %v11211, 7
    %v11213 = vsub.s32 %v11210, %v11212
    %v11214 = vrot.slane %v11200, %v11213
    %v11215 = vcombine.low %v11207, %v11214
    %v11216 = vcombine.low %v5167, %v5171
    %v11217 = vcombine.low %v5175, %v5179
    %v11218 = vcombine.low %v5183, %v5187
    %v11219 = vcombine.low %v5191, %v5195
    %v11221 = vunpack.c.l.s4 1966171168
    %v11222 = vunpack.c.0.s8 %v11221
    %v11223 = vlaneseq
    %v11224 = vshrl.u32 %v11223, 7
    %v11225 = vsub.s32 %v11222, %v11224
    %v11226 = vrot.slane %v11216, %v11225
    %v11228 = vunpack.c.l.s4 1966171168
    %v11229 = vunpack.c.0.s8 %v11228
    %v11230 = vlaneseq
    %v11231 = vshrl.u32 %v11230, 7
    %v11232 = vsub.s32 %v11229, %v11231
    %v11233 = vrot.slane %v11217, %v11232
    %v11235 = vunpack.c.l.s4 1966171168
    %v11236 = vunpack.c.0.s8 %v11235
    %v11237 = vlaneseq
    %v11238 = vshrl.u32 %v11237, 7
    %v11239 = vsub.s32 %v11236, %v11238
    %v11240 = vrot.slane %v11218, %v11239
    %v11242 = vunpack.c.l.s4 1966171168
    %v11243 = vunpack.c.0.s8 %v11242
    %v11244 = vlaneseq
    %v11245 = vshrl.u32 %v11244, 7
    %v11246 = vsub.s32 %v11243, %v11245
    %v11247 = vrot.slane %v11219, %v11246
    %v11248 = vcombine.low %v11226, %v11233
    %v11249 = vcombine.low %v11240, %v11247
    %v11251 = vunpack.c.l.s4 1966171168
    %v11252 = vunpack.c.0.s8 %v11251
    %v11253 = vlaneseq
    %v11254 = vshrl.u32 %v11253, 7
    %v11255 = vsub.s32 %v11252, %v11254
    %v11256 = vrot.slane %v11248, %v11255
    %v11258 = vunpack.c.l.s4 1966171168
    %v11259 = vunpack.c.0.s8 %v11258
    %v11260 = vlaneseq
    %v11261 = vshrl.u32 %v11260, 7
    %v11262 = vsub.s32 %v11259, %v11261
    %v11263 = vrot.slane %v11249, %v11262
    %v11264 = vcombine.low %v11256, %v11263
    %v11265 = vcombine.low %v5199, %v5203
    %v11266 = vcombine.low %v5207, %v5211
    %v11267 = vcombine.low %v5215, %v5219
    %v11268 = vcombine.low %v5223, %v5227
    %v11270 = vunpack.c.l.s4 1966171168
    %v11271 = vunpack.c.0.s8 %v11270
    %v11272 = vlaneseq
    %v11273 = vshrl.u32 %v11272, 7
    %v11274 = vsub.s32 %v11271, %v11273
    %v11275 = vrot.slane %v11265, %v11274
    %v11277 = vunpack.c.l.s4 1966171168
    %v11278 = vunpack.c.0.s8 %v11277
    %v11279 = vlaneseq
    %v11280 = vshrl.u32 %v11279, 7
    %v11281 = vsub.s32 %v11278, %v11280
    %v11282 = vrot.slane %v11266, %v11281
    %v11284 = vunpack.c.l.s4 1966171168
    %v11285 = vunpack.c.0.s8 %v11284
    %v11286 = vlaneseq
    %v11287 = vshrl.u32 %v11286, 7
    %v11288 = vsub.s32 %v11285, %v11287
    %v11289 = vrot.slane %v11267, %v11288
    %v11291 = vunpack.c.l.s4 1966171168
    %v11292 = vunpack.c.0.s8 %v11291
    %v11293 = vlaneseq
    %v11294 = vshrl.u32 %v11293, 7
    %v11295 = vsub.s32 %v11292, %v11294
    %v11296 = vrot.slane %v11268, %v11295
    %v11297 = vcombine.low %v11275, %v11282
    %v11298 = vcombine.low %v11289, %v11296
    %v11300 = vunpack.c.l.s4 1966171168
    %v11301 = vunpack.c.0.s8 %v11300
    %v11302 = vlaneseq
    %v11303 = vshrl.u32 %v11302, 7
    %v11304 = vsub.s32 %v11301, %v11303
    %v11305 = vrot.slane %v11297, %v11304
    %v11307 = vunpack.c.l.s4 1966171168
    %v11308 = vunpack.c.0.s8 %v11307
    %v11309 = vlaneseq
    %v11310 = vshrl.u32 %v11309, 7
    %v11311 = vsub.s32 %v11308, %v11310
    %v11312 = vrot.slane %v11298, %v11311
    %v11313 = vcombine.low %v11305, %v11312
    %v11314 = vcombine.low %v5231, %v5235
    %v11315 = vcombine.low %v5239, %v5243
    %v11316 = vcombine.low %v5247, %v5251
    %v11317 = vcombine.low %v5255, %v5259
    %v11319 = vunpack.c.l.s4 1966171168
    %v11320 = vunpack.c.0.s8 %v11319
    %v11321 = vlaneseq
    %v11322 = vshrl.u32 %v11321, 7
    %v11323 = vsub.s32 %v11320, %v11322
    %v11324 = vrot.slane %v11314, %v11323
    %v11326 = vunpack.c.l.s4 1966171168
    %v11327 = vunpack.c.0.s8 %v11326
    %v11328 = vlaneseq
    %v11329 = vshrl.u32 %v11328, 7
    %v11330 = vsub.s32 %v11327, %v11329
    %v11331 = vrot.slane %v11315, %v11330
    %v11333 = vunpack.c.l.s4 1966171168
    %v11334 = vunpack.c.0.s8 %v11333
    %v11335 = vlaneseq
    %v11336 = vshrl.u32 %v11335, 7
    %v11337 = vsub.s32 %v11334, %v11336
    %v11338 = vrot.slane %v11316, %v11337
    %v11340 = vunpack.c.l.s4 1966171168
    %v11341 = vunpack.c.0.s8 %v11340
    %v11342 = vlaneseq
    %v11343 = vshrl.u32 %v11342, 7
    %v11344 = vsub.s32 %v11341, %v11343
    %v11345 = vrot.slane %v11317, %v11344
    %v11346 = vcombine.low %v11324, %v11331
    %v11347 = vcombine.low %v11338, %v11345
    %v11349 = vunpack.c.l.s4 1966171168
    %v11350 = vunpack.c.0.s8 %v11349
    %v11351 = vlaneseq
    %v11352 = vshrl.u32 %v11351, 7
    %v11353 = vsub.s32 %v11350, %v11352
    %v11354 = vrot.slane %v11346, %v11353
    %v11356 = vunpack.c.l.s4 1966171168
    %v11357 = vunpack.c.0.s8 %v11356
    %v11358 = vlaneseq
    %v11359 = vshrl.u32 %v11358, 7
    %v11360 = vsub.s32 %v11357, %v11359
    %v11361 = vrot.slane %v11347, %v11360
    %v11362 = vcombine.low %v11354, %v11361
    %v11363 = vcombine.low %v5263, %v5267
    %v11364 = vcombine.low %v5271, %v5275
    %v11365 = vcombine.low %v5279, %v5283
    %v11366 = vcombine.low %v5287, %v5291
    %v11368 = vunpack.c.l.s4 1966171168
    %v11369 = vunpack.c.0.s8 %v11368
    %v11370 = vlaneseq
    %v11371 = vshrl.u32 %v11370, 7
    %v11372 = vsub.s32 %v11369, %v11371
    %v11373 = vrot.slane %v11363, %v11372
    %v11375 = vunpack.c.l.s4 1966171168
    %v11376 = vunpack.c.0.s8 %v11375
    %v11377 = vlaneseq
    %v11378 = vshrl.u32 %v11377, 7
    %v11379 = vsub.s32 %v11376, %v11378
    %v11380 = vrot.slane %v11364, %v11379
    %v11382 = vunpack.c.l.s4 1966171168
    %v11383 = vunpack.c.0.s8 %v11382
    %v11384 = vlaneseq
    %v11385 = vshrl.u32 %v11384, 7
    %v11386 = vsub.s32 %v11383, %v11385
    %v11387 = vrot.slane %v11365, %v11386
    %v11389 = vunpack.c.l.s4 1966171168
    %v11390 = vunpack.c.0.s8 %v11389
    %v11391 = vlaneseq
    %v11392 = vshrl.u32 %v11391, 7
    %v11393 = vsub.s32 %v11390, %v11392
    %v11394 = vrot.slane %v11366, %v11393
    %v11395 = vcombine.low %v11373, %v11380
    %v11396 = vcombine.low %v11387, %v11394
    %v11398 = vunpack.c.l.s4 1966171168
    %v11399 = vunpack.c.0.s8 %v11398
    %v11400 = vlaneseq
    %v11401 = vshrl.u32 %v11400, 7
    %v11402 = vsub.s32 %v11399, %v11401
    %v11403 = vrot.slane %v11395, %v11402
    %v11405 = vunpack.c.l.s4 1966171168
    %v11406 = vunpack.c.0.s8 %v11405
    %v11407 = vlaneseq
    %v11408 = vshrl.u32 %v11407, 7
    %v11409 = vsub.s32 %v11406, %v11408
    %v11410 = vrot.slane %v11396, %v11409
    %v11411 = vcombine.low %v11403, %v11410
    %v11412 = vcombine.low %v5295, %v5299
    %v11413 = vcombine.low %v5303, %v5307
    %v11414 = vcombine.low %v5311, %v5315
    %v11415 = vcombine.low %v5319, %v5323
    %v11417 = vunpack.c.l.s4 1966171168
    %v11418 = vunpack.c.0.s8 %v11417
    %v11419 = vlaneseq
    %v11420 = vshrl.u32 %v11419, 7
    %v11421 = vsub.s32 %v11418, %v11420
    %v11422 = vrot.slane %v11412, %v11421
    %v11424 = vunpack.c.l.s4 1966171168
    %v11425 = vunpack.c.0.s8 %v11424
    %v11426 = vlaneseq
    %v11427 = vshrl.u32 %v11426, 7
    %v11428 = vsub.s32 %v11425, %v11427
    %v11429 = vrot.slane %v11413, %v11428
    %v11431 = vunpack.c.l.s4 1966171168
    %v11432 = vunpack.c.0.s8 %v11431
    %v11433 = vlaneseq
    %v11434 = vshrl.u32 %v11433, 7
    %v11435 = vsub.s32 %v11432, %v11434
    %v11436 = vrot.slane %v11414, %v11435
    %v11438 = vunpack.c.l.s4 1966171168
    %v11439 = vunpack.c.0.s8 %v11438
    %v11440 = vlaneseq
    %v11441 = vshrl.u32 %v11440, 7
    %v11442 = vsub.s32 %v11439, %v11441
    %v11443 = vrot.slane %v11415, %v11442
    %v11444 = vcombine.low %v11422, %v11429
    %v11445 = vcombine.low %v11436, %v11443
    %v11447 = vunpack.c.l.s4 1966171168
    %v11448 = vunpack.c.0.s8 %v11447
    %v11449 = vlaneseq
    %v11450 = vshrl.u32 %v11449, 7
    %v11451 = vsub.s32 %v11448, %v11450
    %v11452 = vrot.slane %v11444, %v11451
    %v11454 = vunpack.c.l.s4 1966171168
    %v11455 = vunpack.c.0.s8 %v11454
    %v11456 = vlaneseq
    %v11457 = vshrl.u32 %v11456, 7
    %v11458 = vsub.s32 %v11455, %v11457
    %v11459 = vrot.slane %v11445, %v11458
    %v11460 = vcombine.low %v11452, %v11459
    %v11461 = vcombine.low %v5327, %v5331
    %v11463 = vunpack.c.l.s4 1966171168
    %v11464 = vunpack.c.0.s8 %v11463
    %v11465 = vlaneseq
    %v11466 = vshrl.u32 %v11465, 7
    %v11467 = vsub.s32 %v11464, %v11466
    %v11468 = vrot.slane %v11461, %v11467
    %v11470 = vunpack.c.l.s4 1966171168
    %v11471 = vunpack.c.0.s8 %v11470
    %v11472 = vlaneseq
    %v11473 = vshrl.u32 %v11472, 7
    %v11474 = vsub.s32 %v11471, %v11473
    %v11475 = vrot.slane %v5335, %v11474
    %v11476 = vcombine.low %v11468, %v11475
    %v11478 = vunpack.c.l.s4 1966171168
    %v11479 = vunpack.c.0.s8 %v11478
    %v11480 = vlaneseq
    %v11481 = vshrl.u32 %v11480, 7
    %v11482 = vsub.s32 %v11479, %v11481
    %v11483 = vrot.slane %v11476, %v11482
    %11484 = vset.pattern.permute.xlu0 0
    %11485 = vperm.xlu0 %11484, %v5384
    %v11486 = vpop.permute.xlu0 %11485
    %11487 = vset.pattern.permute.xlu0 0
    %11488 = vperm.xlu0 %11487, %v5433
    %v11489 = vpop.permute.xlu0 %11488
    %11490 = vset.pattern.permute.xlu0 0
    %11491 = vperm.xlu0 %11490, %v5482
    %v11492 = vpop.permute.xlu0 %11491
    %11493 = vset.pattern.permute.xlu0 0
    %11494 = vperm.xlu0 %11493, %v5531
    %v11495 = vpop.permute.xlu0 %11494
    %11496 = vset.pattern.permute.xlu0 0
    %11497 = vperm.xlu0 %11496, %v5580
    %v11498 = vpop.permute.xlu0 %11497
    %11499 = vset.pattern.permute.xlu0 0
    %11500 = vperm.xlu0 %11499, %v5629
    %v11501 = vpop.permute.xlu0 %11500
    %11502 = vset.pattern.permute.xlu0 0
    %11503 = vperm.xlu0 %11502, %v5678
    %v11504 = vpop.permute.xlu0 %11503
    %11505 = vset.pattern.permute.xlu0 0
    %11506 = vperm.xlu0 %11505, %v5727
    %v11507 = vpop.permute.xlu0 %11506
    %11508 = vset.pattern.permute.xlu0 0
    %11509 = vperm.xlu0 %11508, %v5776
    %v11510 = vpop.permute.xlu0 %11509
    %11511 = vset.pattern.permute.xlu0 0
    %11512 = vperm.xlu0 %11511, %v5825
    %v11513 = vpop.permute.xlu0 %11512
    %11514 = vset.pattern.permute.xlu0 0
    %11515 = vperm.xlu0 %11514, %v5874
    %v11516 = vpop.permute.xlu0 %11515
    %11517 = vset.pattern.permute.xlu0 0
    %11518 = vperm.xlu0 %11517, %v5923
    %v11519 = vpop.permute.xlu0 %11518
    %11520 = vset.pattern.permute.xlu0 0
    %11521 = vperm.xlu0 %11520, %v5972
    %v11522 = vpop.permute.xlu0 %11521
    %11523 = vset.pattern.permute.xlu0 0
    %11524 = vperm.xlu0 %11523, %v6021
    %v11525 = vpop.permute.xlu0 %11524
    %11526 = vset.pattern.permute.xlu0 0
    %11527 = vperm.xlu0 %11526, %v6070
    %v11528 = vpop.permute.xlu0 %11527
    %11529 = vset.pattern.permute.xlu0 0
    %11530 = vperm.xlu0 %11529, %v6119
    %v11531 = vpop.permute.xlu0 %11530
    %11532 = vset.pattern.permute.xlu0 0
    %11533 = vperm.xlu0 %11532, %v6168
    %v11534 = vpop.permute.xlu0 %11533
    %11535 = vset.pattern.permute.xlu0 0
    %11536 = vperm.xlu0 %11535, %v6217
    %v11537 = vpop.permute.xlu0 %11536
    %11538 = vset.pattern.permute.xlu0 0
    %11539 = vperm.xlu0 %11538, %v6266
    %v11540 = vpop.permute.xlu0 %11539
    %11541 = vset.pattern.permute.xlu0 0
    %11542 = vperm.xlu0 %11541, %v6315
    %v11543 = vpop.permute.xlu0 %11542
    %11544 = vset.pattern.permute.xlu0 0
    %11545 = vperm.xlu0 %11544, %v6364
    %v11546 = vpop.permute.xlu0 %11545
    %11547 = vset.pattern.permute.xlu0 0
    %11548 = vperm.xlu0 %11547, %v6413
    %v11549 = vpop.permute.xlu0 %11548
    %11550 = vset.pattern.permute.xlu0 0
    %11551 = vperm.xlu0 %11550, %v6462
    %v11552 = vpop.permute.xlu0 %11551
    %11553 = vset.pattern.permute.xlu0 0
    %11554 = vperm.xlu0 %11553, %v6511
    %v11555 = vpop.permute.xlu0 %11554
    %11556 = vset.pattern.permute.xlu0 0
    %11557 = vperm.xlu0 %11556, %v6560
    %v11558 = vpop.permute.xlu0 %11557
    %11559 = vset.pattern.permute.xlu0 0
    %11560 = vperm.xlu0 %11559, %v6609
    %v11561 = vpop.permute.xlu0 %11560
    %11562 = vset.pattern.permute.xlu0 0
    %11563 = vperm.xlu0 %11562, %v6658
    %v11564 = vpop.permute.xlu0 %11563
    %11565 = vset.pattern.permute.xlu0 0
    %11566 = vperm.xlu0 %11565, %v6707
    %v11567 = vpop.permute.xlu0 %11566
    %11568 = vset.pattern.permute.xlu0 0
    %11569 = vperm.xlu0 %11568, %v6756
    %v11570 = vpop.permute.xlu0 %11569
    %11571 = vset.pattern.permute.xlu0 0
    %11572 = vperm.xlu0 %11571, %v6805
    %v11573 = vpop.permute.xlu0 %11572
    %11574 = vset.pattern.permute.xlu0 0
    %11575 = vperm.xlu0 %11574, %v6854
    %v11576 = vpop.permute.xlu0 %11575
    %11577 = vset.pattern.permute.xlu0 0
    %11578 = vperm.xlu0 %11577, %v6903
    %v11579 = vpop.permute.xlu0 %11578
    %11580 = vset.pattern.permute.xlu0 0
    %11581 = vperm.xlu0 %11580, %v6952
    %v11582 = vpop.permute.xlu0 %11581
    %11583 = vset.pattern.permute.xlu0 0
    %11584 = vperm.xlu0 %11583, %v7001
    %v11585 = vpop.permute.xlu0 %11584
    %11586 = vset.pattern.permute.xlu0 0
    %11587 = vperm.xlu0 %11586, %v7050
    %v11588 = vpop.permute.xlu0 %11587
    %11589 = vset.pattern.permute.xlu0 0
    %11590 = vperm.xlu0 %11589, %v7099
    %v11591 = vpop.permute.xlu0 %11590
    %11592 = vset.pattern.permute.xlu0 0
    %11593 = vperm.xlu0 %11592, %v7148
    %v11594 = vpop.permute.xlu0 %11593
    %11595 = vset.pattern.permute.xlu0 0
    %11596 = vperm.xlu0 %11595, %v7197
    %v11597 = vpop.permute.xlu0 %11596
    %11598 = vset.pattern.permute.xlu0 0
    %11599 = vperm.xlu0 %11598, %v7246
    %v11600 = vpop.permute.xlu0 %11599
    %11601 = vset.pattern.permute.xlu0 0
    %11602 = vperm.xlu0 %11601, %v7295
    %v11603 = vpop.permute.xlu0 %11602
    %11604 = vset.pattern.permute.xlu0 0
    %11605 = vperm.xlu0 %11604, %v7344
    %v11606 = vpop.permute.xlu0 %11605
    %11607 = vset.pattern.permute.xlu0 0
    %11608 = vperm.xlu0 %11607, %v7393
    %v11609 = vpop.permute.xlu0 %11608
    %11610 = vset.pattern.permute.xlu0 0
    %11611 = vperm.xlu0 %11610, %v7442
    %v11612 = vpop.permute.xlu0 %11611
    %11613 = vset.pattern.permute.xlu0 0
    %11614 = vperm.xlu0 %11613, %v7491
    %v11615 = vpop.permute.xlu0 %11614
    %11616 = vset.pattern.permute.xlu0 0
    %11617 = vperm.xlu0 %11616, %v7540
    %v11618 = vpop.permute.xlu0 %11617
    %11619 = vset.pattern.permute.xlu0 0
    %11620 = vperm.xlu0 %11619, %v7589
    %v11621 = vpop.permute.xlu0 %11620
    %11622 = vset.pattern.permute.xlu0 0
    %11623 = vperm.xlu0 %11622, %v7638
    %v11624 = vpop.permute.xlu0 %11623
    %11625 = vset.pattern.permute.xlu0 0
    %11626 = vperm.xlu0 %11625, %v7687
    %v11627 = vpop.permute.xlu0 %11626
    %11628 = vset.pattern.permute.xlu0 0
    %11629 = vperm.xlu0 %11628, %v7736
    %v11630 = vpop.permute.xlu0 %11629
    %11631 = vset.pattern.permute.xlu0 0
    %11632 = vperm.xlu0 %11631, %v7785
    %v11633 = vpop.permute.xlu0 %11632
    %11634 = vset.pattern.permute.xlu0 0
    %11635 = vperm.xlu0 %11634, %v7834
    %v11636 = vpop.permute.xlu0 %11635
    %11637 = vset.pattern.permute.xlu0 0
    %11638 = vperm.xlu0 %11637, %v7883
    %v11639 = vpop.permute.xlu0 %11638
    %11640 = vset.pattern.permute.xlu0 0
    %11641 = vperm.xlu0 %11640, %v7932
    %v11642 = vpop.permute.xlu0 %11641
    %11643 = vset.pattern.permute.xlu0 0
    %11644 = vperm.xlu0 %11643, %v7981
    %v11645 = vpop.permute.xlu0 %11644
    %11646 = vset.pattern.permute.xlu0 0
    %11647 = vperm.xlu0 %11646, %v8030
    %v11648 = vpop.permute.xlu0 %11647
    %11649 = vset.pattern.permute.xlu0 0
    %11650 = vperm.xlu0 %11649, %v8079
    %v11651 = vpop.permute.xlu0 %11650
    %11652 = vset.pattern.permute.xlu0 0
    %11653 = vperm.xlu0 %11652, %v8128
    %v11654 = vpop.permute.xlu0 %11653
    %11655 = vset.pattern.permute.xlu0 0
    %11656 = vperm.xlu0 %11655, %v8177
    %v11657 = vpop.permute.xlu0 %11656
    %11658 = vset.pattern.permute.xlu0 0
    %11659 = vperm.xlu0 %11658, %v8226
    %v11660 = vpop.permute.xlu0 %11659
    %11661 = vset.pattern.permute.xlu0 0
    %11662 = vperm.xlu0 %11661, %v8275
    %v11663 = vpop.permute.xlu0 %11662
    %11664 = vset.pattern.permute.xlu0 0
    %11665 = vperm.xlu0 %11664, %v8324
    %v11666 = vpop.permute.xlu0 %11665
    %11667 = vset.pattern.permute.xlu0 0
    %11668 = vperm.xlu0 %11667, %v8373
    %v11669 = vpop.permute.xlu0 %11668
    %11670 = vset.pattern.permute.xlu0 0
    %11671 = vperm.xlu0 %11670, %v8422
    %v11672 = vpop.permute.xlu0 %11671
    %11673 = vset.pattern.permute.xlu0 0
    %11674 = vperm.xlu0 %11673, %v8471
    %v11675 = vpop.permute.xlu0 %11674
    %11676 = vset.pattern.permute.xlu0 0
    %11677 = vperm.xlu0 %11676, %v8520
    %v11678 = vpop.permute.xlu0 %11677
    %11679 = vset.pattern.permute.xlu0 0
    %11680 = vperm.xlu0 %11679, %v8569
    %v11681 = vpop.permute.xlu0 %11680
    %11682 = vset.pattern.permute.xlu0 0
    %11683 = vperm.xlu0 %11682, %v8618
    %v11684 = vpop.permute.xlu0 %11683
    %11685 = vset.pattern.permute.xlu0 0
    %11686 = vperm.xlu0 %11685, %v8667
    %v11687 = vpop.permute.xlu0 %11686
    %11688 = vset.pattern.permute.xlu0 0
    %11689 = vperm.xlu0 %11688, %v8716
    %v11690 = vpop.permute.xlu0 %11689
    %11691 = vset.pattern.permute.xlu0 0
    %11692 = vperm.xlu0 %11691, %v8765
    %v11693 = vpop.permute.xlu0 %11692
    %11694 = vset.pattern.permute.xlu0 0
    %11695 = vperm.xlu0 %11694, %v8814
    %v11696 = vpop.permute.xlu0 %11695
    %11697 = vset.pattern.permute.xlu0 0
    %11698 = vperm.xlu0 %11697, %v8863
    %v11699 = vpop.permute.xlu0 %11698
    %11700 = vset.pattern.permute.xlu0 0
    %11701 = vperm.xlu0 %11700, %v8912
    %v11702 = vpop.permute.xlu0 %11701
    %11703 = vset.pattern.permute.xlu0 0
    %11704 = vperm.xlu0 %11703, %v8961
    %v11705 = vpop.permute.xlu0 %11704
    %11706 = vset.pattern.permute.xlu0 0
    %11707 = vperm.xlu0 %11706, %v9010
    %v11708 = vpop.permute.xlu0 %11707
    %11709 = vset.pattern.permute.xlu0 0
    %11710 = vperm.xlu0 %11709, %v9059
    %v11711 = vpop.permute.xlu0 %11710
    %11712 = vset.pattern.permute.xlu0 0
    %11713 = vperm.xlu0 %11712, %v9108
    %v11714 = vpop.permute.xlu0 %11713
    %11715 = vset.pattern.permute.xlu0 0
    %11716 = vperm.xlu0 %11715, %v9157
    %v11717 = vpop.permute.xlu0 %11716
    %11718 = vset.pattern.permute.xlu0 0
    %11719 = vperm.xlu0 %11718, %v9206
    %v11720 = vpop.permute.xlu0 %11719
    %11721 = vset.pattern.permute.xlu0 0
    %11722 = vperm.xlu0 %11721, %v9255
    %v11723 = vpop.permute.xlu0 %11722
    %11724 = vset.pattern.permute.xlu0 0
    %11725 = vperm.xlu0 %11724, %v9304
    %v11726 = vpop.permute.xlu0 %11725
    %11727 = vset.pattern.permute.xlu0 0
    %11728 = vperm.xlu0 %11727, %v9353
    %v11729 = vpop.permute.xlu0 %11728
    %11730 = vset.pattern.permute.xlu0 0
    %11731 = vperm.xlu0 %11730, %v9402
    %v11732 = vpop.permute.xlu0 %11731
    %11733 = vset.pattern.permute.xlu0 0
    %11734 = vperm.xlu0 %11733, %v9451
    %v11735 = vpop.permute.xlu0 %11734
    %11736 = vset.pattern.permute.xlu0 0
    %11737 = vperm.xlu0 %11736, %v9500
    %v11738 = vpop.permute.xlu0 %11737
    %11739 = vset.pattern.permute.xlu0 0
    %11740 = vperm.xlu0 %11739, %v9549
    %v11741 = vpop.permute.xlu0 %11740
    %11742 = vset.pattern.permute.xlu0 0
    %11743 = vperm.xlu0 %11742, %v9598
    %v11744 = vpop.permute.xlu0 %11743
    %11745 = vset.pattern.permute.xlu0 0
    %11746 = vperm.xlu0 %11745, %v9647
    %v11747 = vpop.permute.xlu0 %11746
    %11748 = vset.pattern.permute.xlu0 0
    %11749 = vperm.xlu0 %11748, %v9696
    %v11750 = vpop.permute.xlu0 %11749
    %11751 = vset.pattern.permute.xlu0 0
    %11752 = vperm.xlu0 %11751, %v9745
    %v11753 = vpop.permute.xlu0 %11752
    %11754 = vset.pattern.permute.xlu0 0
    %11755 = vperm.xlu0 %11754, %v9794
    %v11756 = vpop.permute.xlu0 %11755
    %11757 = vset.pattern.permute.xlu0 0
    %11758 = vperm.xlu0 %11757, %v9843
    %v11759 = vpop.permute.xlu0 %11758
    %11760 = vset.pattern.permute.xlu0 0
    %11761 = vperm.xlu0 %11760, %v9892
    %v11762 = vpop.permute.xlu0 %11761
    %11763 = vset.pattern.permute.xlu0 0
    %11764 = vperm.xlu0 %11763, %v9941
    %v11765 = vpop.permute.xlu0 %11764
    %11766 = vset.pattern.permute.xlu0 0
    %11767 = vperm.xlu0 %11766, %v9990
    %v11768 = vpop.permute.xlu0 %11767
    %11769 = vset.pattern.permute.xlu0 0
    %11770 = vperm.xlu0 %11769, %v10039
    %v11771 = vpop.permute.xlu0 %11770
    %11772 = vset.pattern.permute.xlu0 0
    %11773 = vperm.xlu0 %11772, %v10088
    %v11774 = vpop.permute.xlu0 %11773
    %11775 = vset.pattern.permute.xlu0 0
    %11776 = vperm.xlu0 %11775, %v10137
    %v11777 = vpop.permute.xlu0 %11776
    %11778 = vset.pattern.permute.xlu0 0
    %11779 = vperm.xlu0 %11778, %v10186
    %v11780 = vpop.permute.xlu0 %11779
    %11781 = vset.pattern.permute.xlu0 0
    %11782 = vperm.xlu0 %11781, %v10235
    %v11783 = vpop.permute.xlu0 %11782
    %11784 = vset.pattern.permute.xlu0 0
    %11785 = vperm.xlu0 %11784, %v10284
    %v11786 = vpop.permute.xlu0 %11785
    %11787 = vset.pattern.permute.xlu0 0
    %11788 = vperm.xlu0 %11787, %v10333
    %v11789 = vpop.permute.xlu0 %11788
    %11790 = vset.pattern.permute.xlu0 0
    %11791 = vperm.xlu0 %11790, %v10382
    %v11792 = vpop.permute.xlu0 %11791
    %11793 = vset.pattern.permute.xlu0 0
    %11794 = vperm.xlu0 %11793, %v10431
    %v11795 = vpop.permute.xlu0 %11794
    %11796 = vset.pattern.permute.xlu0 0
    %11797 = vperm.xlu0 %11796, %v10480
    %v11798 = vpop.permute.xlu0 %11797
    %11799 = vset.pattern.permute.xlu0 0
    %11800 = vperm.xlu0 %11799, %v10529
    %v11801 = vpop.permute.xlu0 %11800
    %11802 = vset.pattern.permute.xlu0 0
    %11803 = vperm.xlu0 %11802, %v10578
    %v11804 = vpop.permute.xlu0 %11803
    %11805 = vset.pattern.permute.xlu0 0
    %11806 = vperm.xlu0 %11805, %v10627
    %v11807 = vpop.permute.xlu0 %11806
    %11808 = vset.pattern.permute.xlu0 0
    %11809 = vperm.xlu0 %11808, %v10676
    %v11810 = vpop.permute.xlu0 %11809
    %11811 = vset.pattern.permute.xlu0 0
    %11812 = vperm.xlu0 %11811, %v10725
    %v11813 = vpop.permute.xlu0 %11812
    %11814 = vset.pattern.permute.xlu0 0
    %11815 = vperm.xlu0 %11814, %v10774
    %v11816 = vpop.permute.xlu0 %11815
    %11817 = vset.pattern.permute.xlu0 0
    %11818 = vperm.xlu0 %11817, %v10823
    %v11819 = vpop.permute.xlu0 %11818
    %11820 = vset.pattern.permute.xlu0 0
    %11821 = vperm.xlu0 %11820, %v10872
    %v11822 = vpop.permute.xlu0 %11821
    %11823 = vset.pattern.permute.xlu0 0
    %11824 = vperm.xlu0 %11823, %v10921
    %v11825 = vpop.permute.xlu0 %11824
    %11826 = vset.pattern.permute.xlu0 0
    %11827 = vperm.xlu0 %11826, %v10970
    %v11828 = vpop.permute.xlu0 %11827
    %11829 = vset.pattern.permute.xlu0 0
    %11830 = vperm.xlu0 %11829, %v11019
    %v11831 = vpop.permute.xlu0 %11830
    %11832 = vset.pattern.permute.xlu0 0
    %11833 = vperm.xlu0 %11832, %v11068
    %v11834 = vpop.permute.xlu0 %11833
    %11835 = vset.pattern.permute.xlu0 0
    %11836 = vperm.xlu0 %11835, %v11117
    %v11837 = vpop.permute.xlu0 %11836
    %11838 = vset.pattern.permute.xlu0 0
    %11839 = vperm.xlu0 %11838, %v11166
    %v11840 = vpop.permute.xlu0 %11839
    %11841 = vset.pattern.permute.xlu0 0
    %11842 = vperm.xlu0 %11841, %v11215
    %v11843 = vpop.permute.xlu0 %11842
    %11844 = vset.pattern.permute.xlu0 0
    %11845 = vperm.xlu0 %11844, %v11264
    %v11846 = vpop.permute.xlu0 %11845
    %11847 = vset.pattern.permute.xlu0 0
    %11848 = vperm.xlu0 %11847, %v11313
    %v11849 = vpop.permute.xlu0 %11848
    %11850 = vset.pattern.permute.xlu0 0
    %11851 = vperm.xlu0 %11850, %v11362
    %v11852 = vpop.permute.xlu0 %11851
    %11853 = vset.pattern.permute.xlu0 0
    %11854 = vperm.xlu0 %11853, %v11411
    %v11855 = vpop.permute.xlu0 %11854
    %11856 = vset.pattern.permute.xlu0 0
    %11857 = vperm.xlu0 %11856, %v11460
    %v11858 = vpop.permute.xlu0 %11857
    %11859 = vset.pattern.permute.xlu0 0
    %11860 = vperm.xlu0 %11859, %v11483
    %v11861 = vpop.permute.xlu0 %11860
    %v11862 = vlaneseq
    %v11863 = vand.u32 %v11862, 127
    %v11864 = vlaneseq
    %v11865 = vshrl.u32 %v11864, 7
    %v11866 = vsub.s32 %v11863, %v11865
    %v11867 = vrot.slane %v11486, %v11866
    %v11868 = vadd.s32 %v11863, 4294967288
    %v11869 = vlaneseq
    %v11870 = vshrl.u32 %v11869, 7
    %v11871 = vsub.s32 %v11868, %v11870
    %v11872 = vrot.slane %v11489, %v11871
    %vm11873 = vcmask 130112
    %v11874 = vsel %vm11873, %v11872, %v11867
    %v11875 = vadd.s32 %v11863, 4294967280
    %v11876 = vlaneseq
    %v11877 = vshrl.u32 %v11876, 7
    %v11878 = vsub.s32 %v11875, %v11877
    %v11879 = vrot.slane %v11492, %v11878
    %vm11880 = vcmask 195712
    %v11881 = vsel %vm11880, %v11879, %v11874
    %v11882 = vadd.s32 %v11863, 4294967272
    %v11883 = vlaneseq
    %v11884 = vshrl.u32 %v11883, 7
    %v11885 = vsub.s32 %v11882, %v11884
    %v11886 = vrot.slane %v11495, %v11885
    %vm11887 = vcmask 261312
    %v11888 = vsel %vm11887, %v11886, %v11881
    %v11889 = vadd.s32 %v11863, 4294967264
    %v11890 = vlaneseq
    %v11891 = vshrl.u32 %v11890, 7
    %v11892 = vsub.s32 %v11889, %v11891
    %v11893 = vrot.slane %v11498, %v11892
    %vm11894 = vcmask 326912
    %v11895 = vsel %vm11894, %v11893, %v11888
    %v11896 = vadd.s32 %v11863, 4294967256
    %v11897 = vlaneseq
    %v11898 = vshrl.u32 %v11897, 7
    %v11899 = vsub.s32 %v11896, %v11898
    %v11900 = vrot.slane %v11501, %v11899
    %vm11901 = vcmask 392512
    %v11902 = vsel %vm11901, %v11900, %v11895
    %v11903 = vadd.s32 %v11863, 4294967248
    %v11904 = vlaneseq
    %v11905 = vshrl.u32 %v11904, 7
    %v11906 = vsub.s32 %v11903, %v11905
    %v11907 = vrot.slane %v11504, %v11906
    %vm11908 = vcmask 458112
    %v11909 = vsel %vm11908, %v11907, %v11902
    %v11910 = vadd.s32 %v11863, 4294967240
    %v11911 = vlaneseq
    %v11912 = vshrl.u32 %v11911, 7
    %v11913 = vsub.s32 %v11910, %v11912
    %v11914 = vrot.slane %v11507, %v11913
    %vm11915 = vcmask 523712
    %v11916 = vsel %vm11915, %v11914, %v11909
    %v11917 = vadd.s32 %v11863, 4294967232
    %v11918 = vlaneseq
    %v11919 = vshrl.u32 %v11918, 7
    %v11920 = vsub.s32 %v11917, %v11919
    %v11921 = vrot.slane %v11510, %v11920
    %vm11922 = vcmask 589312
    %v11923 = vsel %vm11922, %v11921, %v11916
    %v11924 = vadd.s32 %v11863, 4294967224
    %v11925 = vlaneseq
    %v11926 = vshrl.u32 %v11925, 7
    %v11927 = vsub.s32 %v11924, %v11926
    %v11928 = vrot.slane %v11513, %v11927
    %vm11929 = vcmask 654912
    %v11930 = vsel %vm11929, %v11928, %v11923
    %v11931 = vadd.s32 %v11863, 4294967216
    %v11932 = vlaneseq
    %v11933 = vshrl.u32 %v11932, 7
    %v11934 = vsub.s32 %v11931, %v11933
    %v11935 = vrot.slane %v11516, %v11934
    %vm11936 = vcmask 720512
    %v11937 = vsel %vm11936, %v11935, %v11930
    %v11938 = vadd.s32 %v11863, 4294967208
    %v11939 = vlaneseq
    %v11940 = vshrl.u32 %v11939, 7
    %v11941 = vsub.s32 %v11938, %v11940
    %v11942 = vrot.slane %v11519, %v11941
    %vm11943 = vcmask 786112
    %v11944 = vsel %vm11943, %v11942, %v11937
    %v11945 = vadd.s32 %v11863, 4294967200
    %v11946 = vlaneseq
    %v11947 = vshrl.u32 %v11946, 7
    %v11948 = vsub.s32 %v11945, %v11947
    %v11949 = vrot.slane %v11522, %v11948
    %vm11950 = vcmask 851712
    %v11951 = vsel %vm11950, %v11949, %v11944
    %v11952 = vadd.s32 %v11863, 4294967192
    %v11953 = vlaneseq
    %v11954 = vshrl.u32 %v11953, 7
    %v11955 = vsub.s32 %v11952, %v11954
    %v11956 = vrot.slane %v11525, %v11955
    %vm11957 = vcmask 917312
    %v11958 = vsel %vm11957, %v11956, %v11951
    %v11959 = vadd.s32 %v11863, 4294967184
    %v11960 = vlaneseq
    %v11961 = vshrl.u32 %v11960, 7
    %v11962 = vsub.s32 %v11959, %v11961
    %v11963 = vrot.slane %v11528, %v11962
    %vm11964 = vcmask 982912
    %v11965 = vsel %vm11964, %v11963, %v11958
    %v11966 = vadd.s32 %v11863, 4294967176
    %v11967 = vlaneseq
    %v11968 = vshrl.u32 %v11967, 7
    %v11969 = vsub.s32 %v11966, %v11968
    %v11970 = vrot.slane %v11531, %v11969
    %vm11971 = vcmask 1048512
    %v11972 = vsel %vm11971, %v11970, %v11965
    %v11973 = vlaneseq
    %v11974 = vshrl.u32 %v11973, 7
    %v11975 = vsub.s32 %v11863, %v11974
    %v11976 = vrot.slane %v11534, %v11975
    %v11977 = vlaneseq
    %v11978 = vshrl.u32 %v11977, 7
    %v11979 = vsub.s32 %v11868, %v11978
    %v11980 = vrot.slane %v11537, %v11979
    %v11981 = vsel %vm11873, %v11980, %v11976
    %v11982 = vlaneseq
    %v11983 = vshrl.u32 %v11982, 7
    %v11984 = vsub.s32 %v11875, %v11983
    %v11985 = vrot.slane %v11540, %v11984
    %v11986 = vsel %vm11880, %v11985, %v11981
    %v11987 = vlaneseq
    %v11988 = vshrl.u32 %v11987, 7
    %v11989 = vsub.s32 %v11882, %v11988
    %v11990 = vrot.slane %v11543, %v11989
    %v11991 = vsel %vm11887, %v11990, %v11986
    %v11992 = vlaneseq
    %v11993 = vshrl.u32 %v11992, 7
    %v11994 = vsub.s32 %v11889, %v11993
    %v11995 = vrot.slane %v11546, %v11994
    %v11996 = vsel %vm11894, %v11995, %v11991
    %v11997 = vlaneseq
    %v11998 = vshrl.u32 %v11997, 7
    %v11999 = vsub.s32 %v11896, %v11998
    %v12000 = vrot.slane %v11549, %v11999
    %v12001 = vsel %vm11901, %v12000, %v11996
    %v12002 = vlaneseq
    %v12003 = vshrl.u32 %v12002, 7
    %v12004 = vsub.s32 %v11903, %v12003
    %v12005 = vrot.slane %v11552, %v12004
    %v12006 = vsel %vm11908, %v12005, %v12001
    %v12007 = vlaneseq
    %v12008 = vshrl.u32 %v12007, 7
    %v12009 = vsub.s32 %v11910, %v12008
    %v12010 = vrot.slane %v11555, %v12009
    %v12011 = vsel %vm11915, %v12010, %v12006
    %v12012 = vlaneseq
    %v12013 = vshrl.u32 %v12012, 7
    %v12014 = vsub.s32 %v11917, %v12013
    %v12015 = vrot.slane %v11558, %v12014
    %v12016 = vsel %vm11922, %v12015, %v12011
    %v12017 = vlaneseq
    %v12018 = vshrl.u32 %v12017, 7
    %v12019 = vsub.s32 %v11924, %v12018
    %v12020 = vrot.slane %v11561, %v12019
    %v12021 = vsel %vm11929, %v12020, %v12016
    %v12022 = vlaneseq
    %v12023 = vshrl.u32 %v12022, 7
    %v12024 = vsub.s32 %v11931, %v12023
    %v12025 = vrot.slane %v11564, %v12024
    %v12026 = vsel %vm11936, %v12025, %v12021
    %v12027 = vlaneseq
    %v12028 = vshrl.u32 %v12027, 7
    %v12029 = vsub.s32 %v11938, %v12028
    %v12030 = vrot.slane %v11567, %v12029
    %v12031 = vsel %vm11943, %v12030, %v12026
    %v12032 = vlaneseq
    %v12033 = vshrl.u32 %v12032, 7
    %v12034 = vsub.s32 %v11945, %v12033
    %v12035 = vrot.slane %v11570, %v12034
    %v12036 = vsel %vm11950, %v12035, %v12031
    %v12037 = vlaneseq
    %v12038 = vshrl.u32 %v12037, 7
    %v12039 = vsub.s32 %v11952, %v12038
    %v12040 = vrot.slane %v11573, %v12039
    %v12041 = vsel %vm11957, %v12040, %v12036
    %v12042 = vlaneseq
    %v12043 = vshrl.u32 %v12042, 7
    %v12044 = vsub.s32 %v11959, %v12043
    %v12045 = vrot.slane %v11576, %v12044
    %v12046 = vsel %vm11964, %v12045, %v12041
    %v12047 = vlaneseq
    %v12048 = vshrl.u32 %v12047, 7
    %v12049 = vsub.s32 %v11966, %v12048
    %v12050 = vrot.slane %v11579, %v12049
    %v12051 = vsel %vm11971, %v12050, %v12046
    %v12052 = vlaneseq
    %v12053 = vshrl.u32 %v12052, 7
    %v12054 = vsub.s32 %v11863, %v12053
    %v12055 = vrot.slane %v11582, %v12054
    %v12056 = vlaneseq
    %v12057 = vshrl.u32 %v12056, 7
    %v12058 = vsub.s32 %v11868, %v12057
    %v12059 = vrot.slane %v11585, %v12058
    %v12060 = vsel %vm11873, %v12059, %v12055
    %v12061 = vlaneseq
    %v12062 = vshrl.u32 %v12061, 7
    %v12063 = vsub.s32 %v11875, %v12062
    %v12064 = vrot.slane %v11588, %v12063
    %v12065 = vsel %vm11880, %v12064, %v12060
    %v12066 = vlaneseq
    %v12067 = vshrl.u32 %v12066, 7
    %v12068 = vsub.s32 %v11882, %v12067
    %v12069 = vrot.slane %v11591, %v12068
    %v12070 = vsel %vm11887, %v12069, %v12065
    %v12071 = vlaneseq
    %v12072 = vshrl.u32 %v12071, 7
    %v12073 = vsub.s32 %v11889, %v12072
    %v12074 = vrot.slane %v11594, %v12073
    %v12075 = vsel %vm11894, %v12074, %v12070
    %v12076 = vlaneseq
    %v12077 = vshrl.u32 %v12076, 7
    %v12078 = vsub.s32 %v11896, %v12077
    %v12079 = vrot.slane %v11597, %v12078
    %v12080 = vsel %vm11901, %v12079, %v12075
    %v12081 = vlaneseq
    %v12082 = vshrl.u32 %v12081, 7
    %v12083 = vsub.s32 %v11903, %v12082
    %v12084 = vrot.slane %v11600, %v12083
    %v12085 = vsel %vm11908, %v12084, %v12080
    %v12086 = vlaneseq
    %v12087 = vshrl.u32 %v12086, 7
    %v12088 = vsub.s32 %v11910, %v12087
    %v12089 = vrot.slane %v11603, %v12088
    %v12090 = vsel %vm11915, %v12089, %v12085
    %v12091 = vlaneseq
    %v12092 = vshrl.u32 %v12091, 7
    %v12093 = vsub.s32 %v11917, %v12092
    %v12094 = vrot.slane %v11606, %v12093
    %v12095 = vsel %vm11922, %v12094, %v12090
    %v12096 = vlaneseq
    %v12097 = vshrl.u32 %v12096, 7
    %v12098 = vsub.s32 %v11924, %v12097
    %v12099 = vrot.slane %v11609, %v12098
    %v12100 = vsel %vm11929, %v12099, %v12095
    %v12101 = vlaneseq
    %v12102 = vshrl.u32 %v12101, 7
    %v12103 = vsub.s32 %v11931, %v12102
    %v12104 = vrot.slane %v11612, %v12103
    %v12105 = vsel %vm11936, %v12104, %v12100
    %v12106 = vlaneseq
    %v12107 = vshrl.u32 %v12106, 7
    %v12108 = vsub.s32 %v11938, %v12107
    %v12109 = vrot.slane %v11615, %v12108
    %v12110 = vsel %vm11943, %v12109, %v12105
    %v12111 = vlaneseq
    %v12112 = vshrl.u32 %v12111, 7
    %v12113 = vsub.s32 %v11945, %v12112
    %v12114 = vrot.slane %v11618, %v12113
    %v12115 = vsel %vm11950, %v12114, %v12110
    %v12116 = vlaneseq
    %v12117 = vshrl.u32 %v12116, 7
    %v12118 = vsub.s32 %v11952, %v12117
    %v12119 = vrot.slane %v11621, %v12118
    %v12120 = vsel %vm11957, %v12119, %v12115
    %v12121 = vlaneseq
    %v12122 = vshrl.u32 %v12121, 7
    %v12123 = vsub.s32 %v11959, %v12122
    %v12124 = vrot.slane %v11624, %v12123
    %v12125 = vsel %vm11964, %v12124, %v12120
    %v12126 = vlaneseq
    %v12127 = vshrl.u32 %v12126, 7
    %v12128 = vsub.s32 %v11966, %v12127
    %v12129 = vrot.slane %v11627, %v12128
    %v12130 = vsel %vm11971, %v12129, %v12125
    %v12131 = vlaneseq
    %v12132 = vshrl.u32 %v12131, 7
    %v12133 = vsub.s32 %v11863, %v12132
    %v12134 = vrot.slane %v11630, %v12133
    %v12135 = vlaneseq
    %v12136 = vshrl.u32 %v12135, 7
    %v12137 = vsub.s32 %v11868, %v12136
    %v12138 = vrot.slane %v11633, %v12137
    %v12139 = vsel %vm11873, %v12138, %v12134
    %v12140 = vlaneseq
    %v12141 = vshrl.u32 %v12140, 7
    %v12142 = vsub.s32 %v11875, %v12141
    %v12143 = vrot.slane %v11636, %v12142
    %v12144 = vsel %vm11880, %v12143, %v12139
    %v12145 = vlaneseq
    %v12146 = vshrl.u32 %v12145, 7
    %v12147 = vsub.s32 %v11882, %v12146
    %v12148 = vrot.slane %v11639, %v12147
    %v12149 = vsel %vm11887, %v12148, %v12144
    %v12150 = vlaneseq
    %v12151 = vshrl.u32 %v12150, 7
    %v12152 = vsub.s32 %v11889, %v12151
    %v12153 = vrot.slane %v11642, %v12152
    %v12154 = vsel %vm11894, %v12153, %v12149
    %v12155 = vlaneseq
    %v12156 = vshrl.u32 %v12155, 7
    %v12157 = vsub.s32 %v11896, %v12156
    %v12158 = vrot.slane %v11645, %v12157
    %v12159 = vsel %vm11901, %v12158, %v12154
    %v12160 = vlaneseq
    %v12161 = vshrl.u32 %v12160, 7
    %v12162 = vsub.s32 %v11903, %v12161
    %v12163 = vrot.slane %v11648, %v12162
    %v12164 = vsel %vm11908, %v12163, %v12159
    %v12165 = vlaneseq
    %v12166 = vshrl.u32 %v12165, 7
    %v12167 = vsub.s32 %v11910, %v12166
    %v12168 = vrot.slane %v11651, %v12167
    %v12169 = vsel %vm11915, %v12168, %v12164
    %v12170 = vlaneseq
    %v12171 = vshrl.u32 %v12170, 7
    %v12172 = vsub.s32 %v11917, %v12171
    %v12173 = vrot.slane %v11654, %v12172
    %v12174 = vsel %vm11922, %v12173, %v12169
    %v12175 = vlaneseq
    %v12176 = vshrl.u32 %v12175, 7
    %v12177 = vsub.s32 %v11924, %v12176
    %v12178 = vrot.slane %v11657, %v12177
    %v12179 = vsel %vm11929, %v12178, %v12174
    %v12180 = vlaneseq
    %v12181 = vshrl.u32 %v12180, 7
    %v12182 = vsub.s32 %v11931, %v12181
    %v12183 = vrot.slane %v11660, %v12182
    %v12184 = vsel %vm11936, %v12183, %v12179
    %v12185 = vlaneseq
    %v12186 = vshrl.u32 %v12185, 7
    %v12187 = vsub.s32 %v11938, %v12186
    %v12188 = vrot.slane %v11663, %v12187
    %v12189 = vsel %vm11943, %v12188, %v12184
    %v12190 = vlaneseq
    %v12191 = vshrl.u32 %v12190, 7
    %v12192 = vsub.s32 %v11945, %v12191
    %v12193 = vrot.slane %v11666, %v12192
    %v12194 = vsel %vm11950, %v12193, %v12189
    %v12195 = vlaneseq
    %v12196 = vshrl.u32 %v12195, 7
    %v12197 = vsub.s32 %v11952, %v12196
    %v12198 = vrot.slane %v11669, %v12197
    %v12199 = vsel %vm11957, %v12198, %v12194
    %v12200 = vlaneseq
    %v12201 = vshrl.u32 %v12200, 7
    %v12202 = vsub.s32 %v11959, %v12201
    %v12203 = vrot.slane %v11672, %v12202
    %v12204 = vsel %vm11964, %v12203, %v12199
    %v12205 = vlaneseq
    %v12206 = vshrl.u32 %v12205, 7
    %v12207 = vsub.s32 %v11966, %v12206
    %v12208 = vrot.slane %v11675, %v12207
    %v12209 = vsel %vm11971, %v12208, %v12204
    %v12210 = vlaneseq
    %v12211 = vshrl.u32 %v12210, 7
    %v12212 = vsub.s32 %v11863, %v12211
    %v12213 = vrot.slane %v11678, %v12212
    %v12214 = vlaneseq
    %v12215 = vshrl.u32 %v12214, 7
    %v12216 = vsub.s32 %v11868, %v12215
    %v12217 = vrot.slane %v11681, %v12216
    %v12218 = vsel %vm11873, %v12217, %v12213
    %v12219 = vlaneseq
    %v12220 = vshrl.u32 %v12219, 7
    %v12221 = vsub.s32 %v11875, %v12220
    %v12222 = vrot.slane %v11684, %v12221
    %v12223 = vsel %vm11880, %v12222, %v12218
    %v12224 = vlaneseq
    %v12225 = vshrl.u32 %v12224, 7
    %v12226 = vsub.s32 %v11882, %v12225
    %v12227 = vrot.slane %v11687, %v12226
    %v12228 = vsel %vm11887, %v12227, %v12223
    %v12229 = vlaneseq
    %v12230 = vshrl.u32 %v12229, 7
    %v12231 = vsub.s32 %v11889, %v12230
    %v12232 = vrot.slane %v11690, %v12231
    %v12233 = vsel %vm11894, %v12232, %v12228
    %v12234 = vlaneseq
    %v12235 = vshrl.u32 %v12234, 7
    %v12236 = vsub.s32 %v11896, %v12235
    %v12237 = vrot.slane %v11693, %v12236
    %v12238 = vsel %vm11901, %v12237, %v12233
    %v12239 = vlaneseq
    %v12240 = vshrl.u32 %v12239, 7
    %v12241 = vsub.s32 %v11903, %v12240
    %v12242 = vrot.slane %v11696, %v12241
    %v12243 = vsel %vm11908, %v12242, %v12238
    %v12244 = vlaneseq
    %v12245 = vshrl.u32 %v12244, 7
    %v12246 = vsub.s32 %v11910, %v12245
    %v12247 = vrot.slane %v11699, %v12246
    %v12248 = vsel %vm11915, %v12247, %v12243
    %v12249 = vlaneseq
    %v12250 = vshrl.u32 %v12249, 7
    %v12251 = vsub.s32 %v11917, %v12250
    %v12252 = vrot.slane %v11702, %v12251
    %v12253 = vsel %vm11922, %v12252, %v12248
    %v12254 = vlaneseq
    %v12255 = vshrl.u32 %v12254, 7
    %v12256 = vsub.s32 %v11924, %v12255
    %v12257 = vrot.slane %v11705, %v12256
    %v12258 = vsel %vm11929, %v12257, %v12253
    %v12259 = vlaneseq
    %v12260 = vshrl.u32 %v12259, 7
    %v12261 = vsub.s32 %v11931, %v12260
    %v12262 = vrot.slane %v11708, %v12261
    %v12263 = vsel %vm11936, %v12262, %v12258
    %v12264 = vlaneseq
    %v12265 = vshrl.u32 %v12264, 7
    %v12266 = vsub.s32 %v11938, %v12265
    %v12267 = vrot.slane %v11711, %v12266
    %v12268 = vsel %vm11943, %v12267, %v12263
    %v12269 = vlaneseq
    %v12270 = vshrl.u32 %v12269, 7
    %v12271 = vsub.s32 %v11945, %v12270
    %v12272 = vrot.slane %v11714, %v12271
    %v12273 = vsel %vm11950, %v12272, %v12268
    %v12274 = vlaneseq
    %v12275 = vshrl.u32 %v12274, 7
    %v12276 = vsub.s32 %v11952, %v12275
    %v12277 = vrot.slane %v11717, %v12276
    %v12278 = vsel %vm11957, %v12277, %v12273
    %v12279 = vlaneseq
    %v12280 = vshrl.u32 %v12279, 7
    %v12281 = vsub.s32 %v11959, %v12280
    %v12282 = vrot.slane %v11720, %v12281
    %v12283 = vsel %vm11964, %v12282, %v12278
    %v12284 = vlaneseq
    %v12285 = vshrl.u32 %v12284, 7
    %v12286 = vsub.s32 %v11966, %v12285
    %v12287 = vrot.slane %v11723, %v12286
    %v12288 = vsel %vm11971, %v12287, %v12283
    %v12289 = vlaneseq
    %v12290 = vshrl.u32 %v12289, 7
    %v12291 = vsub.s32 %v11863, %v12290
    %v12292 = vrot.slane %v11726, %v12291
    %v12293 = vlaneseq
    %v12294 = vshrl.u32 %v12293, 7
    %v12295 = vsub.s32 %v11868, %v12294
    %v12296 = vrot.slane %v11729, %v12295
    %v12297 = vsel %vm11873, %v12296, %v12292
    %v12298 = vlaneseq
    %v12299 = vshrl.u32 %v12298, 7
    %v12300 = vsub.s32 %v11875, %v12299
    %v12301 = vrot.slane %v11732, %v12300
    %v12302 = vsel %vm11880, %v12301, %v12297
    %v12303 = vlaneseq
    %v12304 = vshrl.u32 %v12303, 7
    %v12305 = vsub.s32 %v11882, %v12304
    %v12306 = vrot.slane %v11735, %v12305
    %v12307 = vsel %vm11887, %v12306, %v12302
    %v12308 = vlaneseq
    %v12309 = vshrl.u32 %v12308, 7
    %v12310 = vsub.s32 %v11889, %v12309
    %v12311 = vrot.slane %v11738, %v12310
    %v12312 = vsel %vm11894, %v12311, %v12307
    %v12313 = vlaneseq
    %v12314 = vshrl.u32 %v12313, 7
    %v12315 = vsub.s32 %v11896, %v12314
    %v12316 = vrot.slane %v11741, %v12315
    %v12317 = vsel %vm11901, %v12316, %v12312
    %v12318 = vlaneseq
    %v12319 = vshrl.u32 %v12318, 7
    %v12320 = vsub.s32 %v11903, %v12319
    %v12321 = vrot.slane %v11744, %v12320
    %v12322 = vsel %vm11908, %v12321, %v12317
    %v12323 = vlaneseq
    %v12324 = vshrl.u32 %v12323, 7
    %v12325 = vsub.s32 %v11910, %v12324
    %v12326 = vrot.slane %v11747, %v12325
    %v12327 = vsel %vm11915, %v12326, %v12322
    %v12328 = vlaneseq
    %v12329 = vshrl.u32 %v12328, 7
    %v12330 = vsub.s32 %v11917, %v12329
    %v12331 = vrot.slane %v11750, %v12330
    %v12332 = vsel %vm11922, %v12331, %v12327
    %v12333 = vlaneseq
    %v12334 = vshrl.u32 %v12333, 7
    %v12335 = vsub.s32 %v11924, %v12334
    %v12336 = vrot.slane %v11753, %v12335
    %v12337 = vsel %vm11929, %v12336, %v12332
    %v12338 = vlaneseq
    %v12339 = vshrl.u32 %v12338, 7
    %v12340 = vsub.s32 %v11931, %v12339
    %v12341 = vrot.slane %v11756, %v12340
    %v12342 = vsel %vm11936, %v12341, %v12337
    %v12343 = vlaneseq
    %v12344 = vshrl.u32 %v12343, 7
    %v12345 = vsub.s32 %v11938, %v12344
    %v12346 = vrot.slane %v11759, %v12345
    %v12347 = vsel %vm11943, %v12346, %v12342
    %v12348 = vlaneseq
    %v12349 = vshrl.u32 %v12348, 7
    %v12350 = vsub.s32 %v11945, %v12349
    %v12351 = vrot.slane %v11762, %v12350
    %v12352 = vsel %vm11950, %v12351, %v12347
    %v12353 = vlaneseq
    %v12354 = vshrl.u32 %v12353, 7
    %v12355 = vsub.s32 %v11952, %v12354
    %v12356 = vrot.slane %v11765, %v12355
    %v12357 = vsel %vm11957, %v12356, %v12352
    %v12358 = vlaneseq
    %v12359 = vshrl.u32 %v12358, 7
    %v12360 = vsub.s32 %v11959, %v12359
    %v12361 = vrot.slane %v11768, %v12360
    %v12362 = vsel %vm11964, %v12361, %v12357
    %v12363 = vlaneseq
    %v12364 = vshrl.u32 %v12363, 7
    %v12365 = vsub.s32 %v11966, %v12364
    %v12366 = vrot.slane %v11771, %v12365
    %v12367 = vsel %vm11971, %v12366, %v12362
    %v12368 = vlaneseq
    %v12369 = vshrl.u32 %v12368, 7
    %v12370 = vsub.s32 %v11863, %v12369
    %v12371 = vrot.slane %v11774, %v12370
    %v12372 = vlaneseq
    %v12373 = vshrl.u32 %v12372, 7
    %v12374 = vsub.s32 %v11868, %v12373
    %v12375 = vrot.slane %v11777, %v12374
    %v12376 = vsel %vm11873, %v12375, %v12371
    %v12377 = vlaneseq
    %v12378 = vshrl.u32 %v12377, 7
    %v12379 = vsub.s32 %v11875, %v12378
    %v12380 = vrot.slane %v11780, %v12379
    %v12381 = vsel %vm11880, %v12380, %v12376
    %v12382 = vlaneseq
    %v12383 = vshrl.u32 %v12382, 7
    %v12384 = vsub.s32 %v11882, %v12383
    %v12385 = vrot.slane %v11783, %v12384
    %v12386 = vsel %vm11887, %v12385, %v12381
    %v12387 = vlaneseq
    %v12388 = vshrl.u32 %v12387, 7
    %v12389 = vsub.s32 %v11889, %v12388
    %v12390 = vrot.slane %v11786, %v12389
    %v12391 = vsel %vm11894, %v12390, %v12386
    %v12392 = vlaneseq
    %v12393 = vshrl.u32 %v12392, 7
    %v12394 = vsub.s32 %v11896, %v12393
    %v12395 = vrot.slane %v11789, %v12394
    %v12396 = vsel %vm11901, %v12395, %v12391
    %v12397 = vlaneseq
    %v12398 = vshrl.u32 %v12397, 7
    %v12399 = vsub.s32 %v11903, %v12398
    %v12400 = vrot.slane %v11792, %v12399
    %v12401 = vsel %vm11908, %v12400, %v12396
    %v12402 = vlaneseq
    %v12403 = vshrl.u32 %v12402, 7
    %v12404 = vsub.s32 %v11910, %v12403
    %v12405 = vrot.slane %v11795, %v12404
    %v12406 = vsel %vm11915, %v12405, %v12401
    %v12407 = vlaneseq
    %v12408 = vshrl.u32 %v12407, 7
    %v12409 = vsub.s32 %v11917, %v12408
    %v12410 = vrot.slane %v11798, %v12409
    %v12411 = vsel %vm11922, %v12410, %v12406
    %v12412 = vlaneseq
    %v12413 = vshrl.u32 %v12412, 7
    %v12414 = vsub.s32 %v11924, %v12413
    %v12415 = vrot.slane %v11801, %v12414
    %v12416 = vsel %vm11929, %v12415, %v12411
    %v12417 = vlaneseq
    %v12418 = vshrl.u32 %v12417, 7
    %v12419 = vsub.s32 %v11931, %v12418
    %v12420 = vrot.slane %v11804, %v12419
    %v12421 = vsel %vm11936, %v12420, %v12416
    %v12422 = vlaneseq
    %v12423 = vshrl.u32 %v12422, 7
    %v12424 = vsub.s32 %v11938, %v12423
    %v12425 = vrot.slane %v11807, %v12424
    %v12426 = vsel %vm11943, %v12425, %v12421
    %v12427 = vlaneseq
    %v12428 = vshrl.u32 %v12427, 7
    %v12429 = vsub.s32 %v11945, %v12428
    %v12430 = vrot.slane %v11810, %v12429
    %v12431 = vsel %vm11950, %v12430, %v12426
    %v12432 = vlaneseq
    %v12433 = vshrl.u32 %v12432, 7
    %v12434 = vsub.s32 %v11952, %v12433
    %v12435 = vrot.slane %v11813, %v12434
    %v12436 = vsel %vm11957, %v12435, %v12431
    %v12437 = vlaneseq
    %v12438 = vshrl.u32 %v12437, 7
    %v12439 = vsub.s32 %v11959, %v12438
    %v12440 = vrot.slane %v11816, %v12439
    %v12441 = vsel %vm11964, %v12440, %v12436
    %v12442 = vlaneseq
    %v12443 = vshrl.u32 %v12442, 7
    %v12444 = vsub.s32 %v11966, %v12443
    %v12445 = vrot.slane %v11819, %v12444
    %v12446 = vsel %vm11971, %v12445, %v12441
    %v12447 = vlaneseq
    %v12448 = vshrl.u32 %v12447, 7
    %v12449 = vsub.s32 %v11863, %v12448
    %v12450 = vrot.slane %v11822, %v12449
    %v12451 = vlaneseq
    %v12452 = vshrl.u32 %v12451, 7
    %v12453 = vsub.s32 %v11868, %v12452
    %v12454 = vrot.slane %v11825, %v12453
    %v12455 = vsel %vm11873, %v12454, %v12450
    %v12456 = vlaneseq
    %v12457 = vshrl.u32 %v12456, 7
    %v12458 = vsub.s32 %v11875, %v12457
    %v12459 = vrot.slane %v11828, %v12458
    %v12460 = vsel %vm11880, %v12459, %v12455
    %v12461 = vlaneseq
    %v12462 = vshrl.u32 %v12461, 7
    %v12463 = vsub.s32 %v11882, %v12462
    %v12464 = vrot.slane %v11831, %v12463
    %v12465 = vsel %vm11887, %v12464, %v12460
    %v12466 = vlaneseq
    %v12467 = vshrl.u32 %v12466, 7
    %v12468 = vsub.s32 %v11889, %v12467
    %v12469 = vrot.slane %v11834, %v12468
    %v12470 = vsel %vm11894, %v12469, %v12465
    %v12471 = vlaneseq
    %v12472 = vshrl.u32 %v12471, 7
    %v12473 = vsub.s32 %v11896, %v12472
    %v12474 = vrot.slane %v11837, %v12473
    %v12475 = vsel %vm11901, %v12474, %v12470
    %v12476 = vlaneseq
    %v12477 = vshrl.u32 %v12476, 7
    %v12478 = vsub.s32 %v11903, %v12477
    %v12479 = vrot.slane %v11840, %v12478
    %v12480 = vsel %vm11908, %v12479, %v12475
    %v12481 = vlaneseq
    %v12482 = vshrl.u32 %v12481, 7
    %v12483 = vsub.s32 %v11910, %v12482
    %v12484 = vrot.slane %v11843, %v12483
    %v12485 = vsel %vm11915, %v12484, %v12480
    %v12486 = vlaneseq
    %v12487 = vshrl.u32 %v12486, 7
    %v12488 = vsub.s32 %v11917, %v12487
    %v12489 = vrot.slane %v11846, %v12488
    %v12490 = vsel %vm11922, %v12489, %v12485
    %v12491 = vlaneseq
    %v12492 = vshrl.u32 %v12491, 7
    %v12493 = vsub.s32 %v11924, %v12492
    %v12494 = vrot.slane %v11849, %v12493
    %v12495 = vsel %vm11929, %v12494, %v12490
    %v12496 = vlaneseq
    %v12497 = vshrl.u32 %v12496, 7
    %v12498 = vsub.s32 %v11931, %v12497
    %v12499 = vrot.slane %v11852, %v12498
    %v12500 = vsel %vm11936, %v12499, %v12495
    %v12501 = vlaneseq
    %v12502 = vshrl.u32 %v12501, 7
    %v12503 = vsub.s32 %v11938, %v12502
    %v12504 = vrot.slane %v11855, %v12503
    %v12505 = vsel %vm11943, %v12504, %v12500
    %v12506 = vlaneseq
    %v12507 = vshrl.u32 %v12506, 7
    %v12508 = vsub.s32 %v11945, %v12507
    %v12509 = vrot.slane %v11858, %v12508
    %v12510 = vsel %vm11950, %v12509, %v12505
    %v12511 = vlaneseq
    %v12512 = vshrl.u32 %v12511, 7
    %v12513 = vsub.s32 %v11952, %v12512
    %v12514 = vrot.slane %v11861, %v12513
    %v12515 = vsel %vm11957, %v12514, %v12510
    %v12516 = vcombine.low %v11972, %v12051
    %v12517 = vcombine.low %v12130, %v12209
    %v12518 = vcombine.low %v12288, %v12367
    %v12519 = vcombine.low %v12446, %v12515
    %v12521 = vunpack.c.l.s4 1966171168
    %v12522 = vunpack.c.0.s8 %v12521
    %v12523 = vlaneseq
    %v12524 = vshrl.u32 %v12523, 7
    %v12525 = vsub.s32 %v12522, %v12524
    %v12526 = vrot.slane %v12516, %v12525
    %v12528 = vunpack.c.l.s4 1966171168
    %v12529 = vunpack.c.0.s8 %v12528
    %v12530 = vlaneseq
    %v12531 = vshrl.u32 %v12530, 7
    %v12532 = vsub.s32 %v12529, %v12531
    %v12533 = vrot.slane %v12517, %v12532
    %v12535 = vunpack.c.l.s4 1966171168
    %v12536 = vunpack.c.0.s8 %v12535
    %v12537 = vlaneseq
    %v12538 = vshrl.u32 %v12537, 7
    %v12539 = vsub.s32 %v12536, %v12538
    %v12540 = vrot.slane %v12518, %v12539
    %v12542 = vunpack.c.l.s4 1966171168
    %v12543 = vunpack.c.0.s8 %v12542
    %v12544 = vlaneseq
    %v12545 = vshrl.u32 %v12544, 7
    %v12546 = vsub.s32 %v12543, %v12545
    %v12547 = vrot.slane %v12519, %v12546
    %v12548 = vcombine.low %v12526, %v12533
    %v12549 = vcombine.low %v12540, %v12547
    %v12551 = vunpack.c.l.s4 1966171168
    %v12552 = vunpack.c.0.s8 %v12551
    %v12553 = vlaneseq
    %v12554 = vshrl.u32 %v12553, 7
    %v12555 = vsub.s32 %v12552, %v12554
    %v12556 = vrot.slane %v12548, %v12555
    %v12558 = vunpack.c.l.s4 1966171168
    %v12559 = vunpack.c.0.s8 %v12558
    %v12560 = vlaneseq
    %v12561 = vshrl.u32 %v12560, 7
    %v12562 = vsub.s32 %v12559, %v12561
    %v12563 = vrot.slane %v12549, %v12562
    %v12564 = vcombine.low %v12556, %v12563
    %v12566 = vlaneseq
    %vm12567 = vcmp.ge.s32.totalorder %v12566, 0
    %vm12568 = vcmp.lt.s32.totalorder %v12566, 1003
    %vm12569 = vmand %vm12567, %vm12568
    %12570 = vst.msk [vmem:[#allocation9] sm:$0xff] %vm12569, %v12564
    // Predicated region
    $region30: #{tpu_custom_call.1} parent=1 // pred_check
      _
    $region31: #{tpu_custom_call.1} parent=1 // pred_check_branch
      %12572 = sbr.rel (0) target = $region33
    $region32: #{tpu_custom_call.1} parent=1 // pred_region
      %s12574 = ssub.s32 128, 128
      %12575 = vsyncadd [#allocation5], %s12574
      %s12577 = sshll.u32 [#allocation9], 4
      %s12578 = int_to_ptr.vmem [resolvable:$true] %s12577
      %12580 = dma.vmem_to_hbm [thread:$0]  %s12578, 128, %s4, [#allocation5]
    $region33: #{tpu_custom_call.1} parent=1 // pred_fallthru
      _
    // Predicated region
    $region34: #{tpu_custom_call.1} parent=1 // pred_check
      _
    $region35: #{tpu_custom_call.1} parent=1 // pred_check_branch
      %12582 = sbr.rel (0) target = $region37
    $region36: #{tpu_custom_call.1} parent=1 // pred_region
      %12583 = dma.done [#allocation5], 128
    $region37: #{tpu_custom_call.1} parent=1 // pred_fallthru
      _
    %12584 = vsyncpa [#allocation4], 1
    %12585 = vsyncpa [#allocation7], 1
    %12586 = vsyncpa [#allocation5], 1

</llo_original>
